<compile_context>
chip_gen: v6e
topology: v6e:2x2x1
jax: 0.10.0
libtpu: 0.0.40
codegen_flags: <defaults>
</compile_context>

<pallas_src>
import jax
import jax.numpy as jnp
from jax.experimental import pallas as pl
from jax.experimental.pallas import tpu as pltpu

_LANE = 128  # TPU lane width; im2col K is padded (only) up to a multiple of this.


def _ceil_to(x, m):
    return ((x + m - 1) // m) * m


def _pick_row_tile(H):
    """Largest divisor of H in [2, 32] (bounded VMEM band + enough grid steps
    for megacore/pipelining); falls back to H (single tile) if none exists."""
    target = min(32, max(2, H // 2))
    best = 0
    for d in range(2, target + 1):
        if H % d == 0:
            best = d
    return best if best >= 2 else H


def _conv3x3_layer(src_ref, patch_ref, w_ref, b_ref, dst_ref, dst_c0, *, relu):
    """3x3 SAME conv over a (M+2, W+2, Cs) halo-padded bf16 source buffer.

    Produces M = src_rows-2 rows, written to dst_ref[0:M, dst_c0:dst_c0+W, :].

    Per row-chunk (<= ~128 matmul rows live):
      * im2col patch built in the shared scratch; tap t=(dy*3+dx) packed
        densely at columns [t*Cs, (t+1)*Cs)  (de-padded K),
      * 3 contiguous per-dy source loads; dx shifts sliced from the value,
      * one bf16 MXU matmul with f32 accumulation,
      * f32 bias (+ReLU) epilogue, cast to dst dtype on store.
    """
    Mp2, Wp2, Cs = src_ref.shape
    M, W = Mp2 - 2, Wp2 - 2
    K, Co = w_ref.shape
    row_chunk = max(1, 128 // W)     # caps the live f32 accumulator at ~128 rows
    # Static unroll: with row tiling M <= TH+4 is small, so chunk count is tiny.
    for h0 in range(0, M, row_chunk):
        ch = min(row_chunk, M - h0)
        m = ch * W
        for dy in range(3):
            rows = src_ref[h0 + dy:h0 + dy + ch, :, :]          # (ch, W+2, Cs)
            for dx in range(3):
                t = dy * 3 + dx
                patch_ref[0:m, t * Cs:(t + 1) * Cs] = (
                    rows[:, dx:dx + W, :].reshape(m, Cs))
        acc = jnp.dot(patch_ref[0:m, 0:K], w_ref[...],
                      preferred_element_type=jnp.float32)
        acc = acc + b_ref[...]
        if relu:
            acc = jnp.maximum(acc, 0.0)
        dst_ref[h0:h0 + ch, dst_c0:dst_c0 + W, :] = (
            acc.reshape(ch, W, Co).astype(dst_ref.dtype))


def _fused_kernel(x_ref, w1_ref, b1_ref, w2_ref, b2_ref, w3_ref, b3_ref,
                  o_ref, p0_ref, p1_ref, p2_ref, patch_ref):
    # x_ref : (H, W, Cin)  full image (f32), same block across the tile axis
    # o_ref : (TH, W, out_ch) output row tile
    # p0/p1/p2 : bf16 halo-padded bands (TH+6 / TH+4 / TH+2 rows, W+2 cols)
    # patch_ref: (patch_rows, Kmax) bf16 shared im2col scratch
    TH, W, _ = o_ref.shape
    H = x_ref.shape[0]
    t = pl.program_id(1)
    last = pl.num_programs(1) - 1
    r0 = t * TH

    # --- per-step init: halo columns + patch pad lanes only (interiors are ---
    # --- fully overwritten; no whole-buffer memsets).  Done every step so  ---
    # --- correctness is independent of how "parallel" axes split on cores. ---
    patch_ref[...] = jnp.zeros_like(patch_ref)
    for ref in (p0_ref, p1_ref, p2_ref):
        zcol = jnp.zeros((ref.shape[0], ref.shape[2]), ref.dtype)
        ref[:, 0, :] = zcol
        ref[:, W + 1, :] = zcol

    # --- gather the TH+6 input rows this tile needs, casting to bf16 and   ---
    # --- zeroing rows outside the image (SAME-conv top/bottom padding).    ---
    for i in range(TH + 6):
        src = r0 - 3 + i
        valid = jnp.logical_and(src >= 0, src < H)
        row = x_ref[jnp.clip(src, 0, H - 1)]                    # (W, Cin) f32
        p0_ref[i, 1:W + 1, :] = jnp.where(valid, row, 0.0).astype(p0_ref.dtype)

    # --- conv1: p0 -> p1  (conv1 activations for image rows r0-2..r0+TH+1) ---
    _conv3x3_layer(p0_ref, patch_ref, w1_ref, b1_ref, p1_ref, 1, relu=True)

    # Rows of p1 that lie outside the image are SAME padding for conv2 -> 0.
    @pl.when(t == 0)
    def _():
        p1_ref[0:2, :, :] = jnp.zeros((2,) + p1_ref.shape[1:], p1_ref.dtype)

    @pl.when(t == last)
    def _():
        p1_ref[TH + 2:TH + 4, :, :] = jnp.zeros((2,) + p1_ref.shape[1:],
                                                p1_ref.dtype)

    # --- conv2: p1 -> p2  (conv2 activations for image rows r0-1..r0+TH)   ---
    _conv3x3_layer(p1_ref, patch_ref, w2_ref, b2_ref, p2_ref, 1, relu=True)

    @pl.when(t == 0)
    def _():
        p2_ref[0:1, :, :] = jnp.zeros((1,) + p2_ref.shape[1:], p2_ref.dtype)

    @pl.when(t == last)
    def _():
        p2_ref[TH + 1:TH + 2, :, :] = jnp.zeros((1,) + p2_ref.shape[1:],
                                                p2_ref.dtype)

    # --- conv3: p2 -> output tile (no ReLU), exactly out_ch channels.      ---
    _conv3x3_layer(p2_ref, patch_ref, w3_ref, b3_ref, o_ref, 0, relu=False)


def _pack_conv(w_oihw, b):
    """(Cout,Cin,3,3)+(Cout,) -> densely packed bf16 im2col weights.

    K row index = (dy*3+dx)*Cin + cin ; K is zero-padded only up to the next
    multiple of 128 (de-padded K), bias stays f32 for the epilogue."""
    cout, cin, kh, kw = w_oihw.shape
    k_live = kh * kw * cin
    k_pad = _ceil_to(k_live, _LANE)
    w = jnp.transpose(w_oihw, (2, 3, 1, 0)).reshape(k_live, cout)
    w = jnp.pad(w, ((0, k_pad - k_live), (0, 0))).astype(jnp.bfloat16)
    bp = b.reshape(1, cout).astype(jnp.float32)
    return w, bp


def _feature_extractor_fused(x_nhwc, w1, b1, w2, b2, w3, b3, out_ch):
    N, H, W, cin = x_nhwc.shape
    c1, c2 = w1.shape[1], w2.shape[1]          # 32, 64
    TH = _pick_row_tile(H)
    T = H // TH
    kmax = max(w1.shape[0], w2.shape[0], w3.shape[0])
    patch_rows = max(1, 128 // W) * W          # = max matmul M per chunk

    # Explicit scoped-VMEM budget: scratch + double-buffered blocks + weights.
    bytes_scratch = ((TH + 6) * (W + 2) * cin + (TH + 4) * (W + 2) * c1 +
                     (TH + 2) * (W + 2) * c2 + patch_rows * kmax) * 2
    bytes_blocks = 2 * (H * W * cin * 4 + TH * W * out_ch * 4)
    bytes_weights = 2 * int(sum(a.size for a in (w1, w2, w3)) * 2 +
                            sum(a.size for a in (b1, b2, b3)) * 4)
    vmem_limit = int(min(64 * 1024 * 1024,
                         max(16 * 1024 * 1024,
                             2 * (bytes_scratch + bytes_blocks + bytes_weights))))

    return pl.pallas_call(
        _fused_kernel,
        out_shape=jax.ShapeDtypeStruct((N, H, W, out_ch), jnp.float32),
        grid_spec=pltpu.PrefetchScalarGridSpec(
            num_scalar_prefetch=0,
            grid=(N, T),
            in_specs=[
                # Whole image per step; same block index across the tile axis
                # so it is not re-fetched between consecutive row tiles.
                pl.BlockSpec((pl.Squeezed(), H, W, cin),
                             lambda n, t: (n, 0, 0, 0)),
                pl.BlockSpec(w1.shape, lambda n, t: (0, 0)),
                pl.BlockSpec(b1.shape, lambda n, t: (0, 0)),
                pl.BlockSpec(w2.shape, lambda n, t: (0, 0)),
                pl.BlockSpec(b2.shape, lambda n, t: (0, 0)),
                pl.BlockSpec(w3.shape, lambda n, t: (0, 0)),
                pl.BlockSpec(b3.shape, lambda n, t: (0, 0)),
            ],
            out_specs=pl.BlockSpec((pl.Squeezed(), TH, W, out_ch),
                                   lambda n, t: (n, t, 0, 0)),
            scratch_shapes=[
                pltpu.VMEM((TH + 6, W + 2, cin), jnp.bfloat16),  # input band
                pltpu.VMEM((TH + 4, W + 2, c1), jnp.bfloat16),   # conv1 band
                pltpu.VMEM((TH + 2, W + 2, c2), jnp.bfloat16),   # conv2 band
                pltpu.VMEM((patch_rows, kmax), jnp.bfloat16),    # im2col chunk
            ],
        ),
        compiler_params=pltpu.CompilerParams(
            dimension_semantics=("parallel", "parallel"),
            vmem_limit_bytes=vmem_limit),
    )(x_nhwc, w1, b1, w2, b2, w3, b3)


def init_params(key, in_ch, out_ch=64):
    """Deterministic synthetic params with PyTorch Conv2d shapes (OIHW + bias)."""
    def conv_init(k, cout, cin):
        k1, k2 = jax.random.split(k)
        fan_in = cin * 3 * 3
        bound = 1.0 / jnp.sqrt(fan_in)
        w = jax.random.uniform(k1, (cout, cin, 3, 3), jnp.float32, -bound, bound)
        b = jax.random.uniform(k2, (cout,), jnp.float32, -bound, bound)
        return w, b

    k1, k2, k3 = jax.random.split(key, 3)
    return {
        "conv1": conv_init(k1, 32, in_ch),
        "conv2": conv_init(k2, 64, 32),
        "conv3": conv_init(k3, out_ch, 64),
    }


@jax.jit
def feature_extractor_nhwc(x_nhwc, params):
    """relu(conv1) -> relu(conv2) -> conv3, NHWC in / NHWC out (preferred)."""
    w1, b1 = _pack_conv(*params["conv1"])
    w2, b2 = _pack_conv(*params["conv2"])
    w3, b3 = _pack_conv(*params["conv3"])
    out_ch = params["conv3"][0].shape[0]
    return _feature_extractor_fused(x_nhwc, w1, b1, w2, b2, w3, b3, out_ch)


@jax.jit
def feature_extractor(x_nchw, params):
    """Matches FeatureExtractor.forward with the PyTorch NCHW interface.
    Downstream IRnet consumers should prefer feature_extractor_nhwc to avoid
    the layout transposes."""
    x = jnp.transpose(x_nchw, (0, 2, 3, 1))           # NCHW -> NHWC
    y = feature_extractor_nhwc(x, params)             # (N, H, W, out_ch) f32
    return jnp.transpose(y, (0, 3, 1, 2))             # NHWC -> NCHW


def _conv_ref(x_nchw, w, b, relu):
    out = jax.lax.conv_general_dilated(
        x_nchw, w, window_strides=(1, 1), padding="SAME",
        dimension_numbers=("NCHW", "OIHW", "NCHW"))
    out = out + b[None, :, None, None]
    return jnp.maximum(out, 0.0) if relu else out


def _reference(x_nchw, params):
    x = _conv_ref(x_nchw, *params["conv1"], relu=True)
    x = _conv_ref(x, *params["conv2"], relu=True)
    x = _conv_ref(x, *params["conv3"], relu=False)
    return x


if __name__ == "__main__":
    key = jax.random.PRNGKey(0)
    k_x, k_p = jax.random.split(key)

    N, in_ch, Hs, Ws = 2, 4, 16, 16
    x = jax.random.normal(k_x, (N, in_ch, Hs, Ws), jnp.float32)
    params = init_params(k_p, in_ch, out_ch=64)

    out = feature_extractor(x, params)
    out = jax.block_until_ready(out)

    assert out.shape == (N, 64, Hs, Ws), out.shape

    ref = _reference(x, params)
    # bf16 MXU operands / bf16 intermediate activations with f32 accumulation:
    # typical max abs error vs the f32 reference is ~1e-3; allow 2e-2.
    err = float(jnp.max(jnp.abs(out - ref)))
    assert jnp.allclose(out, ref, rtol=2e-2, atol=2e-2), err

    print("KERNEL_OK")
</pallas_src>

<mosaic_0001>
module attributes {stable_mosaic.version = 11 : i64} {
  func.func @_fused_kernel(%arg0: i32, %arg1: i32, %arg2: memref<1x16x16x4xf32, #tpu.memory_space<vmem>>, %arg3: memref<128x32xbf16, #tpu.memory_space<vmem>>, %arg4: memref<1x32xf32, #tpu.memory_space<vmem>>, %arg5: memref<384x64xbf16, #tpu.memory_space<vmem>>, %arg6: memref<1x64xf32, #tpu.memory_space<vmem>>, %arg7: memref<640x64xbf16, #tpu.memory_space<vmem>>, %arg8: memref<1x64xf32, #tpu.memory_space<vmem>>, %arg9: memref<1x8x16x64xf32, #tpu.memory_space<vmem>>, %arg10: memref<14x18x4xbf16, #tpu.memory_space<vmem>>, %arg11: memref<12x18x32xbf16, #tpu.memory_space<vmem>>, %arg12: memref<10x18x64xbf16, #tpu.memory_space<vmem>>, %arg13: memref<128x640xbf16, #tpu.memory_space<vmem>>) attributes {dimension_semantics = [#tpu.dimension_semantics<parallel>, #tpu.dimension_semantics<parallel>], iteration_bounds = array<i64: 2, 2>, scalar_prefetch = 0 : i64, scratch_operands = 4 : i64, tpu.core_type = #tpu.core_type<tc>, window_params = [{transform_indices = @transform_0, window_bounds = array<i64: 1, 16, 16, 4>}, {pipeline_mode = #tpu.pipeline_mode<synchronous>, transform_indices = @transform_1, window_bounds = array<i64: 128, 32>}, {pipeline_mode = #tpu.pipeline_mode<synchronous>, transform_indices = @transform_2, window_bounds = array<i64: 1, 32>}, {pipeline_mode = #tpu.pipeline_mode<synchronous>, transform_indices = @transform_3, window_bounds = array<i64: 384, 64>}, {pipeline_mode = #tpu.pipeline_mode<synchronous>, transform_indices = @transform_4, window_bounds = array<i64: 1, 64>}, {pipeline_mode = #tpu.pipeline_mode<synchronous>, transform_indices = @transform_5, window_bounds = array<i64: 640, 64>}, {pipeline_mode = #tpu.pipeline_mode<synchronous>, transform_indices = @transform_6, window_bounds = array<i64: 1, 64>}, {transform_indices = @transform_7, window_bounds = array<i64: 1, 8, 16, 64>}]} {
    %c8_i32 = arith.constant 8 : i32
    %0 = arith.muli %arg1, %c8_i32 : i32
    %cst = arith.constant 0.000000e+00 : bf16
    %1 = vector.broadcast %cst : bf16 to vector<128x640xbf16>
    %c0 = arith.constant 0 : index
    %c0_0 = arith.constant 0 : index
    %2 = vector.load %arg13[%c0, %c0_0] : memref<128x640xbf16, #tpu.memory_space<vmem>>, vector<128x640xbf16>
    tpu.vector_store %arg13[%c0, %c0_0], %1 {strides = array<i32>} : memref<128x640xbf16, #tpu.memory_space<vmem>>, vector<128x640xbf16>,
    %cst_1 = arith.constant 0.000000e+00 : bf16
    %3 = vector.broadcast %cst_1 : bf16 to vector<14x4xbf16>
    %c0_2 = arith.constant 0 : index
    %c0_3 = arith.constant 0 : index
    %c0_4 = arith.constant 0 : index
    %4 = vector.load %arg10[%c0_2, %c0_3, %c0_4] : memref<14x18x4xbf16, #tpu.memory_space<vmem>>, vector<14x1x4xbf16>
    %5 = vector.shape_cast %4 : vector<14x1x4xbf16> to vector<14x4xbf16>
    %6 = vector.shape_cast %3 : vector<14x4xbf16> to vector<14x1x4xbf16>
    tpu.vector_store %arg10[%c0_2, %c0_3, %c0_4], %6 {strides = array<i32>} : memref<14x18x4xbf16, #tpu.memory_space<vmem>>, vector<14x1x4xbf16>,
    %c0_5 = arith.constant 0 : index
    %c17 = arith.constant 17 : index
    %c0_6 = arith.constant 0 : index
    %7 = vector.load %arg10[%c0_5, %c17, %c0_6] : memref<14x18x4xbf16, #tpu.memory_space<vmem>>, vector<14x1x4xbf16>
    %8 = vector.shape_cast %7 : vector<14x1x4xbf16> to vector<14x4xbf16>
    %9 = vector.shape_cast %3 : vector<14x4xbf16> to vector<14x1x4xbf16>
    tpu.vector_store %arg10[%c0_5, %c17, %c0_6], %9 {strides = array<i32>} : memref<14x18x4xbf16, #tpu.memory_space<vmem>>, vector<14x1x4xbf16>,
    %cst_7 = arith.constant 0.000000e+00 : bf16
    %10 = vector.broadcast %cst_7 : bf16 to vector<12x32xbf16>
    %c0_8 = arith.constant 0 : index
    %c0_9 = arith.constant 0 : index
    %c0_10 = arith.constant 0 : index
    %11 = vector.load %arg11[%c0_8, %c0_9, %c0_10] : memref<12x18x32xbf16, #tpu.memory_space<vmem>>, vector<12x1x32xbf16>
    %12 = vector.shape_cast %11 : vector<12x1x32xbf16> to vector<12x32xbf16>
    %13 = vector.shape_cast %10 : vector<12x32xbf16> to vector<12x1x32xbf16>
    tpu.vector_store %arg11[%c0_8, %c0_9, %c0_10], %13 {strides = array<i32>} : memref<12x18x32xbf16, #tpu.memory_space<vmem>>, vector<12x1x32xbf16>,
    %c0_11 = arith.constant 0 : index
    %c17_12 = arith.constant 17 : index
    %c0_13 = arith.constant 0 : index
    %14 = vector.load %arg11[%c0_11, %c17_12, %c0_13] : memref<12x18x32xbf16, #tpu.memory_space<vmem>>, vector<12x1x32xbf16>
    %15 = vector.shape_cast %14 : vector<12x1x32xbf16> to vector<12x32xbf16>
    %16 = vector.shape_cast %10 : vector<12x32xbf16> to vector<12x1x32xbf16>
    tpu.vector_store %arg11[%c0_11, %c17_12, %c0_13], %16 {strides = array<i32>} : memref<12x18x32xbf16, #tpu.memory_space<vmem>>, vector<12x1x32xbf16>,
    %cst_14 = arith.constant 0.000000e+00 : bf16
    %17 = vector.broadcast %cst_14 : bf16 to vector<10x64xbf16>
    %c0_15 = arith.constant 0 : index
    %c0_16 = arith.constant 0 : index
    %c0_17 = arith.constant 0 : index
    %18 = vector.load %arg12[%c0_15, %c0_16, %c0_17] : memref<10x18x64xbf16, #tpu.memory_space<vmem>>, vector<10x1x64xbf16>
    %19 = vector.shape_cast %18 : vector<10x1x64xbf16> to vector<10x64xbf16>
    %20 = vector.shape_cast %17 : vector<10x64xbf16> to vector<10x1x64xbf16>
    tpu.vector_store %arg12[%c0_15, %c0_16, %c0_17], %20 {strides = array<i32>} : memref<10x18x64xbf16, #tpu.memory_space<vmem>>, vector<10x1x64xbf16>,
    %c0_18 = arith.constant 0 : index
    %c17_19 = arith.constant 17 : index
    %c0_20 = arith.constant 0 : index
    %21 = vector.load %arg12[%c0_18, %c17_19, %c0_20] : memref<10x18x64xbf16, #tpu.memory_space<vmem>>, vector<10x1x64xbf16>
    %22 = vector.shape_cast %21 : vector<10x1x64xbf16> to vector<10x64xbf16>
    %23 = vector.shape_cast %17 : vector<10x64xbf16> to vector<10x1x64xbf16>
    tpu.vector_store %arg12[%c0_18, %c17_19, %c0_20], %23 {strides = array<i32>} : memref<10x18x64xbf16, #tpu.memory_space<vmem>>, vector<10x1x64xbf16>,
    %c3_i32 = arith.constant 3 : i32
    %24 = arith.subi %0, %c3_i32 : i32
    %c0_i32 = arith.constant 0 : i32
    %25 = arith.addi %24, %c0_i32 : i32
    %c0_i32_21 = arith.constant 0 : i32
    %26 = arith.cmpi sge, %25, %c0_i32_21 : i32
    %c16_i32 = arith.constant 16 : i32
    %27 = arith.cmpi slt, %25, %c16_i32 : i32
    %28 = arith.andi %26, %27 : i1
    %c0_i32_22 = arith.constant 0 : i32
    %c15_i32 = arith.constant 15 : i32
    %29 = arith.maxsi %c0_i32_22, %25 : i32
    %30 = arith.minsi %c15_i32, %29 : i32
    %c0_23 = arith.constant 0 : index
    %31 = arith.index_cast %30 : i32 to index
    %c0_24 = arith.constant 0 : index
    %c0_25 = arith.constant 0 : index
    %32 = vector.load %arg2[%c0_23, %31, %c0_24, %c0_25] : memref<1x16x16x4xf32, #tpu.memory_space<vmem>>, vector<1x1x16x4xf32>
    %33 = vector.shape_cast %32 : vector<1x1x16x4xf32> to vector<16x4xf32>
    %cst_26 = arith.constant 0.000000e+00 : f32
    %34 = vector.broadcast %cst_26 : f32 to vector<16x4xf32>
    %35 = arith.select %28, %33, %34 : vector<16x4xf32>
    %36 = arith.truncf %35 : vector<16x4xf32> to vector<16x4xbf16>
    %c0_27 = arith.constant 0 : index
    %c1 = arith.constant 1 : index
    %c0_28 = arith.constant 0 : index
    %37 = vector.load %arg10[%c0_27, %c1, %c0_28] : memref<14x18x4xbf16, #tpu.memory_space<vmem>>, vector<1x16x4xbf16>
    %38 = vector.shape_cast %37 : vector<1x16x4xbf16> to vector<16x4xbf16>
    %39 = vector.shape_cast %36 : vector<16x4xbf16> to vector<1x16x4xbf16>
    tpu.vector_store %arg10[%c0_27, %c1, %c0_28], %39 {strides = array<i32>} : memref<14x18x4xbf16, #tpu.memory_space<vmem>>, vector<1x16x4xbf16>,
    %c3_i32_29 = arith.constant 3 : i32
    %40 = arith.subi %0, %c3_i32_29 : i32
    %c1_i32 = arith.constant 1 : i32
    %41 = arith.addi %40, %c1_i32 : i32
    %c0_i32_30 = arith.constant 0 : i32
    %42 = arith.cmpi sge, %41, %c0_i32_30 : i32
    %c16_i32_31 = arith.constant 16 : i32
    %43 = arith.cmpi slt, %41, %c16_i32_31 : i32
    %44 = arith.andi %42, %43 : i1
    %c0_i32_32 = arith.constant 0 : i32
    %c15_i32_33 = arith.constant 15 : i32
    %45 = arith.maxsi %c0_i32_32, %41 : i32
    %46 = arith.minsi %c15_i32_33, %45 : i32
    %c0_34 = arith.constant 0 : index
    %47 = arith.index_cast %46 : i32 to index
    %c0_35 = arith.constant 0 : index
    %c0_36 = arith.constant 0 : index
    %48 = vector.load %arg2[%c0_34, %47, %c0_35, %c0_36] : memref<1x16x16x4xf32, #tpu.memory_space<vmem>>, vector<1x1x16x4xf32>
    %49 = vector.shape_cast %48 : vector<1x1x16x4xf32> to vector<16x4xf32>
    %cst_37 = arith.constant 0.000000e+00 : f32
    %50 = vector.broadcast %cst_37 : f32 to vector<16x4xf32>
    %51 = arith.select %44, %49, %50 : vector<16x4xf32>
    %52 = arith.truncf %51 : vector<16x4xf32> to vector<16x4xbf16>
    %c1_38 = arith.constant 1 : index
    %c1_39 = arith.constant 1 : index
    %c0_40 = arith.constant 0 : index
    %53 = vector.load %arg10[%c1_38, %c1_39, %c0_40] : memref<14x18x4xbf16, #tpu.memory_space<vmem>>, vector<1x16x4xbf16>
    %54 = vector.shape_cast %53 : vector<1x16x4xbf16> to vector<16x4xbf16>
    %55 = vector.shape_cast %52 : vector<16x4xbf16> to vector<1x16x4xbf16>
    tpu.vector_store %arg10[%c1_38, %c1_39, %c0_40], %55 {strides = array<i32>} : memref<14x18x4xbf16, #tpu.memory_space<vmem>>, vector<1x16x4xbf16>,
    %c3_i32_41 = arith.constant 3 : i32
    %56 = arith.subi %0, %c3_i32_41 : i32
    %c2_i32 = arith.constant 2 : i32
    %57 = arith.addi %56, %c2_i32 : i32
    %c0_i32_42 = arith.constant 0 : i32
    %58 = arith.cmpi sge, %57, %c0_i32_42 : i32
    %c16_i32_43 = arith.constant 16 : i32
    %59 = arith.cmpi slt, %57, %c16_i32_43 : i32
    %60 = arith.andi %58, %59 : i1
    %c0_i32_44 = arith.constant 0 : i32
    %c15_i32_45 = arith.constant 15 : i32
    %61 = arith.maxsi %c0_i32_44, %57 : i32
    %62 = arith.minsi %c15_i32_45, %61 : i32
    %c0_46 = arith.constant 0 : index
    %63 = arith.index_cast %62 : i32 to index
    %c0_47 = arith.constant 0 : index
    %c0_48 = arith.constant 0 : index
    %64 = vector.load %arg2[%c0_46, %63, %c0_47, %c0_48] : memref<1x16x16x4xf32, #tpu.memory_space<vmem>>, vector<1x1x16x4xf32>
    %65 = vector.shape_cast %64 : vector<1x1x16x4xf32> to vector<16x4xf32>
    %cst_49 = arith.constant 0.000000e+00 : f32
    %66 = vector.broadcast %cst_49 : f32 to vector<16x4xf32>
    %67 = arith.select %60, %65, %66 : vector<16x4xf32>
    %68 = arith.truncf %67 : vector<16x4xf32> to vector<16x4xbf16>
    %c2 = arith.constant 2 : index
    %c1_50 = arith.constant 1 : index
    %c0_51 = arith.constant 0 : index
    %69 = vector.load %arg10[%c2, %c1_50, %c0_51] : memref<14x18x4xbf16, #tpu.memory_space<vmem>>, vector<1x16x4xbf16>
    %70 = vector.shape_cast %69 : vector<1x16x4xbf16> to vector<16x4xbf16>
    %71 = vector.shape_cast %68 : vector<16x4xbf16> to vector<1x16x4xbf16>
    tpu.vector_store %arg10[%c2, %c1_50, %c0_51], %71 {strides = array<i32>} : memref<14x18x4xbf16, #tpu.memory_space<vmem>>, vector<1x16x4xbf16>,
    %c3_i32_52 = arith.constant 3 : i32
    %72 = arith.subi %0, %c3_i32_52 : i32
    %c3_i32_53 = arith.constant 3 : i32
    %73 = arith.addi %72, %c3_i32_53 : i32
    %c0_i32_54 = arith.constant 0 : i32
    %74 = arith.cmpi sge, %73, %c0_i32_54 : i32
    %c16_i32_55 = arith.constant 16 : i32
    %75 = arith.cmpi slt, %73, %c16_i32_55 : i32
    %76 = arith.andi %74, %75 : i1
    %c0_i32_56 = arith.constant 0 : i32
    %c15_i32_57 = arith.constant 15 : i32
    %77 = arith.maxsi %c0_i32_56, %73 : i32
    %78 = arith.minsi %c15_i32_57, %77 : i32
    %c0_58 = arith.constant 0 : index
    %79 = arith.index_cast %78 : i32 to index
    %c0_59 = arith.constant 0 : index
    %c0_60 = arith.constant 0 : index
    %80 = vector.load %arg2[%c0_58, %79, %c0_59, %c0_60] : memref<1x16x16x4xf32, #tpu.memory_space<vmem>>, vector<1x1x16x4xf32>
    %81 = vector.shape_cast %80 : vector<1x1x16x4xf32> to vector<16x4xf32>
    %cst_61 = arith.constant 0.000000e+00 : f32
    %82 = vector.broadcast %cst_61 : f32 to vector<16x4xf32>
    %83 = arith.select %76, %81, %82 : vector<16x4xf32>
    %84 = arith.truncf %83 : vector<16x4xf32> to vector<16x4xbf16>
    %c3 = arith.constant 3 : index
    %c1_62 = arith.constant 1 : index
    %c0_63 = arith.constant 0 : index
    %85 = vector.load %arg10[%c3, %c1_62, %c0_63] : memref<14x18x4xbf16, #tpu.memory_space<vmem>>, vector<1x16x4xbf16>
    %86 = vector.shape_cast %85 : vector<1x16x4xbf16> to vector<16x4xbf16>
    %87 = vector.shape_cast %84 : vector<16x4xbf16> to vector<1x16x4xbf16>
    tpu.vector_store %arg10[%c3, %c1_62, %c0_63], %87 {strides = array<i32>} : memref<14x18x4xbf16, #tpu.memory_space<vmem>>, vector<1x16x4xbf16>,
    %c3_i32_64 = arith.constant 3 : i32
    %88 = arith.subi %0, %c3_i32_64 : i32
    %c4_i32 = arith.constant 4 : i32
    %89 = arith.addi %88, %c4_i32 : i32
    %c0_i32_65 = arith.constant 0 : i32
    %90 = arith.cmpi sge, %89, %c0_i32_65 : i32
    %c16_i32_66 = arith.constant 16 : i32
    %91 = arith.cmpi slt, %89, %c16_i32_66 : i32
    %92 = arith.andi %90, %91 : i1
    %c0_i32_67 = arith.constant 0 : i32
    %c15_i32_68 = arith.constant 15 : i32
    %93 = arith.maxsi %c0_i32_67, %89 : i32
    %94 = arith.minsi %c15_i32_68, %93 : i32
    %c0_69 = arith.constant 0 : index
    %95 = arith.index_cast %94 : i32 to index
    %c0_70 = arith.constant 0 : index
    %c0_71 = arith.constant 0 : index
    %96 = vector.load %arg2[%c0_69, %95, %c0_70, %c0_71] : memref<1x16x16x4xf32, #tpu.memory_space<vmem>>, vector<1x1x16x4xf32>
    %97 = vector.shape_cast %96 : vector<1x1x16x4xf32> to vector<16x4xf32>
    %cst_72 = arith.constant 0.000000e+00 : f32
    %98 = vector.broadcast %cst_72 : f32 to vector<16x4xf32>
    %99 = arith.select %92, %97, %98 : vector<16x4xf32>
    %100 = arith.truncf %99 : vector<16x4xf32> to vector<16x4xbf16>
    %c4 = arith.constant 4 : index
    %c1_73 = arith.constant 1 : index
    %c0_74 = arith.constant 0 : index
    %101 = vector.load %arg10[%c4, %c1_73, %c0_74] : memref<14x18x4xbf16, #tpu.memory_space<vmem>>, vector<1x16x4xbf16>
    %102 = vector.shape_cast %101 : vector<1x16x4xbf16> to vector<16x4xbf16>
    %103 = vector.shape_cast %100 : vector<16x4xbf16> to vector<1x16x4xbf16>
    tpu.vector_store %arg10[%c4, %c1_73, %c0_74], %103 {strides = array<i32>} : memref<14x18x4xbf16, #tpu.memory_space<vmem>>, vector<1x16x4xbf16>,
    %c3_i32_75 = arith.constant 3 : i32
    %104 = arith.subi %0, %c3_i32_75 : i32
    %c5_i32 = arith.constant 5 : i32
    %105 = arith.addi %104, %c5_i32 : i32
    %c0_i32_76 = arith.constant 0 : i32
    %106 = arith.cmpi sge, %105, %c0_i32_76 : i32
    %c16_i32_77 = arith.constant 16 : i32
    %107 = arith.cmpi slt, %105, %c16_i32_77 : i32
    %108 = arith.andi %106, %107 : i1
    %c0_i32_78 = arith.constant 0 : i32
    %c15_i32_79 = arith.constant 15 : i32
    %109 = arith.maxsi %c0_i32_78, %105 : i32
    %110 = arith.minsi %c15_i32_79, %109 : i32
    %c0_80 = arith.constant 0 : index
    %111 = arith.index_cast %110 : i32 to index
    %c0_81 = arith.constant 0 : index
    %c0_82 = arith.constant 0 : index
    %112 = vector.load %arg2[%c0_80, %111, %c0_81, %c0_82] : memref<1x16x16x4xf32, #tpu.memory_space<vmem>>, vector<1x1x16x4xf32>
    %113 = vector.shape_cast %112 : vector<1x1x16x4xf32> to vector<16x4xf32>
    %cst_83 = arith.constant 0.000000e+00 : f32
    %114 = vector.broadcast %cst_83 : f32 to vector<16x4xf32>
    %115 = arith.select %108, %113, %114 : vector<16x4xf32>
    %116 = arith.truncf %115 : vector<16x4xf32> to vector<16x4xbf16>
    %c5 = arith.constant 5 : index
    %c1_84 = arith.constant 1 : index
    %c0_85 = arith.constant 0 : index
    %117 = vector.load %arg10[%c5, %c1_84, %c0_85] : memref<14x18x4xbf16, #tpu.memory_space<vmem>>, vector<1x16x4xbf16>
    %118 = vector.shape_cast %117 : vector<1x16x4xbf16> to vector<16x4xbf16>
    %119 = vector.shape_cast %116 : vector<16x4xbf16> to vector<1x16x4xbf16>
    tpu.vector_store %arg10[%c5, %c1_84, %c0_85], %119 {strides = array<i32>} : memref<14x18x4xbf16, #tpu.memory_space<vmem>>, vector<1x16x4xbf16>,
    %c3_i32_86 = arith.constant 3 : i32
    %120 = arith.subi %0, %c3_i32_86 : i32
    %c6_i32 = arith.constant 6 : i32
    %121 = arith.addi %120, %c6_i32 : i32
    %c0_i32_87 = arith.constant 0 : i32
    %122 = arith.cmpi sge, %121, %c0_i32_87 : i32
    %c16_i32_88 = arith.constant 16 : i32
    %123 = arith.cmpi slt, %121, %c16_i32_88 : i32
    %124 = arith.andi %122, %123 : i1
    %c0_i32_89 = arith.constant 0 : i32
    %c15_i32_90 = arith.constant 15 : i32
    %125 = arith.maxsi %c0_i32_89, %121 : i32
    %126 = arith.minsi %c15_i32_90, %125 : i32
    %c0_91 = arith.constant 0 : index
    %127 = arith.index_cast %126 : i32 to index
    %c0_92 = arith.constant 0 : index
    %c0_93 = arith.constant 0 : index
    %128 = vector.load %arg2[%c0_91, %127, %c0_92, %c0_93] : memref<1x16x16x4xf32, #tpu.memory_space<vmem>>, vector<1x1x16x4xf32>
    %129 = vector.shape_cast %128 : vector<1x1x16x4xf32> to vector<16x4xf32>
    %cst_94 = arith.constant 0.000000e+00 : f32
    %130 = vector.broadcast %cst_94 : f32 to vector<16x4xf32>
    %131 = arith.select %124, %129, %130 : vector<16x4xf32>
    %132 = arith.truncf %131 : vector<16x4xf32> to vector<16x4xbf16>
    %c6 = arith.constant 6 : index
    %c1_95 = arith.constant 1 : index
    %c0_96 = arith.constant 0 : index
    %133 = vector.load %arg10[%c6, %c1_95, %c0_96] : memref<14x18x4xbf16, #tpu.memory_space<vmem>>, vector<1x16x4xbf16>
    %134 = vector.shape_cast %133 : vector<1x16x4xbf16> to vector<16x4xbf16>
    %135 = vector.shape_cast %132 : vector<16x4xbf16> to vector<1x16x4xbf16>
    tpu.vector_store %arg10[%c6, %c1_95, %c0_96], %135 {strides = array<i32>} : memref<14x18x4xbf16, #tpu.memory_space<vmem>>, vector<1x16x4xbf16>,
    %c3_i32_97 = arith.constant 3 : i32
    %136 = arith.subi %0, %c3_i32_97 : i32
    %c7_i32 = arith.constant 7 : i32
    %137 = arith.addi %136, %c7_i32 : i32
    %c0_i32_98 = arith.constant 0 : i32
    %138 = arith.cmpi sge, %137, %c0_i32_98 : i32
    %c16_i32_99 = arith.constant 16 : i32
    %139 = arith.cmpi slt, %137, %c16_i32_99 : i32
    %140 = arith.andi %138, %139 : i1
    %c0_i32_100 = arith.constant 0 : i32
    %c15_i32_101 = arith.constant 15 : i32
    %141 = arith.maxsi %c0_i32_100, %137 : i32
    %142 = arith.minsi %c15_i32_101, %141 : i32
    %c0_102 = arith.constant 0 : index
    %143 = arith.index_cast %142 : i32 to index
    %c0_103 = arith.constant 0 : index
    %c0_104 = arith.constant 0 : index
    %144 = vector.load %arg2[%c0_102, %143, %c0_103, %c0_104] : memref<1x16x16x4xf32, #tpu.memory_space<vmem>>, vector<1x1x16x4xf32>
    %145 = vector.shape_cast %144 : vector<1x1x16x4xf32> to vector<16x4xf32>
    %cst_105 = arith.constant 0.000000e+00 : f32
    %146 = vector.broadcast %cst_105 : f32 to vector<16x4xf32>
    %147 = arith.select %140, %145, %146 : vector<16x4xf32>
    %148 = arith.truncf %147 : vector<16x4xf32> to vector<16x4xbf16>
    %c7 = arith.constant 7 : index
    %c1_106 = arith.constant 1 : index
    %c0_107 = arith.constant 0 : index
    %149 = vector.load %arg10[%c7, %c1_106, %c0_107] : memref<14x18x4xbf16, #tpu.memory_space<vmem>>, vector<1x16x4xbf16>
    %150 = vector.shape_cast %149 : vector<1x16x4xbf16> to vector<16x4xbf16>
    %151 = vector.shape_cast %148 : vector<16x4xbf16> to vector<1x16x4xbf16>
    tpu.vector_store %arg10[%c7, %c1_106, %c0_107], %151 {strides = array<i32>} : memref<14x18x4xbf16, #tpu.memory_space<vmem>>, vector<1x16x4xbf16>,
    %c3_i32_108 = arith.constant 3 : i32
    %152 = arith.subi %0, %c3_i32_108 : i32
    %c8_i32_109 = arith.constant 8 : i32
    %153 = arith.addi %152, %c8_i32_109 : i32
    %c0_i32_110 = arith.constant 0 : i32
    %154 = arith.cmpi sge, %153, %c0_i32_110 : i32
    %c16_i32_111 = arith.constant 16 : i32
    %155 = arith.cmpi slt, %153, %c16_i32_111 : i32
    %156 = arith.andi %154, %155 : i1
    %c0_i32_112 = arith.constant 0 : i32
    %c15_i32_113 = arith.constant 15 : i32
    %157 = arith.maxsi %c0_i32_112, %153 : i32
    %158 = arith.minsi %c15_i32_113, %157 : i32
    %c0_114 = arith.constant 0 : index
    %159 = arith.index_cast %158 : i32 to index
    %c0_115 = arith.constant 0 : index
    %c0_116 = arith.constant 0 : index
    %160 = vector.load %arg2[%c0_114, %159, %c0_115, %c0_116] : memref<1x16x16x4xf32, #tpu.memory_space<vmem>>, vector<1x1x16x4xf32>
    %161 = vector.shape_cast %160 : vector<1x1x16x4xf32> to vector<16x4xf32>
    %cst_117 = arith.constant 0.000000e+00 : f32
    %162 = vector.broadcast %cst_117 : f32 to vector<16x4xf32>
    %163 = arith.select %156, %161, %162 : vector<16x4xf32>
    %164 = arith.truncf %163 : vector<16x4xf32> to vector<16x4xbf16>
    %c8 = arith.constant 8 : index
    %c1_118 = arith.constant 1 : index
    %c0_119 = arith.constant 0 : index
    %165 = vector.load %arg10[%c8, %c1_118, %c0_119] : memref<14x18x4xbf16, #tpu.memory_space<vmem>>, vector<1x16x4xbf16>
    %166 = vector.shape_cast %165 : vector<1x16x4xbf16> to vector<16x4xbf16>
    %167 = vector.shape_cast %164 : vector<16x4xbf16> to vector<1x16x4xbf16>
    tpu.vector_store %arg10[%c8, %c1_118, %c0_119], %167 {strides = array<i32>} : memref<14x18x4xbf16, #tpu.memory_space<vmem>>, vector<1x16x4xbf16>,
    %c3_i32_120 = arith.constant 3 : i32
    %168 = arith.subi %0, %c3_i32_120 : i32
    %c9_i32 = arith.constant 9 : i32
    %169 = arith.addi %168, %c9_i32 : i32
    %c0_i32_121 = arith.constant 0 : i32
    %170 = arith.cmpi sge, %169, %c0_i32_121 : i32
    %c16_i32_122 = arith.constant 16 : i32
    %171 = arith.cmpi slt, %169, %c16_i32_122 : i32
    %172 = arith.andi %170, %171 : i1
    %c0_i32_123 = arith.constant 0 : i32
    %c15_i32_124 = arith.constant 15 : i32
    %173 = arith.maxsi %c0_i32_123, %169 : i32
    %174 = arith.minsi %c15_i32_124, %173 : i32
    %c0_125 = arith.constant 0 : index
    %175 = arith.index_cast %174 : i32 to index
    %c0_126 = arith.constant 0 : index
    %c0_127 = arith.constant 0 : index
    %176 = vector.load %arg2[%c0_125, %175, %c0_126, %c0_127] : memref<1x16x16x4xf32, #tpu.memory_space<vmem>>, vector<1x1x16x4xf32>
    %177 = vector.shape_cast %176 : vector<1x1x16x4xf32> to vector<16x4xf32>
    %cst_128 = arith.constant 0.000000e+00 : f32
    %178 = vector.broadcast %cst_128 : f32 to vector<16x4xf32>
    %179 = arith.select %172, %177, %178 : vector<16x4xf32>
    %180 = arith.truncf %179 : vector<16x4xf32> to vector<16x4xbf16>
    %c9 = arith.constant 9 : index
    %c1_129 = arith.constant 1 : index
    %c0_130 = arith.constant 0 : index
    %181 = vector.load %arg10[%c9, %c1_129, %c0_130] : memref<14x18x4xbf16, #tpu.memory_space<vmem>>, vector<1x16x4xbf16>
    %182 = vector.shape_cast %181 : vector<1x16x4xbf16> to vector<16x4xbf16>
    %183 = vector.shape_cast %180 : vector<16x4xbf16> to vector<1x16x4xbf16>
    tpu.vector_store %arg10[%c9, %c1_129, %c0_130], %183 {strides = array<i32>} : memref<14x18x4xbf16, #tpu.memory_space<vmem>>, vector<1x16x4xbf16>,
    %c3_i32_131 = arith.constant 3 : i32
    %184 = arith.subi %0, %c3_i32_131 : i32
    %c10_i32 = arith.constant 10 : i32
    %185 = arith.addi %184, %c10_i32 : i32
    %c0_i32_132 = arith.constant 0 : i32
    %186 = arith.cmpi sge, %185, %c0_i32_132 : i32
    %c16_i32_133 = arith.constant 16 : i32
    %187 = arith.cmpi slt, %185, %c16_i32_133 : i32
    %188 = arith.andi %186, %187 : i1
    %c0_i32_134 = arith.constant 0 : i32
    %c15_i32_135 = arith.constant 15 : i32
    %189 = arith.maxsi %c0_i32_134, %185 : i32
    %190 = arith.minsi %c15_i32_135, %189 : i32
    %c0_136 = arith.constant 0 : index
    %191 = arith.index_cast %190 : i32 to index
    %c0_137 = arith.constant 0 : index
    %c0_138 = arith.constant 0 : index
    %192 = vector.load %arg2[%c0_136, %191, %c0_137, %c0_138] : memref<1x16x16x4xf32, #tpu.memory_space<vmem>>, vector<1x1x16x4xf32>
    %193 = vector.shape_cast %192 : vector<1x1x16x4xf32> to vector<16x4xf32>
    %cst_139 = arith.constant 0.000000e+00 : f32
    %194 = vector.broadcast %cst_139 : f32 to vector<16x4xf32>
    %195 = arith.select %188, %193, %194 : vector<16x4xf32>
    %196 = arith.truncf %195 : vector<16x4xf32> to vector<16x4xbf16>
    %c10 = arith.constant 10 : index
    %c1_140 = arith.constant 1 : index
    %c0_141 = arith.constant 0 : index
    %197 = vector.load %arg10[%c10, %c1_140, %c0_141] : memref<14x18x4xbf16, #tpu.memory_space<vmem>>, vector<1x16x4xbf16>
    %198 = vector.shape_cast %197 : vector<1x16x4xbf16> to vector<16x4xbf16>
    %199 = vector.shape_cast %196 : vector<16x4xbf16> to vector<1x16x4xbf16>
    tpu.vector_store %arg10[%c10, %c1_140, %c0_141], %199 {strides = array<i32>} : memref<14x18x4xbf16, #tpu.memory_space<vmem>>, vector<1x16x4xbf16>,
    %c3_i32_142 = arith.constant 3 : i32
    %200 = arith.subi %0, %c3_i32_142 : i32
    %c11_i32 = arith.constant 11 : i32
    %201 = arith.addi %200, %c11_i32 : i32
    %c0_i32_143 = arith.constant 0 : i32
    %202 = arith.cmpi sge, %201, %c0_i32_143 : i32
    %c16_i32_144 = arith.constant 16 : i32
    %203 = arith.cmpi slt, %201, %c16_i32_144 : i32
    %204 = arith.andi %202, %203 : i1
    %c0_i32_145 = arith.constant 0 : i32
    %c15_i32_146 = arith.constant 15 : i32
    %205 = arith.maxsi %c0_i32_145, %201 : i32
    %206 = arith.minsi %c15_i32_146, %205 : i32
    %c0_147 = arith.constant 0 : index
    %207 = arith.index_cast %206 : i32 to index
    %c0_148 = arith.constant 0 : index
    %c0_149 = arith.constant 0 : index
    %208 = vector.load %arg2[%c0_147, %207, %c0_148, %c0_149] : memref<1x16x16x4xf32, #tpu.memory_space<vmem>>, vector<1x1x16x4xf32>
    %209 = vector.shape_cast %208 : vector<1x1x16x4xf32> to vector<16x4xf32>
    %cst_150 = arith.constant 0.000000e+00 : f32
    %210 = vector.broadcast %cst_150 : f32 to vector<16x4xf32>
    %211 = arith.select %204, %209, %210 : vector<16x4xf32>
    %212 = arith.truncf %211 : vector<16x4xf32> to vector<16x4xbf16>
    %c11 = arith.constant 11 : index
    %c1_151 = arith.constant 1 : index
    %c0_152 = arith.constant 0 : index
    %213 = vector.load %arg10[%c11, %c1_151, %c0_152] : memref<14x18x4xbf16, #tpu.memory_space<vmem>>, vector<1x16x4xbf16>
    %214 = vector.shape_cast %213 : vector<1x16x4xbf16> to vector<16x4xbf16>
    %215 = vector.shape_cast %212 : vector<16x4xbf16> to vector<1x16x4xbf16>
    tpu.vector_store %arg10[%c11, %c1_151, %c0_152], %215 {strides = array<i32>} : memref<14x18x4xbf16, #tpu.memory_space<vmem>>, vector<1x16x4xbf16>,
    %c3_i32_153 = arith.constant 3 : i32
    %216 = arith.subi %0, %c3_i32_153 : i32
    %c12_i32 = arith.constant 12 : i32
    %217 = arith.addi %216, %c12_i32 : i32
    %c0_i32_154 = arith.constant 0 : i32
    %218 = arith.cmpi sge, %217, %c0_i32_154 : i32
    %c16_i32_155 = arith.constant 16 : i32
    %219 = arith.cmpi slt, %217, %c16_i32_155 : i32
    %220 = arith.andi %218, %219 : i1
    %c0_i32_156 = arith.constant 0 : i32
    %c15_i32_157 = arith.constant 15 : i32
    %221 = arith.maxsi %c0_i32_156, %217 : i32
    %222 = arith.minsi %c15_i32_157, %221 : i32
    %c0_158 = arith.constant 0 : index
    %223 = arith.index_cast %222 : i32 to index
    %c0_159 = arith.constant 0 : index
    %c0_160 = arith.constant 0 : index
    %224 = vector.load %arg2[%c0_158, %223, %c0_159, %c0_160] : memref<1x16x16x4xf32, #tpu.memory_space<vmem>>, vector<1x1x16x4xf32>
    %225 = vector.shape_cast %224 : vector<1x1x16x4xf32> to vector<16x4xf32>
    %cst_161 = arith.constant 0.000000e+00 : f32
    %226 = vector.broadcast %cst_161 : f32 to vector<16x4xf32>
    %227 = arith.select %220, %225, %226 : vector<16x4xf32>
    %228 = arith.truncf %227 : vector<16x4xf32> to vector<16x4xbf16>
    %c12 = arith.constant 12 : index
    %c1_162 = arith.constant 1 : index
    %c0_163 = arith.constant 0 : index
    %229 = vector.load %arg10[%c12, %c1_162, %c0_163] : memref<14x18x4xbf16, #tpu.memory_space<vmem>>, vector<1x16x4xbf16>
    %230 = vector.shape_cast %229 : vector<1x16x4xbf16> to vector<16x4xbf16>
    %231 = vector.shape_cast %228 : vector<16x4xbf16> to vector<1x16x4xbf16>
    tpu.vector_store %arg10[%c12, %c1_162, %c0_163], %231 {strides = array<i32>} : memref<14x18x4xbf16, #tpu.memory_space<vmem>>, vector<1x16x4xbf16>,
    %c3_i32_164 = arith.constant 3 : i32
    %232 = arith.subi %0, %c3_i32_164 : i32
    %c13_i32 = arith.constant 13 : i32
    %233 = arith.addi %232, %c13_i32 : i32
    %c0_i32_165 = arith.constant 0 : i32
    %234 = arith.cmpi sge, %233, %c0_i32_165 : i32
    %c16_i32_166 = arith.constant 16 : i32
    %235 = arith.cmpi slt, %233, %c16_i32_166 : i32
    %236 = arith.andi %234, %235 : i1
    %c0_i32_167 = arith.constant 0 : i32
    %c15_i32_168 = arith.constant 15 : i32
    %237 = arith.maxsi %c0_i32_167, %233 : i32
    %238 = arith.minsi %c15_i32_168, %237 : i32
    %c0_169 = arith.constant 0 : index
    %239 = arith.index_cast %238 : i32 to index
    %c0_170 = arith.constant 0 : index
    %c0_171 = arith.constant 0 : index
    %240 = vector.load %arg2[%c0_169, %239, %c0_170, %c0_171] : memref<1x16x16x4xf32, #tpu.memory_space<vmem>>, vector<1x1x16x4xf32>
    %241 = vector.shape_cast %240 : vector<1x1x16x4xf32> to vector<16x4xf32>
    %cst_172 = arith.constant 0.000000e+00 : f32
    %242 = vector.broadcast %cst_172 : f32 to vector<16x4xf32>
    %243 = arith.select %236, %241, %242 : vector<16x4xf32>
    %244 = arith.truncf %243 : vector<16x4xf32> to vector<16x4xbf16>
    %c13 = arith.constant 13 : index
    %c1_173 = arith.constant 1 : index
    %c0_174 = arith.constant 0 : index
    %245 = vector.load %arg10[%c13, %c1_173, %c0_174] : memref<14x18x4xbf16, #tpu.memory_space<vmem>>, vector<1x16x4xbf16>
    %246 = vector.shape_cast %245 : vector<1x16x4xbf16> to vector<16x4xbf16>
    %247 = vector.shape_cast %244 : vector<16x4xbf16> to vector<1x16x4xbf16>
    tpu.vector_store %arg10[%c13, %c1_173, %c0_174], %247 {strides = array<i32>} : memref<14x18x4xbf16, #tpu.memory_space<vmem>>, vector<1x16x4xbf16>,
    %c0_175 = arith.constant 0 : index
    %c0_176 = arith.constant 0 : index
    %c0_177 = arith.constant 0 : index
    %248 = vector.load %arg10[%c0_175, %c0_176, %c0_177] : memref<14x18x4xbf16, #tpu.memory_space<vmem>>, vector<8x18x4xbf16>
    %249 = vector.extract_strided_slice %248 {offsets = [0, 0, 0], sizes = [8, 16, 4], strides = [1, 1, 1]} : vector<8x18x4xbf16> to vector<8x16x4xbf16>
    %250 = vector.shape_cast %249 : vector<8x16x4xbf16> to vector<128x4xbf16>
    %c0_178 = arith.constant 0 : index
    %c0_179 = arith.constant 0 : index
    %251 = vector.load %arg13[%c0_178, %c0_179] : memref<128x640xbf16, #tpu.memory_space<vmem>>, vector<128x4xbf16>
    tpu.vector_store %arg13[%c0_178, %c0_179], %250 {strides = array<i32>} : memref<128x640xbf16, #tpu.memory_space<vmem>>, vector<128x4xbf16>,
    %252 = vector.extract_strided_slice %248 {offsets = [0, 1, 0], sizes = [8, 16, 4], strides = [1, 1, 1]} : vector<8x18x4xbf16> to vector<8x16x4xbf16>
    %253 = vector.shape_cast %252 : vector<8x16x4xbf16> to vector<128x4xbf16>
    %c0_180 = arith.constant 0 : index
    %c4_181 = arith.constant 4 : index
    %254 = vector.load %arg13[%c0_180, %c4_181] : memref<128x640xbf16, #tpu.memory_space<vmem>>, vector<128x4xbf16>
    tpu.vector_store %arg13[%c0_180, %c4_181], %253 {strides = array<i32>} : memref<128x640xbf16, #tpu.memory_space<vmem>>, vector<128x4xbf16>,
    %255 = vector.extract_strided_slice %248 {offsets = [0, 2, 0], sizes = [8, 16, 4], strides = [1, 1, 1]} : vector<8x18x4xbf16> to vector<8x16x4xbf16>
    %256 = vector.shape_cast %255 : vector<8x16x4xbf16> to vector<128x4xbf16>
    %c0_182 = arith.constant 0 : index
    %c8_183 = arith.constant 8 : index
    %257 = vector.load %arg13[%c0_182, %c8_183] : memref<128x640xbf16, #tpu.memory_space<vmem>>, vector<128x4xbf16>
    tpu.vector_store %arg13[%c0_182, %c8_183], %256 {strides = array<i32>} : memref<128x640xbf16, #tpu.memory_space<vmem>>, vector<128x4xbf16>,
    %c1_184 = arith.constant 1 : index
    %c0_185 = arith.constant 0 : index
    %c0_186 = arith.constant 0 : index
    %258 = vector.load %arg10[%c1_184, %c0_185, %c0_186] : memref<14x18x4xbf16, #tpu.memory_space<vmem>>, vector<8x18x4xbf16>
    %259 = vector.extract_strided_slice %258 {offsets = [0, 0, 0], sizes = [8, 16, 4], strides = [1, 1, 1]} : vector<8x18x4xbf16> to vector<8x16x4xbf16>
    %260 = vector.shape_cast %259 : vector<8x16x4xbf16> to vector<128x4xbf16>
    %c0_187 = arith.constant 0 : index
    %c12_188 = arith.constant 12 : index
    %261 = vector.load %arg13[%c0_187, %c12_188] : memref<128x640xbf16, #tpu.memory_space<vmem>>, vector<128x4xbf16>
    tpu.vector_store %arg13[%c0_187, %c12_188], %260 {strides = array<i32>} : memref<128x640xbf16, #tpu.memory_space<vmem>>, vector<128x4xbf16>,
    %262 = vector.extract_strided_slice %258 {offsets = [0, 1, 0], sizes = [8, 16, 4], strides = [1, 1, 1]} : vector<8x18x4xbf16> to vector<8x16x4xbf16>
    %263 = vector.shape_cast %262 : vector<8x16x4xbf16> to vector<128x4xbf16>
    %c0_189 = arith.constant 0 : index
    %c16 = arith.constant 16 : index
    %264 = vector.load %arg13[%c0_189, %c16] : memref<128x640xbf16, #tpu.memory_space<vmem>>, vector<128x4xbf16>
    tpu.vector_store %arg13[%c0_189, %c16], %263 {strides = array<i32>} : memref<128x640xbf16, #tpu.memory_space<vmem>>, vector<128x4xbf16>,
    %265 = vector.extract_strided_slice %258 {offsets = [0, 2, 0], sizes = [8, 16, 4], strides = [1, 1, 1]} : vector<8x18x4xbf16> to vector<8x16x4xbf16>
    %266 = vector.shape_cast %265 : vector<8x16x4xbf16> to vector<128x4xbf16>
    %c0_190 = arith.constant 0 : index
    %c20 = arith.constant 20 : index
    %267 = vector.load %arg13[%c0_190, %c20] : memref<128x640xbf16, #tpu.memory_space<vmem>>, vector<128x4xbf16>
    tpu.vector_store %arg13[%c0_190, %c20], %266 {strides = array<i32>} : memref<128x640xbf16, #tpu.memory_space<vmem>>, vector<128x4xbf16>,
    %c2_191 = arith.constant 2 : index
    %c0_192 = arith.constant 0 : index
    %c0_193 = arith.constant 0 : index
    %268 = vector.load %arg10[%c2_191, %c0_192, %c0_193] : memref<14x18x4xbf16, #tpu.memory_space<vmem>>, vector<8x18x4xbf16>
    %269 = vector.extract_strided_slice %268 {offsets = [0, 0, 0], sizes = [8, 16, 4], strides = [1, 1, 1]} : vector<8x18x4xbf16> to vector<8x16x4xbf16>
    %270 = vector.shape_cast %269 : vector<8x16x4xbf16> to vector<128x4xbf16>
    %c0_194 = arith.constant 0 : index
    %c24 = arith.constant 24 : index
    %271 = vector.load %arg13[%c0_194, %c24] : memref<128x640xbf16, #tpu.memory_space<vmem>>, vector<128x4xbf16>
    tpu.vector_store %arg13[%c0_194, %c24], %270 {strides = array<i32>} : memref<128x640xbf16, #tpu.memory_space<vmem>>, vector<128x4xbf16>,
    %272 = vector.extract_strided_slice %268 {offsets = [0, 1, 0], sizes = [8, 16, 4], strides = [1, 1, 1]} : vector<8x18x4xbf16> to vector<8x16x4xbf16>
    %273 = vector.shape_cast %272 : vector<8x16x4xbf16> to vector<128x4xbf16>
    %c0_195 = arith.constant 0 : index
    %c28 = arith.constant 28 : index
    %274 = vector.load %arg13[%c0_195, %c28] : memref<128x640xbf16, #tpu.memory_space<vmem>>, vector<128x4xbf16>
    tpu.vector_store %arg13[%c0_195, %c28], %273 {strides = array<i32>} : memref<128x640xbf16, #tpu.memory_space<vmem>>, vector<128x4xbf16>,
    %275 = vector.extract_strided_slice %268 {offsets = [0, 2, 0], sizes = [8, 16, 4], strides = [1, 1, 1]} : vector<8x18x4xbf16> to vector<8x16x4xbf16>
    %276 = vector.shape_cast %275 : vector<8x16x4xbf16> to vector<128x4xbf16>
    %c0_196 = arith.constant 0 : index
    %c32 = arith.constant 32 : index
    %277 = vector.load %arg13[%c0_196, %c32] : memref<128x640xbf16, #tpu.memory_space<vmem>>, vector<128x4xbf16>
    tpu.vector_store %arg13[%c0_196, %c32], %276 {strides = array<i32>} : memref<128x640xbf16, #tpu.memory_space<vmem>>, vector<128x4xbf16>,
    %c0_197 = arith.constant 0 : index
    %c0_198 = arith.constant 0 : index
    %278 = vector.load %arg13[%c0_197, %c0_198] : memref<128x640xbf16, #tpu.memory_space<vmem>>, vector<128x128xbf16>
    %c0_199 = arith.constant 0 : index
    %c0_200 = arith.constant 0 : index
    %279 = vector.load %arg3[%c0_199, %c0_200] : memref<128x32xbf16, #tpu.memory_space<vmem>>, vector<128x32xbf16>
    %cst_201 = arith.constant dense<0.000000e+00> : vector<128x32xf32>
    %280 = tpu.matmul %278, %279, %cst_201 {dimension_numbers = #tpu.dot_dimension_numbers<[1], [0], [0], [1], [0, 0, 1, 1], [], []>} : vector<128x128xbf16>, vector<128x32xbf16>, vector<128x32xf32> -> vector<128x32xf32>
    %c0_202 = arith.constant 0 : index
    %c0_203 = arith.constant 0 : index
    %281 = vector.load %arg4[%c0_202, %c0_203] : memref<1x32xf32, #tpu.memory_space<vmem>>, vector<1x32xf32>
    %282 = vector.broadcast %281 : vector<1x32xf32> to vector<128x32xf32>
    %283 = arith.addf %280, %282 : vector<128x32xf32>
    %cst_204 = arith.constant 0.000000e+00 : f32
    %284 = vector.broadcast %cst_204 : f32 to vector<128x32xf32>
    %285 = arith.maximumf %283, %284 : vector<128x32xf32>
    %286 = vector.shape_cast %285 : vector<128x32xf32> to vector<8x16x32xf32>
    %287 = arith.truncf %286 : vector<8x16x32xf32> to vector<8x16x32xbf16>
    %c0_205 = arith.constant 0 : index
    %c1_206 = arith.constant 1 : index
    %c0_207 = arith.constant 0 : index
    %288 = vector.load %arg11[%c0_205, %c1_206, %c0_207] : memref<12x18x32xbf16, #tpu.memory_space<vmem>>, vector<8x16x32xbf16>
    tpu.vector_store %arg11[%c0_205, %c1_206, %c0_207], %287 {strides = array<i32>} : memref<12x18x32xbf16, #tpu.memory_space<vmem>>, vector<8x16x32xbf16>,
    %c8_208 = arith.constant 8 : index
    %c0_209 = arith.constant 0 : index
    %c0_210 = arith.constant 0 : index
    %289 = vector.load %arg10[%c8_208, %c0_209, %c0_210] : memref<14x18x4xbf16, #tpu.memory_space<vmem>>, vector<4x18x4xbf16>
    %290 = vector.extract_strided_slice %289 {offsets = [0, 0, 0], sizes = [4, 16, 4], strides = [1, 1, 1]} : vector<4x18x4xbf16> to vector<4x16x4xbf16>
    %291 = vector.shape_cast %290 : vector<4x16x4xbf16> to vector<64x4xbf16>
    %c0_211 = arith.constant 0 : index
    %c0_212 = arith.constant 0 : index
    %292 = vector.load %arg13[%c0_211, %c0_212] : memref<128x640xbf16, #tpu.memory_space<vmem>>, vector<64x4xbf16>
    tpu.vector_store %arg13[%c0_211, %c0_212], %291 {strides = array<i32>} : memref<128x640xbf16, #tpu.memory_space<vmem>>, vector<64x4xbf16>,
    %293 = vector.extract_strided_slice %289 {offsets = [0, 1, 0], sizes = [4, 16, 4], strides = [1, 1, 1]} : vector<4x18x4xbf16> to vector<4x16x4xbf16>
    %294 = vector.shape_cast %293 : vector<4x16x4xbf16> to vector<64x4xbf16>
    %c0_213 = arith.constant 0 : index
    %c4_214 = arith.constant 4 : index
    %295 = vector.load %arg13[%c0_213, %c4_214] : memref<128x640xbf16, #tpu.memory_space<vmem>>, vector<64x4xbf16>
    tpu.vector_store %arg13[%c0_213, %c4_214], %294 {strides = array<i32>} : memref<128x640xbf16, #tpu.memory_space<vmem>>, vector<64x4xbf16>,
    %296 = vector.extract_strided_slice %289 {offsets = [0, 2, 0], sizes = [4, 16, 4], strides = [1, 1, 1]} : vector<4x18x4xbf16> to vector<4x16x4xbf16>
    %297 = vector.shape_cast %296 : vector<4x16x4xbf16> to vector<64x4xbf16>
    %c0_215 = arith.constant 0 : index
    %c8_216 = arith.constant 8 : index
    %298 = vector.load %arg13[%c0_215, %c8_216] : memref<128x640xbf16, #tpu.memory_space<vmem>>, vector<64x4xbf16>
    tpu.vector_store %arg13[%c0_215, %c8_216], %297 {strides = array<i32>} : memref<128x640xbf16, #tpu.memory_space<vmem>>, vector<64x4xbf16>,
    %c9_217 = arith.constant 9 : index
    %c0_218 = arith.constant 0 : index
    %c0_219 = arith.constant 0 : index
    %299 = vector.load %arg10[%c9_217, %c0_218, %c0_219] : memref<14x18x4xbf16, #tpu.memory_space<vmem>>, vector<4x18x4xbf16>
    %300 = vector.extract_strided_slice %299 {offsets = [0, 0, 0], sizes = [4, 16, 4], strides = [1, 1, 1]} : vector<4x18x4xbf16> to vector<4x16x4xbf16>
    %301 = vector.shape_cast %300 : vector<4x16x4xbf16> to vector<64x4xbf16>
    %c0_220 = arith.constant 0 : index
    %c12_221 = arith.constant 12 : index
    %302 = vector.load %arg13[%c0_220, %c12_221] : memref<128x640xbf16, #tpu.memory_space<vmem>>, vector<64x4xbf16>
    tpu.vector_store %arg13[%c0_220, %c12_221], %301 {strides = array<i32>} : memref<128x640xbf16, #tpu.memory_space<vmem>>, vector<64x4xbf16>,
    %303 = vector.extract_strided_slice %299 {offsets = [0, 1, 0], sizes = [4, 16, 4], strides = [1, 1, 1]} : vector<4x18x4xbf16> to vector<4x16x4xbf16>
    %304 = vector.shape_cast %303 : vector<4x16x4xbf16> to vector<64x4xbf16>
    %c0_222 = arith.constant 0 : index
    %c16_223 = arith.constant 16 : index
    %305 = vector.load %arg13[%c0_222, %c16_223] : memref<128x640xbf16, #tpu.memory_space<vmem>>, vector<64x4xbf16>
    tpu.vector_store %arg13[%c0_222, %c16_223], %304 {strides = array<i32>} : memref<128x640xbf16, #tpu.memory_space<vmem>>, vector<64x4xbf16>,
    %306 = vector.extract_strided_slice %299 {offsets = [0, 2, 0], sizes = [4, 16, 4], strides = [1, 1, 1]} : vector<4x18x4xbf16> to vector<4x16x4xbf16>
    %307 = vector.shape_cast %306 : vector<4x16x4xbf16> to vector<64x4xbf16>
    %c0_224 = arith.constant 0 : index
    %c20_225 = arith.constant 20 : index
    %308 = vector.load %arg13[%c0_224, %c20_225] : memref<128x640xbf16, #tpu.memory_space<vmem>>, vector<64x4xbf16>
    tpu.vector_store %arg13[%c0_224, %c20_225], %307 {strides = array<i32>} : memref<128x640xbf16, #tpu.memory_space<vmem>>, vector<64x4xbf16>,
    %c10_226 = arith.constant 10 : index
    %c0_227 = arith.constant 0 : index
    %c0_228 = arith.constant 0 : index
    %309 = vector.load %arg10[%c10_226, %c0_227, %c0_228] : memref<14x18x4xbf16, #tpu.memory_space<vmem>>, vector<4x18x4xbf16>
    %310 = vector.extract_strided_slice %309 {offsets = [0, 0, 0], sizes = [4, 16, 4], strides = [1, 1, 1]} : vector<4x18x4xbf16> to vector<4x16x4xbf16>
    %311 = vector.shape_cast %310 : vector<4x16x4xbf16> to vector<64x4xbf16>
    %c0_229 = arith.constant 0 : index
    %c24_230 = arith.constant 24 : index
    %312 = vector.load %arg13[%c0_229, %c24_230] : memref<128x640xbf16, #tpu.memory_space<vmem>>, vector<64x4xbf16>
    tpu.vector_store %arg13[%c0_229, %c24_230], %311 {strides = array<i32>} : memref<128x640xbf16, #tpu.memory_space<vmem>>, vector<64x4xbf16>,
    %313 = vector.extract_strided_slice %309 {offsets = [0, 1, 0], sizes = [4, 16, 4], strides = [1, 1, 1]} : vector<4x18x4xbf16> to vector<4x16x4xbf16>
    %314 = vector.shape_cast %313 : vector<4x16x4xbf16> to vector<64x4xbf16>
    %c0_231 = arith.constant 0 : index
    %c28_232 = arith.constant 28 : index
    %315 = vector.load %arg13[%c0_231, %c28_232] : memref<128x640xbf16, #tpu.memory_space<vmem>>, vector<64x4xbf16>
    tpu.vector_store %arg13[%c0_231, %c28_232], %314 {strides = array<i32>} : memref<128x640xbf16, #tpu.memory_space<vmem>>, vector<64x4xbf16>,
    %316 = vector.extract_strided_slice %309 {offsets = [0, 2, 0], sizes = [4, 16, 4], strides = [1, 1, 1]} : vector<4x18x4xbf16> to vector<4x16x4xbf16>
    %317 = vector.shape_cast %316 : vector<4x16x4xbf16> to vector<64x4xbf16>
    %c0_233 = arith.constant 0 : index
    %c32_234 = arith.constant 32 : index
    %318 = vector.load %arg13[%c0_233, %c32_234] : memref<128x640xbf16, #tpu.memory_space<vmem>>, vector<64x4xbf16>
    tpu.vector_store %arg13[%c0_233, %c32_234], %317 {strides = array<i32>} : memref<128x640xbf16, #tpu.memory_space<vmem>>, vector<64x4xbf16>,
    %c0_235 = arith.constant 0 : index
    %c0_236 = arith.constant 0 : index
    %319 = vector.load %arg13[%c0_235, %c0_236] : memref<128x640xbf16, #tpu.memory_space<vmem>>, vector<64x128xbf16>
    %c0_237 = arith.constant 0 : index
    %c0_238 = arith.constant 0 : index
    %320 = vector.load %arg3[%c0_237, %c0_238] : memref<128x32xbf16, #tpu.memory_space<vmem>>, vector<128x32xbf16>
    %cst_239 = arith.constant dense<0.000000e+00> : vector<64x32xf32>
    %321 = tpu.matmul %319, %320, %cst_239 {dimension_numbers = #tpu.dot_dimension_numbers<[1], [0], [0], [1], [0, 0, 1, 1], [], []>} : vector<64x128xbf16>, vector<128x32xbf16>, vector<64x32xf32> -> vector<64x32xf32>
    %c0_240 = arith.constant 0 : index
    %c0_241 = arith.constant 0 : index
    %322 = vector.load %arg4[%c0_240, %c0_241] : memref<1x32xf32, #tpu.memory_space<vmem>>, vector<1x32xf32>
    %323 = vector.broadcast %322 : vector<1x32xf32> to vector<64x32xf32>
    %324 = arith.addf %321, %323 : vector<64x32xf32>
    %cst_242 = arith.constant 0.000000e+00 : f32
    %325 = vector.broadcast %cst_242 : f32 to vector<64x32xf32>
    %326 = arith.maximumf %324, %325 : vector<64x32xf32>
    %327 = vector.shape_cast %326 : vector<64x32xf32> to vector<4x16x32xf32>
    %328 = arith.truncf %327 : vector<4x16x32xf32> to vector<4x16x32xbf16>
    %c8_243 = arith.constant 8 : index
    %c1_244 = arith.constant 1 : index
    %c0_245 = arith.constant 0 : index
    %329 = vector.load %arg11[%c8_243, %c1_244, %c0_245] : memref<12x18x32xbf16, #tpu.memory_space<vmem>>, vector<4x16x32xbf16>
    tpu.vector_store %arg11[%c8_243, %c1_244, %c0_245], %328 {strides = array<i32>} : memref<12x18x32xbf16, #tpu.memory_space<vmem>>, vector<4x16x32xbf16>,
    %c0_i32_246 = arith.constant 0 : i32
    %330 = arith.cmpi eq, %arg1, %c0_i32_246 : i32
    %331 = arith.extui %330 : i1 to i32
    %c0_i32_247 = arith.constant 0 : i32
    %332 = arith.cmpi ne, %331, %c0_i32_247 : i32
    scf.if %332 {
      %cst_357 = arith.constant 0.000000e+00 : bf16
      %464 = vector.broadcast %cst_357 : bf16 to vector<2x18x32xbf16>
      %c0_358 = arith.constant 0 : index
      %c0_359 = arith.constant 0 : index
      %c0_360 = arith.constant 0 : index
      %465 = vector.load %arg11[%c0_358, %c0_359, %c0_360] : memref<12x18x32xbf16, #tpu.memory_space<vmem>>, vector<2x18x32xbf16>
      tpu.vector_store %arg11[%c0_358, %c0_359, %c0_360], %464 {strides = array<i32>} : memref<12x18x32xbf16, #tpu.memory_space<vmem>>, vector<2x18x32xbf16>,
    } else {
    }
    %c1_i32_248 = arith.constant 1 : i32
    %333 = arith.cmpi eq, %arg1, %c1_i32_248 : i32
    %334 = arith.extui %333 : i1 to i32
    %c0_i32_249 = arith.constant 0 : i32
    %335 = arith.cmpi ne, %334, %c0_i32_249 : i32
    scf.if %335 {
      %cst_357 = arith.constant 0.000000e+00 : bf16
      %464 = vector.broadcast %cst_357 : bf16 to vector<2x18x32xbf16>
      %c10_358 = arith.constant 10 : index
      %c0_359 = arith.constant 0 : index
      %c0_360 = arith.constant 0 : index
      %465 = vector.load %arg11[%c10_358, %c0_359, %c0_360] : memref<12x18x32xbf16, #tpu.memory_space<vmem>>, vector<2x18x32xbf16>
      tpu.vector_store %arg11[%c10_358, %c0_359, %c0_360], %464 {strides = array<i32>} : memref<12x18x32xbf16, #tpu.memory_space<vmem>>, vector<2x18x32xbf16>,
    } else {
    }
    %c0_250 = arith.constant 0 : index
    %c0_251 = arith.constant 0 : index
    %c0_252 = arith.constant 0 : index
    %336 = vector.load %arg11[%c0_250, %c0_251, %c0_252] : memref<12x18x32xbf16, #tpu.memory_space<vmem>>, vector<8x18x32xbf16>
    %337 = vector.extract_strided_slice %336 {offsets = [0, 0, 0], sizes = [8, 16, 32], strides = [1, 1, 1]} : vector<8x18x32xbf16> to vector<8x16x32xbf16>
    %338 = vector.shape_cast %337 : vector<8x16x32xbf16> to vector<128x32xbf16>
    %c0_253 = arith.constant 0 : index
    %c0_254 = arith.constant 0 : index
    %339 = vector.load %arg13[%c0_253, %c0_254] : memref<128x640xbf16, #tpu.memory_space<vmem>>, vector<128x32xbf16>
    tpu.vector_store %arg13[%c0_253, %c0_254], %338 {strides = array<i32>} : memref<128x640xbf16, #tpu.memory_space<vmem>>, vector<128x32xbf16>,
    %340 = vector.extract_strided_slice %336 {offsets = [0, 1, 0], sizes = [8, 16, 32], strides = [1, 1, 1]} : vector<8x18x32xbf16> to vector<8x16x32xbf16>
    %341 = vector.shape_cast %340 : vector<8x16x32xbf16> to vector<128x32xbf16>
    %c0_255 = arith.constant 0 : index
    %c32_256 = arith.constant 32 : index
    %342 = vector.load %arg13[%c0_255, %c32_256] : memref<128x640xbf16, #tpu.memory_space<vmem>>, vector<128x32xbf16>
    tpu.vector_store %arg13[%c0_255, %c32_256], %341 {strides = array<i32>} : memref<128x640xbf16, #tpu.memory_space<vmem>>, vector<128x32xbf16>,
    %343 = vector.extract_strided_slice %336 {offsets = [0, 2, 0], sizes = [8, 16, 32], strides = [1, 1, 1]} : vector<8x18x32xbf16> to vector<8x16x32xbf16>
    %344 = vector.shape_cast %343 : vector<8x16x32xbf16> to vector<128x32xbf16>
    %c0_257 = arith.constant 0 : index
    %c64 = arith.constant 64 : index
    %345 = vector.load %arg13[%c0_257, %c64] : memref<128x640xbf16, #tpu.memory_space<vmem>>, vector<128x32xbf16>
    tpu.vector_store %arg13[%c0_257, %c64], %344 {strides = array<i32>} : memref<128x640xbf16, #tpu.memory_space<vmem>>, vector<128x32xbf16>,
    %c1_258 = arith.constant 1 : index
    %c0_259 = arith.constant 0 : index
    %c0_260 = arith.constant 0 : index
    %346 = vector.load %arg11[%c1_258, %c0_259, %c0_260] : memref<12x18x32xbf16, #tpu.memory_space<vmem>>, vector<8x18x32xbf16>
    %347 = vector.extract_strided_slice %346 {offsets = [0, 0, 0], sizes = [8, 16, 32], strides = [1, 1, 1]} : vector<8x18x32xbf16> to vector<8x16x32xbf16>
    %348 = vector.shape_cast %347 : vector<8x16x32xbf16> to vector<128x32xbf16>
    %c0_261 = arith.constant 0 : index
    %c96 = arith.constant 96 : index
    %349 = vector.load %arg13[%c0_261, %c96] : memref<128x640xbf16, #tpu.memory_space<vmem>>, vector<128x32xbf16>
    tpu.vector_store %arg13[%c0_261, %c96], %348 {strides = array<i32>} : memref<128x640xbf16, #tpu.memory_space<vmem>>, vector<128x32xbf16>,
    %350 = vector.extract_strided_slice %346 {offsets = [0, 1, 0], sizes = [8, 16, 32], strides = [1, 1, 1]} : vector<8x18x32xbf16> to vector<8x16x32xbf16>
    %351 = vector.shape_cast %350 : vector<8x16x32xbf16> to vector<128x32xbf16>
    %c0_262 = arith.constant 0 : index
    %c128 = arith.constant 128 : index
    %352 = vector.load %arg13[%c0_262, %c128] : memref<128x640xbf16, #tpu.memory_space<vmem>>, vector<128x32xbf16>
    tpu.vector_store %arg13[%c0_262, %c128], %351 {strides = array<i32>} : memref<128x640xbf16, #tpu.memory_space<vmem>>, vector<128x32xbf16>,
    %353 = vector.extract_strided_slice %346 {offsets = [0, 2, 0], sizes = [8, 16, 32], strides = [1, 1, 1]} : vector<8x18x32xbf16> to vector<8x16x32xbf16>
    %354 = vector.shape_cast %353 : vector<8x16x32xbf16> to vector<128x32xbf16>
    %c0_263 = arith.constant 0 : index
    %c160 = arith.constant 160 : index
    %355 = vector.load %arg13[%c0_263, %c160] : memref<128x640xbf16, #tpu.memory_space<vmem>>, vector<128x32xbf16>
    tpu.vector_store %arg13[%c0_263, %c160], %354 {strides = array<i32>} : memref<128x640xbf16, #tpu.memory_space<vmem>>, vector<128x32xbf16>,
    %c2_264 = arith.constant 2 : index
    %c0_265 = arith.constant 0 : index
    %c0_266 = arith.constant 0 : index
    %356 = vector.load %arg11[%c2_264, %c0_265, %c0_266] : memref<12x18x32xbf16, #tpu.memory_space<vmem>>, vector<8x18x32xbf16>
    %357 = vector.extract_strided_slice %356 {offsets = [0, 0, 0], sizes = [8, 16, 32], strides = [1, 1, 1]} : vector<8x18x32xbf16> to vector<8x16x32xbf16>
    %358 = vector.shape_cast %357 : vector<8x16x32xbf16> to vector<128x32xbf16>
    %c0_267 = arith.constant 0 : index
    %c192 = arith.constant 192 : index
    %359 = vector.load %arg13[%c0_267, %c192] : memref<128x640xbf16, #tpu.memory_space<vmem>>, vector<128x32xbf16>
    tpu.vector_store %arg13[%c0_267, %c192], %358 {strides = array<i32>} : memref<128x640xbf16, #tpu.memory_space<vmem>>, vector<128x32xbf16>,
    %360 = vector.extract_strided_slice %356 {offsets = [0, 1, 0], sizes = [8, 16, 32], strides = [1, 1, 1]} : vector<8x18x32xbf16> to vector<8x16x32xbf16>
    %361 = vector.shape_cast %360 : vector<8x16x32xbf16> to vector<128x32xbf16>
    %c0_268 = arith.constant 0 : index
    %c224 = arith.constant 224 : index
    %362 = vector.load %arg13[%c0_268, %c224] : memref<128x640xbf16, #tpu.memory_space<vmem>>, vector<128x32xbf16>
    tpu.vector_store %arg13[%c0_268, %c224], %361 {strides = array<i32>} : memref<128x640xbf16, #tpu.memory_space<vmem>>, vector<128x32xbf16>,
    %363 = vector.extract_strided_slice %356 {offsets = [0, 2, 0], sizes = [8, 16, 32], strides = [1, 1, 1]} : vector<8x18x32xbf16> to vector<8x16x32xbf16>
    %364 = vector.shape_cast %363 : vector<8x16x32xbf16> to vector<128x32xbf16>
    %c0_269 = arith.constant 0 : index
    %c256 = arith.constant 256 : index
    %365 = vector.load %arg13[%c0_269, %c256] : memref<128x640xbf16, #tpu.memory_space<vmem>>, vector<128x32xbf16>
    tpu.vector_store %arg13[%c0_269, %c256], %364 {strides = array<i32>} : memref<128x640xbf16, #tpu.memory_space<vmem>>, vector<128x32xbf16>,
    %c0_270 = arith.constant 0 : index
    %c0_271 = arith.constant 0 : index
    %366 = vector.load %arg13[%c0_270, %c0_271] : memref<128x640xbf16, #tpu.memory_space<vmem>>, vector<128x384xbf16>
    %c0_272 = arith.constant 0 : index
    %c0_273 = arith.constant 0 : index
    %367 = vector.load %arg5[%c0_272, %c0_273] : memref<384x64xbf16, #tpu.memory_space<vmem>>, vector<384x64xbf16>
    %cst_274 = arith.constant dense<0.000000e+00> : vector<128x64xf32>
    %368 = tpu.matmul %366, %367, %cst_274 {dimension_numbers = #tpu.dot_dimension_numbers<[1], [0], [0], [1], [0, 0, 1, 1], [], []>} : vector<128x384xbf16>, vector<384x64xbf16>, vector<128x64xf32> -> vector<128x64xf32>
    %c0_275 = arith.constant 0 : index
    %c0_276 = arith.constant 0 : index
    %369 = vector.load %arg6[%c0_275, %c0_276] : memref<1x64xf32, #tpu.memory_space<vmem>>, vector<1x64xf32>
    %370 = vector.broadcast %369 : vector<1x64xf32> to vector<128x64xf32>
    %371 = arith.addf %368, %370 : vector<128x64xf32>
    %cst_277 = arith.constant 0.000000e+00 : f32
    %372 = vector.broadcast %cst_277 : f32 to vector<128x64xf32>
    %373 = arith.maximumf %371, %372 : vector<128x64xf32>
    %374 = vector.shape_cast %373 : vector<128x64xf32> to vector<8x16x64xf32>
    %375 = arith.truncf %374 : vector<8x16x64xf32> to vector<8x16x64xbf16>
    %c0_278 = arith.constant 0 : index
    %c1_279 = arith.constant 1 : index
    %c0_280 = arith.constant 0 : index
    %376 = vector.load %arg12[%c0_278, %c1_279, %c0_280] : memref<10x18x64xbf16, #tpu.memory_space<vmem>>, vector<8x16x64xbf16>
    tpu.vector_store %arg12[%c0_278, %c1_279, %c0_280], %375 {strides = array<i32>} : memref<10x18x64xbf16, #tpu.memory_space<vmem>>, vector<8x16x64xbf16>,
    %c8_281 = arith.constant 8 : index
    %c0_282 = arith.constant 0 : index
    %c0_283 = arith.constant 0 : index
    %377 = vector.load %arg11[%c8_281, %c0_282, %c0_283] : memref<12x18x32xbf16, #tpu.memory_space<vmem>>, vector<2x18x32xbf16>
    %378 = vector.extract_strided_slice %377 {offsets = [0, 0, 0], sizes = [2, 16, 32], strides = [1, 1, 1]} : vector<2x18x32xbf16> to vector<2x16x32xbf16>
    %379 = vector.shape_cast %378 : vector<2x16x32xbf16> to vector<32x32xbf16>
    %c0_284 = arith.constant 0 : index
    %c0_285 = arith.constant 0 : index
    %380 = vector.load %arg13[%c0_284, %c0_285] : memref<128x640xbf16, #tpu.memory_space<vmem>>, vector<32x32xbf16>
    tpu.vector_store %arg13[%c0_284, %c0_285], %379 {strides = array<i32>} : memref<128x640xbf16, #tpu.memory_space<vmem>>, vector<32x32xbf16>,
    %381 = vector.extract_strided_slice %377 {offsets = [0, 1, 0], sizes = [2, 16, 32], strides = [1, 1, 1]} : vector<2x18x32xbf16> to vector<2x16x32xbf16>
    %382 = vector.shape_cast %381 : vector<2x16x32xbf16> to vector<32x32xbf16>
    %c0_286 = arith.constant 0 : index
    %c32_287 = arith.constant 32 : index
    %383 = vector.load %arg13[%c0_286, %c32_287] : memref<128x640xbf16, #tpu.memory_space<vmem>>, vector<32x32xbf16>
    tpu.vector_store %arg13[%c0_286, %c32_287], %382 {strides = array<i32>} : memref<128x640xbf16, #tpu.memory_space<vmem>>, vector<32x32xbf16>,
    %384 = vector.extract_strided_slice %377 {offsets = [0, 2, 0], sizes = [2, 16, 32], strides = [1, 1, 1]} : vector<2x18x32xbf16> to vector<2x16x32xbf16>
    %385 = vector.shape_cast %384 : vector<2x16x32xbf16> to vector<32x32xbf16>
    %c0_288 = arith.constant 0 : index
    %c64_289 = arith.constant 64 : index
    %386 = vector.load %arg13[%c0_288, %c64_289] : memref<128x640xbf16, #tpu.memory_space<vmem>>, vector<32x32xbf16>
    tpu.vector_store %arg13[%c0_288, %c64_289], %385 {strides = array<i32>} : memref<128x640xbf16, #tpu.memory_space<vmem>>, vector<32x32xbf16>,
    %c9_290 = arith.constant 9 : index
    %c0_291 = arith.constant 0 : index
    %c0_292 = arith.constant 0 : index
    %387 = vector.load %arg11[%c9_290, %c0_291, %c0_292] : memref<12x18x32xbf16, #tpu.memory_space<vmem>>, vector<2x18x32xbf16>
    %388 = vector.extract_strided_slice %387 {offsets = [0, 0, 0], sizes = [2, 16, 32], strides = [1, 1, 1]} : vector<2x18x32xbf16> to vector<2x16x32xbf16>
    %389 = vector.shape_cast %388 : vector<2x16x32xbf16> to vector<32x32xbf16>
    %c0_293 = arith.constant 0 : index
    %c96_294 = arith.constant 96 : index
    %390 = vector.load %arg13[%c0_293, %c96_294] : memref<128x640xbf16, #tpu.memory_space<vmem>>, vector<32x32xbf16>
    tpu.vector_store %arg13[%c0_293, %c96_294], %389 {strides = array<i32>} : memref<128x640xbf16, #tpu.memory_space<vmem>>, vector<32x32xbf16>,
    %391 = vector.extract_strided_slice %387 {offsets = [0, 1, 0], sizes = [2, 16, 32], strides = [1, 1, 1]} : vector<2x18x32xbf16> to vector<2x16x32xbf16>
    %392 = vector.shape_cast %391 : vector<2x16x32xbf16> to vector<32x32xbf16>
    %c0_295 = arith.constant 0 : index
    %c128_296 = arith.constant 128 : index
    %393 = vector.load %arg13[%c0_295, %c128_296] : memref<128x640xbf16, #tpu.memory_space<vmem>>, vector<32x32xbf16>
    tpu.vector_store %arg13[%c0_295, %c128_296], %392 {strides = array<i32>} : memref<128x640xbf16, #tpu.memory_space<vmem>>, vector<32x32xbf16>,
    %394 = vector.extract_strided_slice %387 {offsets = [0, 2, 0], sizes = [2, 16, 32], strides = [1, 1, 1]} : vector<2x18x32xbf16> to vector<2x16x32xbf16>
    %395 = vector.shape_cast %394 : vector<2x16x32xbf16> to vector<32x32xbf16>
    %c0_297 = arith.constant 0 : index
    %c160_298 = arith.constant 160 : index
    %396 = vector.load %arg13[%c0_297, %c160_298] : memref<128x640xbf16, #tpu.memory_space<vmem>>, vector<32x32xbf16>
    tpu.vector_store %arg13[%c0_297, %c160_298], %395 {strides = array<i32>} : memref<128x640xbf16, #tpu.memory_space<vmem>>, vector<32x32xbf16>,
    %c10_299 = arith.constant 10 : index
    %c0_300 = arith.constant 0 : index
    %c0_301 = arith.constant 0 : index
    %397 = vector.load %arg11[%c10_299, %c0_300, %c0_301] : memref<12x18x32xbf16, #tpu.memory_space<vmem>>, vector<2x18x32xbf16>
    %398 = vector.extract_strided_slice %397 {offsets = [0, 0, 0], sizes = [2, 16, 32], strides = [1, 1, 1]} : vector<2x18x32xbf16> to vector<2x16x32xbf16>
    %399 = vector.shape_cast %398 : vector<2x16x32xbf16> to vector<32x32xbf16>
    %c0_302 = arith.constant 0 : index
    %c192_303 = arith.constant 192 : index
    %400 = vector.load %arg13[%c0_302, %c192_303] : memref<128x640xbf16, #tpu.memory_space<vmem>>, vector<32x32xbf16>
    tpu.vector_store %arg13[%c0_302, %c192_303], %399 {strides = array<i32>} : memref<128x640xbf16, #tpu.memory_space<vmem>>, vector<32x32xbf16>,
    %401 = vector.extract_strided_slice %397 {offsets = [0, 1, 0], sizes = [2, 16, 32], strides = [1, 1, 1]} : vector<2x18x32xbf16> to vector<2x16x32xbf16>
    %402 = vector.shape_cast %401 : vector<2x16x32xbf16> to vector<32x32xbf16>
    %c0_304 = arith.constant 0 : index
    %c224_305 = arith.constant 224 : index
    %403 = vector.load %arg13[%c0_304, %c224_305] : memref<128x640xbf16, #tpu.memory_space<vmem>>, vector<32x32xbf16>
    tpu.vector_store %arg13[%c0_304, %c224_305], %402 {strides = array<i32>} : memref<128x640xbf16, #tpu.memory_space<vmem>>, vector<32x32xbf16>,
    %404 = vector.extract_strided_slice %397 {offsets = [0, 2, 0], sizes = [2, 16, 32], strides = [1, 1, 1]} : vector<2x18x32xbf16> to vector<2x16x32xbf16>
    %405 = vector.shape_cast %404 : vector<2x16x32xbf16> to vector<32x32xbf16>
    %c0_306 = arith.constant 0 : index
    %c256_307 = arith.constant 256 : index
    %406 = vector.load %arg13[%c0_306, %c256_307] : memref<128x640xbf16, #tpu.memory_space<vmem>>, vector<32x32xbf16>
    tpu.vector_store %arg13[%c0_306, %c256_307], %405 {strides = array<i32>} : memref<128x640xbf16, #tpu.memory_space<vmem>>, vector<32x32xbf16>,
    %c0_308 = arith.constant 0 : index
    %c0_309 = arith.constant 0 : index
    %407 = vector.load %arg13[%c0_308, %c0_309] : memref<128x640xbf16, #tpu.memory_space<vmem>>, vector<32x384xbf16>
    %c0_310 = arith.constant 0 : index
    %c0_311 = arith.constant 0 : index
    %408 = vector.load %arg5[%c0_310, %c0_311] : memref<384x64xbf16, #tpu.memory_space<vmem>>, vector<384x64xbf16>
    %cst_312 = arith.constant dense<0.000000e+00> : vector<32x64xf32>
    %409 = tpu.matmul %407, %408, %cst_312 {dimension_numbers = #tpu.dot_dimension_numbers<[1], [0], [0], [1], [0, 0, 1, 1], [], []>} : vector<32x384xbf16>, vector<384x64xbf16>, vector<32x64xf32> -> vector<32x64xf32>
    %c0_313 = arith.constant 0 : index
    %c0_314 = arith.constant 0 : index
    %410 = vector.load %arg6[%c0_313, %c0_314] : memref<1x64xf32, #tpu.memory_space<vmem>>, vector<1x64xf32>
    %411 = vector.broadcast %410 : vector<1x64xf32> to vector<32x64xf32>
    %412 = arith.addf %409, %411 : vector<32x64xf32>
    %cst_315 = arith.constant 0.000000e+00 : f32
    %413 = vector.broadcast %cst_315 : f32 to vector<32x64xf32>
    %414 = arith.maximumf %412, %413 : vector<32x64xf32>
    %415 = vector.shape_cast %414 : vector<32x64xf32> to vector<2x16x64xf32>
    %416 = arith.truncf %415 : vector<2x16x64xf32> to vector<2x16x64xbf16>
    %c8_316 = arith.constant 8 : index
    %c1_317 = arith.constant 1 : index
    %c0_318 = arith.constant 0 : index
    %417 = vector.load %arg12[%c8_316, %c1_317, %c0_318] : memref<10x18x64xbf16, #tpu.memory_space<vmem>>, vector<2x16x64xbf16>
    tpu.vector_store %arg12[%c8_316, %c1_317, %c0_318], %416 {strides = array<i32>} : memref<10x18x64xbf16, #tpu.memory_space<vmem>>, vector<2x16x64xbf16>,
    %c0_i32_319 = arith.constant 0 : i32
    %418 = arith.cmpi eq, %arg1, %c0_i32_319 : i32
    %419 = arith.extui %418 : i1 to i32
    %c0_i32_320 = arith.constant 0 : i32
    %420 = arith.cmpi ne, %419, %c0_i32_320 : i32
    scf.if %420 {
      %cst_357 = arith.constant 0.000000e+00 : bf16
      %464 = vector.broadcast %cst_357 : bf16 to vector<1x18x64xbf16>
      %c0_358 = arith.constant 0 : index
      %c0_359 = arith.constant 0 : index
      %c0_360 = arith.constant 0 : index
      %465 = vector.load %arg12[%c0_358, %c0_359, %c0_360] : memref<10x18x64xbf16, #tpu.memory_space<vmem>>, vector<1x18x64xbf16>
      tpu.vector_store %arg12[%c0_358, %c0_359, %c0_360], %464 {strides = array<i32>} : memref<10x18x64xbf16, #tpu.memory_space<vmem>>, vector<1x18x64xbf16>,
    } else {
    }
    %c1_i32_321 = arith.constant 1 : i32
    %421 = arith.cmpi eq, %arg1, %c1_i32_321 : i32
    %422 = arith.extui %421 : i1 to i32
    %c0_i32_322 = arith.constant 0 : i32
    %423 = arith.cmpi ne, %422, %c0_i32_322 : i32
    scf.if %423 {
      %cst_357 = arith.constant 0.000000e+00 : bf16
      %464 = vector.broadcast %cst_357 : bf16 to vector<1x18x64xbf16>
      %c9_358 = arith.constant 9 : index
      %c0_359 = arith.constant 0 : index
      %c0_360 = arith.constant 0 : index
      %465 = vector.load %arg12[%c9_358, %c0_359, %c0_360] : memref<10x18x64xbf16, #tpu.memory_space<vmem>>, vector<1x18x64xbf16>
      tpu.vector_store %arg12[%c9_358, %c0_359, %c0_360], %464 {strides = array<i32>} : memref<10x18x64xbf16, #tpu.memory_space<vmem>>, vector<1x18x64xbf16>,
    } else {
    }
    %c0_323 = arith.constant 0 : index
    %c0_324 = arith.constant 0 : index
    %c0_325 = arith.constant 0 : index
    %424 = vector.load %arg12[%c0_323, %c0_324, %c0_325] : memref<10x18x64xbf16, #tpu.memory_space<vmem>>, vector<8x18x64xbf16>
    %425 = vector.extract_strided_slice %424 {offsets = [0, 0, 0], sizes = [8, 16, 64], strides = [1, 1, 1]} : vector<8x18x64xbf16> to vector<8x16x64xbf16>
    %426 = vector.shape_cast %425 : vector<8x16x64xbf16> to vector<128x64xbf16>
    %c0_326 = arith.constant 0 : index
    %c0_327 = arith.constant 0 : index
    %427 = vector.load %arg13[%c0_326, %c0_327] : memref<128x640xbf16, #tpu.memory_space<vmem>>, vector<128x64xbf16>
    tpu.vector_store %arg13[%c0_326, %c0_327], %426 {strides = array<i32>} : memref<128x640xbf16, #tpu.memory_space<vmem>>, vector<128x64xbf16>,
    %428 = vector.extract_strided_slice %424 {offsets = [0, 1, 0], sizes = [8, 16, 64], strides = [1, 1, 1]} : vector<8x18x64xbf16> to vector<8x16x64xbf16>
    %429 = vector.shape_cast %428 : vector<8x16x64xbf16> to vector<128x64xbf16>
    %c0_328 = arith.constant 0 : index
    %c64_329 = arith.constant 64 : index
    %430 = vector.load %arg13[%c0_328, %c64_329] : memref<128x640xbf16, #tpu.memory_space<vmem>>, vector<128x64xbf16>
    tpu.vector_store %arg13[%c0_328, %c64_329], %429 {strides = array<i32>} : memref<128x640xbf16, #tpu.memory_space<vmem>>, vector<128x64xbf16>,
    %431 = vector.extract_strided_slice %424 {offsets = [0, 2, 0], sizes = [8, 16, 64], strides = [1, 1, 1]} : vector<8x18x64xbf16> to vector<8x16x64xbf16>
    %432 = vector.shape_cast %431 : vector<8x16x64xbf16> to vector<128x64xbf16>
    %c0_330 = arith.constant 0 : index
    %c128_331 = arith.constant 128 : index
    %433 = vector.load %arg13[%c0_330, %c128_331] : memref<128x640xbf16, #tpu.memory_space<vmem>>, vector<128x64xbf16>
    tpu.vector_store %arg13[%c0_330, %c128_331], %432 {strides = array<i32>} : memref<128x640xbf16, #tpu.memory_space<vmem>>, vector<128x64xbf16>,
    %c1_332 = arith.constant 1 : index
    %c0_333 = arith.constant 0 : index
    %c0_334 = arith.constant 0 : index
    %434 = vector.load %arg12[%c1_332, %c0_333, %c0_334] : memref<10x18x64xbf16, #tpu.memory_space<vmem>>, vector<8x18x64xbf16>
    %435 = vector.extract_strided_slice %434 {offsets = [0, 0, 0], sizes = [8, 16, 64], strides = [1, 1, 1]} : vector<8x18x64xbf16> to vector<8x16x64xbf16>
    %436 = vector.shape_cast %435 : vector<8x16x64xbf16> to vector<128x64xbf16>
    %c0_335 = arith.constant 0 : index
    %c192_336 = arith.constant 192 : index
    %437 = vector.load %arg13[%c0_335, %c192_336] : memref<128x640xbf16, #tpu.memory_space<vmem>>, vector<128x64xbf16>
    tpu.vector_store %arg13[%c0_335, %c192_336], %436 {strides = array<i32>} : memref<128x640xbf16, #tpu.memory_space<vmem>>, vector<128x64xbf16>,
    %438 = vector.extract_strided_slice %434 {offsets = [0, 1, 0], sizes = [8, 16, 64], strides = [1, 1, 1]} : vector<8x18x64xbf16> to vector<8x16x64xbf16>
    %439 = vector.shape_cast %438 : vector<8x16x64xbf16> to vector<128x64xbf16>
    %c0_337 = arith.constant 0 : index
    %c256_338 = arith.constant 256 : index
    %440 = vector.load %arg13[%c0_337, %c256_338] : memref<128x640xbf16, #tpu.memory_space<vmem>>, vector<128x64xbf16>
    tpu.vector_store %arg13[%c0_337, %c256_338], %439 {strides = array<i32>} : memref<128x640xbf16, #tpu.memory_space<vmem>>, vector<128x64xbf16>,
    %441 = vector.extract_strided_slice %434 {offsets = [0, 2, 0], sizes = [8, 16, 64], strides = [1, 1, 1]} : vector<8x18x64xbf16> to vector<8x16x64xbf16>
    %442 = vector.shape_cast %441 : vector<8x16x64xbf16> to vector<128x64xbf16>
    %c0_339 = arith.constant 0 : index
    %c320 = arith.constant 320 : index
    %443 = vector.load %arg13[%c0_339, %c320] : memref<128x640xbf16, #tpu.memory_space<vmem>>, vector<128x64xbf16>
    tpu.vector_store %arg13[%c0_339, %c320], %442 {strides = array<i32>} : memref<128x640xbf16, #tpu.memory_space<vmem>>, vector<128x64xbf16>,
    %c2_340 = arith.constant 2 : index
    %c0_341 = arith.constant 0 : index
    %c0_342 = arith.constant 0 : index
    %444 = vector.load %arg12[%c2_340, %c0_341, %c0_342] : memref<10x18x64xbf16, #tpu.memory_space<vmem>>, vector<8x18x64xbf16>
    %445 = vector.extract_strided_slice %444 {offsets = [0, 0, 0], sizes = [8, 16, 64], strides = [1, 1, 1]} : vector<8x18x64xbf16> to vector<8x16x64xbf16>
    %446 = vector.shape_cast %445 : vector<8x16x64xbf16> to vector<128x64xbf16>
    %c0_343 = arith.constant 0 : index
    %c384 = arith.constant 384 : index
    %447 = vector.load %arg13[%c0_343, %c384] : memref<128x640xbf16, #tpu.memory_space<vmem>>, vector<128x64xbf16>
    tpu.vector_store %arg13[%c0_343, %c384], %446 {strides = array<i32>} : memref<128x640xbf16, #tpu.memory_space<vmem>>, vector<128x64xbf16>,
    %448 = vector.extract_strided_slice %444 {offsets = [0, 1, 0], sizes = [8, 16, 64], strides = [1, 1, 1]} : vector<8x18x64xbf16> to vector<8x16x64xbf16>
    %449 = vector.shape_cast %448 : vector<8x16x64xbf16> to vector<128x64xbf16>
    %c0_344 = arith.constant 0 : index
    %c448 = arith.constant 448 : index
    %450 = vector.load %arg13[%c0_344, %c448] : memref<128x640xbf16, #tpu.memory_space<vmem>>, vector<128x64xbf16>
    tpu.vector_store %arg13[%c0_344, %c448], %449 {strides = array<i32>} : memref<128x640xbf16, #tpu.memory_space<vmem>>, vector<128x64xbf16>,
    %451 = vector.extract_strided_slice %444 {offsets = [0, 2, 0], sizes = [8, 16, 64], strides = [1, 1, 1]} : vector<8x18x64xbf16> to vector<8x16x64xbf16>
    %452 = vector.shape_cast %451 : vector<8x16x64xbf16> to vector<128x64xbf16>
    %c0_345 = arith.constant 0 : index
    %c512 = arith.constant 512 : index
    %453 = vector.load %arg13[%c0_345, %c512] : memref<128x640xbf16, #tpu.memory_space<vmem>>, vector<128x64xbf16>
    tpu.vector_store %arg13[%c0_345, %c512], %452 {strides = array<i32>} : memref<128x640xbf16, #tpu.memory_space<vmem>>, vector<128x64xbf16>,
    %c0_346 = arith.constant 0 : index
    %c0_347 = arith.constant 0 : index
    %454 = vector.load %arg13[%c0_346, %c0_347] : memref<128x640xbf16, #tpu.memory_space<vmem>>, vector<128x640xbf16>
    %c0_348 = arith.constant 0 : index
    %c0_349 = arith.constant 0 : index
    %455 = vector.load %arg7[%c0_348, %c0_349] : memref<640x64xbf16, #tpu.memory_space<vmem>>, vector<640x64xbf16>
    %cst_350 = arith.constant dense<0.000000e+00> : vector<128x64xf32>
    %456 = tpu.matmul %454, %455, %cst_350 {dimension_numbers = #tpu.dot_dimension_numbers<[1], [0], [0], [1], [0, 0, 1, 1], [], []>} : vector<128x640xbf16>, vector<640x64xbf16>, vector<128x64xf32> -> vector<128x64xf32>
    %c0_351 = arith.constant 0 : index
    %c0_352 = arith.constant 0 : index
    %457 = vector.load %arg8[%c0_351, %c0_352] : memref<1x64xf32, #tpu.memory_space<vmem>>, vector<1x64xf32>
    %458 = vector.broadcast %457 : vector<1x64xf32> to vector<128x64xf32>
    %459 = arith.addf %456, %458 : vector<128x64xf32>
    %460 = vector.shape_cast %459 : vector<128x64xf32> to vector<8x16x64xf32>
    %c0_353 = arith.constant 0 : index
    %c0_354 = arith.constant 0 : index
    %c0_355 = arith.constant 0 : index
    %c0_356 = arith.constant 0 : index
    %461 = vector.load %arg9[%c0_353, %c0_354, %c0_355, %c0_356] : memref<1x8x16x64xf32, #tpu.memory_space<vmem>>, vector<1x8x16x64xf32>
    %462 = vector.shape_cast %461 : vector<1x8x16x64xf32> to vector<8x16x64xf32>
    %463 = vector.shape_cast %460 : vector<8x16x64xf32> to vector<1x8x16x64xf32>
    tpu.vector_store %arg9[%c0_353, %c0_354, %c0_355, %c0_356], %463 {strides = array<i32>} : memref<1x8x16x64xf32, #tpu.memory_space<vmem>>, vector<1x8x16x64xf32>,
    return
  }
  func.func @transform_0(%arg0: i32, %arg1: i32) -> (i32, i32, i32, i32) {
    %c0_i32 = arith.constant 0 : i32
    %c0_i32_0 = arith.constant 0 : i32
    %c0_i32_1 = arith.constant 0 : i32
    %c0_i32_2 = arith.constant 0 : i32
    return %arg0, %c0_i32, %c0_i32_0, %c0_i32_1 : i32, i32, i32, i32
  }
  func.func @transform_1(%arg0: i32, %arg1: i32) -> (i32, i32) {
    %c0_i32 = arith.constant 0 : i32
    %c0_i32_0 = arith.constant 0 : i32
    %c0_i32_1 = arith.constant 0 : i32
    return %c0_i32, %c0_i32_0 : i32, i32
  }
  func.func @transform_2(%arg0: i32, %arg1: i32) -> (i32, i32) {
    %c0_i32 = arith.constant 0 : i32
    %c0_i32_0 = arith.constant 0 : i32
    %c0_i32_1 = arith.constant 0 : i32
    return %c0_i32, %c0_i32_0 : i32, i32
  }
  func.func @transform_3(%arg0: i32, %arg1: i32) -> (i32, i32) {
    %c0_i32 = arith.constant 0 : i32
    %c0_i32_0 = arith.constant 0 : i32
    %c0_i32_1 = arith.constant 0 : i32
    return %c0_i32, %c0_i32_0 : i32, i32
  }
  func.func @transform_4(%arg0: i32, %arg1: i32) -> (i32, i32) {
    %c0_i32 = arith.constant 0 : i32
    %c0_i32_0 = arith.constant 0 : i32
    %c0_i32_1 = arith.constant 0 : i32
    return %c0_i32, %c0_i32_0 : i32, i32
  }
  func.func @transform_5(%arg0: i32, %arg1: i32) -> (i32, i32) {
    %c0_i32 = arith.constant 0 : i32
    %c0_i32_0 = arith.constant 0 : i32
    %c0_i32_1 = arith.constant 0 : i32
    return %c0_i32, %c0_i32_0 : i32, i32
  }
  func.func @transform_6(%arg0: i32, %arg1: i32) -> (i32, i32) {
    %c0_i32 = arith.constant 0 : i32
    %c0_i32_0 = arith.constant 0 : i32
    %c0_i32_1 = arith.constant 0 : i32
    return %c0_i32, %c0_i32_0 : i32, i32
  }
  func.func @transform_7(%arg0: i32, %arg1: i32) -> (i32, i32, i32, i32) {
    %c0_i32 = arith.constant 0 : i32
    %c0_i32_0 = arith.constant 0 : i32
    %c0_i32_1 = arith.constant 0 : i32
    return %arg0, %arg1, %c0_i32, %c0_i32_0 : i32, i32, i32, i32
  }
}

</mosaic_0001>

<llo_original>
// kernel: feature_extractor_nhwc.1
$region0: #{feature_extractor_nhwc.1}
  #allocation0 [shape = 'u32[]', space=smem, size = 0x4, offset = 0x4, fixed_abs, tag = 'smem constant byte address 0x4 - core index']
  #allocation1 [shape = 'u32[144,128]{1,0:T(1,128)}', space=vmem, size = 0x12000, scoped, tag = 'internal scratch']
  #allocation2 [shape = 'bf16[14,18,4]{2,1,0:T(8,128)(2,1)}', space=vmem, size = 0x15000, scoped, tag = 'scratch operand']
  #allocation3 [shape = 'bf16[12,18,32]{2,1,0:T(8,128)(2,1)}', space=vmem, size = 0x12000, scoped, tag = 'scratch operand']
  #allocation4 [shape = 'bf16[10,18,64]{2,1,0:T(8,128)(2,1)}', space=vmem, size = 0xf000, scoped, tag = 'scratch operand']
  #allocation5 [shape = 'bf16[128,640]{1,0:T(8,128)(2,1)}', space=vmem, size = 0x28000, scoped, tag = 'scratch operand']
  %s0 = inlined_call_operand.vmem [shape: f32[2,16,16,4], index: 0, kind: input, shape index: {}]
  %s1 = inlined_call_operand.vmem [shape: bf16[128,32], index: 1, kind: input, shape index: {}]
  %s2 = inlined_call_operand.vmem [shape: f32[1,32], index: 2, kind: input, shape index: {}]
  %s3 = inlined_call_operand.vmem [shape: bf16[384,64], index: 3, kind: input, shape index: {}]
  %s4 = inlined_call_operand.vmem [shape: f32[1,64], index: 4, kind: input, shape index: {}]
  %s5 = inlined_call_operand.vmem [shape: bf16[640,64], index: 5, kind: input, shape index: {}]
  %s6 = inlined_call_operand.vmem [shape: f32[1,64], index: 6, kind: input, shape index: {}]
  %s7 = inlined_call_operand.hbm [shape: f32[2,16,16,64], index: 7, kind: output, shape index: {}]
  %s8 = sld [smem:[#allocation0]]
  $region77: #{feature_extractor_nhwc.1} parent=0
    _
  %s10 = ssub.s32 1, %s8
  %s11 = scalar_select 0, %s10, %s8
  $region1: #{feature_extractor_nhwc.1} parent=0
    #allocation6 [shape = 'u8[131072]{0}', space=vmem, size = 0x20000, scoped, tag = 'output window, operand 0']
    #allocation7 [shape = 's32[2]{0}', space=sflag, size = 0x8, scoped, tag = 'scoped memory for feature_extractor_nhwc.1']
    %12 = vsyncpa [#allocation7], 0
    %s13 = scalar_lea.sflag [#allocation7], 1
    %14 = vsyncpa %s13, 0
    loop: start=0, step=1, limit=6
    $region2: #{feature_extractor_nhwc.1} parent=1 // loop_pre_header
      _
    $region3: #{feature_extractor_nhwc.1} parent=1 // loop_header
      %s16 = sphi 0, %s20
      %p17 = scmp.ge.s32.totalorder %s16, 6
      %s23 = sphi 0, %s35
      %s24 = sphi 0, %s31
      %s25 = sphi 0, %s23
      %s26 = sphi 0, %s24
      %s27 = sphi 0, %s25
      %s28 = sphi 0, %s26
      %s38 = sphi 0, %s40
      %s41 = sphi 0, %s38
      %s42 = sphi 0, %s41
      %s58 = sphi 0, %s42
      %s62 = sphi 0, %s62
      %s64 = sphi 0, %s62
      %s65 = sphi 0, %s64
      %s79 = sphi 0, %s65
      %s83 = sphi 0, %s83
      %s85 = sphi 0, %s83
      %s86 = sphi 0, %s85
      %s100 = sphi 0, %s86
      %s104 = sphi 0, %s104
      %s106 = sphi 0, %s104
      %s107 = sphi 0, %s106
      %s121 = sphi 0, %s107
      %s125 = sphi 0, %s125
      %s127 = sphi 0, %s125
      %s128 = sphi 0, %s127
      %s142 = sphi 0, %s128
      %s146 = sphi 0, %s146
      %s148 = sphi 0, %s146
      %s149 = sphi 0, %s148
      %s163 = sphi 0, %s149
      %s167 = sphi 0, %s167
      %s169 = sphi 0, %s167
      %s170 = sphi 0, %s169
      %s184 = sphi 0, %s170
      %s192 = sphi 0, %s194
      %s195 = sphi 0, %s192
      %s196 = sphi 0, %s195
      %s212 = sphi 0, %s196
    $region4: #{feature_extractor_nhwc.1} parent=1 // loop_header_branch
      %19 = sbr.rel (%p17) target = $region8
    $region5: #{feature_extractor_nhwc.1} parent=1 // loop_body
      %s21 = ssub.s32 %s16, 1
      %s22 = ssub.s32 %s16, 2
      %s29 = sadd.s32 1, %s24
      %p30 = scmp.ge.s32.totalorder %s29, 2
      %s31 = scalar_select %p30, 0, %s29
      %s32 = sadd.s32 1, %s23
      %s33 = scalar_select %p30, %s32, %s23
      %p34 = scmp.ge.s32.totalorder %s33, 2
      %s35 = scalar_select %p34, 0, %s33
      %s36 = ssub.s32 %s23, %s35
      %p37 = scmp.eq.s32.totalorder %s36, 0
      %s39 = sadd.s32 %s38, 1
      %s40 = scalar_select %p37, %s38, %s39
      %p43 = pneg %p37
      %p44 = scmp.eq.s32.totalorder %s16, 3
      %p45 = por %p43, %p44
      %p46 = scmp.ne.s32.totalorder %s38, %s41
      %p47 = scmp.eq.s32.totalorder %s16, 0
      %p48 = por %p46, %p47
      %p49 = scmp.ne.s32.totalorder %s38, %s41
      %p50 = scmp.eq.s32.totalorder %s21, 3
      %p51 = por %p49, %p50
      %p52 = scmp.ne.s32.totalorder %s41, %s42
      %p53 = scmp.eq.s32.totalorder %s21, 0
      %p54 = por %p52, %p53
      %p55 = scmp.ne.s32.totalorder %s41, %s42
      %p56 = scmp.eq.s32.totalorder %s22, 3
      %p57 = por %p55, %p56
      %p59 = scmp.ne.s32.totalorder %s42, %s58
      %p60 = scmp.eq.s32.totalorder %s22, 0
      %p61 = por %p59, %p60
      %s63 = sadd.s32 %s62, 1
      %p66 = scmp.eq.s32.totalorder %s16, 3
      %p67 = scmp.ne.s32.totalorder %s62, %s64
      %p68 = scmp.eq.s32.totalorder %s16, 0
      %p69 = por %p67, %p68
      %p70 = scmp.ne.s32.totalorder %s62, %s64
      %p71 = scmp.eq.s32.totalorder %s21, 3
      %p72 = por %p70, %p71
      %p73 = scmp.ne.s32.totalorder %s64, %s65
      %p74 = scmp.eq.s32.totalorder %s21, 0
      %p75 = por %p73, %p74
      %p76 = scmp.ne.s32.totalorder %s64, %s65
      %p77 = scmp.eq.s32.totalorder %s22, 3
      %p78 = por %p76, %p77
      %p80 = scmp.ne.s32.totalorder %s65, %s79
      %p81 = scmp.eq.s32.totalorder %s22, 0
      %p82 = por %p80, %p81
      %s84 = sadd.s32 %s83, 1
      %p87 = scmp.eq.s32.totalorder %s16, 3
      %p88 = scmp.ne.s32.totalorder %s83, %s85
      %p89 = scmp.eq.s32.totalorder %s16, 0
      %p90 = por %p88, %p89
      %p91 = scmp.ne.s32.totalorder %s83, %s85
      %p92 = scmp.eq.s32.totalorder %s21, 3
      %p93 = por %p91, %p92
      %p94 = scmp.ne.s32.totalorder %s85, %s86
      %p95 = scmp.eq.s32.totalorder %s21, 0
      %p96 = por %p94, %p95
      %p97 = scmp.ne.s32.totalorder %s85, %s86
      %p98 = scmp.eq.s32.totalorder %s22, 3
      %p99 = por %p97, %p98
      %p101 = scmp.ne.s32.totalorder %s86, %s100
      %p102 = scmp.eq.s32.totalorder %s22, 0
      %p103 = por %p101, %p102
      %s105 = sadd.s32 %s104, 1
      %p108 = scmp.eq.s32.totalorder %s16, 3
      %p109 = scmp.ne.s32.totalorder %s104, %s106
      %p110 = scmp.eq.s32.totalorder %s16, 0
      %p111 = por %p109, %p110
      %p112 = scmp.ne.s32.totalorder %s104, %s106
      %p113 = scmp.eq.s32.totalorder %s21, 3
      %p114 = por %p112, %p113
      %p115 = scmp.ne.s32.totalorder %s106, %s107
      %p116 = scmp.eq.s32.totalorder %s21, 0
      %p117 = por %p115, %p116
      %p118 = scmp.ne.s32.totalorder %s106, %s107
      %p119 = scmp.eq.s32.totalorder %s22, 3
      %p120 = por %p118, %p119
      %p122 = scmp.ne.s32.totalorder %s107, %s121
      %p123 = scmp.eq.s32.totalorder %s22, 0
      %p124 = por %p122, %p123
      %s126 = sadd.s32 %s125, 1
      %p129 = scmp.eq.s32.totalorder %s16, 3
      %p130 = scmp.ne.s32.totalorder %s125, %s127
      %p131 = scmp.eq.s32.totalorder %s16, 0
      %p132 = por %p130, %p131
      %p133 = scmp.ne.s32.totalorder %s125, %s127
      %p134 = scmp.eq.s32.totalorder %s21, 3
      %p135 = por %p133, %p134
      %p136 = scmp.ne.s32.totalorder %s127, %s128
      %p137 = scmp.eq.s32.totalorder %s21, 0
      %p138 = por %p136, %p137
      %p139 = scmp.ne.s32.totalorder %s127, %s128
      %p140 = scmp.eq.s32.totalorder %s22, 3
      %p141 = por %p139, %p140
      %p143 = scmp.ne.s32.totalorder %s128, %s142
      %p144 = scmp.eq.s32.totalorder %s22, 0
      %p145 = por %p143, %p144
      %s147 = sadd.s32 %s146, 1
      %p150 = scmp.eq.s32.totalorder %s16, 3
      %p151 = scmp.ne.s32.totalorder %s146, %s148
      %p152 = scmp.eq.s32.totalorder %s16, 0
      %p153 = por %p151, %p152
      %p154 = scmp.ne.s32.totalorder %s146, %s148
      %p155 = scmp.eq.s32.totalorder %s21, 3
      %p156 = por %p154, %p155
      %p157 = scmp.ne.s32.totalorder %s148, %s149
      %p158 = scmp.eq.s32.totalorder %s21, 0
      %p159 = por %p157, %p158
      %p160 = scmp.ne.s32.totalorder %s148, %s149
      %p161 = scmp.eq.s32.totalorder %s22, 3
      %p162 = por %p160, %p161
      %p164 = scmp.ne.s32.totalorder %s149, %s163
      %p165 = scmp.eq.s32.totalorder %s22, 0
      %p166 = por %p164, %p165
      %s168 = sadd.s32 %s167, 1
      %p171 = scmp.eq.s32.totalorder %s16, 3
      %p172 = scmp.ne.s32.totalorder %s167, %s169
      %p173 = scmp.eq.s32.totalorder %s16, 0
      %p174 = por %p172, %p173
      %p175 = scmp.ne.s32.totalorder %s167, %s169
      %p176 = scmp.eq.s32.totalorder %s21, 3
      %p177 = por %p175, %p176
      %p178 = scmp.ne.s32.totalorder %s169, %s170
      %p179 = scmp.eq.s32.totalorder %s21, 0
      %p180 = por %p178, %p179
      %p181 = scmp.ne.s32.totalorder %s169, %s170
      %p182 = scmp.eq.s32.totalorder %s22, 3
      %p183 = por %p181, %p182
      %p185 = scmp.ne.s32.totalorder %s170, %s184
      %p186 = scmp.eq.s32.totalorder %s22, 0
      %p187 = por %p185, %p186
      %s188 = ssub.s32 %s23, %s35
      %s189 = ssub.s32 %s24, %s31
      %s190 = sor.u32 %s188, %s189
      %p191 = scmp.eq.s32.totalorder %s190, 0
      %s193 = sadd.s32 %s192, 1
      %s194 = scalar_select %p191, %s192, %s193
      %p197 = pneg %p191
      %p198 = scmp.eq.s32.totalorder %s16, 3
      %p199 = por %p197, %p198
      %p200 = scmp.ne.s32.totalorder %s192, %s195
      %p201 = scmp.eq.s32.totalorder %s16, 0
      %p202 = por %p200, %p201
      %p203 = scmp.ne.s32.totalorder %s192, %s195
      %p204 = scmp.eq.s32.totalorder %s21, 3
      %p205 = por %p203, %p204
      %p206 = scmp.ne.s32.totalorder %s195, %s196
      %p207 = scmp.eq.s32.totalorder %s21, 0
      %p208 = por %p206, %p207
      %p209 = scmp.ne.s32.totalorder %s195, %s196
      %p210 = scmp.eq.s32.totalorder %s22, 3
      %p211 = por %p209, %p210
      %p213 = scmp.ne.s32.totalorder %s196, %s212
      %p214 = scmp.eq.s32.totalorder %s22, 0
      %p215 = por %p213, %p214
      %p216 = scmp.le.s32.totalorder 1, %s16
      %p217 = scmp.lt.s32.totalorder %s16, 5
      %p218 = pnand %p216, %p217
      %p219 = pneg %p218
      // Predicated region
      $region9: #{feature_extractor_nhwc.1} parent=5 // pred_check
        _
      $region10: #{feature_extractor_nhwc.1} parent=5 // pred_check_branch
        %221 = sbr.rel (%p218) target = $region12
      $region11: #{feature_extractor_nhwc.1} parent=5 // pred_region
        %s222 = ssub.s32 %s16, 1
        // Predicated region
        $region13: #{feature_extractor_nhwc.1} parent=11 // pred_check
          %p223 = pneg %p75
        $region14: #{feature_extractor_nhwc.1} parent=11 // pred_check_branch
          %225 = sbr.rel (%p223) target = $region16
        $region15: #{feature_extractor_nhwc.1} parent=11 // pred_region
          _
        $region16: #{feature_extractor_nhwc.1} parent=11 // pred_fallthru
          _
        // Predicated region
        $region17: #{feature_extractor_nhwc.1} parent=11 // pred_check
          %p226 = pneg %p96
        $region18: #{feature_extractor_nhwc.1} parent=11 // pred_check_branch
          %228 = sbr.rel (%p226) target = $region20
        $region19: #{feature_extractor_nhwc.1} parent=11 // pred_region
          _
        $region20: #{feature_extractor_nhwc.1} parent=11 // pred_fallthru
          _
        // Predicated region
        $region21: #{feature_extractor_nhwc.1} parent=11 // pred_check
          %p229 = pneg %p117
        $region22: #{feature_extractor_nhwc.1} parent=11 // pred_check_branch
          %231 = sbr.rel (%p229) target = $region24
        $region23: #{feature_extractor_nhwc.1} parent=11 // pred_region
          _
        $region24: #{feature_extractor_nhwc.1} parent=11 // pred_fallthru
          _
        // Predicated region
        $region25: #{feature_extractor_nhwc.1} parent=11 // pred_check
          %p232 = pneg %p138
        $region26: #{feature_extractor_nhwc.1} parent=11 // pred_check_branch
          %234 = sbr.rel (%p232) target = $region28
        $region27: #{feature_extractor_nhwc.1} parent=11 // pred_region
          _
        $region28: #{feature_extractor_nhwc.1} parent=11 // pred_fallthru
          _
        // Predicated region
        $region29: #{feature_extractor_nhwc.1} parent=11 // pred_check
          %p235 = pneg %p159
        $region30: #{feature_extractor_nhwc.1} parent=11 // pred_check_branch
          %237 = sbr.rel (%p235) target = $region32
        $region31: #{feature_extractor_nhwc.1} parent=11 // pred_region
          _
        $region32: #{feature_extractor_nhwc.1} parent=11 // pred_fallthru
          _
        // Predicated region
        $region33: #{feature_extractor_nhwc.1} parent=11 // pred_check
          %p238 = pneg %p180
        $region34: #{feature_extractor_nhwc.1} parent=11 // pred_check_branch
          %240 = sbr.rel (%p238) target = $region36
        $region35: #{feature_extractor_nhwc.1} parent=11 // pred_region
          _
        $region36: #{feature_extractor_nhwc.1} parent=11 // pred_fallthru
          _
      $region12: #{feature_extractor_nhwc.1} parent=5 // pred_fallthru
        _
      %p241 = scmp.lt.s32.totalorder %s16, 4
      // Predicated region
      $region37: #{feature_extractor_nhwc.1} parent=5 // pred_check
        %p242 = pneg %p241
      $region38: #{feature_extractor_nhwc.1} parent=5 // pred_check_branch
        %244 = sbr.rel (%p242) target = $region40
      $region39: #{feature_extractor_nhwc.1} parent=5 // pred_region
        // Predicated region
        $region41: #{feature_extractor_nhwc.1} parent=39 // pred_check
          %p245 = pneg %p48
        $region42: #{feature_extractor_nhwc.1} parent=39 // pred_check_branch
          %247 = sbr.rel (%p245) target = $region44
        $region43: #{feature_extractor_nhwc.1} parent=39 // pred_region
          %p248 = scmp.lt.s32.totalorder %s23, 1
          %s249 = scalar_select %p248, %s23, 1
          %s250 = smul.addr %s249, 32
          %s251 = smul.addr %s250, 8
          %s252 = scalar_lea.vmem %s0, %s251
        $region44: #{feature_extractor_nhwc.1} parent=39 // pred_fallthru
          _
      $region40: #{feature_extractor_nhwc.1} parent=5 // pred_fallthru
        _
      %p253 = scmp.le.s32.totalorder 1, %s16
      %p254 = scmp.lt.s32.totalorder %s16, 5
      %p255 = pnand %p253, %p254
      %p256 = pneg %p255
      // Predicated region
      $region45: #{feature_extractor_nhwc.1} parent=5 // pred_check
        _
      $region46: #{feature_extractor_nhwc.1} parent=5 // pred_check_branch
        %258 = sbr.rel (%p255) target = $region48
      $region47: #{feature_extractor_nhwc.1} parent=5 // pred_region
        %s259 = ssub.s32 %s16, 1
        %p260 = scmp.lt.s32.totalorder %s25, 1
        %s261 = scalar_select %p260, %s25, 1
        %s262 = smul.addr %s261, 32
        %s263 = smul.addr %s262, 8
        %s264 = scalar_lea.vmem %s0, %s263
        %p265 = pneg %p54
        %p266 = pneg %p51
        %p267 = pneg %p75
        %p268 = pneg %p72
        %p269 = pneg %p96
        %p270 = pneg %p93
        %p271 = pneg %p117
        %p272 = pneg %p114
        %p273 = pneg %p138
        %p274 = pneg %p135
        %p275 = pneg %p159
        %p276 = pneg %p156
        %p277 = pneg %p180
        %p278 = pneg %p177
        %p279 = pneg %p208
        %p280 = pneg %p205
        %s281 = sand.u32 %s195, 1
        %s282 = scalar_lea.sflag [#allocation7], %s281
        %s283 = sand.u32 %s195, 1
        %s284 = smul.addr %s283, 128
        %s285 = scalar_lea.vmem [#allocation6], %s284
        %p286 = scmp.lt.s32.totalorder %s25, 1
        %s287 = scalar_select %p286, %s25, 1
        %s288 = smul.addr %s287, 32
        %s289 = smul.addr %s288, 8
        %s290 = scalar_lea.vmem %s0, %s289
        %s291 = smul.u32 8, %s26
        %s293 = smul.u32 %s26, 8
        %294 = vst [vmem:[#allocation5] sm:$0xff] 0
        %295 = vst [vmem:[#allocation5 + $0x8] sm:$0xff] 0
        %296 = vst [vmem:[#allocation5 + $0x10] sm:$0xf] 0
        %297 = vst [vmem:[#allocation5 + $0x14] sm:$0xff] 0
        %298 = vst [vmem:[#allocation5 + $0x1c] sm:$0xff] 0
        %299 = vst [vmem:[#allocation5 + $0x24] sm:$0xf] 0
        %300 = vst [vmem:[#allocation5 + $0x28] sm:$0xff] 0
        %301 = vst [vmem:[#allocation5 + $0x30] sm:$0xff] 0
        %302 = vst [vmem:[#allocation5 + $0x38] sm:$0xf] 0
        %303 = vst [vmem:[#allocation5 + $0x3c] sm:$0xff] 0
        %304 = vst [vmem:[#allocation5 + $0x44] sm:$0xff] 0
        %305 = vst [vmem:[#allocation5 + $0x4c] sm:$0xf] 0
        %306 = vst [vmem:[#allocation5 + $0x50] sm:$0xff] 0
        %307 = vst [vmem:[#allocation5 + $0x58] sm:$0xff] 0
        %308 = vst [vmem:[#allocation5 + $0x60] sm:$0xf] 0
        %309 = vst [vmem:[#allocation5 + $0x64] sm:$0xff] 0
        %310 = vst [vmem:[#allocation5 + $0x6c] sm:$0xff] 0
        %311 = vst [vmem:[#allocation5 + $0x74] sm:$0xf] 0
        %312 = vst [vmem:[#allocation5 + $0x78] sm:$0xff] 0
        %313 = vst [vmem:[#allocation5 + $0x80] sm:$0xff] 0
        %314 = vst [vmem:[#allocation5 + $0x88] sm:$0xf] 0
        %315 = vst [vmem:[#allocation5 + $0x8c] sm:$0xff] 0
        %316 = vst [vmem:[#allocation5 + $0x94] sm:$0xff] 0
        %317 = vst [vmem:[#allocation5 + $0x9c] sm:$0xf] 0
        %318 = vst [vmem:[#allocation5 + $0xa0] sm:$0xff] 0
        %319 = vst [vmem:[#allocation5 + $0xa8] sm:$0xff] 0
        %320 = vst [vmem:[#allocation5 + $0xb0] sm:$0xf] 0
        %321 = vst [vmem:[#allocation5 + $0xb4] sm:$0xff] 0
        %322 = vst [vmem:[#allocation5 + $0xbc] sm:$0xff] 0
        %323 = vst [vmem:[#allocation5 + $0xc4] sm:$0xf] 0
        %324 = vst [vmem:[#allocation5 + $0xc8] sm:$0xff] 0
        %325 = vst [vmem:[#allocation5 + $0xd0] sm:$0xff] 0
        %326 = vst [vmem:[#allocation5 + $0xd8] sm:$0xf] 0
        %327 = vst [vmem:[#allocation5 + $0xdc] sm:$0xff] 0
        %328 = vst [vmem:[#allocation5 + $0xe4] sm:$0xff] 0
        %329 = vst [vmem:[#allocation5 + $0xec] sm:$0xf] 0
        %330 = vst [vmem:[#allocation5 + $0xf0] sm:$0xff] 0
        %331 = vst [vmem:[#allocation5 + $0xf8] sm:$0xff] 0
        %332 = vst [vmem:[#allocation5 + $0x100] sm:$0xf] 0
        %333 = vst [vmem:[#allocation5 + $0x104] sm:$0xff] 0
        %334 = vst [vmem:[#allocation5 + $0x10c] sm:$0xff] 0
        %335 = vst [vmem:[#allocation5 + $0x114] sm:$0xf] 0
        %336 = vst [vmem:[#allocation5 + $0x118] sm:$0xff] 0
        %337 = vst [vmem:[#allocation5 + $0x120] sm:$0xff] 0
        %338 = vst [vmem:[#allocation5 + $0x128] sm:$0xf] 0
        %339 = vst [vmem:[#allocation5 + $0x12c] sm:$0xff] 0
        %340 = vst [vmem:[#allocation5 + $0x134] sm:$0xff] 0
        %341 = vst [vmem:[#allocation5 + $0x13c] sm:$0xf] 0
        %vm342 = vcmask 24576
        %vm343 = vsmask.f32 256
        %vm344 = vmand %vm342, %vm343
        %v345 = vld [vmem:[#allocation2] sm:$0x1]
        %v346 = vsel %vm344, 0, %v345
        %347 = vst [vmem:[#allocation2] sm:$0x1] %v346
        %v348 = vld [vmem:[#allocation2 + $0xc] sm:$0x1]
        %v349 = vsel %vm344, 0, %v348
        %350 = vst [vmem:[#allocation2 + $0xc] sm:$0x1] %v349
        %v351 = vld [vmem:[#allocation2 + $0x18] sm:$0x1]
        %v352 = vsel %vm344, 0, %v351
        %353 = vst [vmem:[#allocation2 + $0x18] sm:$0x1] %v352
        %v354 = vld [vmem:[#allocation2 + $0x24] sm:$0x1]
        %v355 = vsel %vm344, 0, %v354
        %356 = vst [vmem:[#allocation2 + $0x24] sm:$0x1] %v355
        %v357 = vld [vmem:[#allocation2 + $0x30] sm:$0x1]
        %v358 = vsel %vm344, 0, %v357
        %359 = vst [vmem:[#allocation2 + $0x30] sm:$0x1] %v358
        %v360 = vld [vmem:[#allocation2 + $0x3c] sm:$0x1]
        %v361 = vsel %vm344, 0, %v360
        %362 = vst [vmem:[#allocation2 + $0x3c] sm:$0x1] %v361
        %v363 = vld [vmem:[#allocation2 + $0x48] sm:$0x1]
        %v364 = vsel %vm344, 0, %v363
        %365 = vst [vmem:[#allocation2 + $0x48] sm:$0x1] %v364
        %v366 = vld [vmem:[#allocation2 + $0x54] sm:$0x1]
        %v367 = vsel %vm344, 0, %v366
        %368 = vst [vmem:[#allocation2 + $0x54] sm:$0x1] %v367
        %v369 = vld [vmem:[#allocation2 + $0x60] sm:$0x1]
        %v370 = vsel %vm344, 0, %v369
        %371 = vst [vmem:[#allocation2 + $0x60] sm:$0x1] %v370
        %v372 = vld [vmem:[#allocation2 + $0x6c] sm:$0x1]
        %v373 = vsel %vm344, 0, %v372
        %374 = vst [vmem:[#allocation2 + $0x6c] sm:$0x1] %v373
        %v375 = vld [vmem:[#allocation2 + $0x78] sm:$0x1]
        %v376 = vsel %vm344, 0, %v375
        %377 = vst [vmem:[#allocation2 + $0x78] sm:$0x1] %v376
        %v378 = vld [vmem:[#allocation2 + $0x84] sm:$0x1]
        %v379 = vsel %vm344, 0, %v378
        %380 = vst [vmem:[#allocation2 + $0x84] sm:$0x1] %v379
        %v381 = vld [vmem:[#allocation2 + $0x90] sm:$0x1]
        %v382 = vsel %vm344, 0, %v381
        %383 = vst [vmem:[#allocation2 + $0x90] sm:$0x1] %v382
        %v384 = vld [vmem:[#allocation2 + $0x9c] sm:$0x1]
        %v385 = vsel %vm344, 0, %v384
        %386 = vst [vmem:[#allocation2 + $0x9c] sm:$0x1] %v385
        %vm387 = vsmask.f32 7938
        %vm388 = vmand %vm342, %vm387
        %v389 = vld [vmem:[#allocation2 + $0x8] sm:$0x1]
        %v390 = vsel %vm388, 0, %v389
        %391 = vst [vmem:[#allocation2 + $0x8] sm:$0x1] %v390
        %v392 = vld [vmem:[#allocation2 + $0x14] sm:$0x1]
        %v393 = vsel %vm388, 0, %v392
        %394 = vst [vmem:[#allocation2 + $0x14] sm:$0x1] %v393
        %v395 = vld [vmem:[#allocation2 + $0x20] sm:$0x1]
        %v396 = vsel %vm388, 0, %v395
        %397 = vst [vmem:[#allocation2 + $0x20] sm:$0x1] %v396
        %v398 = vld [vmem:[#allocation2 + $0x2c] sm:$0x1]
        %v399 = vsel %vm388, 0, %v398
        %400 = vst [vmem:[#allocation2 + $0x2c] sm:$0x1] %v399
        %v401 = vld [vmem:[#allocation2 + $0x38] sm:$0x1]
        %v402 = vsel %vm388, 0, %v401
        %403 = vst [vmem:[#allocation2 + $0x38] sm:$0x1] %v402
        %v404 = vld [vmem:[#allocation2 + $0x44] sm:$0x1]
        %v405 = vsel %vm388, 0, %v404
        %406 = vst [vmem:[#allocation2 + $0x44] sm:$0x1] %v405
        %v407 = vld [vmem:[#allocation2 + $0x50] sm:$0x1]
        %v408 = vsel %vm388, 0, %v407
        %409 = vst [vmem:[#allocation2 + $0x50] sm:$0x1] %v408
        %v410 = vld [vmem:[#allocation2 + $0x5c] sm:$0x1]
        %v411 = vsel %vm388, 0, %v410
        %412 = vst [vmem:[#allocation2 + $0x5c] sm:$0x1] %v411
        %v413 = vld [vmem:[#allocation2 + $0x68] sm:$0x1]
        %v414 = vsel %vm388, 0, %v413
        %415 = vst [vmem:[#allocation2 + $0x68] sm:$0x1] %v414
        %v416 = vld [vmem:[#allocation2 + $0x74] sm:$0x1]
        %v417 = vsel %vm388, 0, %v416
        %418 = vst [vmem:[#allocation2 + $0x74] sm:$0x1] %v417
        %v419 = vld [vmem:[#allocation2 + $0x80] sm:$0x1]
        %v420 = vsel %vm388, 0, %v419
        %421 = vst [vmem:[#allocation2 + $0x80] sm:$0x1] %v420
        %v422 = vld [vmem:[#allocation2 + $0x8c] sm:$0x1]
        %v423 = vsel %vm388, 0, %v422
        %424 = vst [vmem:[#allocation2 + $0x8c] sm:$0x1] %v423
        %v425 = vld [vmem:[#allocation2 + $0x98] sm:$0x1]
        %v426 = vsel %vm388, 0, %v425
        %427 = vst [vmem:[#allocation2 + $0x98] sm:$0x1] %v426
        %v428 = vld [vmem:[#allocation2 + $0xa4] sm:$0x1]
        %v429 = vsel %vm388, 0, %v428
        %430 = vst [vmem:[#allocation2 + $0xa4] sm:$0x1] %v429
        %vm431 = vcmask 253952
        %vm432 = vmand %vm431, %vm343
        %v433 = vld [vmem:[#allocation3] sm:$0x1]
        %v434 = vsel %vm432, 0, %v433
        %435 = vst [vmem:[#allocation3] sm:$0x1] %v434
        %v436 = vld [vmem:[#allocation3 + $0xc] sm:$0x1]
        %v437 = vsel %vm432, 0, %v436
        %438 = vst [vmem:[#allocation3 + $0xc] sm:$0x1] %v437
        %v439 = vld [vmem:[#allocation3 + $0x18] sm:$0x1]
        %v440 = vsel %vm432, 0, %v439
        %441 = vst [vmem:[#allocation3 + $0x18] sm:$0x1] %v440
        %v442 = vld [vmem:[#allocation3 + $0x24] sm:$0x1]
        %v443 = vsel %vm432, 0, %v442
        %444 = vst [vmem:[#allocation3 + $0x24] sm:$0x1] %v443
        %v445 = vld [vmem:[#allocation3 + $0x30] sm:$0x1]
        %v446 = vsel %vm432, 0, %v445
        %447 = vst [vmem:[#allocation3 + $0x30] sm:$0x1] %v446
        %v448 = vld [vmem:[#allocation3 + $0x3c] sm:$0x1]
        %v449 = vsel %vm432, 0, %v448
        %450 = vst [vmem:[#allocation3 + $0x3c] sm:$0x1] %v449
        %v451 = vld [vmem:[#allocation3 + $0x48] sm:$0x1]
        %v452 = vsel %vm432, 0, %v451
        %453 = vst [vmem:[#allocation3 + $0x48] sm:$0x1] %v452
        %v454 = vld [vmem:[#allocation3 + $0x54] sm:$0x1]
        %v455 = vsel %vm432, 0, %v454
        %456 = vst [vmem:[#allocation3 + $0x54] sm:$0x1] %v455
        %v457 = vld [vmem:[#allocation3 + $0x60] sm:$0x1]
        %v458 = vsel %vm432, 0, %v457
        %459 = vst [vmem:[#allocation3 + $0x60] sm:$0x1] %v458
        %v460 = vld [vmem:[#allocation3 + $0x6c] sm:$0x1]
        %v461 = vsel %vm432, 0, %v460
        %462 = vst [vmem:[#allocation3 + $0x6c] sm:$0x1] %v461
        %v463 = vld [vmem:[#allocation3 + $0x78] sm:$0x1]
        %v464 = vsel %vm432, 0, %v463
        %465 = vst [vmem:[#allocation3 + $0x78] sm:$0x1] %v464
        %v466 = vld [vmem:[#allocation3 + $0x84] sm:$0x1]
        %v467 = vsel %vm432, 0, %v466
        %468 = vst [vmem:[#allocation3 + $0x84] sm:$0x1] %v467
        %vm469 = vmand %vm431, %vm387
        %v470 = vld [vmem:[#allocation3 + $0x8] sm:$0x1]
        %v471 = vsel %vm469, 0, %v470
        %472 = vst [vmem:[#allocation3 + $0x8] sm:$0x1] %v471
        %v473 = vld [vmem:[#allocation3 + $0x14] sm:$0x1]
        %v474 = vsel %vm469, 0, %v473
        %475 = vst [vmem:[#allocation3 + $0x14] sm:$0x1] %v474
        %v476 = vld [vmem:[#allocation3 + $0x20] sm:$0x1]
        %v477 = vsel %vm469, 0, %v476
        %478 = vst [vmem:[#allocation3 + $0x20] sm:$0x1] %v477
        %v479 = vld [vmem:[#allocation3 + $0x2c] sm:$0x1]
        %v480 = vsel %vm469, 0, %v479
        %481 = vst [vmem:[#allocation3 + $0x2c] sm:$0x1] %v480
        %v482 = vld [vmem:[#allocation3 + $0x38] sm:$0x1]
        %v483 = vsel %vm469, 0, %v482
        %484 = vst [vmem:[#allocation3 + $0x38] sm:$0x1] %v483
        %v485 = vld [vmem:[#allocation3 + $0x44] sm:$0x1]
        %v486 = vsel %vm469, 0, %v485
        %487 = vst [vmem:[#allocation3 + $0x44] sm:$0x1] %v486
        %v488 = vld [vmem:[#allocation3 + $0x50] sm:$0x1]
        %v489 = vsel %vm469, 0, %v488
        %490 = vst [vmem:[#allocation3 + $0x50] sm:$0x1] %v489
        %v491 = vld [vmem:[#allocation3 + $0x5c] sm:$0x1]
        %v492 = vsel %vm469, 0, %v491
        %493 = vst [vmem:[#allocation3 + $0x5c] sm:$0x1] %v492
        %v494 = vld [vmem:[#allocation3 + $0x68] sm:$0x1]
        %v495 = vsel %vm469, 0, %v494
        %496 = vst [vmem:[#allocation3 + $0x68] sm:$0x1] %v495
        %v497 = vld [vmem:[#allocation3 + $0x74] sm:$0x1]
        %v498 = vsel %vm469, 0, %v497
        %499 = vst [vmem:[#allocation3 + $0x74] sm:$0x1] %v498
        %v500 = vld [vmem:[#allocation3 + $0x80] sm:$0x1]
        %v501 = vsel %vm469, 0, %v500
        %502 = vst [vmem:[#allocation3 + $0x80] sm:$0x1] %v501
        %v503 = vld [vmem:[#allocation3 + $0x8c] sm:$0x1]
        %v504 = vsel %vm469, 0, %v503
        %505 = vst [vmem:[#allocation3 + $0x8c] sm:$0x1] %v504
        %vm506 = vcmask 516096
        %vm507 = vmand %vm506, %vm343
        %v508 = vld [vmem:[#allocation4] sm:$0x1]
        %v509 = vsel %vm507, 0, %v508
        %510 = vst [vmem:[#allocation4] sm:$0x1] %v509
        %v511 = vld [vmem:[#allocation4 + $0xc] sm:$0x1]
        %v512 = vsel %vm507, 0, %v511
        %513 = vst [vmem:[#allocation4 + $0xc] sm:$0x1] %v512
        %v514 = vld [vmem:[#allocation4 + $0x18] sm:$0x1]
        %v515 = vsel %vm507, 0, %v514
        %516 = vst [vmem:[#allocation4 + $0x18] sm:$0x1] %v515
        %v517 = vld [vmem:[#allocation4 + $0x24] sm:$0x1]
        %v518 = vsel %vm507, 0, %v517
        %519 = vst [vmem:[#allocation4 + $0x24] sm:$0x1] %v518
        %v520 = vld [vmem:[#allocation4 + $0x30] sm:$0x1]
        %v521 = vsel %vm507, 0, %v520
        %522 = vst [vmem:[#allocation4 + $0x30] sm:$0x1] %v521
        %v523 = vld [vmem:[#allocation4 + $0x3c] sm:$0x1]
        %v524 = vsel %vm507, 0, %v523
        %525 = vst [vmem:[#allocation4 + $0x3c] sm:$0x1] %v524
        %v526 = vld [vmem:[#allocation4 + $0x48] sm:$0x1]
        %v527 = vsel %vm507, 0, %v526
        %528 = vst [vmem:[#allocation4 + $0x48] sm:$0x1] %v527
        %v529 = vld [vmem:[#allocation4 + $0x54] sm:$0x1]
        %v530 = vsel %vm507, 0, %v529
        %531 = vst [vmem:[#allocation4 + $0x54] sm:$0x1] %v530
        %v532 = vld [vmem:[#allocation4 + $0x60] sm:$0x1]
        %v533 = vsel %vm507, 0, %v532
        %534 = vst [vmem:[#allocation4 + $0x60] sm:$0x1] %v533
        %v535 = vld [vmem:[#allocation4 + $0x6c] sm:$0x1]
        %v536 = vsel %vm507, 0, %v535
        %537 = vst [vmem:[#allocation4 + $0x6c] sm:$0x1] %v536
        %vm538 = vmand %vm506, %vm387
        %v539 = vld [vmem:[#allocation4 + $0x8] sm:$0x1]
        %v540 = vsel %vm538, 0, %v539
        %541 = vst [vmem:[#allocation4 + $0x8] sm:$0x1] %v540
        %v542 = vld [vmem:[#allocation4 + $0x14] sm:$0x1]
        %v543 = vsel %vm538, 0, %v542
        %544 = vst [vmem:[#allocation4 + $0x14] sm:$0x1] %v543
        %v545 = vld [vmem:[#allocation4 + $0x20] sm:$0x1]
        %v546 = vsel %vm538, 0, %v545
        %547 = vst [vmem:[#allocation4 + $0x20] sm:$0x1] %v546
        %v548 = vld [vmem:[#allocation4 + $0x2c] sm:$0x1]
        %v549 = vsel %vm538, 0, %v548
        %550 = vst [vmem:[#allocation4 + $0x2c] sm:$0x1] %v549
        %v551 = vld [vmem:[#allocation4 + $0x38] sm:$0x1]
        %v552 = vsel %vm538, 0, %v551
        %553 = vst [vmem:[#allocation4 + $0x38] sm:$0x1] %v552
        %v554 = vld [vmem:[#allocation4 + $0x44] sm:$0x1]
        %v555 = vsel %vm538, 0, %v554
        %556 = vst [vmem:[#allocation4 + $0x44] sm:$0x1] %v555
        %v557 = vld [vmem:[#allocation4 + $0x50] sm:$0x1]
        %v558 = vsel %vm538, 0, %v557
        %559 = vst [vmem:[#allocation4 + $0x50] sm:$0x1] %v558
        %v560 = vld [vmem:[#allocation4 + $0x5c] sm:$0x1]
        %v561 = vsel %vm538, 0, %v560
        %562 = vst [vmem:[#allocation4 + $0x5c] sm:$0x1] %v561
        %v563 = vld [vmem:[#allocation4 + $0x68] sm:$0x1]
        %v564 = vsel %vm538, 0, %v563
        %565 = vst [vmem:[#allocation4 + $0x68] sm:$0x1] %v564
        %v566 = vld [vmem:[#allocation4 + $0x74] sm:$0x1]
        %v567 = vsel %vm538, 0, %v566
        %568 = vst [vmem:[#allocation4 + $0x74] sm:$0x1] %v567
        %s569 = ssub.s32 %s293, 3
        %p570 = scmp.ge.s32.totalorder %s569, 0
        %p571 = scmp.lt.s32.totalorder %s569, 16
        %p572 = pnand %p570, %p571
        %p573 = pneg %p572
        %p574 = scmp.gt.s32.totalorder %s569, 0
        %s575 = scalar_select %p574, %s569, 0
        %p576 = scmp.lt.s32.totalorder %s575, 15
        %s577 = scalar_select %p576, %s575, 15
        %s578 = smul.u32 %s577, 16
        %s579 = scalar_lea.vmem %s290, %s578
        %v580 = vld [vmem:[%s579] sm:$0xff]
        %v581 = vld [vmem:[%s579 + $0x8] sm:$0xff]
        %s582 = scalar_select %p573, 1, 0
        %v583 = vstv %s582
        %vm584 = vcmp.eq.s32.totalorder %v583, 1
        %v585 = vsel %vm584, %v580, 0.0
        %v586 = vsel %vm584, %v581, 0.0
        %v587 = vpack.c.bf16 %v586, %v585
        %v589 = vunpack.c.l.b16 %v587
        %v590 = vunpack.c.h.b16 %v587
        %v591 = vpack.c.b16 %v589, %v589
        %v592 = vpack.c.b16 %v590, %v590
        %vm593 = vsmask.f32 4368
        %vm594 = vmor %vm343, %vm593
        %v596 = vshrl.u32 %v591, 16
        %v598 = vrot.slane %v596, 7
        %v599 = vshll.u32 %v591, 16
        %v601 = vor.u32 %v598, %v599
        %v602 = vrot.slane %v598, 4
        %v604 = vshrl.u32 %v592, 16
        %v606 = vrot.slane %v604, 7
        %v607 = vshll.u32 %v592, 16
        %v609 = vor.u32 %v606, %v607
        %v610 = vsel %vm594, %v602, %v609
        %v611 = vrot.slane %v606, 4
        %vm615 = vcmask 27648
        %vm616 = vmand %vm615, %vm387
        %v617 = vld [vmem:[#allocation2] sm:$0xf]
        %v618 = vsel %vm616, %v601, %v617
        %619 = vst [vmem:[#allocation2] sm:$0xf] %v618
        %vm620 = vcmask 27648
        %621 = vst.msk [vmem:[#allocation2 + $0x4] sm:$0xf] %vm620, %v610
        %v622 = vld [vmem:[#allocation2 + $0x8] sm:$0x1]
        %v623 = vsel %vm344, %v611, %v622
        %624 = vst [vmem:[#allocation2 + $0x8] sm:$0x1] %v623
        %s625 = sadd.s32 %s293, 4294967294
        %p626 = scmp.ge.s32.totalorder %s625, 0
        %p627 = scmp.lt.s32.totalorder %s625, 16
        %p628 = pnand %p626, %p627
        %p629 = pneg %p628
        %p630 = scmp.gt.s32.totalorder %s625, 0
        %s631 = scalar_select %p630, %s625, 0
        %p632 = scmp.lt.s32.totalorder %s631, 15
        %s633 = scalar_select %p632, %s631, 15
        %s634 = smul.u32 %s633, 16
        %s635 = scalar_lea.vmem %s290, %s634
        %v636 = vld [vmem:[%s635] sm:$0xff]
        %v637 = vld [vmem:[%s635 + $0x8] sm:$0xff]
        %s638 = scalar_select %p629, 1, 0
        %v639 = vstv %s638
        %vm640 = vcmp.eq.s32.totalorder %v639, 1
        %v641 = vsel %vm640, %v636, 0.0
        %v642 = vsel %vm640, %v637, 0.0
        %v643 = vpack.c.bf16 %v642, %v641
        %v645 = vunpack.c.l.b16 %v643
        %v646 = vunpack.c.h.b16 %v643
        %v647 = vpack.c.b16 %v645, %v645
        %v648 = vpack.c.b16 %v646, %v646
        %v650 = vshrl.u32 %v647, 16
        %v652 = vrot.slane %v650, 7
        %v653 = vshll.u32 %v647, 16
        %v655 = vor.u32 %v652, %v653
        %v656 = vrot.slane %v652, 4
        %v658 = vshrl.u32 %v648, 16
        %v660 = vrot.slane %v658, 7
        %v661 = vshll.u32 %v648, 16
        %v663 = vor.u32 %v660, %v661
        %v664 = vsel %vm594, %v656, %v663
        %v665 = vrot.slane %v660, 4
        %s669 = scalar_lea.vmem [#allocation2], 12
        %v670 = vld [vmem:[%s669] sm:$0xf]
        %v671 = vsel %vm616, %v655, %v670
        %672 = vst [vmem:[%s669] sm:$0xf] %v671
        %673 = vst.msk [vmem:[%s669 + $0x4] sm:$0xf] %vm620, %v664
        %v674 = vld [vmem:[%s669 + $0x8] sm:$0x1]
        %v675 = vsel %vm344, %v665, %v674
        %676 = vst [vmem:[%s669 + $0x8] sm:$0x1] %v675
        %s677 = sadd.s32 %s293, 4294967295
        %p678 = scmp.ge.s32.totalorder %s677, 0
        %p679 = scmp.lt.s32.totalorder %s677, 16
        %p680 = pnand %p678, %p679
        %p681 = pneg %p680
        %p682 = scmp.gt.s32.totalorder %s677, 0
        %s683 = scalar_select %p682, %s677, 0
        %p684 = scmp.lt.s32.totalorder %s683, 15
        %s685 = scalar_select %p684, %s683, 15
        %s686 = smul.u32 %s685, 16
        %s687 = scalar_lea.vmem %s290, %s686
        %v688 = vld [vmem:[%s687] sm:$0xff]
        %v689 = vld [vmem:[%s687 + $0x8] sm:$0xff]
        %s690 = scalar_select %p681, 1, 0
        %v691 = vstv %s690
        %vm692 = vcmp.eq.s32.totalorder %v691, 1
        %v693 = vsel %vm692, %v688, 0.0
        %v694 = vsel %vm692, %v689, 0.0
        %v695 = vpack.c.bf16 %v694, %v693
        %v697 = vunpack.c.l.b16 %v695
        %v698 = vunpack.c.h.b16 %v695
        %v699 = vpack.c.b16 %v697, %v697
        %v700 = vpack.c.b16 %v698, %v698
        %v702 = vshrl.u32 %v699, 16
        %v704 = vrot.slane %v702, 7
        %v705 = vshll.u32 %v699, 16
        %v707 = vor.u32 %v704, %v705
        %v708 = vrot.slane %v704, 4
        %v710 = vshrl.u32 %v700, 16
        %v712 = vrot.slane %v710, 7
        %v713 = vshll.u32 %v700, 16
        %v715 = vor.u32 %v712, %v713
        %v716 = vsel %vm594, %v708, %v715
        %v717 = vrot.slane %v712, 4
        %s721 = scalar_lea.vmem [#allocation2], 24
        %v722 = vld [vmem:[%s721] sm:$0xf]
        %v723 = vsel %vm616, %v707, %v722
        %724 = vst [vmem:[%s721] sm:$0xf] %v723
        %725 = vst.msk [vmem:[%s721 + $0x4] sm:$0xf] %vm620, %v716
        %v726 = vld [vmem:[%s721 + $0x8] sm:$0x1]
        %v727 = vsel %vm344, %v717, %v726
        %728 = vst [vmem:[%s721 + $0x8] sm:$0x1] %v727
        %p729 = scmp.ge.s32.totalorder %s293, 0
        %p730 = scmp.lt.s32.totalorder %s293, 16
        %p731 = pnand %p729, %p730
        %p732 = pneg %p731
        %p733 = scmp.gt.s32.totalorder %s293, 0
        %s734 = scalar_select %p733, %s293, 0
        %p735 = scmp.lt.s32.totalorder %s734, 15
        %s736 = scalar_select %p735, %s734, 15
        %s737 = smul.u32 %s736, 16
        %s738 = scalar_lea.vmem %s290, %s737
        %v739 = vld [vmem:[%s738] sm:$0xff]
        %v740 = vld [vmem:[%s738 + $0x8] sm:$0xff]
        %s741 = scalar_select %p732, 1, 0
        %v742 = vstv %s741
        %vm743 = vcmp.eq.s32.totalorder %v742, 1
        %v744 = vsel %vm743, %v739, 0.0
        %v745 = vsel %vm743, %v740, 0.0
        %v746 = vpack.c.bf16 %v745, %v744
        %v748 = vunpack.c.l.b16 %v746
        %v749 = vunpack.c.h.b16 %v746
        %v750 = vpack.c.b16 %v748, %v748
        %v751 = vpack.c.b16 %v749, %v749
        %v753 = vshrl.u32 %v750, 16
        %v755 = vrot.slane %v753, 7
        %v756 = vshll.u32 %v750, 16
        %v758 = vor.u32 %v755, %v756
        %v759 = vrot.slane %v755, 4
        %v761 = vshrl.u32 %v751, 16
        %v763 = vrot.slane %v761, 7
        %v764 = vshll.u32 %v751, 16
        %v766 = vor.u32 %v763, %v764
        %v767 = vsel %vm594, %v759, %v766
        %v768 = vrot.slane %v763, 4
        %s772 = scalar_lea.vmem [#allocation2], 36
        %v773 = vld [vmem:[%s772] sm:$0xf]
        %v774 = vsel %vm616, %v758, %v773
        %775 = vst [vmem:[%s772] sm:$0xf] %v774
        %776 = vst.msk [vmem:[%s772 + $0x4] sm:$0xf] %vm620, %v767
        %v777 = vld [vmem:[%s772 + $0x8] sm:$0x1]
        %v778 = vsel %vm344, %v768, %v777
        %779 = vst [vmem:[%s772 + $0x8] sm:$0x1] %v778
        %s780 = sadd.s32 %s293, 1
        %p781 = scmp.ge.s32.totalorder %s780, 0
        %p782 = scmp.lt.s32.totalorder %s780, 16
        %p783 = pnand %p781, %p782
        %p784 = pneg %p783
        %p785 = scmp.gt.s32.totalorder %s780, 0
        %s786 = scalar_select %p785, %s780, 0
        %p787 = scmp.lt.s32.totalorder %s786, 15
        %s788 = scalar_select %p787, %s786, 15
        %s789 = smul.u32 %s788, 16
        %s790 = scalar_lea.vmem %s290, %s789
        %v791 = vld [vmem:[%s790] sm:$0xff]
        %v792 = vld [vmem:[%s790 + $0x8] sm:$0xff]
        %s793 = scalar_select %p784, 1, 0
        %v794 = vstv %s793
        %vm795 = vcmp.eq.s32.totalorder %v794, 1
        %v796 = vsel %vm795, %v791, 0.0
        %v797 = vsel %vm795, %v792, 0.0
        %v798 = vpack.c.bf16 %v797, %v796
        %v800 = vunpack.c.l.b16 %v798
        %v801 = vunpack.c.h.b16 %v798
        %v802 = vpack.c.b16 %v800, %v800
        %v803 = vpack.c.b16 %v801, %v801
        %v805 = vshrl.u32 %v802, 16
        %v807 = vrot.slane %v805, 7
        %v808 = vshll.u32 %v802, 16
        %v810 = vor.u32 %v807, %v808
        %v811 = vrot.slane %v807, 4
        %v813 = vshrl.u32 %v803, 16
        %v815 = vrot.slane %v813, 7
        %v816 = vshll.u32 %v803, 16
        %v818 = vor.u32 %v815, %v816
        %v819 = vsel %vm594, %v811, %v818
        %v820 = vrot.slane %v815, 4
        %s824 = scalar_lea.vmem [#allocation2], 48
        %v825 = vld [vmem:[%s824] sm:$0xf]
        %v826 = vsel %vm616, %v810, %v825
        %827 = vst [vmem:[%s824] sm:$0xf] %v826
        %828 = vst.msk [vmem:[%s824 + $0x4] sm:$0xf] %vm620, %v819
        %v829 = vld [vmem:[%s824 + $0x8] sm:$0x1]
        %v830 = vsel %vm344, %v820, %v829
        %831 = vst [vmem:[%s824 + $0x8] sm:$0x1] %v830
        %s832 = sadd.s32 %s293, 2
        %p833 = scmp.ge.s32.totalorder %s832, 0
        %p834 = scmp.lt.s32.totalorder %s832, 16
        %p835 = pnand %p833, %p834
        %p836 = pneg %p835
        %p837 = scmp.gt.s32.totalorder %s832, 0
        %s838 = scalar_select %p837, %s832, 0
        %p839 = scmp.lt.s32.totalorder %s838, 15
        %s840 = scalar_select %p839, %s838, 15
        %s841 = smul.u32 %s840, 16
        %s842 = scalar_lea.vmem %s290, %s841
        %v843 = vld [vmem:[%s842] sm:$0xff]
        %v844 = vld [vmem:[%s842 + $0x8] sm:$0xff]
        %s845 = scalar_select %p836, 1, 0
        %v846 = vstv %s845
        %vm847 = vcmp.eq.s32.totalorder %v846, 1
        %v848 = vsel %vm847, %v843, 0.0
        %v849 = vsel %vm847, %v844, 0.0
        %v850 = vpack.c.bf16 %v849, %v848
        %v852 = vunpack.c.l.b16 %v850
        %v853 = vunpack.c.h.b16 %v850
        %v854 = vpack.c.b16 %v852, %v852
        %v855 = vpack.c.b16 %v853, %v853
        %v857 = vshrl.u32 %v854, 16
        %v859 = vrot.slane %v857, 7
        %v860 = vshll.u32 %v854, 16
        %v862 = vor.u32 %v859, %v860
        %v863 = vrot.slane %v859, 4
        %v865 = vshrl.u32 %v855, 16
        %v867 = vrot.slane %v865, 7
        %v868 = vshll.u32 %v855, 16
        %v870 = vor.u32 %v867, %v868
        %v871 = vsel %vm594, %v863, %v870
        %v872 = vrot.slane %v867, 4
        %s876 = scalar_lea.vmem [#allocation2], 60
        %v877 = vld [vmem:[%s876] sm:$0xf]
        %v878 = vsel %vm616, %v862, %v877
        %879 = vst [vmem:[%s876] sm:$0xf] %v878
        %880 = vst.msk [vmem:[%s876 + $0x4] sm:$0xf] %vm620, %v871
        %v881 = vld [vmem:[%s876 + $0x8] sm:$0x1]
        %v882 = vsel %vm344, %v872, %v881
        %883 = vst [vmem:[%s876 + $0x8] sm:$0x1] %v882
        %s884 = sadd.s32 %s293, 3
        %p885 = scmp.ge.s32.totalorder %s884, 0
        %p886 = scmp.lt.s32.totalorder %s884, 16
        %p887 = pnand %p885, %p886
        %p888 = pneg %p887
        %p889 = scmp.gt.s32.totalorder %s884, 0
        %s890 = scalar_select %p889, %s884, 0
        %p891 = scmp.lt.s32.totalorder %s890, 15
        %s892 = scalar_select %p891, %s890, 15
        %s893 = smul.u32 %s892, 16
        %s894 = scalar_lea.vmem %s290, %s893
        %v895 = vld [vmem:[%s894] sm:$0xff]
        %v896 = vld [vmem:[%s894 + $0x8] sm:$0xff]
        %s897 = scalar_select %p888, 1, 0
        %v898 = vstv %s897
        %vm899 = vcmp.eq.s32.totalorder %v898, 1
        %v900 = vsel %vm899, %v895, 0.0
        %v901 = vsel %vm899, %v896, 0.0
        %v902 = vpack.c.bf16 %v901, %v900
        %v904 = vunpack.c.l.b16 %v902
        %v905 = vunpack.c.h.b16 %v902
        %v906 = vpack.c.b16 %v904, %v904
        %v907 = vpack.c.b16 %v905, %v905
        %v909 = vshrl.u32 %v906, 16
        %v911 = vrot.slane %v909, 7
        %v912 = vshll.u32 %v906, 16
        %v914 = vor.u32 %v911, %v912
        %v915 = vrot.slane %v911, 4
        %v917 = vshrl.u32 %v907, 16
        %v919 = vrot.slane %v917, 7
        %v920 = vshll.u32 %v907, 16
        %v922 = vor.u32 %v919, %v920
        %v923 = vsel %vm594, %v915, %v922
        %v924 = vrot.slane %v919, 4
        %s928 = scalar_lea.vmem [#allocation2], 72
        %v929 = vld [vmem:[%s928] sm:$0xf]
        %v930 = vsel %vm616, %v914, %v929
        %931 = vst [vmem:[%s928] sm:$0xf] %v930
        %932 = vst.msk [vmem:[%s928 + $0x4] sm:$0xf] %vm620, %v923
        %v933 = vld [vmem:[%s928 + $0x8] sm:$0x1]
        %v934 = vsel %vm344, %v924, %v933
        %935 = vst [vmem:[%s928 + $0x8] sm:$0x1] %v934
        %s936 = sadd.s32 %s293, 4
        %p937 = scmp.ge.s32.totalorder %s936, 0
        %p938 = scmp.lt.s32.totalorder %s936, 16
        %p939 = pnand %p937, %p938
        %p940 = pneg %p939
        %p941 = scmp.gt.s32.totalorder %s936, 0
        %s942 = scalar_select %p941, %s936, 0
        %p943 = scmp.lt.s32.totalorder %s942, 15
        %s944 = scalar_select %p943, %s942, 15
        %s945 = smul.u32 %s944, 16
        %s946 = scalar_lea.vmem %s290, %s945
        %v947 = vld [vmem:[%s946] sm:$0xff]
        %v948 = vld [vmem:[%s946 + $0x8] sm:$0xff]
        %s949 = scalar_select %p940, 1, 0
        %v950 = vstv %s949
        %vm951 = vcmp.eq.s32.totalorder %v950, 1
        %v952 = vsel %vm951, %v947, 0.0
        %v953 = vsel %vm951, %v948, 0.0
        %v954 = vpack.c.bf16 %v953, %v952
        %v956 = vunpack.c.l.b16 %v954
        %v957 = vunpack.c.h.b16 %v954
        %v958 = vpack.c.b16 %v956, %v956
        %v959 = vpack.c.b16 %v957, %v957
        %v961 = vshrl.u32 %v958, 16
        %v963 = vrot.slane %v961, 7
        %v964 = vshll.u32 %v958, 16
        %v966 = vor.u32 %v963, %v964
        %v967 = vrot.slane %v963, 4
        %v969 = vshrl.u32 %v959, 16
        %v971 = vrot.slane %v969, 7
        %v972 = vshll.u32 %v959, 16
        %v974 = vor.u32 %v971, %v972
        %v975 = vsel %vm594, %v967, %v974
        %v976 = vrot.slane %v971, 4
        %s980 = scalar_lea.vmem [#allocation2], 84
        %v981 = vld [vmem:[%s980] sm:$0xf]
        %v982 = vsel %vm616, %v966, %v981
        %983 = vst [vmem:[%s980] sm:$0xf] %v982
        %984 = vst.msk [vmem:[%s980 + $0x4] sm:$0xf] %vm620, %v975
        %v985 = vld [vmem:[%s980 + $0x8] sm:$0x1]
        %v986 = vsel %vm344, %v976, %v985
        %987 = vst [vmem:[%s980 + $0x8] sm:$0x1] %v986
        %s988 = sadd.s32 %s293, 5
        %p989 = scmp.ge.s32.totalorder %s988, 0
        %p990 = scmp.lt.s32.totalorder %s988, 16
        %p991 = pnand %p989, %p990
        %p992 = pneg %p991
        %p993 = scmp.gt.s32.totalorder %s988, 0
        %s994 = scalar_select %p993, %s988, 0
        %p995 = scmp.lt.s32.totalorder %s994, 15
        %s996 = scalar_select %p995, %s994, 15
        %s997 = smul.u32 %s996, 16
        %s998 = scalar_lea.vmem %s290, %s997
        %v999 = vld [vmem:[%s998] sm:$0xff]
        %v1000 = vld [vmem:[%s998 + $0x8] sm:$0xff]
        %s1001 = scalar_select %p992, 1, 0
        %v1002 = vstv %s1001
        %vm1003 = vcmp.eq.s32.totalorder %v1002, 1
        %v1004 = vsel %vm1003, %v999, 0.0
        %v1005 = vsel %vm1003, %v1000, 0.0
        %v1006 = vpack.c.bf16 %v1005, %v1004
        %v1008 = vunpack.c.l.b16 %v1006
        %v1009 = vunpack.c.h.b16 %v1006
        %v1010 = vpack.c.b16 %v1008, %v1008
        %v1011 = vpack.c.b16 %v1009, %v1009
        %v1013 = vshrl.u32 %v1010, 16
        %v1015 = vrot.slane %v1013, 7
        %v1016 = vshll.u32 %v1010, 16
        %v1018 = vor.u32 %v1015, %v1016
        %v1019 = vrot.slane %v1015, 4
        %v1021 = vshrl.u32 %v1011, 16
        %v1023 = vrot.slane %v1021, 7
        %v1024 = vshll.u32 %v1011, 16
        %v1026 = vor.u32 %v1023, %v1024
        %v1027 = vsel %vm594, %v1019, %v1026
        %v1028 = vrot.slane %v1023, 4
        %s1032 = scalar_lea.vmem [#allocation2], 96
        %v1033 = vld [vmem:[%s1032] sm:$0xf]
        %v1034 = vsel %vm616, %v1018, %v1033
        %1035 = vst [vmem:[%s1032] sm:$0xf] %v1034
        %1036 = vst.msk [vmem:[%s1032 + $0x4] sm:$0xf] %vm620, %v1027
        %v1037 = vld [vmem:[%s1032 + $0x8] sm:$0x1]
        %v1038 = vsel %vm344, %v1028, %v1037
        %1039 = vst [vmem:[%s1032 + $0x8] sm:$0x1] %v1038
        %s1040 = sadd.s32 %s293, 6
        %p1041 = scmp.ge.s32.totalorder %s1040, 0
        %p1042 = scmp.lt.s32.totalorder %s1040, 16
        %p1043 = pnand %p1041, %p1042
        %p1044 = pneg %p1043
        %p1045 = scmp.gt.s32.totalorder %s1040, 0
        %s1046 = scalar_select %p1045, %s1040, 0
        %p1047 = scmp.lt.s32.totalorder %s1046, 15
        %s1048 = scalar_select %p1047, %s1046, 15
        %s1049 = smul.u32 %s1048, 16
        %s1050 = scalar_lea.vmem %s290, %s1049
        %v1051 = vld [vmem:[%s1050] sm:$0xff]
        %v1052 = vld [vmem:[%s1050 + $0x8] sm:$0xff]
        %s1053 = scalar_select %p1044, 1, 0
        %v1054 = vstv %s1053
        %vm1055 = vcmp.eq.s32.totalorder %v1054, 1
        %v1056 = vsel %vm1055, %v1051, 0.0
        %v1057 = vsel %vm1055, %v1052, 0.0
        %v1058 = vpack.c.bf16 %v1057, %v1056
        %v1060 = vunpack.c.l.b16 %v1058
        %v1061 = vunpack.c.h.b16 %v1058
        %v1062 = vpack.c.b16 %v1060, %v1060
        %v1063 = vpack.c.b16 %v1061, %v1061
        %v1065 = vshrl.u32 %v1062, 16
        %v1067 = vrot.slane %v1065, 7
        %v1068 = vshll.u32 %v1062, 16
        %v1070 = vor.u32 %v1067, %v1068
        %v1071 = vrot.slane %v1067, 4
        %v1073 = vshrl.u32 %v1063, 16
        %v1075 = vrot.slane %v1073, 7
        %v1076 = vshll.u32 %v1063, 16
        %v1078 = vor.u32 %v1075, %v1076
        %v1079 = vsel %vm594, %v1071, %v1078
        %v1080 = vrot.slane %v1075, 4
        %s1084 = scalar_lea.vmem [#allocation2], 108
        %v1085 = vld [vmem:[%s1084] sm:$0xf]
        %v1086 = vsel %vm616, %v1070, %v1085
        %1087 = vst [vmem:[%s1084] sm:$0xf] %v1086
        %1088 = vst.msk [vmem:[%s1084 + $0x4] sm:$0xf] %vm620, %v1079
        %v1089 = vld [vmem:[%s1084 + $0x8] sm:$0x1]
        %v1090 = vsel %vm344, %v1080, %v1089
        %1091 = vst [vmem:[%s1084 + $0x8] sm:$0x1] %v1090
        %s1092 = sadd.s32 %s293, 7
        %p1093 = scmp.ge.s32.totalorder %s1092, 0
        %p1094 = scmp.lt.s32.totalorder %s1092, 16
        %p1095 = pnand %p1093, %p1094
        %p1096 = pneg %p1095
        %p1097 = scmp.gt.s32.totalorder %s1092, 0
        %s1098 = scalar_select %p1097, %s1092, 0
        %p1099 = scmp.lt.s32.totalorder %s1098, 15
        %s1100 = scalar_select %p1099, %s1098, 15
        %s1101 = smul.u32 %s1100, 16
        %s1102 = scalar_lea.vmem %s290, %s1101
        %v1103 = vld [vmem:[%s1102] sm:$0xff]
        %v1104 = vld [vmem:[%s1102 + $0x8] sm:$0xff]
        %s1105 = scalar_select %p1096, 1, 0
        %v1106 = vstv %s1105
        %vm1107 = vcmp.eq.s32.totalorder %v1106, 1
        %v1108 = vsel %vm1107, %v1103, 0.0
        %v1109 = vsel %vm1107, %v1104, 0.0
        %v1110 = vpack.c.bf16 %v1109, %v1108
        %v1112 = vunpack.c.l.b16 %v1110
        %v1113 = vunpack.c.h.b16 %v1110
        %v1114 = vpack.c.b16 %v1112, %v1112
        %v1115 = vpack.c.b16 %v1113, %v1113
        %v1117 = vshrl.u32 %v1114, 16
        %v1119 = vrot.slane %v1117, 7
        %v1120 = vshll.u32 %v1114, 16
        %v1122 = vor.u32 %v1119, %v1120
        %v1123 = vrot.slane %v1119, 4
        %v1125 = vshrl.u32 %v1115, 16
        %v1127 = vrot.slane %v1125, 7
        %v1128 = vshll.u32 %v1115, 16
        %v1130 = vor.u32 %v1127, %v1128
        %v1131 = vsel %vm594, %v1123, %v1130
        %v1132 = vrot.slane %v1127, 4
        %s1136 = scalar_lea.vmem [#allocation2], 120
        %v1137 = vld [vmem:[%s1136] sm:$0xf]
        %v1138 = vsel %vm616, %v1122, %v1137
        %1139 = vst [vmem:[%s1136] sm:$0xf] %v1138
        %1140 = vst.msk [vmem:[%s1136 + $0x4] sm:$0xf] %vm620, %v1131
        %v1141 = vld [vmem:[%s1136 + $0x8] sm:$0x1]
        %v1142 = vsel %vm344, %v1132, %v1141
        %1143 = vst [vmem:[%s1136 + $0x8] sm:$0x1] %v1142
        %s1144 = sadd.s32 %s293, 8
        %p1145 = scmp.ge.s32.totalorder %s1144, 0
        %p1146 = scmp.lt.s32.totalorder %s1144, 16
        %p1147 = pnand %p1145, %p1146
        %p1148 = pneg %p1147
        %p1149 = scmp.gt.s32.totalorder %s1144, 0
        %s1150 = scalar_select %p1149, %s1144, 0
        %p1151 = scmp.lt.s32.totalorder %s1150, 15
        %s1152 = scalar_select %p1151, %s1150, 15
        %s1153 = smul.u32 %s1152, 16
        %s1154 = scalar_lea.vmem %s290, %s1153
        %v1155 = vld [vmem:[%s1154] sm:$0xff]
        %v1156 = vld [vmem:[%s1154 + $0x8] sm:$0xff]
        %s1157 = scalar_select %p1148, 1, 0
        %v1158 = vstv %s1157
        %vm1159 = vcmp.eq.s32.totalorder %v1158, 1
        %v1160 = vsel %vm1159, %v1155, 0.0
        %v1161 = vsel %vm1159, %v1156, 0.0
        %v1162 = vpack.c.bf16 %v1161, %v1160
        %v1164 = vunpack.c.l.b16 %v1162
        %v1165 = vunpack.c.h.b16 %v1162
        %v1166 = vpack.c.b16 %v1164, %v1164
        %v1167 = vpack.c.b16 %v1165, %v1165
        %v1169 = vshrl.u32 %v1166, 16
        %v1171 = vrot.slane %v1169, 7
        %v1172 = vshll.u32 %v1166, 16
        %v1174 = vor.u32 %v1171, %v1172
        %v1175 = vrot.slane %v1171, 4
        %v1177 = vshrl.u32 %v1167, 16
        %v1179 = vrot.slane %v1177, 7
        %v1180 = vshll.u32 %v1167, 16
        %v1182 = vor.u32 %v1179, %v1180
        %v1183 = vsel %vm594, %v1175, %v1182
        %v1184 = vrot.slane %v1179, 4
        %s1188 = scalar_lea.vmem [#allocation2], 132
        %v1189 = vld [vmem:[%s1188] sm:$0xf]
        %v1190 = vsel %vm616, %v1174, %v1189
        %1191 = vst [vmem:[%s1188] sm:$0xf] %v1190
        %1192 = vst.msk [vmem:[%s1188 + $0x4] sm:$0xf] %vm620, %v1183
        %v1193 = vld [vmem:[%s1188 + $0x8] sm:$0x1]
        %v1194 = vsel %vm344, %v1184, %v1193
        %1195 = vst [vmem:[%s1188 + $0x8] sm:$0x1] %v1194
        %s1196 = sadd.s32 %s293, 9
        %p1197 = scmp.ge.s32.totalorder %s1196, 0
        %p1198 = scmp.lt.s32.totalorder %s1196, 16
        %p1199 = pnand %p1197, %p1198
        %p1200 = pneg %p1199
        %p1201 = scmp.gt.s32.totalorder %s1196, 0
        %s1202 = scalar_select %p1201, %s1196, 0
        %p1203 = scmp.lt.s32.totalorder %s1202, 15
        %s1204 = scalar_select %p1203, %s1202, 15
        %s1205 = smul.u32 %s1204, 16
        %s1206 = scalar_lea.vmem %s290, %s1205
        %v1207 = vld [vmem:[%s1206] sm:$0xff]
        %v1208 = vld [vmem:[%s1206 + $0x8] sm:$0xff]
        %s1209 = scalar_select %p1200, 1, 0
        %v1210 = vstv %s1209
        %vm1211 = vcmp.eq.s32.totalorder %v1210, 1
        %v1212 = vsel %vm1211, %v1207, 0.0
        %v1213 = vsel %vm1211, %v1208, 0.0
        %v1214 = vpack.c.bf16 %v1213, %v1212
        %v1216 = vunpack.c.l.b16 %v1214
        %v1217 = vunpack.c.h.b16 %v1214
        %v1218 = vpack.c.b16 %v1216, %v1216
        %v1219 = vpack.c.b16 %v1217, %v1217
        %v1221 = vshrl.u32 %v1218, 16
        %v1223 = vrot.slane %v1221, 7
        %v1224 = vshll.u32 %v1218, 16
        %v1226 = vor.u32 %v1223, %v1224
        %v1227 = vrot.slane %v1223, 4
        %v1229 = vshrl.u32 %v1219, 16
        %v1231 = vrot.slane %v1229, 7
        %v1232 = vshll.u32 %v1219, 16
        %v1234 = vor.u32 %v1231, %v1232
        %v1235 = vsel %vm594, %v1227, %v1234
        %v1236 = vrot.slane %v1231, 4
        %s1240 = scalar_lea.vmem [#allocation2], 144
        %v1241 = vld [vmem:[%s1240] sm:$0xf]
        %v1242 = vsel %vm616, %v1226, %v1241
        %1243 = vst [vmem:[%s1240] sm:$0xf] %v1242
        %1244 = vst.msk [vmem:[%s1240 + $0x4] sm:$0xf] %vm620, %v1235
        %v1245 = vld [vmem:[%s1240 + $0x8] sm:$0x1]
        %v1246 = vsel %vm344, %v1236, %v1245
        %1247 = vst [vmem:[%s1240 + $0x8] sm:$0x1] %v1246
        %s1248 = sadd.s32 %s293, 10
        %p1249 = scmp.ge.s32.totalorder %s1248, 0
        %p1250 = scmp.lt.s32.totalorder %s1248, 16
        %p1251 = pnand %p1249, %p1250
        %p1252 = pneg %p1251
        %p1253 = scmp.gt.s32.totalorder %s1248, 0
        %s1254 = scalar_select %p1253, %s1248, 0
        %p1255 = scmp.lt.s32.totalorder %s1254, 15
        %s1256 = scalar_select %p1255, %s1254, 15
        %s1257 = smul.u32 %s1256, 16
        %s1258 = scalar_lea.vmem %s290, %s1257
        %v1259 = vld [vmem:[%s1258] sm:$0xff]
        %v1260 = vld [vmem:[%s1258 + $0x8] sm:$0xff]
        %s1261 = scalar_select %p1252, 1, 0
        %v1262 = vstv %s1261
        %vm1263 = vcmp.eq.s32.totalorder %v1262, 1
        %v1264 = vsel %vm1263, %v1259, 0.0
        %v1265 = vsel %vm1263, %v1260, 0.0
        %v1266 = vpack.c.bf16 %v1265, %v1264
        %v1268 = vunpack.c.l.b16 %v1266
        %v1269 = vunpack.c.h.b16 %v1266
        %v1270 = vpack.c.b16 %v1268, %v1268
        %v1271 = vpack.c.b16 %v1269, %v1269
        %v1273 = vshrl.u32 %v1270, 16
        %v1275 = vrot.slane %v1273, 7
        %v1276 = vshll.u32 %v1270, 16
        %v1278 = vor.u32 %v1275, %v1276
        %v1279 = vrot.slane %v1275, 4
        %v1281 = vshrl.u32 %v1271, 16
        %v1283 = vrot.slane %v1281, 7
        %v1284 = vshll.u32 %v1271, 16
        %v1286 = vor.u32 %v1283, %v1284
        %v1287 = vsel %vm594, %v1279, %v1286
        %v1288 = vrot.slane %v1283, 4
        %s1292 = scalar_lea.vmem [#allocation2], 156
        %v1293 = vld [vmem:[%s1292] sm:$0xf]
        %v1294 = vsel %vm616, %v1278, %v1293
        %1295 = vst [vmem:[%s1292] sm:$0xf] %v1294
        %1296 = vst.msk [vmem:[%s1292 + $0x4] sm:$0xf] %vm620, %v1287
        %v1297 = vld [vmem:[%s1292 + $0x8] sm:$0x1]
        %v1298 = vsel %vm344, %v1288, %v1297
        %1299 = vst [vmem:[%s1292 + $0x8] sm:$0x1] %v1298
        %v1300 = vld [vmem:[#allocation2] sm:$0xf]
        %v1301 = vld [vmem:[#allocation2 + $0x4] sm:$0xf]
        %v1302 = vld [vmem:[#allocation2 + $0x8] sm:$0x1]
        %v1303 = vld [vmem:[#allocation2 + $0xc] sm:$0xf]
        %v1304 = vld [vmem:[#allocation2 + $0x10] sm:$0xf]
        %v1305 = vld [vmem:[#allocation2 + $0x14] sm:$0x1]
        %v1306 = vld [vmem:[#allocation2 + $0x18] sm:$0xf]
        %v1307 = vld [vmem:[#allocation2 + $0x1c] sm:$0xf]
        %v1308 = vld [vmem:[#allocation2 + $0x20] sm:$0x1]
        %v1309 = vld [vmem:[#allocation2 + $0x24] sm:$0xf]
        %v1310 = vld [vmem:[#allocation2 + $0x28] sm:$0xf]
        %v1311 = vld [vmem:[#allocation2 + $0x2c] sm:$0x1]
        %v1312 = vld [vmem:[#allocation2 + $0x30] sm:$0xf]
        %v1313 = vld [vmem:[#allocation2 + $0x34] sm:$0xf]
        %v1314 = vld [vmem:[#allocation2 + $0x38] sm:$0x1]
        %v1315 = vld [vmem:[#allocation2 + $0x3c] sm:$0xf]
        %v1316 = vld [vmem:[#allocation2 + $0x40] sm:$0xf]
        %v1317 = vld [vmem:[#allocation2 + $0x44] sm:$0x1]
        %v1318 = vld [vmem:[#allocation2 + $0x48] sm:$0xf]
        %v1319 = vld [vmem:[#allocation2 + $0x4c] sm:$0xf]
        %v1320 = vld [vmem:[#allocation2 + $0x50] sm:$0x1]
        %v1321 = vld [vmem:[#allocation2 + $0x54] sm:$0xf]
        %v1322 = vld [vmem:[#allocation2 + $0x58] sm:$0xf]
        %v1323 = vld [vmem:[#allocation2 + $0x5c] sm:$0x1]
        %1324 = vst.msk [vmem:[#allocation5] sm:$0xf] %vm620, %v1300
        %1325 = vst.msk [vmem:[#allocation5 + $0x14] sm:$0xf] %vm620, %v1301
        %1326 = vst.msk [vmem:[#allocation5 + $0x28] sm:$0xf] %vm620, %v1303
        %1327 = vst.msk [vmem:[#allocation5 + $0x3c] sm:$0xf] %vm620, %v1304
        %1328 = vst.msk [vmem:[#allocation5 + $0x50] sm:$0xf] %vm620, %v1306
        %1329 = vst.msk [vmem:[#allocation5 + $0x64] sm:$0xf] %vm620, %v1307
        %1330 = vst.msk [vmem:[#allocation5 + $0x78] sm:$0xf] %vm620, %v1309
        %1331 = vst.msk [vmem:[#allocation5 + $0x8c] sm:$0xf] %vm620, %v1310
        %1332 = vst.msk [vmem:[#allocation5 + $0xa0] sm:$0xf] %vm620, %v1312
        %1333 = vst.msk [vmem:[#allocation5 + $0xb4] sm:$0xf] %vm620, %v1313
        %1334 = vst.msk [vmem:[#allocation5 + $0xc8] sm:$0xf] %vm620, %v1315
        %1335 = vst.msk [vmem:[#allocation5 + $0xdc] sm:$0xf] %vm620, %v1316
        %1336 = vst.msk [vmem:[#allocation5 + $0xf0] sm:$0xf] %vm620, %v1318
        %1337 = vst.msk [vmem:[#allocation5 + $0x104] sm:$0xf] %vm620, %v1319
        %1338 = vst.msk [vmem:[#allocation5 + $0x118] sm:$0xf] %vm620, %v1321
        %1339 = vst.msk [vmem:[#allocation5 + $0x12c] sm:$0xf] %vm620, %v1322
        %vm1340 = vsmask.f32 3328
        %vm1341 = vsmask.f32 7440
        %vm1342 = vmor %vm1340, %vm1341
        %v1344 = vshrl.u32 %v1300, 16
        %v1346 = vrot.slane %v1344, 4
        %v1347 = vshll.u32 %v1300, 16
        %v1349 = vrot.slane %v1347, 5
        %v1350 = vor.u32 %v1346, %v1349
        %v1351 = vrot.slane %v1350, 4
        %v1353 = vshll.u32 %v1301, 16
        %v1355 = vrot.slane %v1353, 5
        %v1356 = vsel %vm1342, %v1351, %v1355
        %v1357 = vshrl.u32 %v1301, 16
        %v1359 = vrot.slane %v1357, 4
        %v1360 = vor.u32 %v1359, %v1355
        %v1361 = vrot.slane %v1360, 4
        %v1363 = vshll.u32 %v1302, 16
        %v1365 = vrot.slane %v1363, 5
        %v1366 = vsel %vm1342, %v1361, %v1365
        %v1368 = vshrl.u32 %v1303, 16
        %v1370 = vrot.slane %v1368, 4
        %v1371 = vshll.u32 %v1303, 16
        %v1373 = vrot.slane %v1371, 5
        %v1374 = vor.u32 %v1370, %v1373
        %v1375 = vrot.slane %v1374, 4
        %v1377 = vshll.u32 %v1304, 16
        %v1379 = vrot.slane %v1377, 5
        %v1380 = vsel %vm1342, %v1375, %v1379
        %v1381 = vshrl.u32 %v1304, 16
        %v1383 = vrot.slane %v1381, 4
        %v1384 = vor.u32 %v1383, %v1379
        %v1385 = vrot.slane %v1384, 4
        %v1387 = vshll.u32 %v1305, 16
        %v1389 = vrot.slane %v1387, 5
        %v1390 = vsel %vm1342, %v1385, %v1389
        %v1392 = vshrl.u32 %v1306, 16
        %v1394 = vrot.slane %v1392, 4
        %v1395 = vshll.u32 %v1306, 16
        %v1397 = vrot.slane %v1395, 5
        %v1398 = vor.u32 %v1394, %v1397
        %v1399 = vrot.slane %v1398, 4
        %v1401 = vshll.u32 %v1307, 16
        %v1403 = vrot.slane %v1401, 5
        %v1404 = vsel %vm1342, %v1399, %v1403
        %v1405 = vshrl.u32 %v1307, 16
        %v1407 = vrot.slane %v1405, 4
        %v1408 = vor.u32 %v1407, %v1403
        %v1409 = vrot.slane %v1408, 4
        %v1411 = vshll.u32 %v1308, 16
        %v1413 = vrot.slane %v1411, 5
        %v1414 = vsel %vm1342, %v1409, %v1413
        %v1416 = vshrl.u32 %v1309, 16
        %v1418 = vrot.slane %v1416, 4
        %v1419 = vshll.u32 %v1309, 16
        %v1421 = vrot.slane %v1419, 5
        %v1422 = vor.u32 %v1418, %v1421
        %v1423 = vrot.slane %v1422, 4
        %v1425 = vshll.u32 %v1310, 16
        %v1427 = vrot.slane %v1425, 5
        %v1428 = vsel %vm1342, %v1423, %v1427
        %v1429 = vshrl.u32 %v1310, 16
        %v1431 = vrot.slane %v1429, 4
        %v1432 = vor.u32 %v1431, %v1427
        %v1433 = vrot.slane %v1432, 4
        %v1435 = vshll.u32 %v1311, 16
        %v1437 = vrot.slane %v1435, 5
        %v1438 = vsel %vm1342, %v1433, %v1437
        %v1440 = vshrl.u32 %v1312, 16
        %v1442 = vrot.slane %v1440, 4
        %v1443 = vshll.u32 %v1312, 16
        %v1445 = vrot.slane %v1443, 5
        %v1446 = vor.u32 %v1442, %v1445
        %v1447 = vrot.slane %v1446, 4
        %v1449 = vshll.u32 %v1313, 16
        %v1451 = vrot.slane %v1449, 5
        %v1452 = vsel %vm1342, %v1447, %v1451
        %v1453 = vshrl.u32 %v1313, 16
        %v1455 = vrot.slane %v1453, 4
        %v1456 = vor.u32 %v1455, %v1451
        %v1457 = vrot.slane %v1456, 4
        %v1459 = vshll.u32 %v1314, 16
        %v1461 = vrot.slane %v1459, 5
        %v1462 = vsel %vm1342, %v1457, %v1461
        %v1464 = vshrl.u32 %v1315, 16
        %v1466 = vrot.slane %v1464, 4
        %v1467 = vshll.u32 %v1315, 16
        %v1469 = vrot.slane %v1467, 5
        %v1470 = vor.u32 %v1466, %v1469
        %v1471 = vrot.slane %v1470, 4
        %v1473 = vshll.u32 %v1316, 16
        %v1475 = vrot.slane %v1473, 5
        %v1476 = vsel %vm1342, %v1471, %v1475
        %v1477 = vshrl.u32 %v1316, 16
        %v1479 = vrot.slane %v1477, 4
        %v1480 = vor.u32 %v1479, %v1475
        %v1481 = vrot.slane %v1480, 4
        %v1483 = vshll.u32 %v1317, 16
        %v1485 = vrot.slane %v1483, 5
        %v1486 = vsel %vm1342, %v1481, %v1485
        %v1488 = vshrl.u32 %v1318, 16
        %v1490 = vrot.slane %v1488, 4
        %v1491 = vshll.u32 %v1318, 16
        %v1493 = vrot.slane %v1491, 5
        %v1494 = vor.u32 %v1490, %v1493
        %v1495 = vrot.slane %v1494, 4
        %v1497 = vshll.u32 %v1319, 16
        %v1499 = vrot.slane %v1497, 5
        %v1500 = vsel %vm1342, %v1495, %v1499
        %v1501 = vshrl.u32 %v1319, 16
        %v1503 = vrot.slane %v1501, 4
        %v1504 = vor.u32 %v1503, %v1499
        %v1505 = vrot.slane %v1504, 4
        %v1507 = vshll.u32 %v1320, 16
        %v1509 = vrot.slane %v1507, 5
        %v1510 = vsel %vm1342, %v1505, %v1509
        %v1512 = vshrl.u32 %v1321, 16
        %v1514 = vrot.slane %v1512, 4
        %v1515 = vshll.u32 %v1321, 16
        %v1517 = vrot.slane %v1515, 5
        %v1518 = vor.u32 %v1514, %v1517
        %v1519 = vrot.slane %v1518, 4
        %v1521 = vshll.u32 %v1322, 16
        %v1523 = vrot.slane %v1521, 5
        %v1524 = vsel %vm1342, %v1519, %v1523
        %v1525 = vshrl.u32 %v1322, 16
        %v1527 = vrot.slane %v1525, 4
        %v1528 = vor.u32 %v1527, %v1523
        %v1529 = vrot.slane %v1528, 4
        %v1531 = vshll.u32 %v1323, 16
        %v1533 = vrot.slane %v1531, 5
        %v1534 = vsel %vm1342, %v1529, %v1533
        %1535 = vrot.lane.b32.xlu0 %v1356, 4
        %v1536 = vpop.permute.xlu0 %1535
        %1537 = vrot.lane.b32.xlu0 %v1366, 4
        %v1538 = vpop.permute.xlu0 %1537
        %1539 = vrot.lane.b32.xlu0 %v1380, 4
        %v1540 = vpop.permute.xlu0 %1539
        %1541 = vrot.lane.b32.xlu0 %v1390, 4
        %v1542 = vpop.permute.xlu0 %1541
        %1543 = vrot.lane.b32.xlu0 %v1404, 4
        %v1544 = vpop.permute.xlu0 %1543
        %1545 = vrot.lane.b32.xlu0 %v1414, 4
        %v1546 = vpop.permute.xlu0 %1545
        %1547 = vrot.lane.b32.xlu0 %v1428, 4
        %v1548 = vpop.permute.xlu0 %1547
        %1549 = vrot.lane.b32.xlu0 %v1438, 4
        %v1550 = vpop.permute.xlu0 %1549
        %1551 = vrot.lane.b32.xlu0 %v1452, 4
        %v1552 = vpop.permute.xlu0 %1551
        %1553 = vrot.lane.b32.xlu0 %v1462, 4
        %v1554 = vpop.permute.xlu0 %1553
        %1555 = vrot.lane.b32.xlu0 %v1476, 4
        %v1556 = vpop.permute.xlu0 %1555
        %1557 = vrot.lane.b32.xlu0 %v1486, 4
        %v1558 = vpop.permute.xlu0 %1557
        %1559 = vrot.lane.b32.xlu0 %v1500, 4
        %v1560 = vpop.permute.xlu0 %1559
        %1561 = vrot.lane.b32.xlu0 %v1510, 4
        %v1562 = vpop.permute.xlu0 %1561
        %1563 = vrot.lane.b32.xlu0 %v1524, 4
        %v1564 = vpop.permute.xlu0 %1563
        %1565 = vrot.lane.b32.xlu0 %v1534, 4
        %v1566 = vpop.permute.xlu0 %1565
        %vm1583 = vcmask 60448
        %1584 = vst.msk [vmem:[#allocation5] sm:$0xf] %vm1583, %v1536
        %1585 = vst.msk [vmem:[#allocation5 + $0x14] sm:$0xf] %vm1583, %v1538
        %1586 = vst.msk [vmem:[#allocation5 + $0x28] sm:$0xf] %vm1583, %v1540
        %1587 = vst.msk [vmem:[#allocation5 + $0x3c] sm:$0xf] %vm1583, %v1542
        %1588 = vst.msk [vmem:[#allocation5 + $0x50] sm:$0xf] %vm1583, %v1544
        %1589 = vst.msk [vmem:[#allocation5 + $0x64] sm:$0xf] %vm1583, %v1546
        %1590 = vst.msk [vmem:[#allocation5 + $0x78] sm:$0xf] %vm1583, %v1548
        %1591 = vst.msk [vmem:[#allocation5 + $0x8c] sm:$0xf] %vm1583, %v1550
        %1592 = vst.msk [vmem:[#allocation5 + $0xa0] sm:$0xf] %vm1583, %v1552
        %1593 = vst.msk [vmem:[#allocation5 + $0xb4] sm:$0xf] %vm1583, %v1554
        %1594 = vst.msk [vmem:[#allocation5 + $0xc8] sm:$0xf] %vm1583, %v1556
        %1595 = vst.msk [vmem:[#allocation5 + $0xdc] sm:$0xf] %vm1583, %v1558
        %1596 = vst.msk [vmem:[#allocation5 + $0xf0] sm:$0xf] %vm1583, %v1560
        %1597 = vst.msk [vmem:[#allocation5 + $0x104] sm:$0xf] %vm1583, %v1562
        %1598 = vst.msk [vmem:[#allocation5 + $0x118] sm:$0xf] %vm1583, %v1564
        %1599 = vst.msk [vmem:[#allocation5 + $0x12c] sm:$0xf] %vm1583, %v1566
        %vm1624 = vcmask 1042432
        %vm1625 = vcmask 1046532
        %vm1626 = vmor %vm1624, %vm1625
        %v1627 = vrot.slane %v1300, 5
        %v1628 = vrot.slane %v1627, 4
        %v1629 = vrot.slane %v1301, 5
        %v1630 = vsel %vm1626, %v1628, %v1629
        %v1631 = vrot.slane %v1629, 4
        %v1632 = vrot.slane %v1302, 5
        %v1633 = vsel %vm1626, %v1631, %v1632
        %v1634 = vrot.slane %v1303, 5
        %v1635 = vrot.slane %v1634, 4
        %v1636 = vrot.slane %v1304, 5
        %v1637 = vsel %vm1626, %v1635, %v1636
        %v1638 = vrot.slane %v1636, 4
        %v1639 = vrot.slane %v1305, 5
        %v1640 = vsel %vm1626, %v1638, %v1639
        %v1641 = vrot.slane %v1306, 5
        %v1642 = vrot.slane %v1641, 4
        %v1643 = vrot.slane %v1307, 5
        %v1644 = vsel %vm1626, %v1642, %v1643
        %v1645 = vrot.slane %v1643, 4
        %v1646 = vrot.slane %v1308, 5
        %v1647 = vsel %vm1626, %v1645, %v1646
        %v1648 = vrot.slane %v1309, 5
        %v1649 = vrot.slane %v1648, 4
        %v1650 = vrot.slane %v1310, 5
        %v1651 = vsel %vm1626, %v1649, %v1650
        %v1652 = vrot.slane %v1650, 4
        %v1653 = vrot.slane %v1311, 5
        %v1654 = vsel %vm1626, %v1652, %v1653
        %v1655 = vrot.slane %v1312, 5
        %v1656 = vrot.slane %v1655, 4
        %v1657 = vrot.slane %v1313, 5
        %v1658 = vsel %vm1626, %v1656, %v1657
        %v1659 = vrot.slane %v1657, 4
        %v1660 = vrot.slane %v1314, 5
        %v1661 = vsel %vm1626, %v1659, %v1660
        %v1662 = vrot.slane %v1315, 5
        %v1663 = vrot.slane %v1662, 4
        %v1664 = vrot.slane %v1316, 5
        %v1665 = vsel %vm1626, %v1663, %v1664
        %v1666 = vrot.slane %v1664, 4
        %v1667 = vrot.slane %v1317, 5
        %v1668 = vsel %vm1626, %v1666, %v1667
        %v1669 = vrot.slane %v1318, 5
        %v1670 = vrot.slane %v1669, 4
        %v1671 = vrot.slane %v1319, 5
        %v1672 = vsel %vm1626, %v1670, %v1671
        %v1673 = vrot.slane %v1671, 4
        %v1674 = vrot.slane %v1320, 5
        %v1675 = vsel %vm1626, %v1673, %v1674
        %v1676 = vrot.slane %v1321, 5
        %v1677 = vrot.slane %v1676, 4
        %v1678 = vrot.slane %v1322, 5
        %v1679 = vsel %vm1626, %v1677, %v1678
        %v1680 = vrot.slane %v1678, 4
        %v1681 = vrot.slane %v1323, 5
        %v1682 = vsel %vm1626, %v1680, %v1681
        %1683 = vrot.lane.b32.xlu0 %v1630, 8
        %v1684 = vpop.permute.xlu0 %1683
        %1685 = vrot.lane.b32.xlu0 %v1633, 8
        %v1686 = vpop.permute.xlu0 %1685
        %1687 = vrot.lane.b32.xlu0 %v1637, 8
        %v1688 = vpop.permute.xlu0 %1687
        %1689 = vrot.lane.b32.xlu0 %v1640, 8
        %v1690 = vpop.permute.xlu0 %1689
        %1691 = vrot.lane.b32.xlu0 %v1644, 8
        %v1692 = vpop.permute.xlu0 %1691
        %1693 = vrot.lane.b32.xlu0 %v1647, 8
        %v1694 = vpop.permute.xlu0 %1693
        %1695 = vrot.lane.b32.xlu0 %v1651, 8
        %v1696 = vpop.permute.xlu0 %1695
        %1697 = vrot.lane.b32.xlu0 %v1654, 8
        %v1698 = vpop.permute.xlu0 %1697
        %1699 = vrot.lane.b32.xlu0 %v1658, 8
        %v1700 = vpop.permute.xlu0 %1699
        %1701 = vrot.lane.b32.xlu0 %v1661, 8
        %v1702 = vpop.permute.xlu0 %1701
        %1703 = vrot.lane.b32.xlu0 %v1665, 8
        %v1704 = vpop.permute.xlu0 %1703
        %1705 = vrot.lane.b32.xlu0 %v1668, 8
        %v1706 = vpop.permute.xlu0 %1705
        %1707 = vrot.lane.b32.xlu0 %v1672, 8
        %v1708 = vpop.permute.xlu0 %1707
        %1709 = vrot.lane.b32.xlu0 %v1675, 8
        %v1710 = vpop.permute.xlu0 %1709
        %1711 = vrot.lane.b32.xlu0 %v1679, 8
        %v1712 = vpop.permute.xlu0 %1711
        %1713 = vrot.lane.b32.xlu0 %v1682, 8
        %v1714 = vpop.permute.xlu0 %1713
        %vm1731 = vcmask 93248
        %1732 = vst.msk [vmem:[#allocation5] sm:$0xf] %vm1731, %v1684
        %1733 = vst.msk [vmem:[#allocation5 + $0x14] sm:$0xf] %vm1731, %v1686
        %1734 = vst.msk [vmem:[#allocation5 + $0x28] sm:$0xf] %vm1731, %v1688
        %1735 = vst.msk [vmem:[#allocation5 + $0x3c] sm:$0xf] %vm1731, %v1690
        %1736 = vst.msk [vmem:[#allocation5 + $0x50] sm:$0xf] %vm1731, %v1692
        %1737 = vst.msk [vmem:[#allocation5 + $0x64] sm:$0xf] %vm1731, %v1694
        %1738 = vst.msk [vmem:[#allocation5 + $0x78] sm:$0xf] %vm1731, %v1696
        %1739 = vst.msk [vmem:[#allocation5 + $0x8c] sm:$0xf] %vm1731, %v1698
        %1740 = vst.msk [vmem:[#allocation5 + $0xa0] sm:$0xf] %vm1731, %v1700
        %1741 = vst.msk [vmem:[#allocation5 + $0xb4] sm:$0xf] %vm1731, %v1702
        %1742 = vst.msk [vmem:[#allocation5 + $0xc8] sm:$0xf] %vm1731, %v1704
        %1743 = vst.msk [vmem:[#allocation5 + $0xdc] sm:$0xf] %vm1731, %v1706
        %1744 = vst.msk [vmem:[#allocation5 + $0xf0] sm:$0xf] %vm1731, %v1708
        %1745 = vst.msk [vmem:[#allocation5 + $0x104] sm:$0xf] %vm1731, %v1710
        %1746 = vst.msk [vmem:[#allocation5 + $0x118] sm:$0xf] %vm1731, %v1712
        %1747 = vst.msk [vmem:[#allocation5 + $0x12c] sm:$0xf] %vm1731, %v1714
        %v1748 = vld [vmem:[%s669] sm:$0xf]
        %v1749 = vld [vmem:[%s669 + $0x4] sm:$0xf]
        %v1750 = vld [vmem:[%s669 + $0x8] sm:$0x1]
        %v1751 = vld [vmem:[%s669 + $0xc] sm:$0xf]
        %v1752 = vld [vmem:[%s669 + $0x10] sm:$0xf]
        %v1753 = vld [vmem:[%s669 + $0x14] sm:$0x1]
        %v1754 = vld [vmem:[%s669 + $0x18] sm:$0xf]
        %v1755 = vld [vmem:[%s669 + $0x1c] sm:$0xf]
        %v1756 = vld [vmem:[%s669 + $0x20] sm:$0x1]
        %v1757 = vld [vmem:[%s669 + $0x24] sm:$0xf]
        %v1758 = vld [vmem:[%s669 + $0x28] sm:$0xf]
        %v1759 = vld [vmem:[%s669 + $0x2c] sm:$0x1]
        %v1760 = vld [vmem:[%s669 + $0x30] sm:$0xf]
        %v1761 = vld [vmem:[%s669 + $0x34] sm:$0xf]
        %v1762 = vld [vmem:[%s669 + $0x38] sm:$0x1]
        %v1763 = vld [vmem:[%s669 + $0x3c] sm:$0xf]
        %v1764 = vld [vmem:[%s669 + $0x40] sm:$0xf]
        %v1765 = vld [vmem:[%s669 + $0x44] sm:$0x1]
        %v1766 = vld [vmem:[%s669 + $0x48] sm:$0xf]
        %v1767 = vld [vmem:[%s669 + $0x4c] sm:$0xf]
        %v1768 = vld [vmem:[%s669 + $0x50] sm:$0x1]
        %v1769 = vld [vmem:[%s669 + $0x54] sm:$0xf]
        %v1770 = vld [vmem:[%s669 + $0x58] sm:$0xf]
        %v1771 = vld [vmem:[%s669 + $0x5c] sm:$0x1]
        %1788 = vrot.lane.b32.xlu0 %v1748, 12
        %v1789 = vpop.permute.xlu0 %1788
        %1790 = vrot.lane.b32.xlu0 %v1749, 12
        %v1791 = vpop.permute.xlu0 %1790
        %1792 = vrot.lane.b32.xlu0 %v1751, 12
        %v1793 = vpop.permute.xlu0 %1792
        %1794 = vrot.lane.b32.xlu0 %v1752, 12
        %v1795 = vpop.permute.xlu0 %1794
        %1796 = vrot.lane.b32.xlu0 %v1754, 12
        %v1797 = vpop.permute.xlu0 %1796
        %1798 = vrot.lane.b32.xlu0 %v1755, 12
        %v1799 = vpop.permute.xlu0 %1798
        %1800 = vrot.lane.b32.xlu0 %v1757, 12
        %v1801 = vpop.permute.xlu0 %1800
        %1802 = vrot.lane.b32.xlu0 %v1758, 12
        %v1803 = vpop.permute.xlu0 %1802
        %1804 = vrot.lane.b32.xlu0 %v1760, 12
        %v1805 = vpop.permute.xlu0 %1804
        %1806 = vrot.lane.b32.xlu0 %v1761, 12
        %v1807 = vpop.permute.xlu0 %1806
        %1808 = vrot.lane.b32.xlu0 %v1763, 12
        %v1809 = vpop.permute.xlu0 %1808
        %1810 = vrot.lane.b32.xlu0 %v1764, 12
        %v1811 = vpop.permute.xlu0 %1810
        %1812 = vrot.lane.b32.xlu0 %v1766, 12
        %v1813 = vpop.permute.xlu0 %1812
        %1814 = vrot.lane.b32.xlu0 %v1767, 12
        %v1815 = vpop.permute.xlu0 %1814
        %1816 = vrot.lane.b32.xlu0 %v1769, 12
        %v1817 = vpop.permute.xlu0 %1816
        %1818 = vrot.lane.b32.xlu0 %v1770, 12
        %v1819 = vpop.permute.xlu0 %1818
        %vm1836 = vcmask 126048
        %1837 = vst.msk [vmem:[#allocation5] sm:$0xf] %vm1836, %v1789
        %1838 = vst.msk [vmem:[#allocation5 + $0x14] sm:$0xf] %vm1836, %v1791
        %1839 = vst.msk [vmem:[#allocation5 + $0x28] sm:$0xf] %vm1836, %v1793
        %1840 = vst.msk [vmem:[#allocation5 + $0x3c] sm:$0xf] %vm1836, %v1795
        %1841 = vst.msk [vmem:[#allocation5 + $0x50] sm:$0xf] %vm1836, %v1797
        %1842 = vst.msk [vmem:[#allocation5 + $0x64] sm:$0xf] %vm1836, %v1799
        %1843 = vst.msk [vmem:[#allocation5 + $0x78] sm:$0xf] %vm1836, %v1801
        %1844 = vst.msk [vmem:[#allocation5 + $0x8c] sm:$0xf] %vm1836, %v1803
        %1845 = vst.msk [vmem:[#allocation5 + $0xa0] sm:$0xf] %vm1836, %v1805
        %1846 = vst.msk [vmem:[#allocation5 + $0xb4] sm:$0xf] %vm1836, %v1807
        %1847 = vst.msk [vmem:[#allocation5 + $0xc8] sm:$0xf] %vm1836, %v1809
        %1848 = vst.msk [vmem:[#allocation5 + $0xdc] sm:$0xf] %vm1836, %v1811
        %1849 = vst.msk [vmem:[#allocation5 + $0xf0] sm:$0xf] %vm1836, %v1813
        %1850 = vst.msk [vmem:[#allocation5 + $0x104] sm:$0xf] %vm1836, %v1815
        %1851 = vst.msk [vmem:[#allocation5 + $0x118] sm:$0xf] %vm1836, %v1817
        %1852 = vst.msk [vmem:[#allocation5 + $0x12c] sm:$0xf] %vm1836, %v1819
        %v1854 = vshrl.u32 %v1748, 16
        %v1856 = vrot.slane %v1854, 4
        %v1857 = vshll.u32 %v1748, 16
        %v1859 = vrot.slane %v1857, 5
        %v1860 = vor.u32 %v1856, %v1859
        %v1861 = vrot.slane %v1860, 4
        %v1863 = vshll.u32 %v1749, 16
        %v1865 = vrot.slane %v1863, 5
        %v1866 = vsel %vm1342, %v1861, %v1865
        %v1867 = vshrl.u32 %v1749, 16
        %v1869 = vrot.slane %v1867, 4
        %v1870 = vor.u32 %v1869, %v1865
        %v1871 = vrot.slane %v1870, 4
        %v1873 = vshll.u32 %v1750, 16
        %v1875 = vrot.slane %v1873, 5
        %v1876 = vsel %vm1342, %v1871, %v1875
        %v1878 = vshrl.u32 %v1751, 16
        %v1880 = vrot.slane %v1878, 4
        %v1881 = vshll.u32 %v1751, 16
        %v1883 = vrot.slane %v1881, 5
        %v1884 = vor.u32 %v1880, %v1883
        %v1885 = vrot.slane %v1884, 4
        %v1887 = vshll.u32 %v1752, 16
        %v1889 = vrot.slane %v1887, 5
        %v1890 = vsel %vm1342, %v1885, %v1889
        %v1891 = vshrl.u32 %v1752, 16
        %v1893 = vrot.slane %v1891, 4
        %v1894 = vor.u32 %v1893, %v1889
        %v1895 = vrot.slane %v1894, 4
        %v1897 = vshll.u32 %v1753, 16
        %v1899 = vrot.slane %v1897, 5
        %v1900 = vsel %vm1342, %v1895, %v1899
        %v1902 = vshrl.u32 %v1754, 16
        %v1904 = vrot.slane %v1902, 4
        %v1905 = vshll.u32 %v1754, 16
        %v1907 = vrot.slane %v1905, 5
        %v1908 = vor.u32 %v1904, %v1907
        %v1909 = vrot.slane %v1908, 4
        %v1911 = vshll.u32 %v1755, 16
        %v1913 = vrot.slane %v1911, 5
        %v1914 = vsel %vm1342, %v1909, %v1913
        %v1915 = vshrl.u32 %v1755, 16
        %v1917 = vrot.slane %v1915, 4
        %v1918 = vor.u32 %v1917, %v1913
        %v1919 = vrot.slane %v1918, 4
        %v1921 = vshll.u32 %v1756, 16
        %v1923 = vrot.slane %v1921, 5
        %v1924 = vsel %vm1342, %v1919, %v1923
        %v1926 = vshrl.u32 %v1757, 16
        %v1928 = vrot.slane %v1926, 4
        %v1929 = vshll.u32 %v1757, 16
        %v1931 = vrot.slane %v1929, 5
        %v1932 = vor.u32 %v1928, %v1931
        %v1933 = vrot.slane %v1932, 4
        %v1935 = vshll.u32 %v1758, 16
        %v1937 = vrot.slane %v1935, 5
        %v1938 = vsel %vm1342, %v1933, %v1937
        %v1939 = vshrl.u32 %v1758, 16
        %v1941 = vrot.slane %v1939, 4
        %v1942 = vor.u32 %v1941, %v1937
        %v1943 = vrot.slane %v1942, 4
        %v1945 = vshll.u32 %v1759, 16
        %v1947 = vrot.slane %v1945, 5
        %v1948 = vsel %vm1342, %v1943, %v1947
        %v1950 = vshrl.u32 %v1760, 16
        %v1952 = vrot.slane %v1950, 4
        %v1953 = vshll.u32 %v1760, 16
        %v1955 = vrot.slane %v1953, 5
        %v1956 = vor.u32 %v1952, %v1955
        %v1957 = vrot.slane %v1956, 4
        %v1959 = vshll.u32 %v1761, 16
        %v1961 = vrot.slane %v1959, 5
        %v1962 = vsel %vm1342, %v1957, %v1961
        %v1963 = vshrl.u32 %v1761, 16
        %v1965 = vrot.slane %v1963, 4
        %v1966 = vor.u32 %v1965, %v1961
        %v1967 = vrot.slane %v1966, 4
        %v1969 = vshll.u32 %v1762, 16
        %v1971 = vrot.slane %v1969, 5
        %v1972 = vsel %vm1342, %v1967, %v1971
        %v1974 = vshrl.u32 %v1763, 16
        %v1976 = vrot.slane %v1974, 4
        %v1977 = vshll.u32 %v1763, 16
        %v1979 = vrot.slane %v1977, 5
        %v1980 = vor.u32 %v1976, %v1979
        %v1981 = vrot.slane %v1980, 4
        %v1983 = vshll.u32 %v1764, 16
        %v1985 = vrot.slane %v1983, 5
        %v1986 = vsel %vm1342, %v1981, %v1985
        %v1987 = vshrl.u32 %v1764, 16
        %v1989 = vrot.slane %v1987, 4
        %v1990 = vor.u32 %v1989, %v1985
        %v1991 = vrot.slane %v1990, 4
        %v1993 = vshll.u32 %v1765, 16
        %v1995 = vrot.slane %v1993, 5
        %v1996 = vsel %vm1342, %v1991, %v1995
        %v1998 = vshrl.u32 %v1766, 16
        %v2000 = vrot.slane %v1998, 4
        %v2001 = vshll.u32 %v1766, 16
        %v2003 = vrot.slane %v2001, 5
        %v2004 = vor.u32 %v2000, %v2003
        %v2005 = vrot.slane %v2004, 4
        %v2007 = vshll.u32 %v1767, 16
        %v2009 = vrot.slane %v2007, 5
        %v2010 = vsel %vm1342, %v2005, %v2009
        %v2011 = vshrl.u32 %v1767, 16
        %v2013 = vrot.slane %v2011, 4
        %v2014 = vor.u32 %v2013, %v2009
        %v2015 = vrot.slane %v2014, 4
        %v2017 = vshll.u32 %v1768, 16
        %v2019 = vrot.slane %v2017, 5
        %v2020 = vsel %vm1342, %v2015, %v2019
        %v2022 = vshrl.u32 %v1769, 16
        %v2024 = vrot.slane %v2022, 4
        %v2025 = vshll.u32 %v1769, 16
        %v2027 = vrot.slane %v2025, 5
        %v2028 = vor.u32 %v2024, %v2027
        %v2029 = vrot.slane %v2028, 4
        %v2031 = vshll.u32 %v1770, 16
        %v2033 = vrot.slane %v2031, 5
        %v2034 = vsel %vm1342, %v2029, %v2033
        %v2035 = vshrl.u32 %v1770, 16
        %v2037 = vrot.slane %v2035, 4
        %v2038 = vor.u32 %v2037, %v2033
        %v2039 = vrot.slane %v2038, 4
        %v2041 = vshll.u32 %v1771, 16
        %v2043 = vrot.slane %v2041, 5
        %v2044 = vsel %vm1342, %v2039, %v2043
        %2045 = vrot.lane.b32.xlu0 %v1866, 16
        %v2046 = vpop.permute.xlu0 %2045
        %2047 = vrot.lane.b32.xlu0 %v1876, 16
        %v2048 = vpop.permute.xlu0 %2047
        %2049 = vrot.lane.b32.xlu0 %v1890, 16
        %v2050 = vpop.permute.xlu0 %2049
        %2051 = vrot.lane.b32.xlu0 %v1900, 16
        %v2052 = vpop.permute.xlu0 %2051
        %2053 = vrot.lane.b32.xlu0 %v1914, 16
        %v2054 = vpop.permute.xlu0 %2053
        %2055 = vrot.lane.b32.xlu0 %v1924, 16
        %v2056 = vpop.permute.xlu0 %2055
        %2057 = vrot.lane.b32.xlu0 %v1938, 16
        %v2058 = vpop.permute.xlu0 %2057
        %2059 = vrot.lane.b32.xlu0 %v1948, 16
        %v2060 = vpop.permute.xlu0 %2059
        %2061 = vrot.lane.b32.xlu0 %v1962, 16
        %v2062 = vpop.permute.xlu0 %2061
        %2063 = vrot.lane.b32.xlu0 %v1972, 16
        %v2064 = vpop.permute.xlu0 %2063
        %2065 = vrot.lane.b32.xlu0 %v1986, 16
        %v2066 = vpop.permute.xlu0 %2065
        %2067 = vrot.lane.b32.xlu0 %v1996, 16
        %v2068 = vpop.permute.xlu0 %2067
        %2069 = vrot.lane.b32.xlu0 %v2010, 16
        %v2070 = vpop.permute.xlu0 %2069
        %2071 = vrot.lane.b32.xlu0 %v2020, 16
        %v2072 = vpop.permute.xlu0 %2071
        %2073 = vrot.lane.b32.xlu0 %v2034, 16
        %v2074 = vpop.permute.xlu0 %2073
        %2075 = vrot.lane.b32.xlu0 %v2044, 16
        %v2076 = vpop.permute.xlu0 %2075
        %vm2093 = vcmask 158848
        %2094 = vst.msk [vmem:[#allocation5] sm:$0xf] %vm2093, %v2046
        %2095 = vst.msk [vmem:[#allocation5 + $0x14] sm:$0xf] %vm2093, %v2048
        %2096 = vst.msk [vmem:[#allocation5 + $0x28] sm:$0xf] %vm2093, %v2050
        %2097 = vst.msk [vmem:[#allocation5 + $0x3c] sm:$0xf] %vm2093, %v2052
        %2098 = vst.msk [vmem:[#allocation5 + $0x50] sm:$0xf] %vm2093, %v2054
        %2099 = vst.msk [vmem:[#allocation5 + $0x64] sm:$0xf] %vm2093, %v2056
        %2100 = vst.msk [vmem:[#allocation5 + $0x78] sm:$0xf] %vm2093, %v2058
        %2101 = vst.msk [vmem:[#allocation5 + $0x8c] sm:$0xf] %vm2093, %v2060
        %2102 = vst.msk [vmem:[#allocation5 + $0xa0] sm:$0xf] %vm2093, %v2062
        %2103 = vst.msk [vmem:[#allocation5 + $0xb4] sm:$0xf] %vm2093, %v2064
        %2104 = vst.msk [vmem:[#allocation5 + $0xc8] sm:$0xf] %vm2093, %v2066
        %2105 = vst.msk [vmem:[#allocation5 + $0xdc] sm:$0xf] %vm2093, %v2068
        %2106 = vst.msk [vmem:[#allocation5 + $0xf0] sm:$0xf] %vm2093, %v2070
        %2107 = vst.msk [vmem:[#allocation5 + $0x104] sm:$0xf] %vm2093, %v2072
        %2108 = vst.msk [vmem:[#allocation5 + $0x118] sm:$0xf] %vm2093, %v2074
        %2109 = vst.msk [vmem:[#allocation5 + $0x12c] sm:$0xf] %vm2093, %v2076
        %v2118 = vrot.slane %v1748, 5
        %v2119 = vrot.slane %v2118, 4
        %v2120 = vrot.slane %v1749, 5
        %v2121 = vsel %vm1626, %v2119, %v2120
        %v2122 = vrot.slane %v2120, 4
        %v2123 = vrot.slane %v1750, 5
        %v2124 = vsel %vm1626, %v2122, %v2123
        %v2125 = vrot.slane %v1751, 5
        %v2126 = vrot.slane %v2125, 4
        %v2127 = vrot.slane %v1752, 5
        %v2128 = vsel %vm1626, %v2126, %v2127
        %v2129 = vrot.slane %v2127, 4
        %v2130 = vrot.slane %v1753, 5
        %v2131 = vsel %vm1626, %v2129, %v2130
        %v2132 = vrot.slane %v1754, 5
        %v2133 = vrot.slane %v2132, 4
        %v2134 = vrot.slane %v1755, 5
        %v2135 = vsel %vm1626, %v2133, %v2134
        %v2136 = vrot.slane %v2134, 4
        %v2137 = vrot.slane %v1756, 5
        %v2138 = vsel %vm1626, %v2136, %v2137
        %v2139 = vrot.slane %v1757, 5
        %v2140 = vrot.slane %v2139, 4
        %v2141 = vrot.slane %v1758, 5
        %v2142 = vsel %vm1626, %v2140, %v2141
        %v2143 = vrot.slane %v2141, 4
        %v2144 = vrot.slane %v1759, 5
        %v2145 = vsel %vm1626, %v2143, %v2144
        %v2146 = vrot.slane %v1760, 5
        %v2147 = vrot.slane %v2146, 4
        %v2148 = vrot.slane %v1761, 5
        %v2149 = vsel %vm1626, %v2147, %v2148
        %v2150 = vrot.slane %v2148, 4
        %v2151 = vrot.slane %v1762, 5
        %v2152 = vsel %vm1626, %v2150, %v2151
        %v2153 = vrot.slane %v1763, 5
        %v2154 = vrot.slane %v2153, 4
        %v2155 = vrot.slane %v1764, 5
        %v2156 = vsel %vm1626, %v2154, %v2155
        %v2157 = vrot.slane %v2155, 4
        %v2158 = vrot.slane %v1765, 5
        %v2159 = vsel %vm1626, %v2157, %v2158
        %v2160 = vrot.slane %v1766, 5
        %v2161 = vrot.slane %v2160, 4
        %v2162 = vrot.slane %v1767, 5
        %v2163 = vsel %vm1626, %v2161, %v2162
        %v2164 = vrot.slane %v2162, 4
        %v2165 = vrot.slane %v1768, 5
        %v2166 = vsel %vm1626, %v2164, %v2165
        %v2167 = vrot.slane %v1769, 5
        %v2168 = vrot.slane %v2167, 4
        %v2169 = vrot.slane %v1770, 5
        %v2170 = vsel %vm1626, %v2168, %v2169
        %v2171 = vrot.slane %v2169, 4
        %v2172 = vrot.slane %v1771, 5
        %v2173 = vsel %vm1626, %v2171, %v2172
        %2174 = vrot.lane.b32.xlu0 %v2121, 20
        %v2175 = vpop.permute.xlu0 %2174
        %2176 = vrot.lane.b32.xlu0 %v2124, 20
        %v2177 = vpop.permute.xlu0 %2176
        %2178 = vrot.lane.b32.xlu0 %v2128, 20
        %v2179 = vpop.permute.xlu0 %2178
        %2180 = vrot.lane.b32.xlu0 %v2131, 20
        %v2181 = vpop.permute.xlu0 %2180
        %2182 = vrot.lane.b32.xlu0 %v2135, 20
        %v2183 = vpop.permute.xlu0 %2182
        %2184 = vrot.lane.b32.xlu0 %v2138, 20
        %v2185 = vpop.permute.xlu0 %2184
        %2186 = vrot.lane.b32.xlu0 %v2142, 20
        %v2187 = vpop.permute.xlu0 %2186
        %2188 = vrot.lane.b32.xlu0 %v2145, 20
        %v2189 = vpop.permute.xlu0 %2188
        %2190 = vrot.lane.b32.xlu0 %v2149, 20
        %v2191 = vpop.permute.xlu0 %2190
        %2192 = vrot.lane.b32.xlu0 %v2152, 20
        %v2193 = vpop.permute.xlu0 %2192
        %2194 = vrot.lane.b32.xlu0 %v2156, 20
        %v2195 = vpop.permute.xlu0 %2194
        %2196 = vrot.lane.b32.xlu0 %v2159, 20
        %v2197 = vpop.permute.xlu0 %2196
        %2198 = vrot.lane.b32.xlu0 %v2163, 20
        %v2199 = vpop.permute.xlu0 %2198
        %2200 = vrot.lane.b32.xlu0 %v2166, 20
        %v2201 = vpop.permute.xlu0 %2200
        %2202 = vrot.lane.b32.xlu0 %v2170, 20
        %v2203 = vpop.permute.xlu0 %2202
        %2204 = vrot.lane.b32.xlu0 %v2173, 20
        %v2205 = vpop.permute.xlu0 %2204
        %vm2222 = vcmask 191648
        %2223 = vst.msk [vmem:[#allocation5] sm:$0xf] %vm2222, %v2175
        %2224 = vst.msk [vmem:[#allocation5 + $0x14] sm:$0xf] %vm2222, %v2177
        %2225 = vst.msk [vmem:[#allocation5 + $0x28] sm:$0xf] %vm2222, %v2179
        %2226 = vst.msk [vmem:[#allocation5 + $0x3c] sm:$0xf] %vm2222, %v2181
        %2227 = vst.msk [vmem:[#allocation5 + $0x50] sm:$0xf] %vm2222, %v2183
        %2228 = vst.msk [vmem:[#allocation5 + $0x64] sm:$0xf] %vm2222, %v2185
        %2229 = vst.msk [vmem:[#allocation5 + $0x78] sm:$0xf] %vm2222, %v2187
        %2230 = vst.msk [vmem:[#allocation5 + $0x8c] sm:$0xf] %vm2222, %v2189
        %2231 = vst.msk [vmem:[#allocation5 + $0xa0] sm:$0xf] %vm2222, %v2191
        %2232 = vst.msk [vmem:[#allocation5 + $0xb4] sm:$0xf] %vm2222, %v2193
        %2233 = vst.msk [vmem:[#allocation5 + $0xc8] sm:$0xf] %vm2222, %v2195
        %2234 = vst.msk [vmem:[#allocation5 + $0xdc] sm:$0xf] %vm2222, %v2197
        %2235 = vst.msk [vmem:[#allocation5 + $0xf0] sm:$0xf] %vm2222, %v2199
        %2236 = vst.msk [vmem:[#allocation5 + $0x104] sm:$0xf] %vm2222, %v2201
        %2237 = vst.msk [vmem:[#allocation5 + $0x118] sm:$0xf] %vm2222, %v2203
        %2238 = vst.msk [vmem:[#allocation5 + $0x12c] sm:$0xf] %vm2222, %v2205
        %v2239 = vld [vmem:[%s721] sm:$0xf]
        %v2240 = vld [vmem:[%s721 + $0x4] sm:$0xf]
        %v2241 = vld [vmem:[%s721 + $0x8] sm:$0x1]
        %v2242 = vld [vmem:[%s721 + $0xc] sm:$0xf]
        %v2243 = vld [vmem:[%s721 + $0x10] sm:$0xf]
        %v2244 = vld [vmem:[%s721 + $0x14] sm:$0x1]
        %v2245 = vld [vmem:[%s721 + $0x18] sm:$0xf]
        %v2246 = vld [vmem:[%s721 + $0x1c] sm:$0xf]
        %v2247 = vld [vmem:[%s721 + $0x20] sm:$0x1]
        %v2248 = vld [vmem:[%s721 + $0x24] sm:$0xf]
        %v2249 = vld [vmem:[%s721 + $0x28] sm:$0xf]
        %v2250 = vld [vmem:[%s721 + $0x2c] sm:$0x1]
        %v2251 = vld [vmem:[%s721 + $0x30] sm:$0xf]
        %v2252 = vld [vmem:[%s721 + $0x34] sm:$0xf]
        %v2253 = vld [vmem:[%s721 + $0x38] sm:$0x1]
        %v2254 = vld [vmem:[%s721 + $0x3c] sm:$0xf]
        %v2255 = vld [vmem:[%s721 + $0x40] sm:$0xf]
        %v2256 = vld [vmem:[%s721 + $0x44] sm:$0x1]
        %v2257 = vld [vmem:[%s721 + $0x48] sm:$0xf]
        %v2258 = vld [vmem:[%s721 + $0x4c] sm:$0xf]
        %v2259 = vld [vmem:[%s721 + $0x50] sm:$0x1]
        %v2260 = vld [vmem:[%s721 + $0x54] sm:$0xf]
        %v2261 = vld [vmem:[%s721 + $0x58] sm:$0xf]
        %v2262 = vld [vmem:[%s721 + $0x5c] sm:$0x1]
        %2279 = vrot.lane.b32.xlu0 %v2239, 24
        %v2280 = vpop.permute.xlu0 %2279
        %2281 = vrot.lane.b32.xlu0 %v2240, 24
        %v2282 = vpop.permute.xlu0 %2281
        %2283 = vrot.lane.b32.xlu0 %v2242, 24
        %v2284 = vpop.permute.xlu0 %2283
        %2285 = vrot.lane.b32.xlu0 %v2243, 24
        %v2286 = vpop.permute.xlu0 %2285
        %2287 = vrot.lane.b32.xlu0 %v2245, 24
        %v2288 = vpop.permute.xlu0 %2287
        %2289 = vrot.lane.b32.xlu0 %v2246, 24
        %v2290 = vpop.permute.xlu0 %2289
        %2291 = vrot.lane.b32.xlu0 %v2248, 24
        %v2292 = vpop.permute.xlu0 %2291
        %2293 = vrot.lane.b32.xlu0 %v2249, 24
        %v2294 = vpop.permute.xlu0 %2293
        %2295 = vrot.lane.b32.xlu0 %v2251, 24
        %v2296 = vpop.permute.xlu0 %2295
        %2297 = vrot.lane.b32.xlu0 %v2252, 24
        %v2298 = vpop.permute.xlu0 %2297
        %2299 = vrot.lane.b32.xlu0 %v2254, 24
        %v2300 = vpop.permute.xlu0 %2299
        %2301 = vrot.lane.b32.xlu0 %v2255, 24
        %v2302 = vpop.permute.xlu0 %2301
        %2303 = vrot.lane.b32.xlu0 %v2257, 24
        %v2304 = vpop.permute.xlu0 %2303
        %2305 = vrot.lane.b32.xlu0 %v2258, 24
        %v2306 = vpop.permute.xlu0 %2305
        %2307 = vrot.lane.b32.xlu0 %v2260, 24
        %v2308 = vpop.permute.xlu0 %2307
        %2309 = vrot.lane.b32.xlu0 %v2261, 24
        %v2310 = vpop.permute.xlu0 %2309
        %vm2327 = vcmask 224448
        %2328 = vst.msk [vmem:[#allocation5] sm:$0xf] %vm2327, %v2280
        %2329 = vst.msk [vmem:[#allocation5 + $0x14] sm:$0xf] %vm2327, %v2282
        %2330 = vst.msk [vmem:[#allocation5 + $0x28] sm:$0xf] %vm2327, %v2284
        %2331 = vst.msk [vmem:[#allocation5 + $0x3c] sm:$0xf] %vm2327, %v2286
        %2332 = vst.msk [vmem:[#allocation5 + $0x50] sm:$0xf] %vm2327, %v2288
        %2333 = vst.msk [vmem:[#allocation5 + $0x64] sm:$0xf] %vm2327, %v2290
        %2334 = vst.msk [vmem:[#allocation5 + $0x78] sm:$0xf] %vm2327, %v2292
        %2335 = vst.msk [vmem:[#allocation5 + $0x8c] sm:$0xf] %vm2327, %v2294
        %2336 = vst.msk [vmem:[#allocation5 + $0xa0] sm:$0xf] %vm2327, %v2296
        %2337 = vst.msk [vmem:[#allocation5 + $0xb4] sm:$0xf] %vm2327, %v2298
        %2338 = vst.msk [vmem:[#allocation5 + $0xc8] sm:$0xf] %vm2327, %v2300
        %2339 = vst.msk [vmem:[#allocation5 + $0xdc] sm:$0xf] %vm2327, %v2302
        %2340 = vst.msk [vmem:[#allocation5 + $0xf0] sm:$0xf] %vm2327, %v2304
        %2341 = vst.msk [vmem:[#allocation5 + $0x104] sm:$0xf] %vm2327, %v2306
        %2342 = vst.msk [vmem:[#allocation5 + $0x118] sm:$0xf] %vm2327, %v2308
        %2343 = vst.msk [vmem:[#allocation5 + $0x12c] sm:$0xf] %vm2327, %v2310
        %v2345 = vshrl.u32 %v2239, 16
        %v2347 = vrot.slane %v2345, 4
        %v2348 = vshll.u32 %v2239, 16
        %v2350 = vrot.slane %v2348, 5
        %v2351 = vor.u32 %v2347, %v2350
        %v2352 = vrot.slane %v2351, 4
        %v2354 = vshll.u32 %v2240, 16
        %v2356 = vrot.slane %v2354, 5
        %v2357 = vsel %vm1342, %v2352, %v2356
        %v2358 = vshrl.u32 %v2240, 16
        %v2360 = vrot.slane %v2358, 4
        %v2361 = vor.u32 %v2360, %v2356
        %v2362 = vrot.slane %v2361, 4
        %v2364 = vshll.u32 %v2241, 16
        %v2366 = vrot.slane %v2364, 5
        %v2367 = vsel %vm1342, %v2362, %v2366
        %v2369 = vshrl.u32 %v2242, 16
        %v2371 = vrot.slane %v2369, 4
        %v2372 = vshll.u32 %v2242, 16
        %v2374 = vrot.slane %v2372, 5
        %v2375 = vor.u32 %v2371, %v2374
        %v2376 = vrot.slane %v2375, 4
        %v2378 = vshll.u32 %v2243, 16
        %v2380 = vrot.slane %v2378, 5
        %v2381 = vsel %vm1342, %v2376, %v2380
        %v2382 = vshrl.u32 %v2243, 16
        %v2384 = vrot.slane %v2382, 4
        %v2385 = vor.u32 %v2384, %v2380
        %v2386 = vrot.slane %v2385, 4
        %v2388 = vshll.u32 %v2244, 16
        %v2390 = vrot.slane %v2388, 5
        %v2391 = vsel %vm1342, %v2386, %v2390
        %v2393 = vshrl.u32 %v2245, 16
        %v2395 = vrot.slane %v2393, 4
        %v2396 = vshll.u32 %v2245, 16
        %v2398 = vrot.slane %v2396, 5
        %v2399 = vor.u32 %v2395, %v2398
        %v2400 = vrot.slane %v2399, 4
        %v2402 = vshll.u32 %v2246, 16
        %v2404 = vrot.slane %v2402, 5
        %v2405 = vsel %vm1342, %v2400, %v2404
        %v2406 = vshrl.u32 %v2246, 16
        %v2408 = vrot.slane %v2406, 4
        %v2409 = vor.u32 %v2408, %v2404
        %v2410 = vrot.slane %v2409, 4
        %v2412 = vshll.u32 %v2247, 16
        %v2414 = vrot.slane %v2412, 5
        %v2415 = vsel %vm1342, %v2410, %v2414
        %v2417 = vshrl.u32 %v2248, 16
        %v2419 = vrot.slane %v2417, 4
        %v2420 = vshll.u32 %v2248, 16
        %v2422 = vrot.slane %v2420, 5
        %v2423 = vor.u32 %v2419, %v2422
        %v2424 = vrot.slane %v2423, 4
        %v2426 = vshll.u32 %v2249, 16
        %v2428 = vrot.slane %v2426, 5
        %v2429 = vsel %vm1342, %v2424, %v2428
        %v2430 = vshrl.u32 %v2249, 16
        %v2432 = vrot.slane %v2430, 4
        %v2433 = vor.u32 %v2432, %v2428
        %v2434 = vrot.slane %v2433, 4
        %v2436 = vshll.u32 %v2250, 16
        %v2438 = vrot.slane %v2436, 5
        %v2439 = vsel %vm1342, %v2434, %v2438
        %v2441 = vshrl.u32 %v2251, 16
        %v2443 = vrot.slane %v2441, 4
        %v2444 = vshll.u32 %v2251, 16
        %v2446 = vrot.slane %v2444, 5
        %v2447 = vor.u32 %v2443, %v2446
        %v2448 = vrot.slane %v2447, 4
        %v2450 = vshll.u32 %v2252, 16
        %v2452 = vrot.slane %v2450, 5
        %v2453 = vsel %vm1342, %v2448, %v2452
        %v2454 = vshrl.u32 %v2252, 16
        %v2456 = vrot.slane %v2454, 4
        %v2457 = vor.u32 %v2456, %v2452
        %v2458 = vrot.slane %v2457, 4
        %v2460 = vshll.u32 %v2253, 16
        %v2462 = vrot.slane %v2460, 5
        %v2463 = vsel %vm1342, %v2458, %v2462
        %v2465 = vshrl.u32 %v2254, 16
        %v2467 = vrot.slane %v2465, 4
        %v2468 = vshll.u32 %v2254, 16
        %v2470 = vrot.slane %v2468, 5
        %v2471 = vor.u32 %v2467, %v2470
        %v2472 = vrot.slane %v2471, 4
        %v2474 = vshll.u32 %v2255, 16
        %v2476 = vrot.slane %v2474, 5
        %v2477 = vsel %vm1342, %v2472, %v2476
        %v2478 = vshrl.u32 %v2255, 16
        %v2480 = vrot.slane %v2478, 4
        %v2481 = vor.u32 %v2480, %v2476
        %v2482 = vrot.slane %v2481, 4
        %v2484 = vshll.u32 %v2256, 16
        %v2486 = vrot.slane %v2484, 5
        %v2487 = vsel %vm1342, %v2482, %v2486
        %v2489 = vshrl.u32 %v2257, 16
        %v2491 = vrot.slane %v2489, 4
        %v2492 = vshll.u32 %v2257, 16
        %v2494 = vrot.slane %v2492, 5
        %v2495 = vor.u32 %v2491, %v2494
        %v2496 = vrot.slane %v2495, 4
        %v2498 = vshll.u32 %v2258, 16
        %v2500 = vrot.slane %v2498, 5
        %v2501 = vsel %vm1342, %v2496, %v2500
        %v2502 = vshrl.u32 %v2258, 16
        %v2504 = vrot.slane %v2502, 4
        %v2505 = vor.u32 %v2504, %v2500
        %v2506 = vrot.slane %v2505, 4
        %v2508 = vshll.u32 %v2259, 16
        %v2510 = vrot.slane %v2508, 5
        %v2511 = vsel %vm1342, %v2506, %v2510
        %v2513 = vshrl.u32 %v2260, 16
        %v2515 = vrot.slane %v2513, 4
        %v2516 = vshll.u32 %v2260, 16
        %v2518 = vrot.slane %v2516, 5
        %v2519 = vor.u32 %v2515, %v2518
        %v2520 = vrot.slane %v2519, 4
        %v2522 = vshll.u32 %v2261, 16
        %v2524 = vrot.slane %v2522, 5
        %v2525 = vsel %vm1342, %v2520, %v2524
        %v2526 = vshrl.u32 %v2261, 16
        %v2528 = vrot.slane %v2526, 4
        %v2529 = vor.u32 %v2528, %v2524
        %v2530 = vrot.slane %v2529, 4
        %v2532 = vshll.u32 %v2262, 16
        %v2534 = vrot.slane %v2532, 5
        %v2535 = vsel %vm1342, %v2530, %v2534
        %2536 = vrot.lane.b32.xlu0 %v2357, 28
        %v2537 = vpop.permute.xlu0 %2536
        %2538 = vrot.lane.b32.xlu0 %v2367, 28
        %v2539 = vpop.permute.xlu0 %2538
        %2540 = vrot.lane.b32.xlu0 %v2381, 28
        %v2541 = vpop.permute.xlu0 %2540
        %2542 = vrot.lane.b32.xlu0 %v2391, 28
        %v2543 = vpop.permute.xlu0 %2542
        %2544 = vrot.lane.b32.xlu0 %v2405, 28
        %v2545 = vpop.permute.xlu0 %2544
        %2546 = vrot.lane.b32.xlu0 %v2415, 28
        %v2547 = vpop.permute.xlu0 %2546
        %2548 = vrot.lane.b32.xlu0 %v2429, 28
        %v2549 = vpop.permute.xlu0 %2548
        %2550 = vrot.lane.b32.xlu0 %v2439, 28
        %v2551 = vpop.permute.xlu0 %2550
        %2552 = vrot.lane.b32.xlu0 %v2453, 28
        %v2553 = vpop.permute.xlu0 %2552
        %2554 = vrot.lane.b32.xlu0 %v2463, 28
        %v2555 = vpop.permute.xlu0 %2554
        %2556 = vrot.lane.b32.xlu0 %v2477, 28
        %v2557 = vpop.permute.xlu0 %2556
        %2558 = vrot.lane.b32.xlu0 %v2487, 28
        %v2559 = vpop.permute.xlu0 %2558
        %2560 = vrot.lane.b32.xlu0 %v2501, 28
        %v2561 = vpop.permute.xlu0 %2560
        %2562 = vrot.lane.b32.xlu0 %v2511, 28
        %v2563 = vpop.permute.xlu0 %2562
        %2564 = vrot.lane.b32.xlu0 %v2525, 28
        %v2565 = vpop.permute.xlu0 %2564
        %2566 = vrot.lane.b32.xlu0 %v2535, 28
        %v2567 = vpop.permute.xlu0 %2566
        %vm2584 = vcmask 257248
        %2585 = vst.msk [vmem:[#allocation5] sm:$0xf] %vm2584, %v2537
        %2586 = vst.msk [vmem:[#allocation5 + $0x14] sm:$0xf] %vm2584, %v2539
        %2587 = vst.msk [vmem:[#allocation5 + $0x28] sm:$0xf] %vm2584, %v2541
        %2588 = vst.msk [vmem:[#allocation5 + $0x3c] sm:$0xf] %vm2584, %v2543
        %2589 = vst.msk [vmem:[#allocation5 + $0x50] sm:$0xf] %vm2584, %v2545
        %2590 = vst.msk [vmem:[#allocation5 + $0x64] sm:$0xf] %vm2584, %v2547
        %2591 = vst.msk [vmem:[#allocation5 + $0x78] sm:$0xf] %vm2584, %v2549
        %2592 = vst.msk [vmem:[#allocation5 + $0x8c] sm:$0xf] %vm2584, %v2551
        %2593 = vst.msk [vmem:[#allocation5 + $0xa0] sm:$0xf] %vm2584, %v2553
        %2594 = vst.msk [vmem:[#allocation5 + $0xb4] sm:$0xf] %vm2584, %v2555
        %2595 = vst.msk [vmem:[#allocation5 + $0xc8] sm:$0xf] %vm2584, %v2557
        %2596 = vst.msk [vmem:[#allocation5 + $0xdc] sm:$0xf] %vm2584, %v2559
        %2597 = vst.msk [vmem:[#allocation5 + $0xf0] sm:$0xf] %vm2584, %v2561
        %2598 = vst.msk [vmem:[#allocation5 + $0x104] sm:$0xf] %vm2584, %v2563
        %2599 = vst.msk [vmem:[#allocation5 + $0x118] sm:$0xf] %vm2584, %v2565
        %2600 = vst.msk [vmem:[#allocation5 + $0x12c] sm:$0xf] %vm2584, %v2567
        %v2609 = vrot.slane %v2239, 5
        %v2610 = vrot.slane %v2609, 4
        %v2611 = vrot.slane %v2240, 5
        %v2612 = vsel %vm1626, %v2610, %v2611
        %v2613 = vrot.slane %v2611, 4
        %v2614 = vrot.slane %v2241, 5
        %v2615 = vsel %vm1626, %v2613, %v2614
        %v2616 = vrot.slane %v2242, 5
        %v2617 = vrot.slane %v2616, 4
        %v2618 = vrot.slane %v2243, 5
        %v2619 = vsel %vm1626, %v2617, %v2618
        %v2620 = vrot.slane %v2618, 4
        %v2621 = vrot.slane %v2244, 5
        %v2622 = vsel %vm1626, %v2620, %v2621
        %v2623 = vrot.slane %v2245, 5
        %v2624 = vrot.slane %v2623, 4
        %v2625 = vrot.slane %v2246, 5
        %v2626 = vsel %vm1626, %v2624, %v2625
        %v2627 = vrot.slane %v2625, 4
        %v2628 = vrot.slane %v2247, 5
        %v2629 = vsel %vm1626, %v2627, %v2628
        %v2630 = vrot.slane %v2248, 5
        %v2631 = vrot.slane %v2630, 4
        %v2632 = vrot.slane %v2249, 5
        %v2633 = vsel %vm1626, %v2631, %v2632
        %v2634 = vrot.slane %v2632, 4
        %v2635 = vrot.slane %v2250, 5
        %v2636 = vsel %vm1626, %v2634, %v2635
        %v2637 = vrot.slane %v2251, 5
        %v2638 = vrot.slane %v2637, 4
        %v2639 = vrot.slane %v2252, 5
        %v2640 = vsel %vm1626, %v2638, %v2639
        %v2641 = vrot.slane %v2639, 4
        %v2642 = vrot.slane %v2253, 5
        %v2643 = vsel %vm1626, %v2641, %v2642
        %v2644 = vrot.slane %v2254, 5
        %v2645 = vrot.slane %v2644, 4
        %v2646 = vrot.slane %v2255, 5
        %v2647 = vsel %vm1626, %v2645, %v2646
        %v2648 = vrot.slane %v2646, 4
        %v2649 = vrot.slane %v2256, 5
        %v2650 = vsel %vm1626, %v2648, %v2649
        %v2651 = vrot.slane %v2257, 5
        %v2652 = vrot.slane %v2651, 4
        %v2653 = vrot.slane %v2258, 5
        %v2654 = vsel %vm1626, %v2652, %v2653
        %v2655 = vrot.slane %v2653, 4
        %v2656 = vrot.slane %v2259, 5
        %v2657 = vsel %vm1626, %v2655, %v2656
        %v2658 = vrot.slane %v2260, 5
        %v2659 = vrot.slane %v2658, 4
        %v2660 = vrot.slane %v2261, 5
        %v2661 = vsel %vm1626, %v2659, %v2660
        %v2662 = vrot.slane %v2660, 4
        %v2663 = vrot.slane %v2262, 5
        %v2664 = vsel %vm1626, %v2662, %v2663
        %2665 = vrot.lane.b32.xlu0 %v2612, 32
        %v2666 = vpop.permute.xlu0 %2665
        %2667 = vrot.lane.b32.xlu0 %v2615, 32
        %v2668 = vpop.permute.xlu0 %2667
        %2669 = vrot.lane.b32.xlu0 %v2619, 32
        %v2670 = vpop.permute.xlu0 %2669
        %2671 = vrot.lane.b32.xlu0 %v2622, 32
        %v2672 = vpop.permute.xlu0 %2671
        %2673 = vrot.lane.b32.xlu0 %v2626, 32
        %v2674 = vpop.permute.xlu0 %2673
        %2675 = vrot.lane.b32.xlu0 %v2629, 32
        %v2676 = vpop.permute.xlu0 %2675
        %2677 = vrot.lane.b32.xlu0 %v2633, 32
        %v2678 = vpop.permute.xlu0 %2677
        %2679 = vrot.lane.b32.xlu0 %v2636, 32
        %v2680 = vpop.permute.xlu0 %2679
        %2681 = vrot.lane.b32.xlu0 %v2640, 32
        %v2682 = vpop.permute.xlu0 %2681
        %2683 = vrot.lane.b32.xlu0 %v2643, 32
        %v2684 = vpop.permute.xlu0 %2683
        %2685 = vrot.lane.b32.xlu0 %v2647, 32
        %v2686 = vpop.permute.xlu0 %2685
        %2687 = vrot.lane.b32.xlu0 %v2650, 32
        %v2688 = vpop.permute.xlu0 %2687
        %2689 = vrot.lane.b32.xlu0 %v2654, 32
        %v2690 = vpop.permute.xlu0 %2689
        %2691 = vrot.lane.b32.xlu0 %v2657, 32
        %v2692 = vpop.permute.xlu0 %2691
        %2693 = vrot.lane.b32.xlu0 %v2661, 32
        %v2694 = vpop.permute.xlu0 %2693
        %2695 = vrot.lane.b32.xlu0 %v2664, 32
        %v2696 = vpop.permute.xlu0 %2695
        %vm2713 = vcmask 290048
        %2714 = vst.msk [vmem:[#allocation5] sm:$0xf] %vm2713, %v2666
        %2715 = vst.msk [vmem:[#allocation5 + $0x14] sm:$0xf] %vm2713, %v2668
        %2716 = vst.msk [vmem:[#allocation5 + $0x28] sm:$0xf] %vm2713, %v2670
        %2717 = vst.msk [vmem:[#allocation5 + $0x3c] sm:$0xf] %vm2713, %v2672
        %2718 = vst.msk [vmem:[#allocation5 + $0x50] sm:$0xf] %vm2713, %v2674
        %2719 = vst.msk [vmem:[#allocation5 + $0x64] sm:$0xf] %vm2713, %v2676
        %2720 = vst.msk [vmem:[#allocation5 + $0x78] sm:$0xf] %vm2713, %v2678
        %2721 = vst.msk [vmem:[#allocation5 + $0x8c] sm:$0xf] %vm2713, %v2680
        %2722 = vst.msk [vmem:[#allocation5 + $0xa0] sm:$0xf] %vm2713, %v2682
        %2723 = vst.msk [vmem:[#allocation5 + $0xb4] sm:$0xf] %vm2713, %v2684
        %2724 = vst.msk [vmem:[#allocation5 + $0xc8] sm:$0xf] %vm2713, %v2686
        %2725 = vst.msk [vmem:[#allocation5 + $0xdc] sm:$0xf] %vm2713, %v2688
        %2726 = vst.msk [vmem:[#allocation5 + $0xf0] sm:$0xf] %vm2713, %v2690
        %2727 = vst.msk [vmem:[#allocation5 + $0x104] sm:$0xf] %vm2713, %v2692
        %2728 = vst.msk [vmem:[#allocation5 + $0x118] sm:$0xf] %vm2713, %v2694
        %2729 = vst.msk [vmem:[#allocation5 + $0x12c] sm:$0xf] %vm2713, %v2696
        %v2730 = vld [vmem:[#allocation5] sm:$0xf]
        %v2731 = vld [vmem:[#allocation5 + $0x14] sm:$0xf]
        %v2732 = vld [vmem:[#allocation5 + $0x28] sm:$0xf]
        %v2733 = vld [vmem:[#allocation5 + $0x3c] sm:$0xf]
        %v2734 = vld [vmem:[#allocation5 + $0x50] sm:$0xf]
        %v2735 = vld [vmem:[#allocation5 + $0x64] sm:$0xf]
        %v2736 = vld [vmem:[#allocation5 + $0x78] sm:$0xf]
        %v2737 = vld [vmem:[#allocation5 + $0x8c] sm:$0xf]
        %v2738 = vld [vmem:[#allocation5 + $0xa0] sm:$0xf]
        %v2739 = vld [vmem:[#allocation5 + $0xb4] sm:$0xf]
        %v2740 = vld [vmem:[#allocation5 + $0xc8] sm:$0xf]
        %v2741 = vld [vmem:[#allocation5 + $0xdc] sm:$0xf]
        %v2742 = vld [vmem:[#allocation5 + $0xf0] sm:$0xf]
        %v2743 = vld [vmem:[#allocation5 + $0x104] sm:$0xf]
        %v2744 = vld [vmem:[#allocation5 + $0x118] sm:$0xf]
        %v2745 = vld [vmem:[#allocation5 + $0x12c] sm:$0xf]
        %v2746 = vld [vmem:[%s1] sm:$0xf]
        %v2747 = vld [vmem:[%s1 + $0x4] sm:$0xf]
        %v2748 = vld [vmem:[%s1 + $0x8] sm:$0xf]
        %v2749 = vld [vmem:[%s1 + $0xc] sm:$0xf]
        %v2750 = vld [vmem:[%s1 + $0x10] sm:$0xf]
        %v2751 = vld [vmem:[%s1 + $0x14] sm:$0xf]
        %v2752 = vld [vmem:[%s1 + $0x18] sm:$0xf]
        %v2753 = vld [vmem:[%s1 + $0x1c] sm:$0xf]
        %v2754 = vld [vmem:[%s1 + $0x20] sm:$0xf]
        %v2755 = vld [vmem:[%s1 + $0x24] sm:$0xf]
        %v2756 = vld [vmem:[%s1 + $0x28] sm:$0xf]
        %v2757 = vld [vmem:[%s1 + $0x2c] sm:$0xf]
        %v2758 = vld [vmem:[%s1 + $0x30] sm:$0xf]
        %v2759 = vld [vmem:[%s1 + $0x34] sm:$0xf]
        %v2760 = vld [vmem:[%s1 + $0x38] sm:$0xf]
        %v2761 = vld [vmem:[%s1 + $0x3c] sm:$0xf]
        %v2762 = vld [vmem:[%s2] sm:$0x1]
        %v2764 = vlaneseq
        %v2765 = vshrl.u32 %v2764, 7
        %v2766 = vsub.s32 0, %v2765
        %v2767 = vrot.slane %v2762, %v2766
        %v2785 = vunpack.c.l.b16 %v2730
        %v2786 = vunpack.c.l.b16 %v2731
        %v2787 = vunpack.c.l.b16 %v2732
        %v2788 = vunpack.c.l.b16 %v2733
        %v2789 = vunpack.c.l.b16 %v2734
        %v2790 = vunpack.c.l.b16 %v2735
        %v2791 = vunpack.c.l.b16 %v2736
        %v2792 = vunpack.c.l.b16 %v2737
        %v2793 = vunpack.c.l.b16 %v2738
        %v2794 = vunpack.c.l.b16 %v2739
        %v2795 = vunpack.c.l.b16 %v2740
        %v2796 = vunpack.c.l.b16 %v2741
        %v2797 = vunpack.c.l.b16 %v2742
        %v2798 = vunpack.c.l.b16 %v2743
        %v2799 = vunpack.c.l.b16 %v2744
        %v2800 = vunpack.c.l.b16 %v2745
        %v2801 = vpack.c.b16 %v2786, %v2785
        %v2802 = vpack.c.b16 %v2788, %v2787
        %v2803 = vpack.c.b16 %v2790, %v2789
        %v2804 = vpack.c.b16 %v2792, %v2791
        %v2805 = vpack.c.b16 %v2794, %v2793
        %v2806 = vpack.c.b16 %v2796, %v2795
        %v2807 = vpack.c.b16 %v2798, %v2797
        %v2808 = vpack.c.b16 %v2800, %v2799
        %v2833 = vunpack.c.l.b16 %v2746
        %v2834 = vunpack.c.l.b16 %v2747
        %v2835 = vunpack.c.l.b16 %v2748
        %v2836 = vunpack.c.l.b16 %v2749
        %v2837 = vunpack.c.l.b16 %v2750
        %v2838 = vunpack.c.l.b16 %v2751
        %v2839 = vunpack.c.l.b16 %v2752
        %v2840 = vunpack.c.l.b16 %v2753
        %v2841 = vunpack.c.l.b16 %v2754
        %v2842 = vunpack.c.l.b16 %v2755
        %v2843 = vunpack.c.l.b16 %v2756
        %v2844 = vunpack.c.l.b16 %v2757
        %v2845 = vunpack.c.l.b16 %v2758
        %v2846 = vunpack.c.l.b16 %v2759
        %v2847 = vunpack.c.l.b16 %v2760
        %v2848 = vunpack.c.l.b16 %v2761
        %v2849 = vpack.c.b16 %v2834, %v2833
        %v2850 = vpack.c.b16 %v2836, %v2835
        %v2851 = vpack.c.b16 %v2838, %v2837
        %v2852 = vpack.c.b16 %v2840, %v2839
        %v2853 = vpack.c.b16 %v2842, %v2841
        %v2854 = vpack.c.b16 %v2844, %v2843
        %v2855 = vpack.c.b16 %v2846, %v2845
        %v2856 = vpack.c.b16 %v2848, %v2847
        %2865 = vmatprep.subr.bf16.mxu0 0
        %2866 = vmatpush1.bf16.msra.mxu0 %v2856
        %2867 = vmatprep.subr.bf16.mxu0 0
        %2868 = vmatpush1.bf16.msra.mxu0 %v2855
        %2869 = vmatprep.subr.bf16.mxu0 0
        %2870 = vmatpush1.bf16.msra.mxu0 %v2854
        %2871 = vmatprep.subr.bf16.mxu0 0
        %2872 = vmatpush1.bf16.msra.mxu0 %v2853
        %2873 = vmatprep.subr.bf16.mxu0 0
        %2874 = vmatpush1.bf16.msra.mxu0 %v2852
        %2875 = vmatprep.subr.bf16.mxu0 0
        %2876 = vmatpush1.bf16.msra.mxu0 %v2851
        %2877 = vmatprep.subr.bf16.mxu0 0
        %2878 = vmatpush1.bf16.msra.mxu0 %v2850
        %2879 = vmatprep.subr.bf16.mxu0 0
        %2880 = vmatpush1.bf16.msra.mxu0 %v2849
        %2881 = vmatprep.subr.bf16.mxu0 0
        %2882 = vmatpush2.bf16.msra.mxu0 0
        %2883 = vmatprep.subr.bf16.mxu0 0
        %2884 = vmatpush2.bf16.msra.mxu0 0
        %2885 = vmatprep.subr.bf16.mxu0 0
        %2886 = vmatpush2.bf16.msra.mxu0 0
        %2887 = vmatprep.subr.bf16.mxu0 0
        %2888 = vmatpush2.bf16.msra.mxu0 0
        %2889 = vmatprep.subr.bf16.mxu0 0
        %2890 = vmatpush2.bf16.msra.mxu0 0
        %2891 = vmatprep.subr.bf16.mxu0 0
        %2892 = vmatpush2.bf16.msra.mxu0 0
        %2893 = vmatprep.subr.bf16.mxu0 0
        %2894 = vmatpush2.bf16.msra.mxu0 0
        %2895 = vmatprep.subr.bf16.mxu0 0
        %2896 = vmatpush2.bf16.msra.mxu0 0
        %2897 = vmatprep.mubr.bf16.mxu0 0
        %2898 = vmatmul.mubr.bf16.gmra.mxu0 %v2801
        %v2899 = vpop.f32.mrf.mxu0
        %v2900 = vadd.f32 %v2767, %v2899
        %v2901 = vpop.f32.mrf.mxu0
        %v2902 = vpop.f32.mrf.mxu0
        %v2903 = vadd.f32 %v2767, %v2902
        %v2904 = vpop.f32.mrf.mxu0
        %2905 = vmatprep.mubr.bf16.mxu0 0
        %2906 = vmatmul.mubr.bf16.gmra.mxu0 %v2802
        %v2907 = vpop.f32.mrf.mxu0
        %v2908 = vadd.f32 %v2767, %v2907
        %v2909 = vpop.f32.mrf.mxu0
        %v2910 = vpop.f32.mrf.mxu0
        %v2911 = vadd.f32 %v2767, %v2910
        %v2912 = vpop.f32.mrf.mxu0
        %2913 = vmatprep.mubr.bf16.mxu0 0
        %2914 = vmatmul.mubr.bf16.gmra.mxu0 %v2803
        %v2915 = vpop.f32.mrf.mxu0
        %v2916 = vadd.f32 %v2767, %v2915
        %v2917 = vpop.f32.mrf.mxu0
        %v2918 = vpop.f32.mrf.mxu0
        %v2919 = vadd.f32 %v2767, %v2918
        %v2920 = vpop.f32.mrf.mxu0
        %2921 = vmatprep.mubr.bf16.mxu0 0
        %2922 = vmatmul.mubr.bf16.gmra.mxu0 %v2804
        %v2923 = vpop.f32.mrf.mxu0
        %v2924 = vadd.f32 %v2767, %v2923
        %v2925 = vpop.f32.mrf.mxu0
        %v2926 = vpop.f32.mrf.mxu0
        %v2927 = vadd.f32 %v2767, %v2926
        %v2928 = vpop.f32.mrf.mxu0
        %2929 = vmatprep.mubr.bf16.mxu0 0
        %2930 = vmatmul.mubr.bf16.gmra.mxu0 %v2805
        %v2931 = vpop.f32.mrf.mxu0
        %v2932 = vadd.f32 %v2767, %v2931
        %v2933 = vpop.f32.mrf.mxu0
        %v2934 = vpop.f32.mrf.mxu0
        %v2935 = vadd.f32 %v2767, %v2934
        %v2936 = vpop.f32.mrf.mxu0
        %2937 = vmatprep.mubr.bf16.mxu0 0
        %2938 = vmatmul.mubr.bf16.gmra.mxu0 %v2806
        %v2939 = vpop.f32.mrf.mxu0
        %v2940 = vadd.f32 %v2767, %v2939
        %v2941 = vpop.f32.mrf.mxu0
        %v2942 = vpop.f32.mrf.mxu0
        %v2943 = vadd.f32 %v2767, %v2942
        %v2944 = vpop.f32.mrf.mxu0
        %2945 = vmatprep.mubr.bf16.mxu0 0
        %2946 = vmatmul.mubr.bf16.gmra.mxu0 %v2807
        %v2947 = vpop.f32.mrf.mxu0
        %v2948 = vadd.f32 %v2767, %v2947
        %v2949 = vpop.f32.mrf.mxu0
        %v2950 = vpop.f32.mrf.mxu0
        %v2951 = vadd.f32 %v2767, %v2950
        %v2952 = vpop.f32.mrf.mxu0
        %2953 = vmatprep.mubr.bf16.mxu0 0
        %2954 = vmatmul.mubr.bf16.gmra.mxu0 %v2808
        %v2955 = vpop.f32.mrf.mxu0
        %v2956 = vadd.f32 %v2767, %v2955
        %v2957 = vpop.f32.mrf.mxu0
        %v2958 = vpop.f32.mrf.mxu0
        %v2959 = vadd.f32 %v2767, %v2958
        %v2960 = vpop.f32.mrf.mxu0
        %2961 = vdwg.mxu0
        %v2962 = vmax.f32 %v2900, 0.0
        %v2963 = vmax.f32 %v2903, 0.0
        %v2964 = vmax.f32 %v2908, 0.0
        %v2965 = vmax.f32 %v2911, 0.0
        %v2966 = vmax.f32 %v2916, 0.0
        %v2967 = vmax.f32 %v2919, 0.0
        %v2968 = vmax.f32 %v2924, 0.0
        %v2969 = vmax.f32 %v2927, 0.0
        %v2970 = vmax.f32 %v2932, 0.0
        %v2971 = vmax.f32 %v2935, 0.0
        %v2972 = vmax.f32 %v2940, 0.0
        %v2973 = vmax.f32 %v2943, 0.0
        %v2974 = vmax.f32 %v2948, 0.0
        %v2975 = vmax.f32 %v2951, 0.0
        %v2976 = vmax.f32 %v2956, 0.0
        %v2977 = vmax.f32 %v2959, 0.0
        %v2978 = vpack.c.bf16 %v2963, %v2962
        %v2979 = vpack.c.bf16 %v2965, %v2964
        %v2980 = vpack.c.bf16 %v2967, %v2966
        %v2981 = vpack.c.bf16 %v2969, %v2968
        %v2982 = vpack.c.bf16 %v2971, %v2970
        %v2983 = vpack.c.bf16 %v2973, %v2972
        %v2984 = vpack.c.bf16 %v2975, %v2974
        %v2985 = vpack.c.bf16 %v2977, %v2976
        %v2994 = vunpack.c.l.b16 %v2978
        %v2995 = vunpack.c.h.b16 %v2978
        %v2996 = vunpack.c.l.b16 %v2979
        %v2997 = vunpack.c.h.b16 %v2979
        %v2998 = vunpack.c.l.b16 %v2980
        %v2999 = vunpack.c.h.b16 %v2980
        %v3000 = vunpack.c.l.b16 %v2981
        %v3001 = vunpack.c.h.b16 %v2981
        %v3002 = vunpack.c.l.b16 %v2982
        %v3003 = vunpack.c.h.b16 %v2982
        %v3004 = vunpack.c.l.b16 %v2983
        %v3005 = vunpack.c.h.b16 %v2983
        %v3006 = vunpack.c.l.b16 %v2984
        %v3007 = vunpack.c.h.b16 %v2984
        %v3008 = vunpack.c.l.b16 %v2985
        %v3009 = vunpack.c.h.b16 %v2985
        %v3010 = vpack.c.b16 %v2994, %v2994
        %v3011 = vpack.c.b16 %v2995, %v2995
        %v3012 = vpack.c.b16 %v2996, %v2996
        %v3013 = vpack.c.b16 %v2997, %v2997
        %v3014 = vpack.c.b16 %v2998, %v2998
        %v3015 = vpack.c.b16 %v2999, %v2999
        %v3016 = vpack.c.b16 %v3000, %v3000
        %v3017 = vpack.c.b16 %v3001, %v3001
        %v3018 = vpack.c.b16 %v3002, %v3002
        %v3019 = vpack.c.b16 %v3003, %v3003
        %v3020 = vpack.c.b16 %v3004, %v3004
        %v3021 = vpack.c.b16 %v3005, %v3005
        %v3022 = vpack.c.b16 %v3006, %v3006
        %v3023 = vpack.c.b16 %v3007, %v3007
        %v3024 = vpack.c.b16 %v3008, %v3008
        %v3025 = vpack.c.b16 %v3009, %v3009
        %v3027 = vshrl.u32 %v3010, 16
        %v3029 = vrot.slane %v3027, 7
        %v3030 = vshll.u32 %v3010, 16
        %v3032 = vor.u32 %v3029, %v3030
        %v3033 = vrot.slane %v3029, 4
        %v3035 = vshrl.u32 %v3011, 16
        %v3037 = vrot.slane %v3035, 7
        %v3038 = vshll.u32 %v3011, 16
        %v3040 = vor.u32 %v3037, %v3038
        %v3041 = vsel %vm594, %v3033, %v3040
        %v3042 = vrot.slane %v3037, 4
        %v3044 = vshrl.u32 %v3012, 16
        %v3046 = vrot.slane %v3044, 7
        %v3047 = vshll.u32 %v3012, 16
        %v3049 = vor.u32 %v3046, %v3047
        %v3050 = vrot.slane %v3046, 4
        %v3052 = vshrl.u32 %v3013, 16
        %v3054 = vrot.slane %v3052, 7
        %v3055 = vshll.u32 %v3013, 16
        %v3057 = vor.u32 %v3054, %v3055
        %v3058 = vsel %vm594, %v3050, %v3057
        %v3059 = vrot.slane %v3054, 4
        %v3061 = vshrl.u32 %v3014, 16
        %v3063 = vrot.slane %v3061, 7
        %v3064 = vshll.u32 %v3014, 16
        %v3066 = vor.u32 %v3063, %v3064
        %v3067 = vrot.slane %v3063, 4
        %v3069 = vshrl.u32 %v3015, 16
        %v3071 = vrot.slane %v3069, 7
        %v3072 = vshll.u32 %v3015, 16
        %v3074 = vor.u32 %v3071, %v3072
        %v3075 = vsel %vm594, %v3067, %v3074
        %v3076 = vrot.slane %v3071, 4
        %v3078 = vshrl.u32 %v3016, 16
        %v3080 = vrot.slane %v3078, 7
        %v3081 = vshll.u32 %v3016, 16
        %v3083 = vor.u32 %v3080, %v3081
        %v3084 = vrot.slane %v3080, 4
        %v3086 = vshrl.u32 %v3017, 16
        %v3088 = vrot.slane %v3086, 7
        %v3089 = vshll.u32 %v3017, 16
        %v3091 = vor.u32 %v3088, %v3089
        %v3092 = vsel %vm594, %v3084, %v3091
        %v3093 = vrot.slane %v3088, 4
        %v3095 = vshrl.u32 %v3018, 16
        %v3097 = vrot.slane %v3095, 7
        %v3098 = vshll.u32 %v3018, 16
        %v3100 = vor.u32 %v3097, %v3098
        %v3101 = vrot.slane %v3097, 4
        %v3103 = vshrl.u32 %v3019, 16
        %v3105 = vrot.slane %v3103, 7
        %v3106 = vshll.u32 %v3019, 16
        %v3108 = vor.u32 %v3105, %v3106
        %v3109 = vsel %vm594, %v3101, %v3108
        %v3110 = vrot.slane %v3105, 4
        %v3112 = vshrl.u32 %v3020, 16
        %v3114 = vrot.slane %v3112, 7
        %v3115 = vshll.u32 %v3020, 16
        %v3117 = vor.u32 %v3114, %v3115
        %v3118 = vrot.slane %v3114, 4
        %v3120 = vshrl.u32 %v3021, 16
        %v3122 = vrot.slane %v3120, 7
        %v3123 = vshll.u32 %v3021, 16
        %v3125 = vor.u32 %v3122, %v3123
        %v3126 = vsel %vm594, %v3118, %v3125
        %v3127 = vrot.slane %v3122, 4
        %v3129 = vshrl.u32 %v3022, 16
        %v3131 = vrot.slane %v3129, 7
        %v3132 = vshll.u32 %v3022, 16
        %v3134 = vor.u32 %v3131, %v3132
        %v3135 = vrot.slane %v3131, 4
        %v3137 = vshrl.u32 %v3023, 16
        %v3139 = vrot.slane %v3137, 7
        %v3140 = vshll.u32 %v3023, 16
        %v3142 = vor.u32 %v3139, %v3140
        %v3143 = vsel %vm594, %v3135, %v3142
        %v3144 = vrot.slane %v3139, 4
        %v3146 = vshrl.u32 %v3024, 16
        %v3148 = vrot.slane %v3146, 7
        %v3149 = vshll.u32 %v3024, 16
        %v3151 = vor.u32 %v3148, %v3149
        %v3152 = vrot.slane %v3148, 4
        %v3154 = vshrl.u32 %v3025, 16
        %v3156 = vrot.slane %v3154, 7
        %v3157 = vshll.u32 %v3025, 16
        %v3159 = vor.u32 %v3156, %v3157
        %v3160 = vsel %vm594, %v3152, %v3159
        %v3161 = vrot.slane %v3156, 4
        %vm3186 = vcmask 257024
        %vm3187 = vmand %vm3186, %vm387
        %v3188 = vld [vmem:[#allocation3] sm:$0xf]
        %v3189 = vsel %vm3187, %v3032, %v3188
        %3190 = vst [vmem:[#allocation3] sm:$0xf] %v3189
        %vm3191 = vcmask 257024
        %3192 = vst.msk [vmem:[#allocation3 + $0x4] sm:$0xf] %vm3191, %v3041
        %v3193 = vld [vmem:[#allocation3 + $0x8] sm:$0x1]
        %v3194 = vsel %vm432, %v3042, %v3193
        %3195 = vst [vmem:[#allocation3 + $0x8] sm:$0x1] %v3194
        %v3196 = vld [vmem:[#allocation3 + $0xc] sm:$0xf]
        %v3197 = vsel %vm3187, %v3049, %v3196
        %3198 = vst [vmem:[#allocation3 + $0xc] sm:$0xf] %v3197
        %3199 = vst.msk [vmem:[#allocation3 + $0x10] sm:$0xf] %vm3191, %v3058
        %v3200 = vld [vmem:[#allocation3 + $0x14] sm:$0x1]
        %v3201 = vsel %vm432, %v3059, %v3200
        %3202 = vst [vmem:[#allocation3 + $0x14] sm:$0x1] %v3201
        %v3203 = vld [vmem:[#allocation3 + $0x18] sm:$0xf]
        %v3204 = vsel %vm3187, %v3066, %v3203
        %3205 = vst [vmem:[#allocation3 + $0x18] sm:$0xf] %v3204
        %3206 = vst.msk [vmem:[#allocation3 + $0x1c] sm:$0xf] %vm3191, %v3075
        %v3207 = vld [vmem:[#allocation3 + $0x20] sm:$0x1]
        %v3208 = vsel %vm432, %v3076, %v3207
        %3209 = vst [vmem:[#allocation3 + $0x20] sm:$0x1] %v3208
        %v3210 = vld [vmem:[#allocation3 + $0x24] sm:$0xf]
        %v3211 = vsel %vm3187, %v3083, %v3210
        %3212 = vst [vmem:[#allocation3 + $0x24] sm:$0xf] %v3211
        %3213 = vst.msk [vmem:[#allocation3 + $0x28] sm:$0xf] %vm3191, %v3092
        %v3214 = vld [vmem:[#allocation3 + $0x2c] sm:$0x1]
        %v3215 = vsel %vm432, %v3093, %v3214
        %3216 = vst [vmem:[#allocation3 + $0x2c] sm:$0x1] %v3215
        %v3217 = vld [vmem:[#allocation3 + $0x30] sm:$0xf]
        %v3218 = vsel %vm3187, %v3100, %v3217
        %3219 = vst [vmem:[#allocation3 + $0x30] sm:$0xf] %v3218
        %3220 = vst.msk [vmem:[#allocation3 + $0x34] sm:$0xf] %vm3191, %v3109
        %v3221 = vld [vmem:[#allocation3 + $0x38] sm:$0x1]
        %v3222 = vsel %vm432, %v3110, %v3221
        %3223 = vst [vmem:[#allocation3 + $0x38] sm:$0x1] %v3222
        %v3224 = vld [vmem:[#allocation3 + $0x3c] sm:$0xf]
        %v3225 = vsel %vm3187, %v3117, %v3224
        %3226 = vst [vmem:[#allocation3 + $0x3c] sm:$0xf] %v3225
        %3227 = vst.msk [vmem:[#allocation3 + $0x40] sm:$0xf] %vm3191, %v3126
        %v3228 = vld [vmem:[#allocation3 + $0x44] sm:$0x1]
        %v3229 = vsel %vm432, %v3127, %v3228
        %3230 = vst [vmem:[#allocation3 + $0x44] sm:$0x1] %v3229
        %v3231 = vld [vmem:[#allocation3 + $0x48] sm:$0xf]
        %v3232 = vsel %vm3187, %v3134, %v3231
        %3233 = vst [vmem:[#allocation3 + $0x48] sm:$0xf] %v3232
        %3234 = vst.msk [vmem:[#allocation3 + $0x4c] sm:$0xf] %vm3191, %v3143
        %v3235 = vld [vmem:[#allocation3 + $0x50] sm:$0x1]
        %v3236 = vsel %vm432, %v3144, %v3235
        %3237 = vst [vmem:[#allocation3 + $0x50] sm:$0x1] %v3236
        %v3238 = vld [vmem:[#allocation3 + $0x54] sm:$0xf]
        %v3239 = vsel %vm3187, %v3151, %v3238
        %3240 = vst [vmem:[#allocation3 + $0x54] sm:$0xf] %v3239
        %3241 = vst.msk [vmem:[#allocation3 + $0x58] sm:$0xf] %vm3191, %v3160
        %v3242 = vld [vmem:[#allocation3 + $0x5c] sm:$0x1]
        %v3243 = vsel %vm432, %v3161, %v3242
        %3244 = vst [vmem:[#allocation3 + $0x5c] sm:$0x1] %v3243
        %v3245 = vld [vmem:[%s1032] sm:$0xf]
        %v3246 = vld [vmem:[%s1032 + $0x4] sm:$0xf]
        %v3247 = vld [vmem:[%s1032 + $0x8] sm:$0x1]
        %v3248 = vld [vmem:[%s1032 + $0xc] sm:$0xf]
        %v3249 = vld [vmem:[%s1032 + $0x10] sm:$0xf]
        %v3250 = vld [vmem:[%s1032 + $0x14] sm:$0x1]
        %v3251 = vld [vmem:[%s1032 + $0x18] sm:$0xf]
        %v3252 = vld [vmem:[%s1032 + $0x1c] sm:$0xf]
        %v3253 = vld [vmem:[%s1032 + $0x20] sm:$0x1]
        %v3254 = vld [vmem:[%s1032 + $0x24] sm:$0xf]
        %v3255 = vld [vmem:[%s1032 + $0x28] sm:$0xf]
        %v3256 = vld [vmem:[%s1032 + $0x2c] sm:$0x1]
        %3257 = vst.msk [vmem:[#allocation5] sm:$0xf] %vm620, %v3245
        %3258 = vst.msk [vmem:[#allocation5 + $0x14] sm:$0xf] %vm620, %v3246
        %3259 = vst.msk [vmem:[#allocation5 + $0x28] sm:$0xf] %vm620, %v3248
        %3260 = vst.msk [vmem:[#allocation5 + $0x3c] sm:$0xf] %vm620, %v3249
        %3261 = vst.msk [vmem:[#allocation5 + $0x50] sm:$0xf] %vm620, %v3251
        %3262 = vst.msk [vmem:[#allocation5 + $0x64] sm:$0xf] %vm620, %v3252
        %3263 = vst.msk [vmem:[#allocation5 + $0x78] sm:$0xf] %vm620, %v3254
        %3264 = vst.msk [vmem:[#allocation5 + $0x8c] sm:$0xf] %vm620, %v3255
        %v3266 = vshrl.u32 %v3245, 16
        %v3268 = vrot.slane %v3266, 4
        %v3269 = vshll.u32 %v3245, 16
        %v3271 = vrot.slane %v3269, 5
        %v3272 = vor.u32 %v3268, %v3271
        %v3273 = vrot.slane %v3272, 4
        %v3275 = vshll.u32 %v3246, 16
        %v3277 = vrot.slane %v3275, 5
        %v3278 = vsel %vm1342, %v3273, %v3277
        %v3279 = vshrl.u32 %v3246, 16
        %v3281 = vrot.slane %v3279, 4
        %v3282 = vor.u32 %v3281, %v3277
        %v3283 = vrot.slane %v3282, 4
        %v3285 = vshll.u32 %v3247, 16
        %v3287 = vrot.slane %v3285, 5
        %v3288 = vsel %vm1342, %v3283, %v3287
        %v3290 = vshrl.u32 %v3248, 16
        %v3292 = vrot.slane %v3290, 4
        %v3293 = vshll.u32 %v3248, 16
        %v3295 = vrot.slane %v3293, 5
        %v3296 = vor.u32 %v3292, %v3295
        %v3297 = vrot.slane %v3296, 4
        %v3299 = vshll.u32 %v3249, 16
        %v3301 = vrot.slane %v3299, 5
        %v3302 = vsel %vm1342, %v3297, %v3301
        %v3303 = vshrl.u32 %v3249, 16
        %v3305 = vrot.slane %v3303, 4
        %v3306 = vor.u32 %v3305, %v3301
        %v3307 = vrot.slane %v3306, 4
        %v3309 = vshll.u32 %v3250, 16
        %v3311 = vrot.slane %v3309, 5
        %v3312 = vsel %vm1342, %v3307, %v3311
        %v3314 = vshrl.u32 %v3251, 16
        %v3316 = vrot.slane %v3314, 4
        %v3317 = vshll.u32 %v3251, 16
        %v3319 = vrot.slane %v3317, 5
        %v3320 = vor.u32 %v3316, %v3319
        %v3321 = vrot.slane %v3320, 4
        %v3323 = vshll.u32 %v3252, 16
        %v3325 = vrot.slane %v3323, 5
        %v3326 = vsel %vm1342, %v3321, %v3325
        %v3327 = vshrl.u32 %v3252, 16
        %v3329 = vrot.slane %v3327, 4
        %v3330 = vor.u32 %v3329, %v3325
        %v3331 = vrot.slane %v3330, 4
        %v3333 = vshll.u32 %v3253, 16
        %v3335 = vrot.slane %v3333, 5
        %v3336 = vsel %vm1342, %v3331, %v3335
        %v3338 = vshrl.u32 %v3254, 16
        %v3340 = vrot.slane %v3338, 4
        %v3341 = vshll.u32 %v3254, 16
        %v3343 = vrot.slane %v3341, 5
        %v3344 = vor.u32 %v3340, %v3343
        %v3345 = vrot.slane %v3344, 4
        %v3347 = vshll.u32 %v3255, 16
        %v3349 = vrot.slane %v3347, 5
        %v3350 = vsel %vm1342, %v3345, %v3349
        %v3351 = vshrl.u32 %v3255, 16
        %v3353 = vrot.slane %v3351, 4
        %v3354 = vor.u32 %v3353, %v3349
        %v3355 = vrot.slane %v3354, 4
        %v3357 = vshll.u32 %v3256, 16
        %v3359 = vrot.slane %v3357, 5
        %v3360 = vsel %vm1342, %v3355, %v3359
        %3361 = vrot.lane.b32.xlu0 %v3278, 4
        %v3362 = vpop.permute.xlu0 %3361
        %3363 = vrot.lane.b32.xlu0 %v3288, 4
        %v3364 = vpop.permute.xlu0 %3363
        %3365 = vrot.lane.b32.xlu0 %v3302, 4
        %v3366 = vpop.permute.xlu0 %3365
        %3367 = vrot.lane.b32.xlu0 %v3312, 4
        %v3368 = vpop.permute.xlu0 %3367
        %3369 = vrot.lane.b32.xlu0 %v3326, 4
        %v3370 = vpop.permute.xlu0 %3369
        %3371 = vrot.lane.b32.xlu0 %v3336, 4
        %v3372 = vpop.permute.xlu0 %3371
        %3373 = vrot.lane.b32.xlu0 %v3350, 4
        %v3374 = vpop.permute.xlu0 %3373
        %3375 = vrot.lane.b32.xlu0 %v3360, 4
        %v3376 = vpop.permute.xlu0 %3375
        %3385 = vst.msk [vmem:[#allocation5] sm:$0xf] %vm1583, %v3362
        %3386 = vst.msk [vmem:[#allocation5 + $0x14] sm:$0xf] %vm1583, %v3364
        %3387 = vst.msk [vmem:[#allocation5 + $0x28] sm:$0xf] %vm1583, %v3366
        %3388 = vst.msk [vmem:[#allocation5 + $0x3c] sm:$0xf] %vm1583, %v3368
        %3389 = vst.msk [vmem:[#allocation5 + $0x50] sm:$0xf] %vm1583, %v3370
        %3390 = vst.msk [vmem:[#allocation5 + $0x64] sm:$0xf] %vm1583, %v3372
        %3391 = vst.msk [vmem:[#allocation5 + $0x78] sm:$0xf] %vm1583, %v3374
        %3392 = vst.msk [vmem:[#allocation5 + $0x8c] sm:$0xf] %vm1583, %v3376
        %v3405 = vrot.slane %v3245, 5
        %v3406 = vrot.slane %v3405, 4
        %v3407 = vrot.slane %v3246, 5
        %v3408 = vsel %vm1626, %v3406, %v3407
        %v3409 = vrot.slane %v3407, 4
        %v3410 = vrot.slane %v3247, 5
        %v3411 = vsel %vm1626, %v3409, %v3410
        %v3412 = vrot.slane %v3248, 5
        %v3413 = vrot.slane %v3412, 4
        %v3414 = vrot.slane %v3249, 5
        %v3415 = vsel %vm1626, %v3413, %v3414
        %v3416 = vrot.slane %v3414, 4
        %v3417 = vrot.slane %v3250, 5
        %v3418 = vsel %vm1626, %v3416, %v3417
        %v3419 = vrot.slane %v3251, 5
        %v3420 = vrot.slane %v3419, 4
        %v3421 = vrot.slane %v3252, 5
        %v3422 = vsel %vm1626, %v3420, %v3421
        %v3423 = vrot.slane %v3421, 4
        %v3424 = vrot.slane %v3253, 5
        %v3425 = vsel %vm1626, %v3423, %v3424
        %v3426 = vrot.slane %v3254, 5
        %v3427 = vrot.slane %v3426, 4
        %v3428 = vrot.slane %v3255, 5
        %v3429 = vsel %vm1626, %v3427, %v3428
        %v3430 = vrot.slane %v3428, 4
        %v3431 = vrot.slane %v3256, 5
        %v3432 = vsel %vm1626, %v3430, %v3431
        %3433 = vrot.lane.b32.xlu0 %v3408, 8
        %v3434 = vpop.permute.xlu0 %3433
        %3435 = vrot.lane.b32.xlu0 %v3411, 8
        %v3436 = vpop.permute.xlu0 %3435
        %3437 = vrot.lane.b32.xlu0 %v3415, 8
        %v3438 = vpop.permute.xlu0 %3437
        %3439 = vrot.lane.b32.xlu0 %v3418, 8
        %v3440 = vpop.permute.xlu0 %3439
        %3441 = vrot.lane.b32.xlu0 %v3422, 8
        %v3442 = vpop.permute.xlu0 %3441
        %3443 = vrot.lane.b32.xlu0 %v3425, 8
        %v3444 = vpop.permute.xlu0 %3443
        %3445 = vrot.lane.b32.xlu0 %v3429, 8
        %v3446 = vpop.permute.xlu0 %3445
        %3447 = vrot.lane.b32.xlu0 %v3432, 8
        %v3448 = vpop.permute.xlu0 %3447
        %3457 = vst.msk [vmem:[#allocation5] sm:$0xf] %vm1731, %v3434
        %3458 = vst.msk [vmem:[#allocation5 + $0x14] sm:$0xf] %vm1731, %v3436
        %3459 = vst.msk [vmem:[#allocation5 + $0x28] sm:$0xf] %vm1731, %v3438
        %3460 = vst.msk [vmem:[#allocation5 + $0x3c] sm:$0xf] %vm1731, %v3440
        %3461 = vst.msk [vmem:[#allocation5 + $0x50] sm:$0xf] %vm1731, %v3442
        %3462 = vst.msk [vmem:[#allocation5 + $0x64] sm:$0xf] %vm1731, %v3444
        %3463 = vst.msk [vmem:[#allocation5 + $0x78] sm:$0xf] %vm1731, %v3446
        %3464 = vst.msk [vmem:[#allocation5 + $0x8c] sm:$0xf] %vm1731, %v3448
        %v3465 = vld [vmem:[%s1084] sm:$0xf]
        %v3466 = vld [vmem:[%s1084 + $0x4] sm:$0xf]
        %v3467 = vld [vmem:[%s1084 + $0x8] sm:$0x1]
        %v3468 = vld [vmem:[%s1084 + $0xc] sm:$0xf]
        %v3469 = vld [vmem:[%s1084 + $0x10] sm:$0xf]
        %v3470 = vld [vmem:[%s1084 + $0x14] sm:$0x1]
        %v3471 = vld [vmem:[%s1084 + $0x18] sm:$0xf]
        %v3472 = vld [vmem:[%s1084 + $0x1c] sm:$0xf]
        %v3473 = vld [vmem:[%s1084 + $0x20] sm:$0x1]
        %v3474 = vld [vmem:[%s1084 + $0x24] sm:$0xf]
        %v3475 = vld [vmem:[%s1084 + $0x28] sm:$0xf]
        %v3476 = vld [vmem:[%s1084 + $0x2c] sm:$0x1]
        %3485 = vrot.lane.b32.xlu0 %v3465, 12
        %v3486 = vpop.permute.xlu0 %3485
        %3487 = vrot.lane.b32.xlu0 %v3466, 12
        %v3488 = vpop.permute.xlu0 %3487
        %3489 = vrot.lane.b32.xlu0 %v3468, 12
        %v3490 = vpop.permute.xlu0 %3489
        %3491 = vrot.lane.b32.xlu0 %v3469, 12
        %v3492 = vpop.permute.xlu0 %3491
        %3493 = vrot.lane.b32.xlu0 %v3471, 12
        %v3494 = vpop.permute.xlu0 %3493
        %3495 = vrot.lane.b32.xlu0 %v3472, 12
        %v3496 = vpop.permute.xlu0 %3495
        %3497 = vrot.lane.b32.xlu0 %v3474, 12
        %v3498 = vpop.permute.xlu0 %3497
        %3499 = vrot.lane.b32.xlu0 %v3475, 12
        %v3500 = vpop.permute.xlu0 %3499
        %3509 = vst.msk [vmem:[#allocation5] sm:$0xf] %vm1836, %v3486
        %3510 = vst.msk [vmem:[#allocation5 + $0x14] sm:$0xf] %vm1836, %v3488
        %3511 = vst.msk [vmem:[#allocation5 + $0x28] sm:$0xf] %vm1836, %v3490
        %3512 = vst.msk [vmem:[#allocation5 + $0x3c] sm:$0xf] %vm1836, %v3492
        %3513 = vst.msk [vmem:[#allocation5 + $0x50] sm:$0xf] %vm1836, %v3494
        %3514 = vst.msk [vmem:[#allocation5 + $0x64] sm:$0xf] %vm1836, %v3496
        %3515 = vst.msk [vmem:[#allocation5 + $0x78] sm:$0xf] %vm1836, %v3498
        %3516 = vst.msk [vmem:[#allocation5 + $0x8c] sm:$0xf] %vm1836, %v3500
        %v3518 = vshrl.u32 %v3465, 16
        %v3520 = vrot.slane %v3518, 4
        %v3521 = vshll.u32 %v3465, 16
        %v3523 = vrot.slane %v3521, 5
        %v3524 = vor.u32 %v3520, %v3523
        %v3525 = vrot.slane %v3524, 4
        %v3527 = vshll.u32 %v3466, 16
        %v3529 = vrot.slane %v3527, 5
        %v3530 = vsel %vm1342, %v3525, %v3529
        %v3531 = vshrl.u32 %v3466, 16
        %v3533 = vrot.slane %v3531, 4
        %v3534 = vor.u32 %v3533, %v3529
        %v3535 = vrot.slane %v3534, 4
        %v3537 = vshll.u32 %v3467, 16
        %v3539 = vrot.slane %v3537, 5
        %v3540 = vsel %vm1342, %v3535, %v3539
        %v3542 = vshrl.u32 %v3468, 16
        %v3544 = vrot.slane %v3542, 4
        %v3545 = vshll.u32 %v3468, 16
        %v3547 = vrot.slane %v3545, 5
        %v3548 = vor.u32 %v3544, %v3547
        %v3549 = vrot.slane %v3548, 4
        %v3551 = vshll.u32 %v3469, 16
        %v3553 = vrot.slane %v3551, 5
        %v3554 = vsel %vm1342, %v3549, %v3553
        %v3555 = vshrl.u32 %v3469, 16
        %v3557 = vrot.slane %v3555, 4
        %v3558 = vor.u32 %v3557, %v3553
        %v3559 = vrot.slane %v3558, 4
        %v3561 = vshll.u32 %v3470, 16
        %v3563 = vrot.slane %v3561, 5
        %v3564 = vsel %vm1342, %v3559, %v3563
        %v3566 = vshrl.u32 %v3471, 16
        %v3568 = vrot.slane %v3566, 4
        %v3569 = vshll.u32 %v3471, 16
        %v3571 = vrot.slane %v3569, 5
        %v3572 = vor.u32 %v3568, %v3571
        %v3573 = vrot.slane %v3572, 4
        %v3575 = vshll.u32 %v3472, 16
        %v3577 = vrot.slane %v3575, 5
        %v3578 = vsel %vm1342, %v3573, %v3577
        %v3579 = vshrl.u32 %v3472, 16
        %v3581 = vrot.slane %v3579, 4
        %v3582 = vor.u32 %v3581, %v3577
        %v3583 = vrot.slane %v3582, 4
        %v3585 = vshll.u32 %v3473, 16
        %v3587 = vrot.slane %v3585, 5
        %v3588 = vsel %vm1342, %v3583, %v3587
        %v3590 = vshrl.u32 %v3474, 16
        %v3592 = vrot.slane %v3590, 4
        %v3593 = vshll.u32 %v3474, 16
        %v3595 = vrot.slane %v3593, 5
        %v3596 = vor.u32 %v3592, %v3595
        %v3597 = vrot.slane %v3596, 4
        %v3599 = vshll.u32 %v3475, 16
        %v3601 = vrot.slane %v3599, 5
        %v3602 = vsel %vm1342, %v3597, %v3601
        %v3603 = vshrl.u32 %v3475, 16
        %v3605 = vrot.slane %v3603, 4
        %v3606 = vor.u32 %v3605, %v3601
        %v3607 = vrot.slane %v3606, 4
        %v3609 = vshll.u32 %v3476, 16
        %v3611 = vrot.slane %v3609, 5
        %v3612 = vsel %vm1342, %v3607, %v3611
        %3613 = vrot.lane.b32.xlu0 %v3530, 16
        %v3614 = vpop.permute.xlu0 %3613
        %3615 = vrot.lane.b32.xlu0 %v3540, 16
        %v3616 = vpop.permute.xlu0 %3615
        %3617 = vrot.lane.b32.xlu0 %v3554, 16
        %v3618 = vpop.permute.xlu0 %3617
        %3619 = vrot.lane.b32.xlu0 %v3564, 16
        %v3620 = vpop.permute.xlu0 %3619
        %3621 = vrot.lane.b32.xlu0 %v3578, 16
        %v3622 = vpop.permute.xlu0 %3621
        %3623 = vrot.lane.b32.xlu0 %v3588, 16
        %v3624 = vpop.permute.xlu0 %3623
        %3625 = vrot.lane.b32.xlu0 %v3602, 16
        %v3626 = vpop.permute.xlu0 %3625
        %3627 = vrot.lane.b32.xlu0 %v3612, 16
        %v3628 = vpop.permute.xlu0 %3627
        %3637 = vst.msk [vmem:[#allocation5] sm:$0xf] %vm2093, %v3614
        %3638 = vst.msk [vmem:[#allocation5 + $0x14] sm:$0xf] %vm2093, %v3616
        %3639 = vst.msk [vmem:[#allocation5 + $0x28] sm:$0xf] %vm2093, %v3618
        %3640 = vst.msk [vmem:[#allocation5 + $0x3c] sm:$0xf] %vm2093, %v3620
        %3641 = vst.msk [vmem:[#allocation5 + $0x50] sm:$0xf] %vm2093, %v3622
        %3642 = vst.msk [vmem:[#allocation5 + $0x64] sm:$0xf] %vm2093, %v3624
        %3643 = vst.msk [vmem:[#allocation5 + $0x78] sm:$0xf] %vm2093, %v3626
        %3644 = vst.msk [vmem:[#allocation5 + $0x8c] sm:$0xf] %vm2093, %v3628
        %v3649 = vrot.slane %v3465, 5
        %v3650 = vrot.slane %v3649, 4
        %v3651 = vrot.slane %v3466, 5
        %v3652 = vsel %vm1626, %v3650, %v3651
        %v3653 = vrot.slane %v3651, 4
        %v3654 = vrot.slane %v3467, 5
        %v3655 = vsel %vm1626, %v3653, %v3654
        %v3656 = vrot.slane %v3468, 5
        %v3657 = vrot.slane %v3656, 4
        %v3658 = vrot.slane %v3469, 5
        %v3659 = vsel %vm1626, %v3657, %v3658
        %v3660 = vrot.slane %v3658, 4
        %v3661 = vrot.slane %v3470, 5
        %v3662 = vsel %vm1626, %v3660, %v3661
        %v3663 = vrot.slane %v3471, 5
        %v3664 = vrot.slane %v3663, 4
        %v3665 = vrot.slane %v3472, 5
        %v3666 = vsel %vm1626, %v3664, %v3665
        %v3667 = vrot.slane %v3665, 4
        %v3668 = vrot.slane %v3473, 5
        %v3669 = vsel %vm1626, %v3667, %v3668
        %v3670 = vrot.slane %v3474, 5
        %v3671 = vrot.slane %v3670, 4
        %v3672 = vrot.slane %v3475, 5
        %v3673 = vsel %vm1626, %v3671, %v3672
        %v3674 = vrot.slane %v3672, 4
        %v3675 = vrot.slane %v3476, 5
        %v3676 = vsel %vm1626, %v3674, %v3675
        %3677 = vrot.lane.b32.xlu0 %v3652, 20
        %v3678 = vpop.permute.xlu0 %3677
        %3679 = vrot.lane.b32.xlu0 %v3655, 20
        %v3680 = vpop.permute.xlu0 %3679
        %3681 = vrot.lane.b32.xlu0 %v3659, 20
        %v3682 = vpop.permute.xlu0 %3681
        %3683 = vrot.lane.b32.xlu0 %v3662, 20
        %v3684 = vpop.permute.xlu0 %3683
        %3685 = vrot.lane.b32.xlu0 %v3666, 20
        %v3686 = vpop.permute.xlu0 %3685
        %3687 = vrot.lane.b32.xlu0 %v3669, 20
        %v3688 = vpop.permute.xlu0 %3687
        %3689 = vrot.lane.b32.xlu0 %v3673, 20
        %v3690 = vpop.permute.xlu0 %3689
        %3691 = vrot.lane.b32.xlu0 %v3676, 20
        %v3692 = vpop.permute.xlu0 %3691
        %3701 = vst.msk [vmem:[#allocation5] sm:$0xf] %vm2222, %v3678
        %3702 = vst.msk [vmem:[#allocation5 + $0x14] sm:$0xf] %vm2222, %v3680
        %3703 = vst.msk [vmem:[#allocation5 + $0x28] sm:$0xf] %vm2222, %v3682
        %3704 = vst.msk [vmem:[#allocation5 + $0x3c] sm:$0xf] %vm2222, %v3684
        %3705 = vst.msk [vmem:[#allocation5 + $0x50] sm:$0xf] %vm2222, %v3686
        %3706 = vst.msk [vmem:[#allocation5 + $0x64] sm:$0xf] %vm2222, %v3688
        %3707 = vst.msk [vmem:[#allocation5 + $0x78] sm:$0xf] %vm2222, %v3690
        %3708 = vst.msk [vmem:[#allocation5 + $0x8c] sm:$0xf] %vm2222, %v3692
        %v3709 = vld [vmem:[%s1136] sm:$0xf]
        %v3710 = vld [vmem:[%s1136 + $0x4] sm:$0xf]
        %v3711 = vld [vmem:[%s1136 + $0x8] sm:$0x1]
        %v3712 = vld [vmem:[%s1136 + $0xc] sm:$0xf]
        %v3713 = vld [vmem:[%s1136 + $0x10] sm:$0xf]
        %v3714 = vld [vmem:[%s1136 + $0x14] sm:$0x1]
        %v3715 = vld [vmem:[%s1136 + $0x18] sm:$0xf]
        %v3716 = vld [vmem:[%s1136 + $0x1c] sm:$0xf]
        %v3717 = vld [vmem:[%s1136 + $0x20] sm:$0x1]
        %v3718 = vld [vmem:[%s1136 + $0x24] sm:$0xf]
        %v3719 = vld [vmem:[%s1136 + $0x28] sm:$0xf]
        %v3720 = vld [vmem:[%s1136 + $0x2c] sm:$0x1]
        %3729 = vrot.lane.b32.xlu0 %v3709, 24
        %v3730 = vpop.permute.xlu0 %3729
        %3731 = vrot.lane.b32.xlu0 %v3710, 24
        %v3732 = vpop.permute.xlu0 %3731
        %3733 = vrot.lane.b32.xlu0 %v3712, 24
        %v3734 = vpop.permute.xlu0 %3733
        %3735 = vrot.lane.b32.xlu0 %v3713, 24
        %v3736 = vpop.permute.xlu0 %3735
        %3737 = vrot.lane.b32.xlu0 %v3715, 24
        %v3738 = vpop.permute.xlu0 %3737
        %3739 = vrot.lane.b32.xlu0 %v3716, 24
        %v3740 = vpop.permute.xlu0 %3739
        %3741 = vrot.lane.b32.xlu0 %v3718, 24
        %v3742 = vpop.permute.xlu0 %3741
        %3743 = vrot.lane.b32.xlu0 %v3719, 24
        %v3744 = vpop.permute.xlu0 %3743
        %3753 = vst.msk [vmem:[#allocation5] sm:$0xf] %vm2327, %v3730
        %3754 = vst.msk [vmem:[#allocation5 + $0x14] sm:$0xf] %vm2327, %v3732
        %3755 = vst.msk [vmem:[#allocation5 + $0x28] sm:$0xf] %vm2327, %v3734
        %3756 = vst.msk [vmem:[#allocation5 + $0x3c] sm:$0xf] %vm2327, %v3736
        %3757 = vst.msk [vmem:[#allocation5 + $0x50] sm:$0xf] %vm2327, %v3738
        %3758 = vst.msk [vmem:[#allocation5 + $0x64] sm:$0xf] %vm2327, %v3740
        %3759 = vst.msk [vmem:[#allocation5 + $0x78] sm:$0xf] %vm2327, %v3742
        %3760 = vst.msk [vmem:[#allocation5 + $0x8c] sm:$0xf] %vm2327, %v3744
        %v3762 = vshrl.u32 %v3709, 16
        %v3764 = vrot.slane %v3762, 4
        %v3765 = vshll.u32 %v3709, 16
        %v3767 = vrot.slane %v3765, 5
        %v3768 = vor.u32 %v3764, %v3767
        %v3769 = vrot.slane %v3768, 4
        %v3771 = vshll.u32 %v3710, 16
        %v3773 = vrot.slane %v3771, 5
        %v3774 = vsel %vm1342, %v3769, %v3773
        %v3775 = vshrl.u32 %v3710, 16
        %v3777 = vrot.slane %v3775, 4
        %v3778 = vor.u32 %v3777, %v3773
        %v3779 = vrot.slane %v3778, 4
        %v3781 = vshll.u32 %v3711, 16
        %v3783 = vrot.slane %v3781, 5
        %v3784 = vsel %vm1342, %v3779, %v3783
        %v3786 = vshrl.u32 %v3712, 16
        %v3788 = vrot.slane %v3786, 4
        %v3789 = vshll.u32 %v3712, 16
        %v3791 = vrot.slane %v3789, 5
        %v3792 = vor.u32 %v3788, %v3791
        %v3793 = vrot.slane %v3792, 4
        %v3795 = vshll.u32 %v3713, 16
        %v3797 = vrot.slane %v3795, 5
        %v3798 = vsel %vm1342, %v3793, %v3797
        %v3799 = vshrl.u32 %v3713, 16
        %v3801 = vrot.slane %v3799, 4
        %v3802 = vor.u32 %v3801, %v3797
        %v3803 = vrot.slane %v3802, 4
        %v3805 = vshll.u32 %v3714, 16
        %v3807 = vrot.slane %v3805, 5
        %v3808 = vsel %vm1342, %v3803, %v3807
        %v3810 = vshrl.u32 %v3715, 16
        %v3812 = vrot.slane %v3810, 4
        %v3813 = vshll.u32 %v3715, 16
        %v3815 = vrot.slane %v3813, 5
        %v3816 = vor.u32 %v3812, %v3815
        %v3817 = vrot.slane %v3816, 4
        %v3819 = vshll.u32 %v3716, 16
        %v3821 = vrot.slane %v3819, 5
        %v3822 = vsel %vm1342, %v3817, %v3821
        %v3823 = vshrl.u32 %v3716, 16
        %v3825 = vrot.slane %v3823, 4
        %v3826 = vor.u32 %v3825, %v3821
        %v3827 = vrot.slane %v3826, 4
        %v3829 = vshll.u32 %v3717, 16
        %v3831 = vrot.slane %v3829, 5
        %v3832 = vsel %vm1342, %v3827, %v3831
        %v3834 = vshrl.u32 %v3718, 16
        %v3836 = vrot.slane %v3834, 4
        %v3837 = vshll.u32 %v3718, 16
        %v3839 = vrot.slane %v3837, 5
        %v3840 = vor.u32 %v3836, %v3839
        %v3841 = vrot.slane %v3840, 4
        %v3843 = vshll.u32 %v3719, 16
        %v3845 = vrot.slane %v3843, 5
        %v3846 = vsel %vm1342, %v3841, %v3845
        %v3847 = vshrl.u32 %v3719, 16
        %v3849 = vrot.slane %v3847, 4
        %v3850 = vor.u32 %v3849, %v3845
        %v3851 = vrot.slane %v3850, 4
        %v3853 = vshll.u32 %v3720, 16
        %v3855 = vrot.slane %v3853, 5
        %v3856 = vsel %vm1342, %v3851, %v3855
        %3857 = vrot.lane.b32.xlu0 %v3774, 28
        %v3858 = vpop.permute.xlu0 %3857
        %3859 = vrot.lane.b32.xlu0 %v3784, 28
        %v3860 = vpop.permute.xlu0 %3859
        %3861 = vrot.lane.b32.xlu0 %v3798, 28
        %v3862 = vpop.permute.xlu0 %3861
        %3863 = vrot.lane.b32.xlu0 %v3808, 28
        %v3864 = vpop.permute.xlu0 %3863
        %3865 = vrot.lane.b32.xlu0 %v3822, 28
        %v3866 = vpop.permute.xlu0 %3865
        %3867 = vrot.lane.b32.xlu0 %v3832, 28
        %v3868 = vpop.permute.xlu0 %3867
        %3869 = vrot.lane.b32.xlu0 %v3846, 28
        %v3870 = vpop.permute.xlu0 %3869
        %3871 = vrot.lane.b32.xlu0 %v3856, 28
        %v3872 = vpop.permute.xlu0 %3871
        %3881 = vst.msk [vmem:[#allocation5] sm:$0xf] %vm2584, %v3858
        %3882 = vst.msk [vmem:[#allocation5 + $0x14] sm:$0xf] %vm2584, %v3860
        %3883 = vst.msk [vmem:[#allocation5 + $0x28] sm:$0xf] %vm2584, %v3862
        %3884 = vst.msk [vmem:[#allocation5 + $0x3c] sm:$0xf] %vm2584, %v3864
        %3885 = vst.msk [vmem:[#allocation5 + $0x50] sm:$0xf] %vm2584, %v3866
        %3886 = vst.msk [vmem:[#allocation5 + $0x64] sm:$0xf] %vm2584, %v3868
        %3887 = vst.msk [vmem:[#allocation5 + $0x78] sm:$0xf] %vm2584, %v3870
        %3888 = vst.msk [vmem:[#allocation5 + $0x8c] sm:$0xf] %vm2584, %v3872
        %v3893 = vrot.slane %v3709, 5
        %v3894 = vrot.slane %v3893, 4
        %v3895 = vrot.slane %v3710, 5
        %v3896 = vsel %vm1626, %v3894, %v3895
        %v3897 = vrot.slane %v3895, 4
        %v3898 = vrot.slane %v3711, 5
        %v3899 = vsel %vm1626, %v3897, %v3898
        %v3900 = vrot.slane %v3712, 5
        %v3901 = vrot.slane %v3900, 4
        %v3902 = vrot.slane %v3713, 5
        %v3903 = vsel %vm1626, %v3901, %v3902
        %v3904 = vrot.slane %v3902, 4
        %v3905 = vrot.slane %v3714, 5
        %v3906 = vsel %vm1626, %v3904, %v3905
        %v3907 = vrot.slane %v3715, 5
        %v3908 = vrot.slane %v3907, 4
        %v3909 = vrot.slane %v3716, 5
        %v3910 = vsel %vm1626, %v3908, %v3909
        %v3911 = vrot.slane %v3909, 4
        %v3912 = vrot.slane %v3717, 5
        %v3913 = vsel %vm1626, %v3911, %v3912
        %v3914 = vrot.slane %v3718, 5
        %v3915 = vrot.slane %v3914, 4
        %v3916 = vrot.slane %v3719, 5
        %v3917 = vsel %vm1626, %v3915, %v3916
        %v3918 = vrot.slane %v3916, 4
        %v3919 = vrot.slane %v3720, 5
        %v3920 = vsel %vm1626, %v3918, %v3919
        %3921 = vrot.lane.b32.xlu0 %v3896, 32
        %v3922 = vpop.permute.xlu0 %3921
        %3923 = vrot.lane.b32.xlu0 %v3899, 32
        %v3924 = vpop.permute.xlu0 %3923
        %3925 = vrot.lane.b32.xlu0 %v3903, 32
        %v3926 = vpop.permute.xlu0 %3925
        %3927 = vrot.lane.b32.xlu0 %v3906, 32
        %v3928 = vpop.permute.xlu0 %3927
        %3929 = vrot.lane.b32.xlu0 %v3910, 32
        %v3930 = vpop.permute.xlu0 %3929
        %3931 = vrot.lane.b32.xlu0 %v3913, 32
        %v3932 = vpop.permute.xlu0 %3931
        %3933 = vrot.lane.b32.xlu0 %v3917, 32
        %v3934 = vpop.permute.xlu0 %3933
        %3935 = vrot.lane.b32.xlu0 %v3920, 32
        %v3936 = vpop.permute.xlu0 %3935
        %3945 = vst.msk [vmem:[#allocation5] sm:$0xf] %vm2713, %v3922
        %3946 = vst.msk [vmem:[#allocation5 + $0x14] sm:$0xf] %vm2713, %v3924
        %3947 = vst.msk [vmem:[#allocation5 + $0x28] sm:$0xf] %vm2713, %v3926
        %3948 = vst.msk [vmem:[#allocation5 + $0x3c] sm:$0xf] %vm2713, %v3928
        %3949 = vst.msk [vmem:[#allocation5 + $0x50] sm:$0xf] %vm2713, %v3930
        %3950 = vst.msk [vmem:[#allocation5 + $0x64] sm:$0xf] %vm2713, %v3932
        %3951 = vst.msk [vmem:[#allocation5 + $0x78] sm:$0xf] %vm2713, %v3934
        %3952 = vst.msk [vmem:[#allocation5 + $0x8c] sm:$0xf] %vm2713, %v3936
        %v3953 = vld [vmem:[#allocation5] sm:$0xf]
        %v3954 = vld [vmem:[#allocation5 + $0x14] sm:$0xf]
        %v3955 = vld [vmem:[#allocation5 + $0x28] sm:$0xf]
        %v3956 = vld [vmem:[#allocation5 + $0x3c] sm:$0xf]
        %v3957 = vld [vmem:[#allocation5 + $0x50] sm:$0xf]
        %v3958 = vld [vmem:[#allocation5 + $0x64] sm:$0xf]
        %v3959 = vld [vmem:[#allocation5 + $0x78] sm:$0xf]
        %v3960 = vld [vmem:[#allocation5 + $0x8c] sm:$0xf]
        %v3961 = vld [vmem:[%s1] sm:$0xf]
        %v3962 = vld [vmem:[%s1 + $0x4] sm:$0xf]
        %v3963 = vld [vmem:[%s1 + $0x8] sm:$0xf]
        %v3964 = vld [vmem:[%s1 + $0xc] sm:$0xf]
        %v3965 = vld [vmem:[%s1 + $0x10] sm:$0xf]
        %v3966 = vld [vmem:[%s1 + $0x14] sm:$0xf]
        %v3967 = vld [vmem:[%s1 + $0x18] sm:$0xf]
        %v3968 = vld [vmem:[%s1 + $0x1c] sm:$0xf]
        %v3969 = vld [vmem:[%s1 + $0x20] sm:$0xf]
        %v3970 = vld [vmem:[%s1 + $0x24] sm:$0xf]
        %v3971 = vld [vmem:[%s1 + $0x28] sm:$0xf]
        %v3972 = vld [vmem:[%s1 + $0x2c] sm:$0xf]
        %v3973 = vld [vmem:[%s1 + $0x30] sm:$0xf]
        %v3974 = vld [vmem:[%s1 + $0x34] sm:$0xf]
        %v3975 = vld [vmem:[%s1 + $0x38] sm:$0xf]
        %v3976 = vld [vmem:[%s1 + $0x3c] sm:$0xf]
        %v3977 = vld [vmem:[%s2] sm:$0x1]
        %v3979 = vlaneseq
        %v3980 = vshrl.u32 %v3979, 7
        %v3981 = vsub.s32 0, %v3980
        %v3982 = vrot.slane %v3977, %v3981
        %v3992 = vunpack.c.l.b16 %v3953
        %v3993 = vunpack.c.l.b16 %v3954
        %v3994 = vunpack.c.l.b16 %v3955
        %v3995 = vunpack.c.l.b16 %v3956
        %v3996 = vunpack.c.l.b16 %v3957
        %v3997 = vunpack.c.l.b16 %v3958
        %v3998 = vunpack.c.l.b16 %v3959
        %v3999 = vunpack.c.l.b16 %v3960
        %v4000 = vpack.c.b16 %v3993, %v3992
        %v4001 = vpack.c.b16 %v3995, %v3994
        %v4002 = vpack.c.b16 %v3997, %v3996
        %v4003 = vpack.c.b16 %v3999, %v3998
        %v4024 = vunpack.c.l.b16 %v3961
        %v4025 = vunpack.c.l.b16 %v3962
        %v4026 = vunpack.c.l.b16 %v3963
        %v4027 = vunpack.c.l.b16 %v3964
        %v4028 = vunpack.c.l.b16 %v3965
        %v4029 = vunpack.c.l.b16 %v3966
        %v4030 = vunpack.c.l.b16 %v3967
        %v4031 = vunpack.c.l.b16 %v3968
        %v4032 = vunpack.c.l.b16 %v3969
        %v4033 = vunpack.c.l.b16 %v3970
        %v4034 = vunpack.c.l.b16 %v3971
        %v4035 = vunpack.c.l.b16 %v3972
        %v4036 = vunpack.c.l.b16 %v3973
        %v4037 = vunpack.c.l.b16 %v3974
        %v4038 = vunpack.c.l.b16 %v3975
        %v4039 = vunpack.c.l.b16 %v3976
        %v4040 = vpack.c.b16 %v4025, %v4024
        %v4041 = vpack.c.b16 %v4027, %v4026
        %v4042 = vpack.c.b16 %v4029, %v4028
        %v4043 = vpack.c.b16 %v4031, %v4030
        %v4044 = vpack.c.b16 %v4033, %v4032
        %v4045 = vpack.c.b16 %v4035, %v4034
        %v4046 = vpack.c.b16 %v4037, %v4036
        %v4047 = vpack.c.b16 %v4039, %v4038
        %4056 = vmatprep.subr.bf16.mxu0 0
        %4057 = vmatpush1.bf16.msra.mxu0 %v4047
        %4058 = vmatprep.subr.bf16.mxu0 0
        %4059 = vmatpush1.bf16.msra.mxu0 %v4046
        %4060 = vmatprep.subr.bf16.mxu0 0
        %4061 = vmatpush1.bf16.msra.mxu0 %v4045
        %4062 = vmatprep.subr.bf16.mxu0 0
        %4063 = vmatpush1.bf16.msra.mxu0 %v4044
        %4064 = vmatprep.subr.bf16.mxu0 0
        %4065 = vmatpush1.bf16.msra.mxu0 %v4043
        %4066 = vmatprep.subr.bf16.mxu0 0
        %4067 = vmatpush1.bf16.msra.mxu0 %v4042
        %4068 = vmatprep.subr.bf16.mxu0 0
        %4069 = vmatpush1.bf16.msra.mxu0 %v4041
        %4070 = vmatprep.subr.bf16.mxu0 0
        %4071 = vmatpush1.bf16.msra.mxu0 %v4040
        %4072 = vmatprep.subr.bf16.mxu0 0
        %4073 = vmatpush2.bf16.msra.mxu0 0
        %4074 = vmatprep.subr.bf16.mxu0 0
        %4075 = vmatpush2.bf16.msra.mxu0 0
        %4076 = vmatprep.subr.bf16.mxu0 0
        %4077 = vmatpush2.bf16.msra.mxu0 0
        %4078 = vmatprep.subr.bf16.mxu0 0
        %4079 = vmatpush2.bf16.msra.mxu0 0
        %4080 = vmatprep.subr.bf16.mxu0 0
        %4081 = vmatpush2.bf16.msra.mxu0 0
        %4082 = vmatprep.subr.bf16.mxu0 0
        %4083 = vmatpush2.bf16.msra.mxu0 0
        %4084 = vmatprep.subr.bf16.mxu0 0
        %4085 = vmatpush2.bf16.msra.mxu0 0
        %4086 = vmatprep.subr.bf16.mxu0 0
        %4087 = vmatpush2.bf16.msra.mxu0 0
        %4088 = vmatprep.mubr.bf16.mxu0 0
        %4089 = vmatmul.mubr.bf16.gmra.mxu0 %v4000
        %v4090 = vpop.f32.mrf.mxu0
        %v4091 = vadd.f32 %v3982, %v4090
        %v4092 = vpop.f32.mrf.mxu0
        %v4093 = vpop.f32.mrf.mxu0
        %v4094 = vadd.f32 %v3982, %v4093
        %v4095 = vpop.f32.mrf.mxu0
        %4096 = vmatprep.mubr.bf16.mxu0 0
        %4097 = vmatmul.mubr.bf16.gmra.mxu0 %v4001
        %v4098 = vpop.f32.mrf.mxu0
        %v4099 = vadd.f32 %v3982, %v4098
        %v4100 = vpop.f32.mrf.mxu0
        %v4101 = vpop.f32.mrf.mxu0
        %v4102 = vadd.f32 %v3982, %v4101
        %v4103 = vpop.f32.mrf.mxu0
        %4104 = vmatprep.mubr.bf16.mxu0 0
        %4105 = vmatmul.mubr.bf16.gmra.mxu0 %v4002
        %v4106 = vpop.f32.mrf.mxu0
        %v4107 = vadd.f32 %v3982, %v4106
        %v4108 = vpop.f32.mrf.mxu0
        %v4109 = vpop.f32.mrf.mxu0
        %v4110 = vadd.f32 %v3982, %v4109
        %v4111 = vpop.f32.mrf.mxu0
        %4112 = vmatprep.mubr.bf16.mxu0 0
        %4113 = vmatmul.mubr.bf16.gmra.mxu0 %v4003
        %v4114 = vpop.f32.mrf.mxu0
        %v4115 = vadd.f32 %v3982, %v4114
        %v4116 = vpop.f32.mrf.mxu0
        %v4117 = vpop.f32.mrf.mxu0
        %v4118 = vadd.f32 %v3982, %v4117
        %v4119 = vpop.f32.mrf.mxu0
        %4120 = vdwg.mxu0
        %v4121 = vmax.f32 %v4091, 0.0
        %v4122 = vmax.f32 %v4094, 0.0
        %v4123 = vmax.f32 %v4099, 0.0
        %v4124 = vmax.f32 %v4102, 0.0
        %v4125 = vmax.f32 %v4107, 0.0
        %v4126 = vmax.f32 %v4110, 0.0
        %v4127 = vmax.f32 %v4115, 0.0
        %v4128 = vmax.f32 %v4118, 0.0
        %v4129 = vpack.c.bf16 %v4122, %v4121
        %v4130 = vpack.c.bf16 %v4124, %v4123
        %v4131 = vpack.c.bf16 %v4126, %v4125
        %v4132 = vpack.c.bf16 %v4128, %v4127
        %v4137 = vunpack.c.l.b16 %v4129
        %v4138 = vunpack.c.h.b16 %v4129
        %v4139 = vunpack.c.l.b16 %v4130
        %v4140 = vunpack.c.h.b16 %v4130
        %v4141 = vunpack.c.l.b16 %v4131
        %v4142 = vunpack.c.h.b16 %v4131
        %v4143 = vunpack.c.l.b16 %v4132
        %v4144 = vunpack.c.h.b16 %v4132
        %v4145 = vpack.c.b16 %v4137, %v4137
        %v4146 = vpack.c.b16 %v4138, %v4138
        %v4147 = vpack.c.b16 %v4139, %v4139
        %v4148 = vpack.c.b16 %v4140, %v4140
        %v4149 = vpack.c.b16 %v4141, %v4141
        %v4150 = vpack.c.b16 %v4142, %v4142
        %v4151 = vpack.c.b16 %v4143, %v4143
        %v4152 = vpack.c.b16 %v4144, %v4144
        %v4154 = vshrl.u32 %v4145, 16
        %v4156 = vrot.slane %v4154, 7
        %v4157 = vshll.u32 %v4145, 16
        %v4159 = vor.u32 %v4156, %v4157
        %v4160 = vrot.slane %v4156, 4
        %v4162 = vshrl.u32 %v4146, 16
        %v4164 = vrot.slane %v4162, 7
        %v4165 = vshll.u32 %v4146, 16
        %v4167 = vor.u32 %v4164, %v4165
        %v4168 = vsel %vm594, %v4160, %v4167
        %v4169 = vrot.slane %v4164, 4
        %v4171 = vshrl.u32 %v4147, 16
        %v4173 = vrot.slane %v4171, 7
        %v4174 = vshll.u32 %v4147, 16
        %v4176 = vor.u32 %v4173, %v4174
        %v4177 = vrot.slane %v4173, 4
        %v4179 = vshrl.u32 %v4148, 16
        %v4181 = vrot.slane %v4179, 7
        %v4182 = vshll.u32 %v4148, 16
        %v4184 = vor.u32 %v4181, %v4182
        %v4185 = vsel %vm594, %v4177, %v4184
        %v4186 = vrot.slane %v4181, 4
        %v4188 = vshrl.u32 %v4149, 16
        %v4190 = vrot.slane %v4188, 7
        %v4191 = vshll.u32 %v4149, 16
        %v4193 = vor.u32 %v4190, %v4191
        %v4194 = vrot.slane %v4190, 4
        %v4196 = vshrl.u32 %v4150, 16
        %v4198 = vrot.slane %v4196, 7
        %v4199 = vshll.u32 %v4150, 16
        %v4201 = vor.u32 %v4198, %v4199
        %v4202 = vsel %vm594, %v4194, %v4201
        %v4203 = vrot.slane %v4198, 4
        %v4205 = vshrl.u32 %v4151, 16
        %v4207 = vrot.slane %v4205, 7
        %v4208 = vshll.u32 %v4151, 16
        %v4210 = vor.u32 %v4207, %v4208
        %v4211 = vrot.slane %v4207, 4
        %v4213 = vshrl.u32 %v4152, 16
        %v4215 = vrot.slane %v4213, 7
        %v4216 = vshll.u32 %v4152, 16
        %v4218 = vor.u32 %v4215, %v4216
        %v4219 = vsel %vm594, %v4211, %v4218
        %v4220 = vrot.slane %v4215, 4
        %s4233 = scalar_lea.vmem [#allocation3], 96
        %v4234 = vld [vmem:[%s4233] sm:$0xf]
        %v4235 = vsel %vm3187, %v4159, %v4234
        %4236 = vst [vmem:[%s4233] sm:$0xf] %v4235
        %4237 = vst.msk [vmem:[%s4233 + $0x4] sm:$0xf] %vm3191, %v4168
        %v4238 = vld [vmem:[%s4233 + $0x8] sm:$0x1]
        %v4239 = vsel %vm432, %v4169, %v4238
        %4240 = vst [vmem:[%s4233 + $0x8] sm:$0x1] %v4239
        %v4241 = vld [vmem:[%s4233 + $0xc] sm:$0xf]
        %v4242 = vsel %vm3187, %v4176, %v4241
        %4243 = vst [vmem:[%s4233 + $0xc] sm:$0xf] %v4242
        %4244 = vst.msk [vmem:[%s4233 + $0x10] sm:$0xf] %vm3191, %v4185
        %v4245 = vld [vmem:[%s4233 + $0x14] sm:$0x1]
        %v4246 = vsel %vm432, %v4186, %v4245
        %4247 = vst [vmem:[%s4233 + $0x14] sm:$0x1] %v4246
        %v4248 = vld [vmem:[%s4233 + $0x18] sm:$0xf]
        %v4249 = vsel %vm3187, %v4193, %v4248
        %4250 = vst [vmem:[%s4233 + $0x18] sm:$0xf] %v4249
        %4251 = vst.msk [vmem:[%s4233 + $0x1c] sm:$0xf] %vm3191, %v4202
        %v4252 = vld [vmem:[%s4233 + $0x20] sm:$0x1]
        %v4253 = vsel %vm432, %v4203, %v4252
        %4254 = vst [vmem:[%s4233 + $0x20] sm:$0x1] %v4253
        %v4255 = vld [vmem:[%s4233 + $0x24] sm:$0xf]
        %v4256 = vsel %vm3187, %v4210, %v4255
        %4257 = vst [vmem:[%s4233 + $0x24] sm:$0xf] %v4256
        %4258 = vst.msk [vmem:[%s4233 + $0x28] sm:$0xf] %vm3191, %v4219
        %v4259 = vld [vmem:[%s4233 + $0x2c] sm:$0x1]
        %v4260 = vsel %vm432, %v4220, %v4259
        %4261 = vst [vmem:[%s4233 + $0x2c] sm:$0x1] %v4260
        %p4262 = scmp.eq.s32.totalorder %s26, 0
        // Predicated region
        $region49: #{feature_extractor_nhwc.1} parent=47 // pred_check
          %p4263 = pneg %p4262
        $region50: #{feature_extractor_nhwc.1} parent=47 // pred_check_branch
          %4265 = sbr.rel (%p4263) target = $region52
        $region51: #{feature_extractor_nhwc.1} parent=47 // pred_region
          %4266 = vst.msk [vmem:[#allocation3] sm:$0xf] %vm3191, 0
          %4267 = vst.msk [vmem:[#allocation3 + $0x4] sm:$0xf] %vm3191, 0
          %vm4268 = vcmask 253952
          %4269 = vst.msk [vmem:[#allocation3 + $0x8] sm:$0x1] %vm4268, 0
          %4270 = vst.msk [vmem:[#allocation3 + $0xc] sm:$0xf] %vm3191, 0
          %4271 = vst.msk [vmem:[#allocation3 + $0x10] sm:$0xf] %vm3191, 0
          %4272 = vst.msk [vmem:[#allocation3 + $0x14] sm:$0x1] %vm4268, 0
        $region52: #{feature_extractor_nhwc.1} parent=47 // pred_fallthru
          _
        %p4273 = scmp.eq.s32.totalorder %s26, 1
        // Predicated region
        $region53: #{feature_extractor_nhwc.1} parent=47 // pred_check
          %p4274 = pneg %p4273
        $region54: #{feature_extractor_nhwc.1} parent=47 // pred_check_branch
          %4276 = sbr.rel (%p4274) target = $region56
        $region55: #{feature_extractor_nhwc.1} parent=47 // pred_region
          %s4277 = scalar_lea.vmem [#allocation3], 120
          %4278 = vst.msk [vmem:[%s4277] sm:$0xf] %vm3191, 0
          %4279 = vst.msk [vmem:[%s4277 + $0x4] sm:$0xf] %vm3191, 0
          %vm4280 = vcmask 253952
          %4281 = vst.msk [vmem:[%s4277 + $0x8] sm:$0x1] %vm4280, 0
          %4282 = vst.msk [vmem:[%s4277 + $0xc] sm:$0xf] %vm3191, 0
          %4283 = vst.msk [vmem:[%s4277 + $0x10] sm:$0xf] %vm3191, 0
          %4284 = vst.msk [vmem:[%s4277 + $0x14] sm:$0x1] %vm4280, 0
        $region56: #{feature_extractor_nhwc.1} parent=47 // pred_fallthru
          _
        %v4285 = vld [vmem:[#allocation3] sm:$0xf]
        %v4286 = vld [vmem:[#allocation3 + $0x4] sm:$0xf]
        %v4287 = vld [vmem:[#allocation3 + $0x8] sm:$0x1]
        %v4288 = vld [vmem:[#allocation3 + $0xc] sm:$0xf]
        %v4289 = vld [vmem:[#allocation3 + $0x10] sm:$0xf]
        %v4290 = vld [vmem:[#allocation3 + $0x14] sm:$0x1]
        %v4291 = vld [vmem:[#allocation3 + $0x18] sm:$0xf]
        %v4292 = vld [vmem:[#allocation3 + $0x1c] sm:$0xf]
        %v4293 = vld [vmem:[#allocation3 + $0x20] sm:$0x1]
        %v4294 = vld [vmem:[#allocation3 + $0x24] sm:$0xf]
        %v4295 = vld [vmem:[#allocation3 + $0x28] sm:$0xf]
        %v4296 = vld [vmem:[#allocation3 + $0x2c] sm:$0x1]
        %v4297 = vld [vmem:[#allocation3 + $0x30] sm:$0xf]
        %v4298 = vld [vmem:[#allocation3 + $0x34] sm:$0xf]
        %v4299 = vld [vmem:[#allocation3 + $0x38] sm:$0x1]
        %v4300 = vld [vmem:[#allocation3 + $0x3c] sm:$0xf]
        %v4301 = vld [vmem:[#allocation3 + $0x40] sm:$0xf]
        %v4302 = vld [vmem:[#allocation3 + $0x44] sm:$0x1]
        %v4303 = vld [vmem:[#allocation3 + $0x48] sm:$0xf]
        %v4304 = vld [vmem:[#allocation3 + $0x4c] sm:$0xf]
        %v4305 = vld [vmem:[#allocation3 + $0x50] sm:$0x1]
        %v4306 = vld [vmem:[#allocation3 + $0x54] sm:$0xf]
        %v4307 = vld [vmem:[#allocation3 + $0x58] sm:$0xf]
        %v4308 = vld [vmem:[#allocation3 + $0x5c] sm:$0x1]
        %4309 = vst.msk [vmem:[#allocation5] sm:$0xf] %vm3191, %v4285
        %4310 = vst.msk [vmem:[#allocation5 + $0x14] sm:$0xf] %vm3191, %v4286
        %4311 = vst.msk [vmem:[#allocation5 + $0x28] sm:$0xf] %vm3191, %v4288
        %4312 = vst.msk [vmem:[#allocation5 + $0x3c] sm:$0xf] %vm3191, %v4289
        %4313 = vst.msk [vmem:[#allocation5 + $0x50] sm:$0xf] %vm3191, %v4291
        %4314 = vst.msk [vmem:[#allocation5 + $0x64] sm:$0xf] %vm3191, %v4292
        %4315 = vst.msk [vmem:[#allocation5 + $0x78] sm:$0xf] %vm3191, %v4294
        %4316 = vst.msk [vmem:[#allocation5 + $0x8c] sm:$0xf] %vm3191, %v4295
        %4317 = vst.msk [vmem:[#allocation5 + $0xa0] sm:$0xf] %vm3191, %v4297
        %4318 = vst.msk [vmem:[#allocation5 + $0xb4] sm:$0xf] %vm3191, %v4298
        %4319 = vst.msk [vmem:[#allocation5 + $0xc8] sm:$0xf] %vm3191, %v4300
        %4320 = vst.msk [vmem:[#allocation5 + $0xdc] sm:$0xf] %vm3191, %v4301
        %4321 = vst.msk [vmem:[#allocation5 + $0xf0] sm:$0xf] %vm3191, %v4303
        %4322 = vst.msk [vmem:[#allocation5 + $0x104] sm:$0xf] %vm3191, %v4304
        %4323 = vst.msk [vmem:[#allocation5 + $0x118] sm:$0xf] %vm3191, %v4306
        %4324 = vst.msk [vmem:[#allocation5 + $0x12c] sm:$0xf] %vm3191, %v4307
        %v4326 = vshrl.u32 %v4285, 16
        %v4328 = vrot.slane %v4326, 4
        %v4329 = vshll.u32 %v4285, 16
        %v4331 = vrot.slane %v4329, 5
        %v4332 = vor.u32 %v4328, %v4331
        %v4333 = vrot.slane %v4332, 4
        %v4335 = vshll.u32 %v4286, 16
        %v4337 = vrot.slane %v4335, 5
        %v4338 = vsel %vm1342, %v4333, %v4337
        %v4339 = vshrl.u32 %v4286, 16
        %v4341 = vrot.slane %v4339, 4
        %v4342 = vor.u32 %v4341, %v4337
        %v4343 = vrot.slane %v4342, 4
        %v4345 = vshll.u32 %v4287, 16
        %v4347 = vrot.slane %v4345, 5
        %v4348 = vsel %vm1342, %v4343, %v4347
        %v4350 = vshrl.u32 %v4288, 16
        %v4352 = vrot.slane %v4350, 4
        %v4353 = vshll.u32 %v4288, 16
        %v4355 = vrot.slane %v4353, 5
        %v4356 = vor.u32 %v4352, %v4355
        %v4357 = vrot.slane %v4356, 4
        %v4359 = vshll.u32 %v4289, 16
        %v4361 = vrot.slane %v4359, 5
        %v4362 = vsel %vm1342, %v4357, %v4361
        %v4363 = vshrl.u32 %v4289, 16
        %v4365 = vrot.slane %v4363, 4
        %v4366 = vor.u32 %v4365, %v4361
        %v4367 = vrot.slane %v4366, 4
        %v4369 = vshll.u32 %v4290, 16
        %v4371 = vrot.slane %v4369, 5
        %v4372 = vsel %vm1342, %v4367, %v4371
        %v4374 = vshrl.u32 %v4291, 16
        %v4376 = vrot.slane %v4374, 4
        %v4377 = vshll.u32 %v4291, 16
        %v4379 = vrot.slane %v4377, 5
        %v4380 = vor.u32 %v4376, %v4379
        %v4381 = vrot.slane %v4380, 4
        %v4383 = vshll.u32 %v4292, 16
        %v4385 = vrot.slane %v4383, 5
        %v4386 = vsel %vm1342, %v4381, %v4385
        %v4387 = vshrl.u32 %v4292, 16
        %v4389 = vrot.slane %v4387, 4
        %v4390 = vor.u32 %v4389, %v4385
        %v4391 = vrot.slane %v4390, 4
        %v4393 = vshll.u32 %v4293, 16
        %v4395 = vrot.slane %v4393, 5
        %v4396 = vsel %vm1342, %v4391, %v4395
        %v4398 = vshrl.u32 %v4294, 16
        %v4400 = vrot.slane %v4398, 4
        %v4401 = vshll.u32 %v4294, 16
        %v4403 = vrot.slane %v4401, 5
        %v4404 = vor.u32 %v4400, %v4403
        %v4405 = vrot.slane %v4404, 4
        %v4407 = vshll.u32 %v4295, 16
        %v4409 = vrot.slane %v4407, 5
        %v4410 = vsel %vm1342, %v4405, %v4409
        %v4411 = vshrl.u32 %v4295, 16
        %v4413 = vrot.slane %v4411, 4
        %v4414 = vor.u32 %v4413, %v4409
        %v4415 = vrot.slane %v4414, 4
        %v4417 = vshll.u32 %v4296, 16
        %v4419 = vrot.slane %v4417, 5
        %v4420 = vsel %vm1342, %v4415, %v4419
        %v4422 = vshrl.u32 %v4297, 16
        %v4424 = vrot.slane %v4422, 4
        %v4425 = vshll.u32 %v4297, 16
        %v4427 = vrot.slane %v4425, 5
        %v4428 = vor.u32 %v4424, %v4427
        %v4429 = vrot.slane %v4428, 4
        %v4431 = vshll.u32 %v4298, 16
        %v4433 = vrot.slane %v4431, 5
        %v4434 = vsel %vm1342, %v4429, %v4433
        %v4435 = vshrl.u32 %v4298, 16
        %v4437 = vrot.slane %v4435, 4
        %v4438 = vor.u32 %v4437, %v4433
        %v4439 = vrot.slane %v4438, 4
        %v4441 = vshll.u32 %v4299, 16
        %v4443 = vrot.slane %v4441, 5
        %v4444 = vsel %vm1342, %v4439, %v4443
        %v4446 = vshrl.u32 %v4300, 16
        %v4448 = vrot.slane %v4446, 4
        %v4449 = vshll.u32 %v4300, 16
        %v4451 = vrot.slane %v4449, 5
        %v4452 = vor.u32 %v4448, %v4451
        %v4453 = vrot.slane %v4452, 4
        %v4455 = vshll.u32 %v4301, 16
        %v4457 = vrot.slane %v4455, 5
        %v4458 = vsel %vm1342, %v4453, %v4457
        %v4459 = vshrl.u32 %v4301, 16
        %v4461 = vrot.slane %v4459, 4
        %v4462 = vor.u32 %v4461, %v4457
        %v4463 = vrot.slane %v4462, 4
        %v4465 = vshll.u32 %v4302, 16
        %v4467 = vrot.slane %v4465, 5
        %v4468 = vsel %vm1342, %v4463, %v4467
        %v4470 = vshrl.u32 %v4303, 16
        %v4472 = vrot.slane %v4470, 4
        %v4473 = vshll.u32 %v4303, 16
        %v4475 = vrot.slane %v4473, 5
        %v4476 = vor.u32 %v4472, %v4475
        %v4477 = vrot.slane %v4476, 4
        %v4479 = vshll.u32 %v4304, 16
        %v4481 = vrot.slane %v4479, 5
        %v4482 = vsel %vm1342, %v4477, %v4481
        %v4483 = vshrl.u32 %v4304, 16
        %v4485 = vrot.slane %v4483, 4
        %v4486 = vor.u32 %v4485, %v4481
        %v4487 = vrot.slane %v4486, 4
        %v4489 = vshll.u32 %v4305, 16
        %v4491 = vrot.slane %v4489, 5
        %v4492 = vsel %vm1342, %v4487, %v4491
        %v4494 = vshrl.u32 %v4306, 16
        %v4496 = vrot.slane %v4494, 4
        %v4497 = vshll.u32 %v4306, 16
        %v4499 = vrot.slane %v4497, 5
        %v4500 = vor.u32 %v4496, %v4499
        %v4501 = vrot.slane %v4500, 4
        %v4503 = vshll.u32 %v4307, 16
        %v4505 = vrot.slane %v4503, 5
        %v4506 = vsel %vm1342, %v4501, %v4505
        %v4507 = vshrl.u32 %v4307, 16
        %v4509 = vrot.slane %v4507, 4
        %v4510 = vor.u32 %v4509, %v4505
        %v4511 = vrot.slane %v4510, 4
        %v4513 = vshll.u32 %v4308, 16
        %v4515 = vrot.slane %v4513, 5
        %v4516 = vsel %vm1342, %v4511, %v4515
        %4517 = vrot.lane.b32.xlu0 %v4338, 32
        %v4518 = vpop.permute.xlu0 %4517
        %4519 = vrot.lane.b32.xlu0 %v4348, 32
        %v4520 = vpop.permute.xlu0 %4519
        %4521 = vrot.lane.b32.xlu0 %v4362, 32
        %v4522 = vpop.permute.xlu0 %4521
        %4523 = vrot.lane.b32.xlu0 %v4372, 32
        %v4524 = vpop.permute.xlu0 %4523
        %4525 = vrot.lane.b32.xlu0 %v4386, 32
        %v4526 = vpop.permute.xlu0 %4525
        %4527 = vrot.lane.b32.xlu0 %v4396, 32
        %v4528 = vpop.permute.xlu0 %4527
        %4529 = vrot.lane.b32.xlu0 %v4410, 32
        %v4530 = vpop.permute.xlu0 %4529
        %4531 = vrot.lane.b32.xlu0 %v4420, 32
        %v4532 = vpop.permute.xlu0 %4531
        %4533 = vrot.lane.b32.xlu0 %v4434, 32
        %v4534 = vpop.permute.xlu0 %4533
        %4535 = vrot.lane.b32.xlu0 %v4444, 32
        %v4536 = vpop.permute.xlu0 %4535
        %4537 = vrot.lane.b32.xlu0 %v4458, 32
        %v4538 = vpop.permute.xlu0 %4537
        %4539 = vrot.lane.b32.xlu0 %v4468, 32
        %v4540 = vpop.permute.xlu0 %4539
        %4541 = vrot.lane.b32.xlu0 %v4482, 32
        %v4542 = vpop.permute.xlu0 %4541
        %4543 = vrot.lane.b32.xlu0 %v4492, 32
        %v4544 = vpop.permute.xlu0 %4543
        %4545 = vrot.lane.b32.xlu0 %v4506, 32
        %v4546 = vpop.permute.xlu0 %4545
        %4547 = vrot.lane.b32.xlu0 %v4516, 32
        %v4548 = vpop.permute.xlu0 %4547
        %vm4565 = vcmask 519424
        %4566 = vst.msk [vmem:[#allocation5] sm:$0xf] %vm4565, %v4518
        %4567 = vst.msk [vmem:[#allocation5 + $0x14] sm:$0xf] %vm4565, %v4520
        %4568 = vst.msk [vmem:[#allocation5 + $0x28] sm:$0xf] %vm4565, %v4522
        %4569 = vst.msk [vmem:[#allocation5 + $0x3c] sm:$0xf] %vm4565, %v4524
        %4570 = vst.msk [vmem:[#allocation5 + $0x50] sm:$0xf] %vm4565, %v4526
        %4571 = vst.msk [vmem:[#allocation5 + $0x64] sm:$0xf] %vm4565, %v4528
        %4572 = vst.msk [vmem:[#allocation5 + $0x78] sm:$0xf] %vm4565, %v4530
        %4573 = vst.msk [vmem:[#allocation5 + $0x8c] sm:$0xf] %vm4565, %v4532
        %4574 = vst.msk [vmem:[#allocation5 + $0xa0] sm:$0xf] %vm4565, %v4534
        %4575 = vst.msk [vmem:[#allocation5 + $0xb4] sm:$0xf] %vm4565, %v4536
        %4576 = vst.msk [vmem:[#allocation5 + $0xc8] sm:$0xf] %vm4565, %v4538
        %4577 = vst.msk [vmem:[#allocation5 + $0xdc] sm:$0xf] %vm4565, %v4540
        %4578 = vst.msk [vmem:[#allocation5 + $0xf0] sm:$0xf] %vm4565, %v4542
        %4579 = vst.msk [vmem:[#allocation5 + $0x104] sm:$0xf] %vm4565, %v4544
        %4580 = vst.msk [vmem:[#allocation5 + $0x118] sm:$0xf] %vm4565, %v4546
        %4581 = vst.msk [vmem:[#allocation5 + $0x12c] sm:$0xf] %vm4565, %v4548
        %v4606 = vrot.slane %v4285, 5
        %v4607 = vrot.slane %v4606, 4
        %v4608 = vrot.slane %v4286, 5
        %v4609 = vsel %vm1626, %v4607, %v4608
        %v4610 = vrot.slane %v4608, 4
        %v4611 = vrot.slane %v4287, 5
        %v4612 = vsel %vm1626, %v4610, %v4611
        %v4613 = vrot.slane %v4288, 5
        %v4614 = vrot.slane %v4613, 4
        %v4615 = vrot.slane %v4289, 5
        %v4616 = vsel %vm1626, %v4614, %v4615
        %v4617 = vrot.slane %v4615, 4
        %v4618 = vrot.slane %v4290, 5
        %v4619 = vsel %vm1626, %v4617, %v4618
        %v4620 = vrot.slane %v4291, 5
        %v4621 = vrot.slane %v4620, 4
        %v4622 = vrot.slane %v4292, 5
        %v4623 = vsel %vm1626, %v4621, %v4622
        %v4624 = vrot.slane %v4622, 4
        %v4625 = vrot.slane %v4293, 5
        %v4626 = vsel %vm1626, %v4624, %v4625
        %v4627 = vrot.slane %v4294, 5
        %v4628 = vrot.slane %v4627, 4
        %v4629 = vrot.slane %v4295, 5
        %v4630 = vsel %vm1626, %v4628, %v4629
        %v4631 = vrot.slane %v4629, 4
        %v4632 = vrot.slane %v4296, 5
        %v4633 = vsel %vm1626, %v4631, %v4632
        %v4634 = vrot.slane %v4297, 5
        %v4635 = vrot.slane %v4634, 4
        %v4636 = vrot.slane %v4298, 5
        %v4637 = vsel %vm1626, %v4635, %v4636
        %v4638 = vrot.slane %v4636, 4
        %v4639 = vrot.slane %v4299, 5
        %v4640 = vsel %vm1626, %v4638, %v4639
        %v4641 = vrot.slane %v4300, 5
        %v4642 = vrot.slane %v4641, 4
        %v4643 = vrot.slane %v4301, 5
        %v4644 = vsel %vm1626, %v4642, %v4643
        %v4645 = vrot.slane %v4643, 4
        %v4646 = vrot.slane %v4302, 5
        %v4647 = vsel %vm1626, %v4645, %v4646
        %v4648 = vrot.slane %v4303, 5
        %v4649 = vrot.slane %v4648, 4
        %v4650 = vrot.slane %v4304, 5
        %v4651 = vsel %vm1626, %v4649, %v4650
        %v4652 = vrot.slane %v4650, 4
        %v4653 = vrot.slane %v4305, 5
        %v4654 = vsel %vm1626, %v4652, %v4653
        %v4655 = vrot.slane %v4306, 5
        %v4656 = vrot.slane %v4655, 4
        %v4657 = vrot.slane %v4307, 5
        %v4658 = vsel %vm1626, %v4656, %v4657
        %v4659 = vrot.slane %v4657, 4
        %v4660 = vrot.slane %v4308, 5
        %v4661 = vsel %vm1626, %v4659, %v4660
        %4662 = vrot.lane.b32.xlu0 %v4609, 64
        %v4663 = vpop.permute.xlu0 %4662
        %4664 = vrot.lane.b32.xlu0 %v4612, 64
        %v4665 = vpop.permute.xlu0 %4664
        %4666 = vrot.lane.b32.xlu0 %v4616, 64
        %v4667 = vpop.permute.xlu0 %4666
        %4668 = vrot.lane.b32.xlu0 %v4619, 64
        %v4669 = vpop.permute.xlu0 %4668
        %4670 = vrot.lane.b32.xlu0 %v4623, 64
        %v4671 = vpop.permute.xlu0 %4670
        %4672 = vrot.lane.b32.xlu0 %v4626, 64
        %v4673 = vpop.permute.xlu0 %4672
        %4674 = vrot.lane.b32.xlu0 %v4630, 64
        %v4675 = vpop.permute.xlu0 %4674
        %4676 = vrot.lane.b32.xlu0 %v4633, 64
        %v4677 = vpop.permute.xlu0 %4676
        %4678 = vrot.lane.b32.xlu0 %v4637, 64
        %v4679 = vpop.permute.xlu0 %4678
        %4680 = vrot.lane.b32.xlu0 %v4640, 64
        %v4681 = vpop.permute.xlu0 %4680
        %4682 = vrot.lane.b32.xlu0 %v4644, 64
        %v4683 = vpop.permute.xlu0 %4682
        %4684 = vrot.lane.b32.xlu0 %v4647, 64
        %v4685 = vpop.permute.xlu0 %4684
        %4686 = vrot.lane.b32.xlu0 %v4651, 64
        %v4687 = vpop.permute.xlu0 %4686
        %4688 = vrot.lane.b32.xlu0 %v4654, 64
        %v4689 = vpop.permute.xlu0 %4688
        %4690 = vrot.lane.b32.xlu0 %v4658, 64
        %v4691 = vpop.permute.xlu0 %4690
        %4692 = vrot.lane.b32.xlu0 %v4661, 64
        %v4693 = vpop.permute.xlu0 %4692
        %vm4710 = vcmask 781824
        %4711 = vst.msk [vmem:[#allocation5] sm:$0xf] %vm4710, %v4663
        %4712 = vst.msk [vmem:[#allocation5 + $0x14] sm:$0xf] %vm4710, %v4665
        %4713 = vst.msk [vmem:[#allocation5 + $0x28] sm:$0xf] %vm4710, %v4667
        %4714 = vst.msk [vmem:[#allocation5 + $0x3c] sm:$0xf] %vm4710, %v4669
        %4715 = vst.msk [vmem:[#allocation5 + $0x50] sm:$0xf] %vm4710, %v4671
        %4716 = vst.msk [vmem:[#allocation5 + $0x64] sm:$0xf] %vm4710, %v4673
        %4717 = vst.msk [vmem:[#allocation5 + $0x78] sm:$0xf] %vm4710, %v4675
        %4718 = vst.msk [vmem:[#allocation5 + $0x8c] sm:$0xf] %vm4710, %v4677
        %4719 = vst.msk [vmem:[#allocation5 + $0xa0] sm:$0xf] %vm4710, %v4679
        %4720 = vst.msk [vmem:[#allocation5 + $0xb4] sm:$0xf] %vm4710, %v4681
        %4721 = vst.msk [vmem:[#allocation5 + $0xc8] sm:$0xf] %vm4710, %v4683
        %4722 = vst.msk [vmem:[#allocation5 + $0xdc] sm:$0xf] %vm4710, %v4685
        %4723 = vst.msk [vmem:[#allocation5 + $0xf0] sm:$0xf] %vm4710, %v4687
        %4724 = vst.msk [vmem:[#allocation5 + $0x104] sm:$0xf] %vm4710, %v4689
        %4725 = vst.msk [vmem:[#allocation5 + $0x118] sm:$0xf] %vm4710, %v4691
        %4726 = vst.msk [vmem:[#allocation5 + $0x12c] sm:$0xf] %vm4710, %v4693
        %s4727 = scalar_lea.vmem [#allocation3], 12
        %v4728 = vld [vmem:[%s4727] sm:$0xf]
        %v4729 = vld [vmem:[%s4727 + $0x4] sm:$0xf]
        %v4730 = vld [vmem:[%s4727 + $0x8] sm:$0x1]
        %v4731 = vld [vmem:[%s4727 + $0xc] sm:$0xf]
        %v4732 = vld [vmem:[%s4727 + $0x10] sm:$0xf]
        %v4733 = vld [vmem:[%s4727 + $0x14] sm:$0x1]
        %v4734 = vld [vmem:[%s4727 + $0x18] sm:$0xf]
        %v4735 = vld [vmem:[%s4727 + $0x1c] sm:$0xf]
        %v4736 = vld [vmem:[%s4727 + $0x20] sm:$0x1]
        %v4737 = vld [vmem:[%s4727 + $0x24] sm:$0xf]
        %v4738 = vld [vmem:[%s4727 + $0x28] sm:$0xf]
        %v4739 = vld [vmem:[%s4727 + $0x2c] sm:$0x1]
        %v4740 = vld [vmem:[%s4727 + $0x30] sm:$0xf]
        %v4741 = vld [vmem:[%s4727 + $0x34] sm:$0xf]
        %v4742 = vld [vmem:[%s4727 + $0x38] sm:$0x1]
        %v4743 = vld [vmem:[%s4727 + $0x3c] sm:$0xf]
        %v4744 = vld [vmem:[%s4727 + $0x40] sm:$0xf]
        %v4745 = vld [vmem:[%s4727 + $0x44] sm:$0x1]
        %v4746 = vld [vmem:[%s4727 + $0x48] sm:$0xf]
        %v4747 = vld [vmem:[%s4727 + $0x4c] sm:$0xf]
        %v4748 = vld [vmem:[%s4727 + $0x50] sm:$0x1]
        %v4749 = vld [vmem:[%s4727 + $0x54] sm:$0xf]
        %v4750 = vld [vmem:[%s4727 + $0x58] sm:$0xf]
        %v4751 = vld [vmem:[%s4727 + $0x5c] sm:$0x1]
        %4768 = vrot.lane.b32.xlu0 %v4728, 96
        %v4769 = vpop.permute.xlu0 %4768
        %4770 = vrot.lane.b32.xlu0 %v4729, 96
        %v4771 = vpop.permute.xlu0 %4770
        %4772 = vrot.lane.b32.xlu0 %v4731, 96
        %v4773 = vpop.permute.xlu0 %4772
        %4774 = vrot.lane.b32.xlu0 %v4732, 96
        %v4775 = vpop.permute.xlu0 %4774
        %4776 = vrot.lane.b32.xlu0 %v4734, 96
        %v4777 = vpop.permute.xlu0 %4776
        %4778 = vrot.lane.b32.xlu0 %v4735, 96
        %v4779 = vpop.permute.xlu0 %4778
        %4780 = vrot.lane.b32.xlu0 %v4737, 96
        %v4781 = vpop.permute.xlu0 %4780
        %4782 = vrot.lane.b32.xlu0 %v4738, 96
        %v4783 = vpop.permute.xlu0 %4782
        %4784 = vrot.lane.b32.xlu0 %v4740, 96
        %v4785 = vpop.permute.xlu0 %4784
        %4786 = vrot.lane.b32.xlu0 %v4741, 96
        %v4787 = vpop.permute.xlu0 %4786
        %4788 = vrot.lane.b32.xlu0 %v4743, 96
        %v4789 = vpop.permute.xlu0 %4788
        %4790 = vrot.lane.b32.xlu0 %v4744, 96
        %v4791 = vpop.permute.xlu0 %4790
        %4792 = vrot.lane.b32.xlu0 %v4746, 96
        %v4793 = vpop.permute.xlu0 %4792
        %4794 = vrot.lane.b32.xlu0 %v4747, 96
        %v4795 = vpop.permute.xlu0 %4794
        %4796 = vrot.lane.b32.xlu0 %v4749, 96
        %v4797 = vpop.permute.xlu0 %4796
        %4798 = vrot.lane.b32.xlu0 %v4750, 96
        %v4799 = vpop.permute.xlu0 %4798
        %vm4816 = vcmask 1044224
        %4817 = vst.msk [vmem:[#allocation5] sm:$0xf] %vm4816, %v4769
        %4818 = vst.msk [vmem:[#allocation5 + $0x14] sm:$0xf] %vm4816, %v4771
        %4819 = vst.msk [vmem:[#allocation5 + $0x28] sm:$0xf] %vm4816, %v4773
        %4820 = vst.msk [vmem:[#allocation5 + $0x3c] sm:$0xf] %vm4816, %v4775
        %4821 = vst.msk [vmem:[#allocation5 + $0x50] sm:$0xf] %vm4816, %v4777
        %4822 = vst.msk [vmem:[#allocation5 + $0x64] sm:$0xf] %vm4816, %v4779
        %4823 = vst.msk [vmem:[#allocation5 + $0x78] sm:$0xf] %vm4816, %v4781
        %4824 = vst.msk [vmem:[#allocation5 + $0x8c] sm:$0xf] %vm4816, %v4783
        %4825 = vst.msk [vmem:[#allocation5 + $0xa0] sm:$0xf] %vm4816, %v4785
        %4826 = vst.msk [vmem:[#allocation5 + $0xb4] sm:$0xf] %vm4816, %v4787
        %4827 = vst.msk [vmem:[#allocation5 + $0xc8] sm:$0xf] %vm4816, %v4789
        %4828 = vst.msk [vmem:[#allocation5 + $0xdc] sm:$0xf] %vm4816, %v4791
        %4829 = vst.msk [vmem:[#allocation5 + $0xf0] sm:$0xf] %vm4816, %v4793
        %4830 = vst.msk [vmem:[#allocation5 + $0x104] sm:$0xf] %vm4816, %v4795
        %4831 = vst.msk [vmem:[#allocation5 + $0x118] sm:$0xf] %vm4816, %v4797
        %4832 = vst.msk [vmem:[#allocation5 + $0x12c] sm:$0xf] %vm4816, %v4799
        %v4834 = vshrl.u32 %v4728, 16
        %v4836 = vrot.slane %v4834, 4
        %v4837 = vshll.u32 %v4728, 16
        %v4839 = vrot.slane %v4837, 5
        %v4840 = vor.u32 %v4836, %v4839
        %v4841 = vrot.slane %v4840, 4
        %v4843 = vshll.u32 %v4729, 16
        %v4845 = vrot.slane %v4843, 5
        %v4846 = vsel %vm1342, %v4841, %v4845
        %v4847 = vshrl.u32 %v4729, 16
        %v4849 = vrot.slane %v4847, 4
        %v4850 = vor.u32 %v4849, %v4845
        %v4851 = vrot.slane %v4850, 4
        %v4853 = vshll.u32 %v4730, 16
        %v4855 = vrot.slane %v4853, 5
        %v4856 = vsel %vm1342, %v4851, %v4855
        %v4858 = vshrl.u32 %v4731, 16
        %v4860 = vrot.slane %v4858, 4
        %v4861 = vshll.u32 %v4731, 16
        %v4863 = vrot.slane %v4861, 5
        %v4864 = vor.u32 %v4860, %v4863
        %v4865 = vrot.slane %v4864, 4
        %v4867 = vshll.u32 %v4732, 16
        %v4869 = vrot.slane %v4867, 5
        %v4870 = vsel %vm1342, %v4865, %v4869
        %v4871 = vshrl.u32 %v4732, 16
        %v4873 = vrot.slane %v4871, 4
        %v4874 = vor.u32 %v4873, %v4869
        %v4875 = vrot.slane %v4874, 4
        %v4877 = vshll.u32 %v4733, 16
        %v4879 = vrot.slane %v4877, 5
        %v4880 = vsel %vm1342, %v4875, %v4879
        %v4882 = vshrl.u32 %v4734, 16
        %v4884 = vrot.slane %v4882, 4
        %v4885 = vshll.u32 %v4734, 16
        %v4887 = vrot.slane %v4885, 5
        %v4888 = vor.u32 %v4884, %v4887
        %v4889 = vrot.slane %v4888, 4
        %v4891 = vshll.u32 %v4735, 16
        %v4893 = vrot.slane %v4891, 5
        %v4894 = vsel %vm1342, %v4889, %v4893
        %v4895 = vshrl.u32 %v4735, 16
        %v4897 = vrot.slane %v4895, 4
        %v4898 = vor.u32 %v4897, %v4893
        %v4899 = vrot.slane %v4898, 4
        %v4901 = vshll.u32 %v4736, 16
        %v4903 = vrot.slane %v4901, 5
        %v4904 = vsel %vm1342, %v4899, %v4903
        %v4906 = vshrl.u32 %v4737, 16
        %v4908 = vrot.slane %v4906, 4
        %v4909 = vshll.u32 %v4737, 16
        %v4911 = vrot.slane %v4909, 5
        %v4912 = vor.u32 %v4908, %v4911
        %v4913 = vrot.slane %v4912, 4
        %v4915 = vshll.u32 %v4738, 16
        %v4917 = vrot.slane %v4915, 5
        %v4918 = vsel %vm1342, %v4913, %v4917
        %v4919 = vshrl.u32 %v4738, 16
        %v4921 = vrot.slane %v4919, 4
        %v4922 = vor.u32 %v4921, %v4917
        %v4923 = vrot.slane %v4922, 4
        %v4925 = vshll.u32 %v4739, 16
        %v4927 = vrot.slane %v4925, 5
        %v4928 = vsel %vm1342, %v4923, %v4927
        %v4930 = vshrl.u32 %v4740, 16
        %v4932 = vrot.slane %v4930, 4
        %v4933 = vshll.u32 %v4740, 16
        %v4935 = vrot.slane %v4933, 5
        %v4936 = vor.u32 %v4932, %v4935
        %v4937 = vrot.slane %v4936, 4
        %v4939 = vshll.u32 %v4741, 16
        %v4941 = vrot.slane %v4939, 5
        %v4942 = vsel %vm1342, %v4937, %v4941
        %v4943 = vshrl.u32 %v4741, 16
        %v4945 = vrot.slane %v4943, 4
        %v4946 = vor.u32 %v4945, %v4941
        %v4947 = vrot.slane %v4946, 4
        %v4949 = vshll.u32 %v4742, 16
        %v4951 = vrot.slane %v4949, 5
        %v4952 = vsel %vm1342, %v4947, %v4951
        %v4954 = vshrl.u32 %v4743, 16
        %v4956 = vrot.slane %v4954, 4
        %v4957 = vshll.u32 %v4743, 16
        %v4959 = vrot.slane %v4957, 5
        %v4960 = vor.u32 %v4956, %v4959
        %v4961 = vrot.slane %v4960, 4
        %v4963 = vshll.u32 %v4744, 16
        %v4965 = vrot.slane %v4963, 5
        %v4966 = vsel %vm1342, %v4961, %v4965
        %v4967 = vshrl.u32 %v4744, 16
        %v4969 = vrot.slane %v4967, 4
        %v4970 = vor.u32 %v4969, %v4965
        %v4971 = vrot.slane %v4970, 4
        %v4973 = vshll.u32 %v4745, 16
        %v4975 = vrot.slane %v4973, 5
        %v4976 = vsel %vm1342, %v4971, %v4975
        %v4978 = vshrl.u32 %v4746, 16
        %v4980 = vrot.slane %v4978, 4
        %v4981 = vshll.u32 %v4746, 16
        %v4983 = vrot.slane %v4981, 5
        %v4984 = vor.u32 %v4980, %v4983
        %v4985 = vrot.slane %v4984, 4
        %v4987 = vshll.u32 %v4747, 16
        %v4989 = vrot.slane %v4987, 5
        %v4990 = vsel %vm1342, %v4985, %v4989
        %v4991 = vshrl.u32 %v4747, 16
        %v4993 = vrot.slane %v4991, 4
        %v4994 = vor.u32 %v4993, %v4989
        %v4995 = vrot.slane %v4994, 4
        %v4997 = vshll.u32 %v4748, 16
        %v4999 = vrot.slane %v4997, 5
        %v5000 = vsel %vm1342, %v4995, %v4999
        %v5002 = vshrl.u32 %v4749, 16
        %v5004 = vrot.slane %v5002, 4
        %v5005 = vshll.u32 %v4749, 16
        %v5007 = vrot.slane %v5005, 5
        %v5008 = vor.u32 %v5004, %v5007
        %v5009 = vrot.slane %v5008, 4
        %v5011 = vshll.u32 %v4750, 16
        %v5013 = vrot.slane %v5011, 5
        %v5014 = vsel %vm1342, %v5009, %v5013
        %v5015 = vshrl.u32 %v4750, 16
        %v5017 = vrot.slane %v5015, 4
        %v5018 = vor.u32 %v5017, %v5013
        %v5019 = vrot.slane %v5018, 4
        %v5021 = vshll.u32 %v4751, 16
        %v5023 = vrot.slane %v5021, 5
        %v5024 = vsel %vm1342, %v5019, %v5023
        %5041 = vst.msk [vmem:[#allocation5 + $0x4] sm:$0xf] %vm3191, %v4846
        %5042 = vst.msk [vmem:[#allocation5 + $0x18] sm:$0xf] %vm3191, %v4856
        %5043 = vst.msk [vmem:[#allocation5 + $0x2c] sm:$0xf] %vm3191, %v4870
        %5044 = vst.msk [vmem:[#allocation5 + $0x40] sm:$0xf] %vm3191, %v4880
        %5045 = vst.msk [vmem:[#allocation5 + $0x54] sm:$0xf] %vm3191, %v4894
        %5046 = vst.msk [vmem:[#allocation5 + $0x68] sm:$0xf] %vm3191, %v4904
        %5047 = vst.msk [vmem:[#allocation5 + $0x7c] sm:$0xf] %vm3191, %v4918
        %5048 = vst.msk [vmem:[#allocation5 + $0x90] sm:$0xf] %vm3191, %v4928
        %5049 = vst.msk [vmem:[#allocation5 + $0xa4] sm:$0xf] %vm3191, %v4942
        %5050 = vst.msk [vmem:[#allocation5 + $0xb8] sm:$0xf] %vm3191, %v4952
        %5051 = vst.msk [vmem:[#allocation5 + $0xcc] sm:$0xf] %vm3191, %v4966
        %5052 = vst.msk [vmem:[#allocation5 + $0xe0] sm:$0xf] %vm3191, %v4976
        %5053 = vst.msk [vmem:[#allocation5 + $0xf4] sm:$0xf] %vm3191, %v4990
        %5054 = vst.msk [vmem:[#allocation5 + $0x108] sm:$0xf] %vm3191, %v5000
        %5055 = vst.msk [vmem:[#allocation5 + $0x11c] sm:$0xf] %vm3191, %v5014
        %5056 = vst.msk [vmem:[#allocation5 + $0x130] sm:$0xf] %vm3191, %v5024
        %v5065 = vrot.slane %v4728, 5
        %v5066 = vrot.slane %v5065, 4
        %v5067 = vrot.slane %v4729, 5
        %v5068 = vsel %vm1626, %v5066, %v5067
        %v5069 = vrot.slane %v5067, 4
        %v5070 = vrot.slane %v4730, 5
        %v5071 = vsel %vm1626, %v5069, %v5070
        %v5072 = vrot.slane %v4731, 5
        %v5073 = vrot.slane %v5072, 4
        %v5074 = vrot.slane %v4732, 5
        %v5075 = vsel %vm1626, %v5073, %v5074
        %v5076 = vrot.slane %v5074, 4
        %v5077 = vrot.slane %v4733, 5
        %v5078 = vsel %vm1626, %v5076, %v5077
        %v5079 = vrot.slane %v4734, 5
        %v5080 = vrot.slane %v5079, 4
        %v5081 = vrot.slane %v4735, 5
        %v5082 = vsel %vm1626, %v5080, %v5081
        %v5083 = vrot.slane %v5081, 4
        %v5084 = vrot.slane %v4736, 5
        %v5085 = vsel %vm1626, %v5083, %v5084
        %v5086 = vrot.slane %v4737, 5
        %v5087 = vrot.slane %v5086, 4
        %v5088 = vrot.slane %v4738, 5
        %v5089 = vsel %vm1626, %v5087, %v5088
        %v5090 = vrot.slane %v5088, 4
        %v5091 = vrot.slane %v4739, 5
        %v5092 = vsel %vm1626, %v5090, %v5091
        %v5093 = vrot.slane %v4740, 5
        %v5094 = vrot.slane %v5093, 4
        %v5095 = vrot.slane %v4741, 5
        %v5096 = vsel %vm1626, %v5094, %v5095
        %v5097 = vrot.slane %v5095, 4
        %v5098 = vrot.slane %v4742, 5
        %v5099 = vsel %vm1626, %v5097, %v5098
        %v5100 = vrot.slane %v4743, 5
        %v5101 = vrot.slane %v5100, 4
        %v5102 = vrot.slane %v4744, 5
        %v5103 = vsel %vm1626, %v5101, %v5102
        %v5104 = vrot.slane %v5102, 4
        %v5105 = vrot.slane %v4745, 5
        %v5106 = vsel %vm1626, %v5104, %v5105
        %v5107 = vrot.slane %v4746, 5
        %v5108 = vrot.slane %v5107, 4
        %v5109 = vrot.slane %v4747, 5
        %v5110 = vsel %vm1626, %v5108, %v5109
        %v5111 = vrot.slane %v5109, 4
        %v5112 = vrot.slane %v4748, 5
        %v5113 = vsel %vm1626, %v5111, %v5112
        %v5114 = vrot.slane %v4749, 5
        %v5115 = vrot.slane %v5114, 4
        %v5116 = vrot.slane %v4750, 5
        %v5117 = vsel %vm1626, %v5115, %v5116
        %v5118 = vrot.slane %v5116, 4
        %v5119 = vrot.slane %v4751, 5
        %v5120 = vsel %vm1626, %v5118, %v5119
        %5121 = vrot.lane.b32.xlu0 %v5068, 32
        %v5122 = vpop.permute.xlu0 %5121
        %5123 = vrot.lane.b32.xlu0 %v5071, 32
        %v5124 = vpop.permute.xlu0 %5123
        %5125 = vrot.lane.b32.xlu0 %v5075, 32
        %v5126 = vpop.permute.xlu0 %5125
        %5127 = vrot.lane.b32.xlu0 %v5078, 32
        %v5128 = vpop.permute.xlu0 %5127
        %5129 = vrot.lane.b32.xlu0 %v5082, 32
        %v5130 = vpop.permute.xlu0 %5129
        %5131 = vrot.lane.b32.xlu0 %v5085, 32
        %v5132 = vpop.permute.xlu0 %5131
        %5133 = vrot.lane.b32.xlu0 %v5089, 32
        %v5134 = vpop.permute.xlu0 %5133
        %5135 = vrot.lane.b32.xlu0 %v5092, 32
        %v5136 = vpop.permute.xlu0 %5135
        %5137 = vrot.lane.b32.xlu0 %v5096, 32
        %v5138 = vpop.permute.xlu0 %5137
        %5139 = vrot.lane.b32.xlu0 %v5099, 32
        %v5140 = vpop.permute.xlu0 %5139
        %5141 = vrot.lane.b32.xlu0 %v5103, 32
        %v5142 = vpop.permute.xlu0 %5141
        %5143 = vrot.lane.b32.xlu0 %v5106, 32
        %v5144 = vpop.permute.xlu0 %5143
        %5145 = vrot.lane.b32.xlu0 %v5110, 32
        %v5146 = vpop.permute.xlu0 %5145
        %5147 = vrot.lane.b32.xlu0 %v5113, 32
        %v5148 = vpop.permute.xlu0 %5147
        %5149 = vrot.lane.b32.xlu0 %v5117, 32
        %v5150 = vpop.permute.xlu0 %5149
        %5151 = vrot.lane.b32.xlu0 %v5120, 32
        %v5152 = vpop.permute.xlu0 %5151
        %5169 = vst.msk [vmem:[#allocation5 + $0x4] sm:$0xf] %vm4565, %v5122
        %5170 = vst.msk [vmem:[#allocation5 + $0x18] sm:$0xf] %vm4565, %v5124
        %5171 = vst.msk [vmem:[#allocation5 + $0x2c] sm:$0xf] %vm4565, %v5126
        %5172 = vst.msk [vmem:[#allocation5 + $0x40] sm:$0xf] %vm4565, %v5128
        %5173 = vst.msk [vmem:[#allocation5 + $0x54] sm:$0xf] %vm4565, %v5130
        %5174 = vst.msk [vmem:[#allocation5 + $0x68] sm:$0xf] %vm4565, %v5132
        %5175 = vst.msk [vmem:[#allocation5 + $0x7c] sm:$0xf] %vm4565, %v5134
        %5176 = vst.msk [vmem:[#allocation5 + $0x90] sm:$0xf] %vm4565, %v5136
        %5177 = vst.msk [vmem:[#allocation5 + $0xa4] sm:$0xf] %vm4565, %v5138
        %5178 = vst.msk [vmem:[#allocation5 + $0xb8] sm:$0xf] %vm4565, %v5140
        %5179 = vst.msk [vmem:[#allocation5 + $0xcc] sm:$0xf] %vm4565, %v5142
        %5180 = vst.msk [vmem:[#allocation5 + $0xe0] sm:$0xf] %vm4565, %v5144
        %5181 = vst.msk [vmem:[#allocation5 + $0xf4] sm:$0xf] %vm4565, %v5146
        %5182 = vst.msk [vmem:[#allocation5 + $0x108] sm:$0xf] %vm4565, %v5148
        %5183 = vst.msk [vmem:[#allocation5 + $0x11c] sm:$0xf] %vm4565, %v5150
        %5184 = vst.msk [vmem:[#allocation5 + $0x130] sm:$0xf] %vm4565, %v5152
        %s5185 = scalar_lea.vmem [#allocation3], 24
        %v5186 = vld [vmem:[%s5185] sm:$0xf]
        %v5187 = vld [vmem:[%s5185 + $0x4] sm:$0xf]
        %v5188 = vld [vmem:[%s5185 + $0x8] sm:$0x1]
        %v5189 = vld [vmem:[%s5185 + $0xc] sm:$0xf]
        %v5190 = vld [vmem:[%s5185 + $0x10] sm:$0xf]
        %v5191 = vld [vmem:[%s5185 + $0x14] sm:$0x1]
        %v5192 = vld [vmem:[%s5185 + $0x18] sm:$0xf]
        %v5193 = vld [vmem:[%s5185 + $0x1c] sm:$0xf]
        %v5194 = vld [vmem:[%s5185 + $0x20] sm:$0x1]
        %v5195 = vld [vmem:[%s5185 + $0x24] sm:$0xf]
        %v5196 = vld [vmem:[%s5185 + $0x28] sm:$0xf]
        %v5197 = vld [vmem:[%s5185 + $0x2c] sm:$0x1]
        %v5198 = vld [vmem:[%s5185 + $0x30] sm:$0xf]
        %v5199 = vld [vmem:[%s5185 + $0x34] sm:$0xf]
        %v5200 = vld [vmem:[%s5185 + $0x38] sm:$0x1]
        %v5201 = vld [vmem:[%s5185 + $0x3c] sm:$0xf]
        %v5202 = vld [vmem:[%s5185 + $0x40] sm:$0xf]
        %v5203 = vld [vmem:[%s5185 + $0x44] sm:$0x1]
        %v5204 = vld [vmem:[%s5185 + $0x48] sm:$0xf]
        %v5205 = vld [vmem:[%s5185 + $0x4c] sm:$0xf]
        %v5206 = vld [vmem:[%s5185 + $0x50] sm:$0x1]
        %v5207 = vld [vmem:[%s5185 + $0x54] sm:$0xf]
        %v5208 = vld [vmem:[%s5185 + $0x58] sm:$0xf]
        %v5209 = vld [vmem:[%s5185 + $0x5c] sm:$0x1]
        %5226 = vrot.lane.b32.xlu0 %v5186, 64
        %v5227 = vpop.permute.xlu0 %5226
        %5228 = vrot.lane.b32.xlu0 %v5187, 64
        %v5229 = vpop.permute.xlu0 %5228
        %5230 = vrot.lane.b32.xlu0 %v5189, 64
        %v5231 = vpop.permute.xlu0 %5230
        %5232 = vrot.lane.b32.xlu0 %v5190, 64
        %v5233 = vpop.permute.xlu0 %5232
        %5234 = vrot.lane.b32.xlu0 %v5192, 64
        %v5235 = vpop.permute.xlu0 %5234
        %5236 = vrot.lane.b32.xlu0 %v5193, 64
        %v5237 = vpop.permute.xlu0 %5236
        %5238 = vrot.lane.b32.xlu0 %v5195, 64
        %v5239 = vpop.permute.xlu0 %5238
        %5240 = vrot.lane.b32.xlu0 %v5196, 64
        %v5241 = vpop.permute.xlu0 %5240
        %5242 = vrot.lane.b32.xlu0 %v5198, 64
        %v5243 = vpop.permute.xlu0 %5242
        %5244 = vrot.lane.b32.xlu0 %v5199, 64
        %v5245 = vpop.permute.xlu0 %5244
        %5246 = vrot.lane.b32.xlu0 %v5201, 64
        %v5247 = vpop.permute.xlu0 %5246
        %5248 = vrot.lane.b32.xlu0 %v5202, 64
        %v5249 = vpop.permute.xlu0 %5248
        %5250 = vrot.lane.b32.xlu0 %v5204, 64
        %v5251 = vpop.permute.xlu0 %5250
        %5252 = vrot.lane.b32.xlu0 %v5205, 64
        %v5253 = vpop.permute.xlu0 %5252
        %5254 = vrot.lane.b32.xlu0 %v5207, 64
        %v5255 = vpop.permute.xlu0 %5254
        %5256 = vrot.lane.b32.xlu0 %v5208, 64
        %v5257 = vpop.permute.xlu0 %5256
        %5274 = vst.msk [vmem:[#allocation5 + $0x4] sm:$0xf] %vm4710, %v5227
        %5275 = vst.msk [vmem:[#allocation5 + $0x18] sm:$0xf] %vm4710, %v5229
        %5276 = vst.msk [vmem:[#allocation5 + $0x2c] sm:$0xf] %vm4710, %v5231
        %5277 = vst.msk [vmem:[#allocation5 + $0x40] sm:$0xf] %vm4710, %v5233
        %5278 = vst.msk [vmem:[#allocation5 + $0x54] sm:$0xf] %vm4710, %v5235
        %5279 = vst.msk [vmem:[#allocation5 + $0x68] sm:$0xf] %vm4710, %v5237
        %5280 = vst.msk [vmem:[#allocation5 + $0x7c] sm:$0xf] %vm4710, %v5239
        %5281 = vst.msk [vmem:[#allocation5 + $0x90] sm:$0xf] %vm4710, %v5241
        %5282 = vst.msk [vmem:[#allocation5 + $0xa4] sm:$0xf] %vm4710, %v5243
        %5283 = vst.msk [vmem:[#allocation5 + $0xb8] sm:$0xf] %vm4710, %v5245
        %5284 = vst.msk [vmem:[#allocation5 + $0xcc] sm:$0xf] %vm4710, %v5247
        %5285 = vst.msk [vmem:[#allocation5 + $0xe0] sm:$0xf] %vm4710, %v5249
        %5286 = vst.msk [vmem:[#allocation5 + $0xf4] sm:$0xf] %vm4710, %v5251
        %5287 = vst.msk [vmem:[#allocation5 + $0x108] sm:$0xf] %vm4710, %v5253
        %5288 = vst.msk [vmem:[#allocation5 + $0x11c] sm:$0xf] %vm4710, %v5255
        %5289 = vst.msk [vmem:[#allocation5 + $0x130] sm:$0xf] %vm4710, %v5257
        %v5291 = vshrl.u32 %v5186, 16
        %v5293 = vrot.slane %v5291, 4
        %v5294 = vshll.u32 %v5186, 16
        %v5296 = vrot.slane %v5294, 5
        %v5297 = vor.u32 %v5293, %v5296
        %v5298 = vrot.slane %v5297, 4
        %v5300 = vshll.u32 %v5187, 16
        %v5302 = vrot.slane %v5300, 5
        %v5303 = vsel %vm1342, %v5298, %v5302
        %v5304 = vshrl.u32 %v5187, 16
        %v5306 = vrot.slane %v5304, 4
        %v5307 = vor.u32 %v5306, %v5302
        %v5308 = vrot.slane %v5307, 4
        %v5310 = vshll.u32 %v5188, 16
        %v5312 = vrot.slane %v5310, 5
        %v5313 = vsel %vm1342, %v5308, %v5312
        %v5315 = vshrl.u32 %v5189, 16
        %v5317 = vrot.slane %v5315, 4
        %v5318 = vshll.u32 %v5189, 16
        %v5320 = vrot.slane %v5318, 5
        %v5321 = vor.u32 %v5317, %v5320
        %v5322 = vrot.slane %v5321, 4
        %v5324 = vshll.u32 %v5190, 16
        %v5326 = vrot.slane %v5324, 5
        %v5327 = vsel %vm1342, %v5322, %v5326
        %v5328 = vshrl.u32 %v5190, 16
        %v5330 = vrot.slane %v5328, 4
        %v5331 = vor.u32 %v5330, %v5326
        %v5332 = vrot.slane %v5331, 4
        %v5334 = vshll.u32 %v5191, 16
        %v5336 = vrot.slane %v5334, 5
        %v5337 = vsel %vm1342, %v5332, %v5336
        %v5339 = vshrl.u32 %v5192, 16
        %v5341 = vrot.slane %v5339, 4
        %v5342 = vshll.u32 %v5192, 16
        %v5344 = vrot.slane %v5342, 5
        %v5345 = vor.u32 %v5341, %v5344
        %v5346 = vrot.slane %v5345, 4
        %v5348 = vshll.u32 %v5193, 16
        %v5350 = vrot.slane %v5348, 5
        %v5351 = vsel %vm1342, %v5346, %v5350
        %v5352 = vshrl.u32 %v5193, 16
        %v5354 = vrot.slane %v5352, 4
        %v5355 = vor.u32 %v5354, %v5350
        %v5356 = vrot.slane %v5355, 4
        %v5358 = vshll.u32 %v5194, 16
        %v5360 = vrot.slane %v5358, 5
        %v5361 = vsel %vm1342, %v5356, %v5360
        %v5363 = vshrl.u32 %v5195, 16
        %v5365 = vrot.slane %v5363, 4
        %v5366 = vshll.u32 %v5195, 16
        %v5368 = vrot.slane %v5366, 5
        %v5369 = vor.u32 %v5365, %v5368
        %v5370 = vrot.slane %v5369, 4
        %v5372 = vshll.u32 %v5196, 16
        %v5374 = vrot.slane %v5372, 5
        %v5375 = vsel %vm1342, %v5370, %v5374
        %v5376 = vshrl.u32 %v5196, 16
        %v5378 = vrot.slane %v5376, 4
        %v5379 = vor.u32 %v5378, %v5374
        %v5380 = vrot.slane %v5379, 4
        %v5382 = vshll.u32 %v5197, 16
        %v5384 = vrot.slane %v5382, 5
        %v5385 = vsel %vm1342, %v5380, %v5384
        %v5387 = vshrl.u32 %v5198, 16
        %v5389 = vrot.slane %v5387, 4
        %v5390 = vshll.u32 %v5198, 16
        %v5392 = vrot.slane %v5390, 5
        %v5393 = vor.u32 %v5389, %v5392
        %v5394 = vrot.slane %v5393, 4
        %v5396 = vshll.u32 %v5199, 16
        %v5398 = vrot.slane %v5396, 5
        %v5399 = vsel %vm1342, %v5394, %v5398
        %v5400 = vshrl.u32 %v5199, 16
        %v5402 = vrot.slane %v5400, 4
        %v5403 = vor.u32 %v5402, %v5398
        %v5404 = vrot.slane %v5403, 4
        %v5406 = vshll.u32 %v5200, 16
        %v5408 = vrot.slane %v5406, 5
        %v5409 = vsel %vm1342, %v5404, %v5408
        %v5411 = vshrl.u32 %v5201, 16
        %v5413 = vrot.slane %v5411, 4
        %v5414 = vshll.u32 %v5201, 16
        %v5416 = vrot.slane %v5414, 5
        %v5417 = vor.u32 %v5413, %v5416
        %v5418 = vrot.slane %v5417, 4
        %v5420 = vshll.u32 %v5202, 16
        %v5422 = vrot.slane %v5420, 5
        %v5423 = vsel %vm1342, %v5418, %v5422
        %v5424 = vshrl.u32 %v5202, 16
        %v5426 = vrot.slane %v5424, 4
        %v5427 = vor.u32 %v5426, %v5422
        %v5428 = vrot.slane %v5427, 4
        %v5430 = vshll.u32 %v5203, 16
        %v5432 = vrot.slane %v5430, 5
        %v5433 = vsel %vm1342, %v5428, %v5432
        %v5435 = vshrl.u32 %v5204, 16
        %v5437 = vrot.slane %v5435, 4
        %v5438 = vshll.u32 %v5204, 16
        %v5440 = vrot.slane %v5438, 5
        %v5441 = vor.u32 %v5437, %v5440
        %v5442 = vrot.slane %v5441, 4
        %v5444 = vshll.u32 %v5205, 16
        %v5446 = vrot.slane %v5444, 5
        %v5447 = vsel %vm1342, %v5442, %v5446
        %v5448 = vshrl.u32 %v5205, 16
        %v5450 = vrot.slane %v5448, 4
        %v5451 = vor.u32 %v5450, %v5446
        %v5452 = vrot.slane %v5451, 4
        %v5454 = vshll.u32 %v5206, 16
        %v5456 = vrot.slane %v5454, 5
        %v5457 = vsel %vm1342, %v5452, %v5456
        %v5459 = vshrl.u32 %v5207, 16
        %v5461 = vrot.slane %v5459, 4
        %v5462 = vshll.u32 %v5207, 16
        %v5464 = vrot.slane %v5462, 5
        %v5465 = vor.u32 %v5461, %v5464
        %v5466 = vrot.slane %v5465, 4
        %v5468 = vshll.u32 %v5208, 16
        %v5470 = vrot.slane %v5468, 5
        %v5471 = vsel %vm1342, %v5466, %v5470
        %v5472 = vshrl.u32 %v5208, 16
        %v5474 = vrot.slane %v5472, 4
        %v5475 = vor.u32 %v5474, %v5470
        %v5476 = vrot.slane %v5475, 4
        %v5478 = vshll.u32 %v5209, 16
        %v5480 = vrot.slane %v5478, 5
        %v5481 = vsel %vm1342, %v5476, %v5480
        %5482 = vrot.lane.b32.xlu0 %v5303, 96
        %v5483 = vpop.permute.xlu0 %5482
        %5484 = vrot.lane.b32.xlu0 %v5313, 96
        %v5485 = vpop.permute.xlu0 %5484
        %5486 = vrot.lane.b32.xlu0 %v5327, 96
        %v5487 = vpop.permute.xlu0 %5486
        %5488 = vrot.lane.b32.xlu0 %v5337, 96
        %v5489 = vpop.permute.xlu0 %5488
        %5490 = vrot.lane.b32.xlu0 %v5351, 96
        %v5491 = vpop.permute.xlu0 %5490
        %5492 = vrot.lane.b32.xlu0 %v5361, 96
        %v5493 = vpop.permute.xlu0 %5492
        %5494 = vrot.lane.b32.xlu0 %v5375, 96
        %v5495 = vpop.permute.xlu0 %5494
        %5496 = vrot.lane.b32.xlu0 %v5385, 96
        %v5497 = vpop.permute.xlu0 %5496
        %5498 = vrot.lane.b32.xlu0 %v5399, 96
        %v5499 = vpop.permute.xlu0 %5498
        %5500 = vrot.lane.b32.xlu0 %v5409, 96
        %v5501 = vpop.permute.xlu0 %5500
        %5502 = vrot.lane.b32.xlu0 %v5423, 96
        %v5503 = vpop.permute.xlu0 %5502
        %5504 = vrot.lane.b32.xlu0 %v5433, 96
        %v5505 = vpop.permute.xlu0 %5504
        %5506 = vrot.lane.b32.xlu0 %v5447, 96
        %v5507 = vpop.permute.xlu0 %5506
        %5508 = vrot.lane.b32.xlu0 %v5457, 96
        %v5509 = vpop.permute.xlu0 %5508
        %5510 = vrot.lane.b32.xlu0 %v5471, 96
        %v5511 = vpop.permute.xlu0 %5510
        %5512 = vrot.lane.b32.xlu0 %v5481, 96
        %v5513 = vpop.permute.xlu0 %5512
        %5530 = vst.msk [vmem:[#allocation5 + $0x4] sm:$0xf] %vm4816, %v5483
        %5531 = vst.msk [vmem:[#allocation5 + $0x18] sm:$0xf] %vm4816, %v5485
        %5532 = vst.msk [vmem:[#allocation5 + $0x2c] sm:$0xf] %vm4816, %v5487
        %5533 = vst.msk [vmem:[#allocation5 + $0x40] sm:$0xf] %vm4816, %v5489
        %5534 = vst.msk [vmem:[#allocation5 + $0x54] sm:$0xf] %vm4816, %v5491
        %5535 = vst.msk [vmem:[#allocation5 + $0x68] sm:$0xf] %vm4816, %v5493
        %5536 = vst.msk [vmem:[#allocation5 + $0x7c] sm:$0xf] %vm4816, %v5495
        %5537 = vst.msk [vmem:[#allocation5 + $0x90] sm:$0xf] %vm4816, %v5497
        %5538 = vst.msk [vmem:[#allocation5 + $0xa4] sm:$0xf] %vm4816, %v5499
        %5539 = vst.msk [vmem:[#allocation5 + $0xb8] sm:$0xf] %vm4816, %v5501
        %5540 = vst.msk [vmem:[#allocation5 + $0xcc] sm:$0xf] %vm4816, %v5503
        %5541 = vst.msk [vmem:[#allocation5 + $0xe0] sm:$0xf] %vm4816, %v5505
        %5542 = vst.msk [vmem:[#allocation5 + $0xf4] sm:$0xf] %vm4816, %v5507
        %5543 = vst.msk [vmem:[#allocation5 + $0x108] sm:$0xf] %vm4816, %v5509
        %5544 = vst.msk [vmem:[#allocation5 + $0x11c] sm:$0xf] %vm4816, %v5511
        %5545 = vst.msk [vmem:[#allocation5 + $0x130] sm:$0xf] %vm4816, %v5513
        %v5554 = vrot.slane %v5186, 5
        %v5555 = vrot.slane %v5554, 4
        %v5556 = vrot.slane %v5187, 5
        %v5557 = vsel %vm1626, %v5555, %v5556
        %v5558 = vrot.slane %v5556, 4
        %v5559 = vrot.slane %v5188, 5
        %v5560 = vsel %vm1626, %v5558, %v5559
        %v5561 = vrot.slane %v5189, 5
        %v5562 = vrot.slane %v5561, 4
        %v5563 = vrot.slane %v5190, 5
        %v5564 = vsel %vm1626, %v5562, %v5563
        %v5565 = vrot.slane %v5563, 4
        %v5566 = vrot.slane %v5191, 5
        %v5567 = vsel %vm1626, %v5565, %v5566
        %v5568 = vrot.slane %v5192, 5
        %v5569 = vrot.slane %v5568, 4
        %v5570 = vrot.slane %v5193, 5
        %v5571 = vsel %vm1626, %v5569, %v5570
        %v5572 = vrot.slane %v5570, 4
        %v5573 = vrot.slane %v5194, 5
        %v5574 = vsel %vm1626, %v5572, %v5573
        %v5575 = vrot.slane %v5195, 5
        %v5576 = vrot.slane %v5575, 4
        %v5577 = vrot.slane %v5196, 5
        %v5578 = vsel %vm1626, %v5576, %v5577
        %v5579 = vrot.slane %v5577, 4
        %v5580 = vrot.slane %v5197, 5
        %v5581 = vsel %vm1626, %v5579, %v5580
        %v5582 = vrot.slane %v5198, 5
        %v5583 = vrot.slane %v5582, 4
        %v5584 = vrot.slane %v5199, 5
        %v5585 = vsel %vm1626, %v5583, %v5584
        %v5586 = vrot.slane %v5584, 4
        %v5587 = vrot.slane %v5200, 5
        %v5588 = vsel %vm1626, %v5586, %v5587
        %v5589 = vrot.slane %v5201, 5
        %v5590 = vrot.slane %v5589, 4
        %v5591 = vrot.slane %v5202, 5
        %v5592 = vsel %vm1626, %v5590, %v5591
        %v5593 = vrot.slane %v5591, 4
        %v5594 = vrot.slane %v5203, 5
        %v5595 = vsel %vm1626, %v5593, %v5594
        %v5596 = vrot.slane %v5204, 5
        %v5597 = vrot.slane %v5596, 4
        %v5598 = vrot.slane %v5205, 5
        %v5599 = vsel %vm1626, %v5597, %v5598
        %v5600 = vrot.slane %v5598, 4
        %v5601 = vrot.slane %v5206, 5
        %v5602 = vsel %vm1626, %v5600, %v5601
        %v5603 = vrot.slane %v5207, 5
        %v5604 = vrot.slane %v5603, 4
        %v5605 = vrot.slane %v5208, 5
        %v5606 = vsel %vm1626, %v5604, %v5605
        %v5607 = vrot.slane %v5605, 4
        %v5608 = vrot.slane %v5209, 5
        %v5609 = vsel %vm1626, %v5607, %v5608
        %5626 = vst.msk [vmem:[#allocation5 + $0x8] sm:$0xf] %vm3191, %v5557
        %5627 = vst.msk [vmem:[#allocation5 + $0x1c] sm:$0xf] %vm3191, %v5560
        %5628 = vst.msk [vmem:[#allocation5 + $0x30] sm:$0xf] %vm3191, %v5564
        %5629 = vst.msk [vmem:[#allocation5 + $0x44] sm:$0xf] %vm3191, %v5567
        %5630 = vst.msk [vmem:[#allocation5 + $0x58] sm:$0xf] %vm3191, %v5571
        %5631 = vst.msk [vmem:[#allocation5 + $0x6c] sm:$0xf] %vm3191, %v5574
        %5632 = vst.msk [vmem:[#allocation5 + $0x80] sm:$0xf] %vm3191, %v5578
        %5633 = vst.msk [vmem:[#allocation5 + $0x94] sm:$0xf] %vm3191, %v5581
        %5634 = vst.msk [vmem:[#allocation5 + $0xa8] sm:$0xf] %vm3191, %v5585
        %5635 = vst.msk [vmem:[#allocation5 + $0xbc] sm:$0xf] %vm3191, %v5588
        %5636 = vst.msk [vmem:[#allocation5 + $0xd0] sm:$0xf] %vm3191, %v5592
        %5637 = vst.msk [vmem:[#allocation5 + $0xe4] sm:$0xf] %vm3191, %v5595
        %5638 = vst.msk [vmem:[#allocation5 + $0xf8] sm:$0xf] %vm3191, %v5599
        %5639 = vst.msk [vmem:[#allocation5 + $0x10c] sm:$0xf] %vm3191, %v5602
        %5640 = vst.msk [vmem:[#allocation5 + $0x120] sm:$0xf] %vm3191, %v5606
        %5641 = vst.msk [vmem:[#allocation5 + $0x134] sm:$0xf] %vm3191, %v5609
        %v5642 = vld [vmem:[#allocation5] sm:$0xff]
        %v5643 = vld [vmem:[#allocation5 + $0x8] sm:$0xf]
        %v5644 = vld [vmem:[#allocation5 + $0x14] sm:$0xff]
        %v5645 = vld [vmem:[#allocation5 + $0x1c] sm:$0xf]
        %v5646 = vld [vmem:[#allocation5 + $0x28] sm:$0xff]
        %v5647 = vld [vmem:[#allocation5 + $0x30] sm:$0xf]
        %v5648 = vld [vmem:[#allocation5 + $0x3c] sm:$0xff]
        %v5649 = vld [vmem:[#allocation5 + $0x44] sm:$0xf]
        %v5650 = vld [vmem:[#allocation5 + $0x50] sm:$0xff]
        %v5651 = vld [vmem:[#allocation5 + $0x58] sm:$0xf]
        %v5652 = vld [vmem:[#allocation5 + $0x64] sm:$0xff]
        %v5653 = vld [vmem:[#allocation5 + $0x6c] sm:$0xf]
        %v5654 = vld [vmem:[#allocation5 + $0x78] sm:$0xff]
        %v5655 = vld [vmem:[#allocation5 + $0x80] sm:$0xf]
        %v5656 = vld [vmem:[#allocation5 + $0x8c] sm:$0xff]
        %v5657 = vld [vmem:[#allocation5 + $0x94] sm:$0xf]
        %v5658 = vld [vmem:[#allocation5 + $0xa0] sm:$0xff]
        %v5659 = vld [vmem:[#allocation5 + $0xa8] sm:$0xf]
        %v5660 = vld [vmem:[#allocation5 + $0xb4] sm:$0xff]
        %v5661 = vld [vmem:[#allocation5 + $0xbc] sm:$0xf]
        %v5662 = vld [vmem:[#allocation5 + $0xc8] sm:$0xff]
        %v5663 = vld [vmem:[#allocation5 + $0xd0] sm:$0xf]
        %v5664 = vld [vmem:[#allocation5 + $0xdc] sm:$0xff]
        %v5665 = vld [vmem:[#allocation5 + $0xe4] sm:$0xf]
        %v5666 = vld [vmem:[#allocation5 + $0xf0] sm:$0xff]
        %v5667 = vld [vmem:[#allocation5 + $0xf8] sm:$0xf]
        %v5668 = vld [vmem:[#allocation5 + $0x104] sm:$0xff]
        %v5669 = vld [vmem:[#allocation5 + $0x10c] sm:$0xf]
        %v5670 = vld [vmem:[#allocation5 + $0x118] sm:$0xff]
        %v5671 = vld [vmem:[#allocation5 + $0x120] sm:$0xf]
        %v5672 = vld [vmem:[#allocation5 + $0x12c] sm:$0xff]
        %v5673 = vld [vmem:[#allocation5 + $0x134] sm:$0xf]
        %v5674 = vld [vmem:[%s3] sm:$0xf]
        %v5675 = vld [vmem:[%s3 + $0x4] sm:$0xf]
        %v5676 = vld [vmem:[%s3 + $0x8] sm:$0xf]
        %v5677 = vld [vmem:[%s3 + $0xc] sm:$0xf]
        %v5678 = vld [vmem:[%s3 + $0x10] sm:$0xf]
        %v5679 = vld [vmem:[%s3 + $0x14] sm:$0xf]
        %v5680 = vld [vmem:[%s3 + $0x18] sm:$0xf]
        %v5681 = vld [vmem:[%s3 + $0x1c] sm:$0xf]
        %v5682 = vld [vmem:[%s3 + $0x20] sm:$0xf]
        %v5683 = vld [vmem:[%s3 + $0x24] sm:$0xf]
        %v5684 = vld [vmem:[%s3 + $0x28] sm:$0xf]
        %v5685 = vld [vmem:[%s3 + $0x2c] sm:$0xf]
        %v5686 = vld [vmem:[%s3 + $0x30] sm:$0xf]
        %v5687 = vld [vmem:[%s3 + $0x34] sm:$0xf]
        %v5688 = vld [vmem:[%s3 + $0x38] sm:$0xf]
        %v5689 = vld [vmem:[%s3 + $0x3c] sm:$0xf]
        %v5690 = vld [vmem:[%s3 + $0x40] sm:$0xf]
        %v5691 = vld [vmem:[%s3 + $0x44] sm:$0xf]
        %v5692 = vld [vmem:[%s3 + $0x48] sm:$0xf]
        %v5693 = vld [vmem:[%s3 + $0x4c] sm:$0xf]
        %v5694 = vld [vmem:[%s3 + $0x50] sm:$0xf]
        %v5695 = vld [vmem:[%s3 + $0x54] sm:$0xf]
        %v5696 = vld [vmem:[%s3 + $0x58] sm:$0xf]
        %v5697 = vld [vmem:[%s3 + $0x5c] sm:$0xf]
        %v5698 = vld [vmem:[%s3 + $0x60] sm:$0xf]
        %v5699 = vld [vmem:[%s3 + $0x64] sm:$0xf]
        %v5700 = vld [vmem:[%s3 + $0x68] sm:$0xf]
        %v5701 = vld [vmem:[%s3 + $0x6c] sm:$0xf]
        %v5702 = vld [vmem:[%s3 + $0x70] sm:$0xf]
        %v5703 = vld [vmem:[%s3 + $0x74] sm:$0xf]
        %v5704 = vld [vmem:[%s3 + $0x78] sm:$0xf]
        %v5705 = vld [vmem:[%s3 + $0x7c] sm:$0xf]
        %v5706 = vld [vmem:[%s3 + $0x80] sm:$0xf]
        %v5707 = vld [vmem:[%s3 + $0x84] sm:$0xf]
        %v5708 = vld [vmem:[%s3 + $0x88] sm:$0xf]
        %v5709 = vld [vmem:[%s3 + $0x8c] sm:$0xf]
        %v5710 = vld [vmem:[%s3 + $0x90] sm:$0xf]
        %v5711 = vld [vmem:[%s3 + $0x94] sm:$0xf]
        %v5712 = vld [vmem:[%s3 + $0x98] sm:$0xf]
        %v5713 = vld [vmem:[%s3 + $0x9c] sm:$0xf]
        %v5714 = vld [vmem:[%s3 + $0xa0] sm:$0xf]
        %v5715 = vld [vmem:[%s3 + $0xa4] sm:$0xf]
        %v5716 = vld [vmem:[%s3 + $0xa8] sm:$0xf]
        %v5717 = vld [vmem:[%s3 + $0xac] sm:$0xf]
        %v5718 = vld [vmem:[%s3 + $0xb0] sm:$0xf]
        %v5719 = vld [vmem:[%s3 + $0xb4] sm:$0xf]
        %v5720 = vld [vmem:[%s3 + $0xb8] sm:$0xf]
        %v5721 = vld [vmem:[%s3 + $0xbc] sm:$0xf]
        %v5722 = vld [vmem:[%s4] sm:$0x1]
        %v5724 = vlaneseq
        %v5725 = vshrl.u32 %v5724, 7
        %v5726 = vsub.s32 0, %v5725
        %v5727 = vrot.slane %v5722, %v5726
        %v5761 = vunpack.c.l.b16 %v5642
        %v5762 = vunpack.c.h.b16 %v5642
        %v5763 = vunpack.c.l.b16 %v5643
        %v5764 = vunpack.c.l.b16 %v5644
        %v5765 = vunpack.c.h.b16 %v5644
        %v5766 = vunpack.c.l.b16 %v5645
        %v5767 = vunpack.c.l.b16 %v5646
        %v5768 = vunpack.c.h.b16 %v5646
        %v5769 = vunpack.c.l.b16 %v5647
        %v5770 = vunpack.c.l.b16 %v5648
        %v5771 = vunpack.c.h.b16 %v5648
        %v5772 = vunpack.c.l.b16 %v5649
        %v5773 = vunpack.c.l.b16 %v5650
        %v5774 = vunpack.c.h.b16 %v5650
        %v5775 = vunpack.c.l.b16 %v5651
        %v5776 = vunpack.c.l.b16 %v5652
        %v5777 = vunpack.c.h.b16 %v5652
        %v5778 = vunpack.c.l.b16 %v5653
        %v5779 = vunpack.c.l.b16 %v5654
        %v5780 = vunpack.c.h.b16 %v5654
        %v5781 = vunpack.c.l.b16 %v5655
        %v5782 = vunpack.c.l.b16 %v5656
        %v5783 = vunpack.c.h.b16 %v5656
        %v5784 = vunpack.c.l.b16 %v5657
        %v5785 = vunpack.c.l.b16 %v5658
        %v5786 = vunpack.c.h.b16 %v5658
        %v5787 = vunpack.c.l.b16 %v5659
        %v5788 = vunpack.c.l.b16 %v5660
        %v5789 = vunpack.c.h.b16 %v5660
        %v5790 = vunpack.c.l.b16 %v5661
        %v5791 = vunpack.c.l.b16 %v5662
        %v5792 = vunpack.c.h.b16 %v5662
        %v5793 = vunpack.c.l.b16 %v5663
        %v5794 = vunpack.c.l.b16 %v5664
        %v5795 = vunpack.c.h.b16 %v5664
        %v5796 = vunpack.c.l.b16 %v5665
        %v5797 = vunpack.c.l.b16 %v5666
        %v5798 = vunpack.c.h.b16 %v5666
        %v5799 = vunpack.c.l.b16 %v5667
        %v5800 = vunpack.c.l.b16 %v5668
        %v5801 = vunpack.c.h.b16 %v5668
        %v5802 = vunpack.c.l.b16 %v5669
        %v5803 = vunpack.c.l.b16 %v5670
        %v5804 = vunpack.c.h.b16 %v5670
        %v5805 = vunpack.c.l.b16 %v5671
        %v5806 = vunpack.c.l.b16 %v5672
        %v5807 = vunpack.c.h.b16 %v5672
        %v5808 = vunpack.c.l.b16 %v5673
        %v5809 = vpack.c.b16 %v5764, %v5761
        %v5810 = vpack.c.b16 %v5765, %v5762
        %v5811 = vpack.c.b16 %v5766, %v5763
        %v5812 = vpack.c.b16 %v5770, %v5767
        %v5813 = vpack.c.b16 %v5771, %v5768
        %v5814 = vpack.c.b16 %v5772, %v5769
        %v5815 = vpack.c.b16 %v5776, %v5773
        %v5816 = vpack.c.b16 %v5777, %v5774
        %v5817 = vpack.c.b16 %v5778, %v5775
        %v5818 = vpack.c.b16 %v5782, %v5779
        %v5819 = vpack.c.b16 %v5783, %v5780
        %v5820 = vpack.c.b16 %v5784, %v5781
        %v5821 = vpack.c.b16 %v5788, %v5785
        %v5822 = vpack.c.b16 %v5789, %v5786
        %v5823 = vpack.c.b16 %v5790, %v5787
        %v5824 = vpack.c.b16 %v5794, %v5791
        %v5825 = vpack.c.b16 %v5795, %v5792
        %v5826 = vpack.c.b16 %v5796, %v5793
        %v5827 = vpack.c.b16 %v5800, %v5797
        %v5828 = vpack.c.b16 %v5801, %v5798
        %v5829 = vpack.c.b16 %v5802, %v5799
        %v5830 = vpack.c.b16 %v5806, %v5803
        %v5831 = vpack.c.b16 %v5807, %v5804
        %v5832 = vpack.c.b16 %v5808, %v5805
        %v5905 = vunpack.c.l.b16 %v5674
        %v5906 = vunpack.c.l.b16 %v5675
        %v5907 = vunpack.c.l.b16 %v5676
        %v5908 = vunpack.c.l.b16 %v5677
        %v5909 = vunpack.c.l.b16 %v5678
        %v5910 = vunpack.c.l.b16 %v5679
        %v5911 = vunpack.c.l.b16 %v5680
        %v5912 = vunpack.c.l.b16 %v5681
        %v5913 = vunpack.c.l.b16 %v5682
        %v5914 = vunpack.c.l.b16 %v5683
        %v5915 = vunpack.c.l.b16 %v5684
        %v5916 = vunpack.c.l.b16 %v5685
        %v5917 = vunpack.c.l.b16 %v5686
        %v5918 = vunpack.c.l.b16 %v5687
        %v5919 = vunpack.c.l.b16 %v5688
        %v5920 = vunpack.c.l.b16 %v5689
        %v5921 = vunpack.c.l.b16 %v5690
        %v5922 = vunpack.c.l.b16 %v5691
        %v5923 = vunpack.c.l.b16 %v5692
        %v5924 = vunpack.c.l.b16 %v5693
        %v5925 = vunpack.c.l.b16 %v5694
        %v5926 = vunpack.c.l.b16 %v5695
        %v5927 = vunpack.c.l.b16 %v5696
        %v5928 = vunpack.c.l.b16 %v5697
        %v5929 = vunpack.c.l.b16 %v5698
        %v5930 = vunpack.c.l.b16 %v5699
        %v5931 = vunpack.c.l.b16 %v5700
        %v5932 = vunpack.c.l.b16 %v5701
        %v5933 = vunpack.c.l.b16 %v5702
        %v5934 = vunpack.c.l.b16 %v5703
        %v5935 = vunpack.c.l.b16 %v5704
        %v5936 = vunpack.c.l.b16 %v5705
        %v5937 = vunpack.c.l.b16 %v5706
        %v5938 = vunpack.c.l.b16 %v5707
        %v5939 = vunpack.c.l.b16 %v5708
        %v5940 = vunpack.c.l.b16 %v5709
        %v5941 = vunpack.c.l.b16 %v5710
        %v5942 = vunpack.c.l.b16 %v5711
        %v5943 = vunpack.c.l.b16 %v5712
        %v5944 = vunpack.c.l.b16 %v5713
        %v5945 = vunpack.c.l.b16 %v5714
        %v5946 = vunpack.c.l.b16 %v5715
        %v5947 = vunpack.c.l.b16 %v5716
        %v5948 = vunpack.c.l.b16 %v5717
        %v5949 = vunpack.c.l.b16 %v5718
        %v5950 = vunpack.c.l.b16 %v5719
        %v5951 = vunpack.c.l.b16 %v5720
        %v5952 = vunpack.c.l.b16 %v5721
        %v5953 = vpack.c.b16 %v5906, %v5905
        %v5954 = vpack.c.b16 %v5908, %v5907
        %v5955 = vpack.c.b16 %v5910, %v5909
        %v5956 = vpack.c.b16 %v5912, %v5911
        %v5957 = vpack.c.b16 %v5914, %v5913
        %v5958 = vpack.c.b16 %v5916, %v5915
        %v5959 = vpack.c.b16 %v5918, %v5917
        %v5960 = vpack.c.b16 %v5920, %v5919
        %v5961 = vpack.c.b16 %v5922, %v5921
        %v5962 = vpack.c.b16 %v5924, %v5923
        %v5963 = vpack.c.b16 %v5926, %v5925
        %v5964 = vpack.c.b16 %v5928, %v5927
        %v5965 = vpack.c.b16 %v5930, %v5929
        %v5966 = vpack.c.b16 %v5932, %v5931
        %v5967 = vpack.c.b16 %v5934, %v5933
        %v5968 = vpack.c.b16 %v5936, %v5935
        %v5969 = vpack.c.b16 %v5938, %v5937
        %v5970 = vpack.c.b16 %v5940, %v5939
        %v5971 = vpack.c.b16 %v5942, %v5941
        %v5972 = vpack.c.b16 %v5944, %v5943
        %v5973 = vpack.c.b16 %v5946, %v5945
        %v5974 = vpack.c.b16 %v5948, %v5947
        %v5975 = vpack.c.b16 %v5950, %v5949
        %v5976 = vpack.c.b16 %v5952, %v5951
        %6001 = vmatprep.subr.bf16.mxu0 0
        %6002 = vmatpush1.bf16.msra.mxu0 %v5960
        %6003 = vmatprep.subr.bf16.mxu0 0
        %6004 = vmatpush1.bf16.msra.mxu0 %v5959
        %6005 = vmatprep.subr.bf16.mxu0 0
        %6006 = vmatpush1.bf16.msra.mxu0 %v5958
        %6007 = vmatprep.subr.bf16.mxu0 0
        %6008 = vmatpush1.bf16.msra.mxu0 %v5957
        %6009 = vmatprep.subr.bf16.mxu0 0
        %6010 = vmatpush1.bf16.msra.mxu0 %v5956
        %6011 = vmatprep.subr.bf16.mxu0 0
        %6012 = vmatpush1.bf16.msra.mxu0 %v5955
        %6013 = vmatprep.subr.bf16.mxu0 0
        %6014 = vmatpush1.bf16.msra.mxu0 %v5954
        %6015 = vmatprep.subr.bf16.mxu0 0
        %6016 = vmatpush1.bf16.msra.mxu0 %v5953
        %6017 = vmatprep.subr.bf16.mxu0 0
        %6018 = vmatpush2.bf16.msra.mxu0 %v5968
        %6019 = vmatprep.subr.bf16.mxu0 0
        %6020 = vmatpush2.bf16.msra.mxu0 %v5967
        %6021 = vmatprep.subr.bf16.mxu0 0
        %6022 = vmatpush2.bf16.msra.mxu0 %v5966
        %6023 = vmatprep.subr.bf16.mxu0 0
        %6024 = vmatpush2.bf16.msra.mxu0 %v5965
        %6025 = vmatprep.subr.bf16.mxu0 0
        %6026 = vmatpush2.bf16.msra.mxu0 %v5964
        %6027 = vmatprep.subr.bf16.mxu0 0
        %6028 = vmatpush2.bf16.msra.mxu0 %v5963
        %6029 = vmatprep.subr.bf16.mxu0 0
        %6030 = vmatpush2.bf16.msra.mxu0 %v5962
        %6031 = vmatprep.subr.bf16.mxu0 0
        %6032 = vmatpush2.bf16.msra.mxu0 %v5961
        %6033 = vmatprep.mubr.bf16.mxu0 %v5810
        %6034 = vmatmul.mubr.bf16.gmra.mxu0 %v5809
        %v6035 = vpop.f32.mrf.mxu0
        %v6036 = vadd.f32 %v5727, %v6035
        %v6037 = vpop.f32.mrf.mxu0
        %v6038 = vpop.f32.mrf.mxu0
        %v6039 = vadd.f32 %v5727, %v6038
        %v6040 = vpop.f32.mrf.mxu0
        %6041 = vmatprep.mubr.bf16.mxu0 %v5813
        %6042 = vmatmul.mubr.bf16.gmra.mxu0 %v5812
        %v6043 = vpop.f32.mrf.mxu0
        %v6044 = vadd.f32 %v5727, %v6043
        %v6045 = vpop.f32.mrf.mxu0
        %v6046 = vpop.f32.mrf.mxu0
        %v6047 = vadd.f32 %v5727, %v6046
        %v6048 = vpop.f32.mrf.mxu0
        %6049 = vmatprep.mubr.bf16.mxu0 %v5816
        %6050 = vmatmul.mubr.bf16.gmra.mxu0 %v5815
        %v6051 = vpop.f32.mrf.mxu0
        %v6052 = vadd.f32 %v5727, %v6051
        %v6053 = vpop.f32.mrf.mxu0
        %v6054 = vpop.f32.mrf.mxu0
        %v6055 = vadd.f32 %v5727, %v6054
        %v6056 = vpop.f32.mrf.mxu0
        %6057 = vmatprep.mubr.bf16.mxu0 %v5819
        %6058 = vmatmul.mubr.bf16.gmra.mxu0 %v5818
        %v6059 = vpop.f32.mrf.mxu0
        %v6060 = vadd.f32 %v5727, %v6059
        %v6061 = vpop.f32.mrf.mxu0
        %v6062 = vpop.f32.mrf.mxu0
        %v6063 = vadd.f32 %v5727, %v6062
        %v6064 = vpop.f32.mrf.mxu0
        %6065 = vmatprep.mubr.bf16.mxu0 %v5822
        %6066 = vmatmul.mubr.bf16.gmra.mxu0 %v5821
        %v6067 = vpop.f32.mrf.mxu0
        %v6068 = vadd.f32 %v5727, %v6067
        %v6069 = vpop.f32.mrf.mxu0
        %v6070 = vpop.f32.mrf.mxu0
        %v6071 = vadd.f32 %v5727, %v6070
        %v6072 = vpop.f32.mrf.mxu0
        %6073 = vmatprep.mubr.bf16.mxu0 %v5825
        %6074 = vmatmul.mubr.bf16.gmra.mxu0 %v5824
        %v6075 = vpop.f32.mrf.mxu0
        %v6076 = vadd.f32 %v5727, %v6075
        %v6077 = vpop.f32.mrf.mxu0
        %v6078 = vpop.f32.mrf.mxu0
        %v6079 = vadd.f32 %v5727, %v6078
        %v6080 = vpop.f32.mrf.mxu0
        %6081 = vmatprep.mubr.bf16.mxu0 %v5828
        %6082 = vmatmul.mubr.bf16.gmra.mxu0 %v5827
        %v6083 = vpop.f32.mrf.mxu0
        %v6084 = vadd.f32 %v5727, %v6083
        %v6085 = vpop.f32.mrf.mxu0
        %v6086 = vpop.f32.mrf.mxu0
        %v6087 = vadd.f32 %v5727, %v6086
        %v6088 = vpop.f32.mrf.mxu0
        %6089 = vmatprep.mubr.bf16.mxu0 %v5831
        %6090 = vmatmul.mubr.bf16.gmra.mxu0 %v5830
        %v6091 = vpop.f32.mrf.mxu0
        %v6092 = vadd.f32 %v5727, %v6091
        %v6093 = vpop.f32.mrf.mxu0
        %v6094 = vpop.f32.mrf.mxu0
        %v6095 = vadd.f32 %v5727, %v6094
        %v6096 = vpop.f32.mrf.mxu0
        %6097 = vdwg.mxu0
        %6098 = vmatprep.subr.bf16.mxu0 0
        %6099 = vmatpush1.bf16.msra.mxu0 %v5976
        %6100 = vmatprep.subr.bf16.mxu0 0
        %6101 = vmatpush1.bf16.msra.mxu0 %v5975
        %6102 = vmatprep.subr.bf16.mxu0 0
        %6103 = vmatpush1.bf16.msra.mxu0 %v5974
        %6104 = vmatprep.subr.bf16.mxu0 0
        %6105 = vmatpush1.bf16.msra.mxu0 %v5973
        %6106 = vmatprep.subr.bf16.mxu0 0
        %6107 = vmatpush1.bf16.msra.mxu0 %v5972
        %6108 = vmatprep.subr.bf16.mxu0 0
        %6109 = vmatpush1.bf16.msra.mxu0 %v5971
        %6110 = vmatprep.subr.bf16.mxu0 0
        %6111 = vmatpush1.bf16.msra.mxu0 %v5970
        %6112 = vmatprep.subr.bf16.mxu0 0
        %6113 = vmatpush1.bf16.msra.mxu0 %v5969
        %6114 = vmatprep.subr.bf16.mxu0 0
        %6115 = vmatpush2.bf16.msra.mxu0 0
        %6116 = vmatprep.subr.bf16.mxu0 0
        %6117 = vmatpush2.bf16.msra.mxu0 0
        %6118 = vmatprep.subr.bf16.mxu0 0
        %6119 = vmatpush2.bf16.msra.mxu0 0
        %6120 = vmatprep.subr.bf16.mxu0 0
        %6121 = vmatpush2.bf16.msra.mxu0 0
        %6122 = vmatprep.subr.bf16.mxu0 0
        %6123 = vmatpush2.bf16.msra.mxu0 0
        %6124 = vmatprep.subr.bf16.mxu0 0
        %6125 = vmatpush2.bf16.msra.mxu0 0
        %6126 = vmatprep.subr.bf16.mxu0 0
        %6127 = vmatpush2.bf16.msra.mxu0 0
        %6128 = vmatprep.subr.bf16.mxu0 0
        %6129 = vmatpush2.bf16.msra.mxu0 0
        %6130 = vmatprep.mubr.bf16.mxu0 0
        %6131 = vmatmul.mubr.bf16.gmra.mxu0 %v5811
        %v6132 = vpop.f32.mrf.mxu0
        %v6133 = vadd.f32 %v6036, %v6132
        %v6134 = vpop.f32.mrf.mxu0
        %v6135 = vpop.f32.mrf.mxu0
        %v6136 = vadd.f32 %v6039, %v6135
        %v6137 = vpop.f32.mrf.mxu0
        %6138 = vmatprep.mubr.bf16.mxu0 0
        %6139 = vmatmul.mubr.bf16.gmra.mxu0 %v5814
        %v6140 = vpop.f32.mrf.mxu0
        %v6141 = vadd.f32 %v6044, %v6140
        %v6142 = vpop.f32.mrf.mxu0
        %v6143 = vpop.f32.mrf.mxu0
        %v6144 = vadd.f32 %v6047, %v6143
        %v6145 = vpop.f32.mrf.mxu0
        %6146 = vmatprep.mubr.bf16.mxu0 0
        %6147 = vmatmul.mubr.bf16.gmra.mxu0 %v5817
        %v6148 = vpop.f32.mrf.mxu0
        %v6149 = vadd.f32 %v6052, %v6148
        %v6150 = vpop.f32.mrf.mxu0
        %v6151 = vpop.f32.mrf.mxu0
        %v6152 = vadd.f32 %v6055, %v6151
        %v6153 = vpop.f32.mrf.mxu0
        %6154 = vmatprep.mubr.bf16.mxu0 0
        %6155 = vmatmul.mubr.bf16.gmra.mxu0 %v5820
        %v6156 = vpop.f32.mrf.mxu0
        %v6157 = vadd.f32 %v6060, %v6156
        %v6158 = vpop.f32.mrf.mxu0
        %v6159 = vpop.f32.mrf.mxu0
        %v6160 = vadd.f32 %v6063, %v6159
        %v6161 = vpop.f32.mrf.mxu0
        %6162 = vmatprep.mubr.bf16.mxu0 0
        %6163 = vmatmul.mubr.bf16.gmra.mxu0 %v5823
        %v6164 = vpop.f32.mrf.mxu0
        %v6165 = vadd.f32 %v6068, %v6164
        %v6166 = vpop.f32.mrf.mxu0
        %v6167 = vpop.f32.mrf.mxu0
        %v6168 = vadd.f32 %v6071, %v6167
        %v6169 = vpop.f32.mrf.mxu0
        %6170 = vmatprep.mubr.bf16.mxu0 0
        %6171 = vmatmul.mubr.bf16.gmra.mxu0 %v5826
        %v6172 = vpop.f32.mrf.mxu0
        %v6173 = vadd.f32 %v6076, %v6172
        %v6174 = vpop.f32.mrf.mxu0
        %v6175 = vpop.f32.mrf.mxu0
        %v6176 = vadd.f32 %v6079, %v6175
        %v6177 = vpop.f32.mrf.mxu0
        %6178 = vmatprep.mubr.bf16.mxu0 0
        %6179 = vmatmul.mubr.bf16.gmra.mxu0 %v5829
        %v6180 = vpop.f32.mrf.mxu0
        %v6181 = vadd.f32 %v6084, %v6180
        %v6182 = vpop.f32.mrf.mxu0
        %v6183 = vpop.f32.mrf.mxu0
        %v6184 = vadd.f32 %v6087, %v6183
        %v6185 = vpop.f32.mrf.mxu0
        %6186 = vmatprep.mubr.bf16.mxu0 0
        %6187 = vmatmul.mubr.bf16.gmra.mxu0 %v5832
        %v6188 = vpop.f32.mrf.mxu0
        %v6189 = vadd.f32 %v6092, %v6188
        %v6190 = vpop.f32.mrf.mxu0
        %v6191 = vpop.f32.mrf.mxu0
        %v6192 = vadd.f32 %v6095, %v6191
        %v6193 = vpop.f32.mrf.mxu0
        %6194 = vdwg.mxu0
        %v6195 = vmax.f32 %v6133, 0.0
        %v6196 = vmax.f32 %v6136, 0.0
        %v6197 = vmax.f32 %v6141, 0.0
        %v6198 = vmax.f32 %v6144, 0.0
        %v6199 = vmax.f32 %v6149, 0.0
        %v6200 = vmax.f32 %v6152, 0.0
        %v6201 = vmax.f32 %v6157, 0.0
        %v6202 = vmax.f32 %v6160, 0.0
        %v6203 = vmax.f32 %v6165, 0.0
        %v6204 = vmax.f32 %v6168, 0.0
        %v6205 = vmax.f32 %v6173, 0.0
        %v6206 = vmax.f32 %v6176, 0.0
        %v6207 = vmax.f32 %v6181, 0.0
        %v6208 = vmax.f32 %v6184, 0.0
        %v6209 = vmax.f32 %v6189, 0.0
        %v6210 = vmax.f32 %v6192, 0.0
        %v6211 = vpack.c.bf16 %v6196, %v6195
        %v6212 = vpack.c.bf16 %v6198, %v6197
        %v6213 = vpack.c.bf16 %v6200, %v6199
        %v6214 = vpack.c.bf16 %v6202, %v6201
        %v6215 = vpack.c.bf16 %v6204, %v6203
        %v6216 = vpack.c.bf16 %v6206, %v6205
        %v6217 = vpack.c.bf16 %v6208, %v6207
        %v6218 = vpack.c.bf16 %v6210, %v6209
        %v6227 = vunpack.c.l.b16 %v6211
        %v6228 = vunpack.c.h.b16 %v6211
        %v6229 = vunpack.c.l.b16 %v6212
        %v6230 = vunpack.c.h.b16 %v6212
        %v6231 = vunpack.c.l.b16 %v6213
        %v6232 = vunpack.c.h.b16 %v6213
        %v6233 = vunpack.c.l.b16 %v6214
        %v6234 = vunpack.c.h.b16 %v6214
        %v6235 = vunpack.c.l.b16 %v6215
        %v6236 = vunpack.c.h.b16 %v6215
        %v6237 = vunpack.c.l.b16 %v6216
        %v6238 = vunpack.c.h.b16 %v6216
        %v6239 = vunpack.c.l.b16 %v6217
        %v6240 = vunpack.c.h.b16 %v6217
        %v6241 = vunpack.c.l.b16 %v6218
        %v6242 = vunpack.c.h.b16 %v6218
        %v6243 = vpack.c.b16 %v6227, %v6227
        %v6244 = vpack.c.b16 %v6228, %v6228
        %v6245 = vpack.c.b16 %v6229, %v6229
        %v6246 = vpack.c.b16 %v6230, %v6230
        %v6247 = vpack.c.b16 %v6231, %v6231
        %v6248 = vpack.c.b16 %v6232, %v6232
        %v6249 = vpack.c.b16 %v6233, %v6233
        %v6250 = vpack.c.b16 %v6234, %v6234
        %v6251 = vpack.c.b16 %v6235, %v6235
        %v6252 = vpack.c.b16 %v6236, %v6236
        %v6253 = vpack.c.b16 %v6237, %v6237
        %v6254 = vpack.c.b16 %v6238, %v6238
        %v6255 = vpack.c.b16 %v6239, %v6239
        %v6256 = vpack.c.b16 %v6240, %v6240
        %v6257 = vpack.c.b16 %v6241, %v6241
        %v6258 = vpack.c.b16 %v6242, %v6242
        %v6260 = vshrl.u32 %v6243, 16
        %v6262 = vrot.slane %v6260, 7
        %v6263 = vshll.u32 %v6243, 16
        %v6265 = vor.u32 %v6262, %v6263
        %v6266 = vrot.slane %v6262, 4
        %v6268 = vshrl.u32 %v6244, 16
        %v6270 = vrot.slane %v6268, 7
        %v6271 = vshll.u32 %v6244, 16
        %v6273 = vor.u32 %v6270, %v6271
        %v6274 = vsel %vm594, %v6266, %v6273
        %v6275 = vrot.slane %v6270, 4
        %v6277 = vshrl.u32 %v6245, 16
        %v6279 = vrot.slane %v6277, 7
        %v6280 = vshll.u32 %v6245, 16
        %v6282 = vor.u32 %v6279, %v6280
        %v6283 = vrot.slane %v6279, 4
        %v6285 = vshrl.u32 %v6246, 16
        %v6287 = vrot.slane %v6285, 7
        %v6288 = vshll.u32 %v6246, 16
        %v6290 = vor.u32 %v6287, %v6288
        %v6291 = vsel %vm594, %v6283, %v6290
        %v6292 = vrot.slane %v6287, 4
        %v6294 = vshrl.u32 %v6247, 16
        %v6296 = vrot.slane %v6294, 7
        %v6297 = vshll.u32 %v6247, 16
        %v6299 = vor.u32 %v6296, %v6297
        %v6300 = vrot.slane %v6296, 4
        %v6302 = vshrl.u32 %v6248, 16
        %v6304 = vrot.slane %v6302, 7
        %v6305 = vshll.u32 %v6248, 16
        %v6307 = vor.u32 %v6304, %v6305
        %v6308 = vsel %vm594, %v6300, %v6307
        %v6309 = vrot.slane %v6304, 4
        %v6311 = vshrl.u32 %v6249, 16
        %v6313 = vrot.slane %v6311, 7
        %v6314 = vshll.u32 %v6249, 16
        %v6316 = vor.u32 %v6313, %v6314
        %v6317 = vrot.slane %v6313, 4
        %v6319 = vshrl.u32 %v6250, 16
        %v6321 = vrot.slane %v6319, 7
        %v6322 = vshll.u32 %v6250, 16
        %v6324 = vor.u32 %v6321, %v6322
        %v6325 = vsel %vm594, %v6317, %v6324
        %v6326 = vrot.slane %v6321, 4
        %v6328 = vshrl.u32 %v6251, 16
        %v6330 = vrot.slane %v6328, 7
        %v6331 = vshll.u32 %v6251, 16
        %v6333 = vor.u32 %v6330, %v6331
        %v6334 = vrot.slane %v6330, 4
        %v6336 = vshrl.u32 %v6252, 16
        %v6338 = vrot.slane %v6336, 7
        %v6339 = vshll.u32 %v6252, 16
        %v6341 = vor.u32 %v6338, %v6339
        %v6342 = vsel %vm594, %v6334, %v6341
        %v6343 = vrot.slane %v6338, 4
        %v6345 = vshrl.u32 %v6253, 16
        %v6347 = vrot.slane %v6345, 7
        %v6348 = vshll.u32 %v6253, 16
        %v6350 = vor.u32 %v6347, %v6348
        %v6351 = vrot.slane %v6347, 4
        %v6353 = vshrl.u32 %v6254, 16
        %v6355 = vrot.slane %v6353, 7
        %v6356 = vshll.u32 %v6254, 16
        %v6358 = vor.u32 %v6355, %v6356
        %v6359 = vsel %vm594, %v6351, %v6358
        %v6360 = vrot.slane %v6355, 4
        %v6362 = vshrl.u32 %v6255, 16
        %v6364 = vrot.slane %v6362, 7
        %v6365 = vshll.u32 %v6255, 16
        %v6367 = vor.u32 %v6364, %v6365
        %v6368 = vrot.slane %v6364, 4
        %v6370 = vshrl.u32 %v6256, 16
        %v6372 = vrot.slane %v6370, 7
        %v6373 = vshll.u32 %v6256, 16
        %v6375 = vor.u32 %v6372, %v6373
        %v6376 = vsel %vm594, %v6368, %v6375
        %v6377 = vrot.slane %v6372, 4
        %v6379 = vshrl.u32 %v6257, 16
        %v6381 = vrot.slane %v6379, 7
        %v6382 = vshll.u32 %v6257, 16
        %v6384 = vor.u32 %v6381, %v6382
        %v6385 = vrot.slane %v6381, 4
        %v6387 = vshrl.u32 %v6258, 16
        %v6389 = vrot.slane %v6387, 7
        %v6390 = vshll.u32 %v6258, 16
        %v6392 = vor.u32 %v6389, %v6390
        %v6393 = vsel %vm594, %v6385, %v6392
        %v6394 = vrot.slane %v6389, 4
        %vm6419 = vcmask 519168
        %vm6420 = vmand %vm6419, %vm387
        %v6421 = vld [vmem:[#allocation4] sm:$0xf]
        %v6422 = vsel %vm6420, %v6265, %v6421
        %6423 = vst [vmem:[#allocation4] sm:$0xf] %v6422
        %vm6424 = vcmask 519168
        %6425 = vst.msk [vmem:[#allocation4 + $0x4] sm:$0xf] %vm6424, %v6274
        %v6426 = vld [vmem:[#allocation4 + $0x8] sm:$0x1]
        %v6427 = vsel %vm507, %v6275, %v6426
        %6428 = vst [vmem:[#allocation4 + $0x8] sm:$0x1] %v6427
        %v6429 = vld [vmem:[#allocation4 + $0xc] sm:$0xf]
        %v6430 = vsel %vm6420, %v6282, %v6429
        %6431 = vst [vmem:[#allocation4 + $0xc] sm:$0xf] %v6430
        %6432 = vst.msk [vmem:[#allocation4 + $0x10] sm:$0xf] %vm6424, %v6291
        %v6433 = vld [vmem:[#allocation4 + $0x14] sm:$0x1]
        %v6434 = vsel %vm507, %v6292, %v6433
        %6435 = vst [vmem:[#allocation4 + $0x14] sm:$0x1] %v6434
        %v6436 = vld [vmem:[#allocation4 + $0x18] sm:$0xf]
        %v6437 = vsel %vm6420, %v6299, %v6436
        %6438 = vst [vmem:[#allocation4 + $0x18] sm:$0xf] %v6437
        %6439 = vst.msk [vmem:[#allocation4 + $0x1c] sm:$0xf] %vm6424, %v6308
        %v6440 = vld [vmem:[#allocation4 + $0x20] sm:$0x1]
        %v6441 = vsel %vm507, %v6309, %v6440
        %6442 = vst [vmem:[#allocation4 + $0x20] sm:$0x1] %v6441
        %v6443 = vld [vmem:[#allocation4 + $0x24] sm:$0xf]
        %v6444 = vsel %vm6420, %v6316, %v6443
        %6445 = vst [vmem:[#allocation4 + $0x24] sm:$0xf] %v6444
        %6446 = vst.msk [vmem:[#allocation4 + $0x28] sm:$0xf] %vm6424, %v6325
        %v6447 = vld [vmem:[#allocation4 + $0x2c] sm:$0x1]
        %v6448 = vsel %vm507, %v6326, %v6447
        %6449 = vst [vmem:[#allocation4 + $0x2c] sm:$0x1] %v6448
        %v6450 = vld [vmem:[#allocation4 + $0x30] sm:$0xf]
        %v6451 = vsel %vm6420, %v6333, %v6450
        %6452 = vst [vmem:[#allocation4 + $0x30] sm:$0xf] %v6451
        %6453 = vst.msk [vmem:[#allocation4 + $0x34] sm:$0xf] %vm6424, %v6342
        %v6454 = vld [vmem:[#allocation4 + $0x38] sm:$0x1]
        %v6455 = vsel %vm507, %v6343, %v6454
        %6456 = vst [vmem:[#allocation4 + $0x38] sm:$0x1] %v6455
        %v6457 = vld [vmem:[#allocation4 + $0x3c] sm:$0xf]
        %v6458 = vsel %vm6420, %v6350, %v6457
        %6459 = vst [vmem:[#allocation4 + $0x3c] sm:$0xf] %v6458
        %6460 = vst.msk [vmem:[#allocation4 + $0x40] sm:$0xf] %vm6424, %v6359
        %v6461 = vld [vmem:[#allocation4 + $0x44] sm:$0x1]
        %v6462 = vsel %vm507, %v6360, %v6461
        %6463 = vst [vmem:[#allocation4 + $0x44] sm:$0x1] %v6462
        %v6464 = vld [vmem:[#allocation4 + $0x48] sm:$0xf]
        %v6465 = vsel %vm6420, %v6367, %v6464
        %6466 = vst [vmem:[#allocation4 + $0x48] sm:$0xf] %v6465
        %6467 = vst.msk [vmem:[#allocation4 + $0x4c] sm:$0xf] %vm6424, %v6376
        %v6468 = vld [vmem:[#allocation4 + $0x50] sm:$0x1]
        %v6469 = vsel %vm507, %v6377, %v6468
        %6470 = vst [vmem:[#allocation4 + $0x50] sm:$0x1] %v6469
        %v6471 = vld [vmem:[#allocation4 + $0x54] sm:$0xf]
        %v6472 = vsel %vm6420, %v6384, %v6471
        %6473 = vst [vmem:[#allocation4 + $0x54] sm:$0xf] %v6472
        %6474 = vst.msk [vmem:[#allocation4 + $0x58] sm:$0xf] %vm6424, %v6393
        %v6475 = vld [vmem:[#allocation4 + $0x5c] sm:$0x1]
        %v6476 = vsel %vm507, %v6394, %v6475
        %6477 = vst [vmem:[#allocation4 + $0x5c] sm:$0x1] %v6476
        %v6478 = vld [vmem:[%s4233] sm:$0xf]
        %v6479 = vld [vmem:[%s4233 + $0x4] sm:$0xf]
        %v6480 = vld [vmem:[%s4233 + $0x8] sm:$0x1]
        %v6481 = vld [vmem:[%s4233 + $0xc] sm:$0xf]
        %v6482 = vld [vmem:[%s4233 + $0x10] sm:$0xf]
        %v6483 = vld [vmem:[%s4233 + $0x14] sm:$0x1]
        %6484 = vst.msk [vmem:[#allocation5] sm:$0xf] %vm3191, %v6478
        %6485 = vst.msk [vmem:[#allocation5 + $0x14] sm:$0xf] %vm3191, %v6479
        %6486 = vst.msk [vmem:[#allocation5 + $0x28] sm:$0xf] %vm3191, %v6481
        %6487 = vst.msk [vmem:[#allocation5 + $0x3c] sm:$0xf] %vm3191, %v6482
        %v6489 = vshrl.u32 %v6478, 16
        %v6491 = vrot.slane %v6489, 4
        %v6492 = vshll.u32 %v6478, 16
        %v6494 = vrot.slane %v6492, 5
        %v6495 = vor.u32 %v6491, %v6494
        %v6496 = vrot.slane %v6495, 4
        %v6498 = vshll.u32 %v6479, 16
        %v6500 = vrot.slane %v6498, 5
        %v6501 = vsel %vm1342, %v6496, %v6500
        %v6502 = vshrl.u32 %v6479, 16
        %v6504 = vrot.slane %v6502, 4
        %v6505 = vor.u32 %v6504, %v6500
        %v6506 = vrot.slane %v6505, 4
        %v6508 = vshll.u32 %v6480, 16
        %v6510 = vrot.slane %v6508, 5
        %v6511 = vsel %vm1342, %v6506, %v6510
        %v6513 = vshrl.u32 %v6481, 16
        %v6515 = vrot.slane %v6513, 4
        %v6516 = vshll.u32 %v6481, 16
        %v6518 = vrot.slane %v6516, 5
        %v6519 = vor.u32 %v6515, %v6518
        %v6520 = vrot.slane %v6519, 4
        %v6522 = vshll.u32 %v6482, 16
        %v6524 = vrot.slane %v6522, 5
        %v6525 = vsel %vm1342, %v6520, %v6524
        %v6526 = vshrl.u32 %v6482, 16
        %v6528 = vrot.slane %v6526, 4
        %v6529 = vor.u32 %v6528, %v6524
        %v6530 = vrot.slane %v6529, 4
        %v6532 = vshll.u32 %v6483, 16
        %v6534 = vrot.slane %v6532, 5
        %v6535 = vsel %vm1342, %v6530, %v6534
        %6536 = vrot.lane.b32.xlu0 %v6501, 32
        %v6537 = vpop.permute.xlu0 %6536
        %6538 = vrot.lane.b32.xlu0 %v6511, 32
        %v6539 = vpop.permute.xlu0 %6538
        %6540 = vrot.lane.b32.xlu0 %v6525, 32
        %v6541 = vpop.permute.xlu0 %6540
        %6542 = vrot.lane.b32.xlu0 %v6535, 32
        %v6543 = vpop.permute.xlu0 %6542
        %6548 = vst.msk [vmem:[#allocation5] sm:$0xf] %vm4565, %v6537
        %6549 = vst.msk [vmem:[#allocation5 + $0x14] sm:$0xf] %vm4565, %v6539
        %6550 = vst.msk [vmem:[#allocation5 + $0x28] sm:$0xf] %vm4565, %v6541
        %6551 = vst.msk [vmem:[#allocation5 + $0x3c] sm:$0xf] %vm4565, %v6543
        %v6558 = vrot.slane %v6478, 5
        %v6559 = vrot.slane %v6558, 4
        %v6560 = vrot.slane %v6479, 5
        %v6561 = vsel %vm1626, %v6559, %v6560
        %v6562 = vrot.slane %v6560, 4
        %v6563 = vrot.slane %v6480, 5
        %v6564 = vsel %vm1626, %v6562, %v6563
        %v6565 = vrot.slane %v6481, 5
        %v6566 = vrot.slane %v6565, 4
        %v6567 = vrot.slane %v6482, 5
        %v6568 = vsel %vm1626, %v6566, %v6567
        %v6569 = vrot.slane %v6567, 4
        %v6570 = vrot.slane %v6483, 5
        %v6571 = vsel %vm1626, %v6569, %v6570
        %6572 = vrot.lane.b32.xlu0 %v6561, 64
        %v6573 = vpop.permute.xlu0 %6572
        %6574 = vrot.lane.b32.xlu0 %v6564, 64
        %v6575 = vpop.permute.xlu0 %6574
        %6576 = vrot.lane.b32.xlu0 %v6568, 64
        %v6577 = vpop.permute.xlu0 %6576
        %6578 = vrot.lane.b32.xlu0 %v6571, 64
        %v6579 = vpop.permute.xlu0 %6578
        %6584 = vst.msk [vmem:[#allocation5] sm:$0xf] %vm4710, %v6573
        %6585 = vst.msk [vmem:[#allocation5 + $0x14] sm:$0xf] %vm4710, %v6575
        %6586 = vst.msk [vmem:[#allocation5 + $0x28] sm:$0xf] %vm4710, %v6577
        %6587 = vst.msk [vmem:[#allocation5 + $0x3c] sm:$0xf] %vm4710, %v6579
        %s6588 = scalar_lea.vmem [#allocation3], 108
        %v6589 = vld [vmem:[%s6588] sm:$0xf]
        %v6590 = vld [vmem:[%s6588 + $0x4] sm:$0xf]
        %v6591 = vld [vmem:[%s6588 + $0x8] sm:$0x1]
        %v6592 = vld [vmem:[%s6588 + $0xc] sm:$0xf]
        %v6593 = vld [vmem:[%s6588 + $0x10] sm:$0xf]
        %v6594 = vld [vmem:[%s6588 + $0x14] sm:$0x1]
        %6599 = vrot.lane.b32.xlu0 %v6589, 96
        %v6600 = vpop.permute.xlu0 %6599
        %6601 = vrot.lane.b32.xlu0 %v6590, 96
        %v6602 = vpop.permute.xlu0 %6601
        %6603 = vrot.lane.b32.xlu0 %v6592, 96
        %v6604 = vpop.permute.xlu0 %6603
        %6605 = vrot.lane.b32.xlu0 %v6593, 96
        %v6606 = vpop.permute.xlu0 %6605
        %6611 = vst.msk [vmem:[#allocation5] sm:$0xf] %vm4816, %v6600
        %6612 = vst.msk [vmem:[#allocation5 + $0x14] sm:$0xf] %vm4816, %v6602
        %6613 = vst.msk [vmem:[#allocation5 + $0x28] sm:$0xf] %vm4816, %v6604
        %6614 = vst.msk [vmem:[#allocation5 + $0x3c] sm:$0xf] %vm4816, %v6606
        %v6616 = vshrl.u32 %v6589, 16
        %v6618 = vrot.slane %v6616, 4
        %v6619 = vshll.u32 %v6589, 16
        %v6621 = vrot.slane %v6619, 5
        %v6622 = vor.u32 %v6618, %v6621
        %v6623 = vrot.slane %v6622, 4
        %v6625 = vshll.u32 %v6590, 16
        %v6627 = vrot.slane %v6625, 5
        %v6628 = vsel %vm1342, %v6623, %v6627
        %v6629 = vshrl.u32 %v6590, 16
        %v6631 = vrot.slane %v6629, 4
        %v6632 = vor.u32 %v6631, %v6627
        %v6633 = vrot.slane %v6632, 4
        %v6635 = vshll.u32 %v6591, 16
        %v6637 = vrot.slane %v6635, 5
        %v6638 = vsel %vm1342, %v6633, %v6637
        %v6640 = vshrl.u32 %v6592, 16
        %v6642 = vrot.slane %v6640, 4
        %v6643 = vshll.u32 %v6592, 16
        %v6645 = vrot.slane %v6643, 5
        %v6646 = vor.u32 %v6642, %v6645
        %v6647 = vrot.slane %v6646, 4
        %v6649 = vshll.u32 %v6593, 16
        %v6651 = vrot.slane %v6649, 5
        %v6652 = vsel %vm1342, %v6647, %v6651
        %v6653 = vshrl.u32 %v6593, 16
        %v6655 = vrot.slane %v6653, 4
        %v6656 = vor.u32 %v6655, %v6651
        %v6657 = vrot.slane %v6656, 4
        %v6659 = vshll.u32 %v6594, 16
        %v6661 = vrot.slane %v6659, 5
        %v6662 = vsel %vm1342, %v6657, %v6661
        %6667 = vst.msk [vmem:[#allocation5 + $0x4] sm:$0xf] %vm3191, %v6628
        %6668 = vst.msk [vmem:[#allocation5 + $0x18] sm:$0xf] %vm3191, %v6638
        %6669 = vst.msk [vmem:[#allocation5 + $0x2c] sm:$0xf] %vm3191, %v6652
        %6670 = vst.msk [vmem:[#allocation5 + $0x40] sm:$0xf] %vm3191, %v6662
        %v6673 = vrot.slane %v6589, 5
        %v6674 = vrot.slane %v6673, 4
        %v6675 = vrot.slane %v6590, 5
        %v6676 = vsel %vm1626, %v6674, %v6675
        %v6677 = vrot.slane %v6675, 4
        %v6678 = vrot.slane %v6591, 5
        %v6679 = vsel %vm1626, %v6677, %v6678
        %v6680 = vrot.slane %v6592, 5
        %v6681 = vrot.slane %v6680, 4
        %v6682 = vrot.slane %v6593, 5
        %v6683 = vsel %vm1626, %v6681, %v6682
        %v6684 = vrot.slane %v6682, 4
        %v6685 = vrot.slane %v6594, 5
        %v6686 = vsel %vm1626, %v6684, %v6685
        %6687 = vrot.lane.b32.xlu0 %v6676, 32
        %v6688 = vpop.permute.xlu0 %6687
        %6689 = vrot.lane.b32.xlu0 %v6679, 32
        %v6690 = vpop.permute.xlu0 %6689
        %6691 = vrot.lane.b32.xlu0 %v6683, 32
        %v6692 = vpop.permute.xlu0 %6691
        %6693 = vrot.lane.b32.xlu0 %v6686, 32
        %v6694 = vpop.permute.xlu0 %6693
        %6699 = vst.msk [vmem:[#allocation5 + $0x4] sm:$0xf] %vm4565, %v6688
        %6700 = vst.msk [vmem:[#allocation5 + $0x18] sm:$0xf] %vm4565, %v6690
        %6701 = vst.msk [vmem:[#allocation5 + $0x2c] sm:$0xf] %vm4565, %v6692
        %6702 = vst.msk [vmem:[#allocation5 + $0x40] sm:$0xf] %vm4565, %v6694
        %s6703 = scalar_lea.vmem [#allocation3], 120
        %v6704 = vld [vmem:[%s6703] sm:$0xf]
        %v6705 = vld [vmem:[%s6703 + $0x4] sm:$0xf]
        %v6706 = vld [vmem:[%s6703 + $0x8] sm:$0x1]
        %v6707 = vld [vmem:[%s6703 + $0xc] sm:$0xf]
        %v6708 = vld [vmem:[%s6703 + $0x10] sm:$0xf]
        %v6709 = vld [vmem:[%s6703 + $0x14] sm:$0x1]
        %6714 = vrot.lane.b32.xlu0 %v6704, 64
        %v6715 = vpop.permute.xlu0 %6714
        %6716 = vrot.lane.b32.xlu0 %v6705, 64
        %v6717 = vpop.permute.xlu0 %6716
        %6718 = vrot.lane.b32.xlu0 %v6707, 64
        %v6719 = vpop.permute.xlu0 %6718
        %6720 = vrot.lane.b32.xlu0 %v6708, 64
        %v6721 = vpop.permute.xlu0 %6720
        %6726 = vst.msk [vmem:[#allocation5 + $0x4] sm:$0xf] %vm4710, %v6715
        %6727 = vst.msk [vmem:[#allocation5 + $0x18] sm:$0xf] %vm4710, %v6717
        %6728 = vst.msk [vmem:[#allocation5 + $0x2c] sm:$0xf] %vm4710, %v6719
        %6729 = vst.msk [vmem:[#allocation5 + $0x40] sm:$0xf] %vm4710, %v6721
        %v6731 = vshrl.u32 %v6704, 16
        %v6733 = vrot.slane %v6731, 4
        %v6734 = vshll.u32 %v6704, 16
        %v6736 = vrot.slane %v6734, 5
        %v6737 = vor.u32 %v6733, %v6736
        %v6738 = vrot.slane %v6737, 4
        %v6740 = vshll.u32 %v6705, 16
        %v6742 = vrot.slane %v6740, 5
        %v6743 = vsel %vm1342, %v6738, %v6742
        %v6744 = vshrl.u32 %v6705, 16
        %v6746 = vrot.slane %v6744, 4
        %v6747 = vor.u32 %v6746, %v6742
        %v6748 = vrot.slane %v6747, 4
        %v6750 = vshll.u32 %v6706, 16
        %v6752 = vrot.slane %v6750, 5
        %v6753 = vsel %vm1342, %v6748, %v6752
        %v6755 = vshrl.u32 %v6707, 16
        %v6757 = vrot.slane %v6755, 4
        %v6758 = vshll.u32 %v6707, 16
        %v6760 = vrot.slane %v6758, 5
        %v6761 = vor.u32 %v6757, %v6760
        %v6762 = vrot.slane %v6761, 4
        %v6764 = vshll.u32 %v6708, 16
        %v6766 = vrot.slane %v6764, 5
        %v6767 = vsel %vm1342, %v6762, %v6766
        %v6768 = vshrl.u32 %v6708, 16
        %v6770 = vrot.slane %v6768, 4
        %v6771 = vor.u32 %v6770, %v6766
        %v6772 = vrot.slane %v6771, 4
        %v6774 = vshll.u32 %v6709, 16
        %v6776 = vrot.slane %v6774, 5
        %v6777 = vsel %vm1342, %v6772, %v6776
        %6778 = vrot.lane.b32.xlu0 %v6743, 96
        %v6779 = vpop.permute.xlu0 %6778
        %6780 = vrot.lane.b32.xlu0 %v6753, 96
        %v6781 = vpop.permute.xlu0 %6780
        %6782 = vrot.lane.b32.xlu0 %v6767, 96
        %v6783 = vpop.permute.xlu0 %6782
        %6784 = vrot.lane.b32.xlu0 %v6777, 96
        %v6785 = vpop.permute.xlu0 %6784
        %6790 = vst.msk [vmem:[#allocation5 + $0x4] sm:$0xf] %vm4816, %v6779
        %6791 = vst.msk [vmem:[#allocation5 + $0x18] sm:$0xf] %vm4816, %v6781
        %6792 = vst.msk [vmem:[#allocation5 + $0x2c] sm:$0xf] %vm4816, %v6783
        %6793 = vst.msk [vmem:[#allocation5 + $0x40] sm:$0xf] %vm4816, %v6785
        %v6796 = vrot.slane %v6704, 5
        %v6797 = vrot.slane %v6796, 4
        %v6798 = vrot.slane %v6705, 5
        %v6799 = vsel %vm1626, %v6797, %v6798
        %v6800 = vrot.slane %v6798, 4
        %v6801 = vrot.slane %v6706, 5
        %v6802 = vsel %vm1626, %v6800, %v6801
        %v6803 = vrot.slane %v6707, 5
        %v6804 = vrot.slane %v6803, 4
        %v6805 = vrot.slane %v6708, 5
        %v6806 = vsel %vm1626, %v6804, %v6805
        %v6807 = vrot.slane %v6805, 4
        %v6808 = vrot.slane %v6709, 5
        %v6809 = vsel %vm1626, %v6807, %v6808
        %6814 = vst.msk [vmem:[#allocation5 + $0x8] sm:$0xf] %vm3191, %v6799
        %6815 = vst.msk [vmem:[#allocation5 + $0x1c] sm:$0xf] %vm3191, %v6802
        %6816 = vst.msk [vmem:[#allocation5 + $0x30] sm:$0xf] %vm3191, %v6806
        %6817 = vst.msk [vmem:[#allocation5 + $0x44] sm:$0xf] %vm3191, %v6809
        %v6818 = vld [vmem:[#allocation5] sm:$0xff]
        %v6819 = vld [vmem:[#allocation5 + $0x8] sm:$0xf]
        %v6820 = vld [vmem:[#allocation5 + $0x14] sm:$0xff]
        %v6821 = vld [vmem:[#allocation5 + $0x1c] sm:$0xf]
        %v6822 = vld [vmem:[#allocation5 + $0x28] sm:$0xff]
        %v6823 = vld [vmem:[#allocation5 + $0x30] sm:$0xf]
        %v6824 = vld [vmem:[#allocation5 + $0x3c] sm:$0xff]
        %v6825 = vld [vmem:[#allocation5 + $0x44] sm:$0xf]
        %v6826 = vld [vmem:[%s3] sm:$0xf]
        %v6827 = vld [vmem:[%s3 + $0x4] sm:$0xf]
        %v6828 = vld [vmem:[%s3 + $0x8] sm:$0xf]
        %v6829 = vld [vmem:[%s3 + $0xc] sm:$0xf]
        %v6830 = vld [vmem:[%s3 + $0x10] sm:$0xf]
        %v6831 = vld [vmem:[%s3 + $0x14] sm:$0xf]
        %v6832 = vld [vmem:[%s3 + $0x18] sm:$0xf]
        %v6833 = vld [vmem:[%s3 + $0x1c] sm:$0xf]
        %v6834 = vld [vmem:[%s3 + $0x20] sm:$0xf]
        %v6835 = vld [vmem:[%s3 + $0x24] sm:$0xf]
        %v6836 = vld [vmem:[%s3 + $0x28] sm:$0xf]
        %v6837 = vld [vmem:[%s3 + $0x2c] sm:$0xf]
        %v6838 = vld [vmem:[%s3 + $0x30] sm:$0xf]
        %v6839 = vld [vmem:[%s3 + $0x34] sm:$0xf]
        %v6840 = vld [vmem:[%s3 + $0x38] sm:$0xf]
        %v6841 = vld [vmem:[%s3 + $0x3c] sm:$0xf]
        %v6842 = vld [vmem:[%s3 + $0x40] sm:$0xf]
        %v6843 = vld [vmem:[%s3 + $0x44] sm:$0xf]
        %v6844 = vld [vmem:[%s3 + $0x48] sm:$0xf]
        %v6845 = vld [vmem:[%s3 + $0x4c] sm:$0xf]
        %v6846 = vld [vmem:[%s3 + $0x50] sm:$0xf]
        %v6847 = vld [vmem:[%s3 + $0x54] sm:$0xf]
        %v6848 = vld [vmem:[%s3 + $0x58] sm:$0xf]
        %v6849 = vld [vmem:[%s3 + $0x5c] sm:$0xf]
        %v6850 = vld [vmem:[%s3 + $0x60] sm:$0xf]
        %v6851 = vld [vmem:[%s3 + $0x64] sm:$0xf]
        %v6852 = vld [vmem:[%s3 + $0x68] sm:$0xf]
        %v6853 = vld [vmem:[%s3 + $0x6c] sm:$0xf]
        %v6854 = vld [vmem:[%s3 + $0x70] sm:$0xf]
        %v6855 = vld [vmem:[%s3 + $0x74] sm:$0xf]
        %v6856 = vld [vmem:[%s3 + $0x78] sm:$0xf]
        %v6857 = vld [vmem:[%s3 + $0x7c] sm:$0xf]
        %v6858 = vld [vmem:[%s3 + $0x80] sm:$0xf]
        %v6859 = vld [vmem:[%s3 + $0x84] sm:$0xf]
        %v6860 = vld [vmem:[%s3 + $0x88] sm:$0xf]
        %v6861 = vld [vmem:[%s3 + $0x8c] sm:$0xf]
        %v6862 = vld [vmem:[%s3 + $0x90] sm:$0xf]
        %v6863 = vld [vmem:[%s3 + $0x94] sm:$0xf]
        %v6864 = vld [vmem:[%s3 + $0x98] sm:$0xf]
        %v6865 = vld [vmem:[%s3 + $0x9c] sm:$0xf]
        %v6866 = vld [vmem:[%s3 + $0xa0] sm:$0xf]
        %v6867 = vld [vmem:[%s3 + $0xa4] sm:$0xf]
        %v6868 = vld [vmem:[%s3 + $0xa8] sm:$0xf]
        %v6869 = vld [vmem:[%s3 + $0xac] sm:$0xf]
        %v6870 = vld [vmem:[%s3 + $0xb0] sm:$0xf]
        %v6871 = vld [vmem:[%s3 + $0xb4] sm:$0xf]
        %v6872 = vld [vmem:[%s3 + $0xb8] sm:$0xf]
        %v6873 = vld [vmem:[%s3 + $0xbc] sm:$0xf]
        %v6874 = vld [vmem:[%s4] sm:$0x1]
        %v6876 = vlaneseq
        %v6877 = vshrl.u32 %v6876, 7
        %v6878 = vsub.s32 0, %v6877
        %v6879 = vrot.slane %v6874, %v6878
        %v6889 = vunpack.c.l.b16 %v6818
        %v6890 = vunpack.c.h.b16 %v6818
        %v6891 = vunpack.c.l.b16 %v6819
        %v6892 = vunpack.c.l.b16 %v6820
        %v6893 = vunpack.c.h.b16 %v6820
        %v6894 = vunpack.c.l.b16 %v6821
        %v6895 = vunpack.c.l.b16 %v6822
        %v6896 = vunpack.c.h.b16 %v6822
        %v6897 = vunpack.c.l.b16 %v6823
        %v6898 = vunpack.c.l.b16 %v6824
        %v6899 = vunpack.c.h.b16 %v6824
        %v6900 = vunpack.c.l.b16 %v6825
        %v6901 = vpack.c.b16 %v6892, %v6889
        %v6902 = vpack.c.b16 %v6893, %v6890
        %v6903 = vpack.c.b16 %v6894, %v6891
        %v6904 = vpack.c.b16 %v6898, %v6895
        %v6905 = vpack.c.b16 %v6899, %v6896
        %v6906 = vpack.c.b16 %v6900, %v6897
        %v6961 = vunpack.c.l.b16 %v6826
        %v6962 = vunpack.c.l.b16 %v6827
        %v6963 = vunpack.c.l.b16 %v6828
        %v6964 = vunpack.c.l.b16 %v6829
        %v6965 = vunpack.c.l.b16 %v6830
        %v6966 = vunpack.c.l.b16 %v6831
        %v6967 = vunpack.c.l.b16 %v6832
        %v6968 = vunpack.c.l.b16 %v6833
        %v6969 = vunpack.c.l.b16 %v6834
        %v6970 = vunpack.c.l.b16 %v6835
        %v6971 = vunpack.c.l.b16 %v6836
        %v6972 = vunpack.c.l.b16 %v6837
        %v6973 = vunpack.c.l.b16 %v6838
        %v6974 = vunpack.c.l.b16 %v6839
        %v6975 = vunpack.c.l.b16 %v6840
        %v6976 = vunpack.c.l.b16 %v6841
        %v6977 = vunpack.c.l.b16 %v6842
        %v6978 = vunpack.c.l.b16 %v6843
        %v6979 = vunpack.c.l.b16 %v6844
        %v6980 = vunpack.c.l.b16 %v6845
        %v6981 = vunpack.c.l.b16 %v6846
        %v6982 = vunpack.c.l.b16 %v6847
        %v6983 = vunpack.c.l.b16 %v6848
        %v6984 = vunpack.c.l.b16 %v6849
        %v6985 = vunpack.c.l.b16 %v6850
        %v6986 = vunpack.c.l.b16 %v6851
        %v6987 = vunpack.c.l.b16 %v6852
        %v6988 = vunpack.c.l.b16 %v6853
        %v6989 = vunpack.c.l.b16 %v6854
        %v6990 = vunpack.c.l.b16 %v6855
        %v6991 = vunpack.c.l.b16 %v6856
        %v6992 = vunpack.c.l.b16 %v6857
        %v6993 = vunpack.c.l.b16 %v6858
        %v6994 = vunpack.c.l.b16 %v6859
        %v6995 = vunpack.c.l.b16 %v6860
        %v6996 = vunpack.c.l.b16 %v6861
        %v6997 = vunpack.c.l.b16 %v6862
        %v6998 = vunpack.c.l.b16 %v6863
        %v6999 = vunpack.c.l.b16 %v6864
        %v7000 = vunpack.c.l.b16 %v6865
        %v7001 = vunpack.c.l.b16 %v6866
        %v7002 = vunpack.c.l.b16 %v6867
        %v7003 = vunpack.c.l.b16 %v6868
        %v7004 = vunpack.c.l.b16 %v6869
        %v7005 = vunpack.c.l.b16 %v6870
        %v7006 = vunpack.c.l.b16 %v6871
        %v7007 = vunpack.c.l.b16 %v6872
        %v7008 = vunpack.c.l.b16 %v6873
        %v7009 = vpack.c.b16 %v6962, %v6961
        %v7010 = vpack.c.b16 %v6964, %v6963
        %v7011 = vpack.c.b16 %v6966, %v6965
        %v7012 = vpack.c.b16 %v6968, %v6967
        %v7013 = vpack.c.b16 %v6970, %v6969
        %v7014 = vpack.c.b16 %v6972, %v6971
        %v7015 = vpack.c.b16 %v6974, %v6973
        %v7016 = vpack.c.b16 %v6976, %v6975
        %v7017 = vpack.c.b16 %v6978, %v6977
        %v7018 = vpack.c.b16 %v6980, %v6979
        %v7019 = vpack.c.b16 %v6982, %v6981
        %v7020 = vpack.c.b16 %v6984, %v6983
        %v7021 = vpack.c.b16 %v6986, %v6985
        %v7022 = vpack.c.b16 %v6988, %v6987
        %v7023 = vpack.c.b16 %v6990, %v6989
        %v7024 = vpack.c.b16 %v6992, %v6991
        %v7025 = vpack.c.b16 %v6994, %v6993
        %v7026 = vpack.c.b16 %v6996, %v6995
        %v7027 = vpack.c.b16 %v6998, %v6997
        %v7028 = vpack.c.b16 %v7000, %v6999
        %v7029 = vpack.c.b16 %v7002, %v7001
        %v7030 = vpack.c.b16 %v7004, %v7003
        %v7031 = vpack.c.b16 %v7006, %v7005
        %v7032 = vpack.c.b16 %v7008, %v7007
        %7057 = vmatprep.subr.bf16.mxu0 0
        %7058 = vmatpush1.bf16.msra.mxu0 %v7016
        %7059 = vmatprep.subr.bf16.mxu0 0
        %7060 = vmatpush1.bf16.msra.mxu0 %v7015
        %7061 = vmatprep.subr.bf16.mxu0 0
        %7062 = vmatpush1.bf16.msra.mxu0 %v7014
        %7063 = vmatprep.subr.bf16.mxu0 0
        %7064 = vmatpush1.bf16.msra.mxu0 %v7013
        %7065 = vmatprep.subr.bf16.mxu0 0
        %7066 = vmatpush1.bf16.msra.mxu0 %v7012
        %7067 = vmatprep.subr.bf16.mxu0 0
        %7068 = vmatpush1.bf16.msra.mxu0 %v7011
        %7069 = vmatprep.subr.bf16.mxu0 0
        %7070 = vmatpush1.bf16.msra.mxu0 %v7010
        %7071 = vmatprep.subr.bf16.mxu0 0
        %7072 = vmatpush1.bf16.msra.mxu0 %v7009
        %7073 = vmatprep.subr.bf16.mxu0 0
        %7074 = vmatpush2.bf16.msra.mxu0 %v7024
        %7075 = vmatprep.subr.bf16.mxu0 0
        %7076 = vmatpush2.bf16.msra.mxu0 %v7023
        %7077 = vmatprep.subr.bf16.mxu0 0
        %7078 = vmatpush2.bf16.msra.mxu0 %v7022
        %7079 = vmatprep.subr.bf16.mxu0 0
        %7080 = vmatpush2.bf16.msra.mxu0 %v7021
        %7081 = vmatprep.subr.bf16.mxu0 0
        %7082 = vmatpush2.bf16.msra.mxu0 %v7020
        %7083 = vmatprep.subr.bf16.mxu0 0
        %7084 = vmatpush2.bf16.msra.mxu0 %v7019
        %7085 = vmatprep.subr.bf16.mxu0 0
        %7086 = vmatpush2.bf16.msra.mxu0 %v7018
        %7087 = vmatprep.subr.bf16.mxu0 0
        %7088 = vmatpush2.bf16.msra.mxu0 %v7017
        %7089 = vmatprep.mubr.bf16.mxu0 %v6902
        %7090 = vmatmul.mubr.bf16.gmra.mxu0 %v6901
        %v7091 = vpop.f32.mrf.mxu0
        %v7092 = vadd.f32 %v6879, %v7091
        %v7093 = vpop.f32.mrf.mxu0
        %v7094 = vpop.f32.mrf.mxu0
        %v7095 = vadd.f32 %v6879, %v7094
        %v7096 = vpop.f32.mrf.mxu0
        %7097 = vmatprep.mubr.bf16.mxu0 %v6905
        %7098 = vmatmul.mubr.bf16.gmra.mxu0 %v6904
        %v7099 = vpop.f32.mrf.mxu0
        %v7100 = vadd.f32 %v6879, %v7099
        %v7101 = vpop.f32.mrf.mxu0
        %v7102 = vpop.f32.mrf.mxu0
        %v7103 = vadd.f32 %v6879, %v7102
        %v7104 = vpop.f32.mrf.mxu0
        %7105 = vdwg.mxu0
        %7106 = vmatprep.subr.bf16.mxu0 0
        %7107 = vmatpush1.bf16.msra.mxu0 %v7032
        %7108 = vmatprep.subr.bf16.mxu0 0
        %7109 = vmatpush1.bf16.msra.mxu0 %v7031
        %7110 = vmatprep.subr.bf16.mxu0 0
        %7111 = vmatpush1.bf16.msra.mxu0 %v7030
        %7112 = vmatprep.subr.bf16.mxu0 0
        %7113 = vmatpush1.bf16.msra.mxu0 %v7029
        %7114 = vmatprep.subr.bf16.mxu0 0
        %7115 = vmatpush1.bf16.msra.mxu0 %v7028
        %7116 = vmatprep.subr.bf16.mxu0 0
        %7117 = vmatpush1.bf16.msra.mxu0 %v7027
        %7118 = vmatprep.subr.bf16.mxu0 0
        %7119 = vmatpush1.bf16.msra.mxu0 %v7026
        %7120 = vmatprep.subr.bf16.mxu0 0
        %7121 = vmatpush1.bf16.msra.mxu0 %v7025
        %7122 = vmatprep.subr.bf16.mxu0 0
        %7123 = vmatpush2.bf16.msra.mxu0 0
        %7124 = vmatprep.subr.bf16.mxu0 0
        %7125 = vmatpush2.bf16.msra.mxu0 0
        %7126 = vmatprep.subr.bf16.mxu0 0
        %7127 = vmatpush2.bf16.msra.mxu0 0
        %7128 = vmatprep.subr.bf16.mxu0 0
        %7129 = vmatpush2.bf16.msra.mxu0 0
        %7130 = vmatprep.subr.bf16.mxu0 0
        %7131 = vmatpush2.bf16.msra.mxu0 0
        %7132 = vmatprep.subr.bf16.mxu0 0
        %7133 = vmatpush2.bf16.msra.mxu0 0
        %7134 = vmatprep.subr.bf16.mxu0 0
        %7135 = vmatpush2.bf16.msra.mxu0 0
        %7136 = vmatprep.subr.bf16.mxu0 0
        %7137 = vmatpush2.bf16.msra.mxu0 0
        %7138 = vmatprep.mubr.bf16.mxu0 0
        %7139 = vmatmul.mubr.bf16.gmra.mxu0 %v6903
        %v7140 = vpop.f32.mrf.mxu0
        %v7141 = vadd.f32 %v7092, %v7140
        %v7142 = vpop.f32.mrf.mxu0
        %v7143 = vpop.f32.mrf.mxu0
        %v7144 = vadd.f32 %v7095, %v7143
        %v7145 = vpop.f32.mrf.mxu0
        %7146 = vmatprep.mubr.bf16.mxu0 0
        %7147 = vmatmul.mubr.bf16.gmra.mxu0 %v6906
        %v7148 = vpop.f32.mrf.mxu0
        %v7149 = vadd.f32 %v7100, %v7148
        %v7150 = vpop.f32.mrf.mxu0
        %v7151 = vpop.f32.mrf.mxu0
        %v7152 = vadd.f32 %v7103, %v7151
        %v7153 = vpop.f32.mrf.mxu0
        %7154 = vdwg.mxu0
        %v7155 = vmax.f32 %v7141, 0.0
        %v7156 = vmax.f32 %v7144, 0.0
        %v7157 = vmax.f32 %v7149, 0.0
        %v7158 = vmax.f32 %v7152, 0.0
        %v7159 = vpack.c.bf16 %v7156, %v7155
        %v7160 = vpack.c.bf16 %v7158, %v7157
        %v7163 = vunpack.c.l.b16 %v7159
        %v7164 = vunpack.c.h.b16 %v7159
        %v7165 = vunpack.c.l.b16 %v7160
        %v7166 = vunpack.c.h.b16 %v7160
        %v7167 = vpack.c.b16 %v7163, %v7163
        %v7168 = vpack.c.b16 %v7164, %v7164
        %v7169 = vpack.c.b16 %v7165, %v7165
        %v7170 = vpack.c.b16 %v7166, %v7166
        %v7172 = vshrl.u32 %v7167, 16
        %v7174 = vrot.slane %v7172, 7
        %v7175 = vshll.u32 %v7167, 16
        %v7177 = vor.u32 %v7174, %v7175
        %v7178 = vrot.slane %v7174, 4
        %v7180 = vshrl.u32 %v7168, 16
        %v7182 = vrot.slane %v7180, 7
        %v7183 = vshll.u32 %v7168, 16
        %v7185 = vor.u32 %v7182, %v7183
        %v7186 = vsel %vm594, %v7178, %v7185
        %v7187 = vrot.slane %v7182, 4
        %v7189 = vshrl.u32 %v7169, 16
        %v7191 = vrot.slane %v7189, 7
        %v7192 = vshll.u32 %v7169, 16
        %v7194 = vor.u32 %v7191, %v7192
        %v7195 = vrot.slane %v7191, 4
        %v7197 = vshrl.u32 %v7170, 16
        %v7199 = vrot.slane %v7197, 7
        %v7200 = vshll.u32 %v7170, 16
        %v7202 = vor.u32 %v7199, %v7200
        %v7203 = vsel %vm594, %v7195, %v7202
        %v7204 = vrot.slane %v7199, 4
        %s7211 = scalar_lea.vmem [#allocation4], 96
        %v7212 = vld [vmem:[%s7211] sm:$0xf]
        %v7213 = vsel %vm6420, %v7177, %v7212
        %7214 = vst [vmem:[%s7211] sm:$0xf] %v7213
        %7215 = vst.msk [vmem:[%s7211 + $0x4] sm:$0xf] %vm6424, %v7186
        %v7216 = vld [vmem:[%s7211 + $0x8] sm:$0x1]
        %v7217 = vsel %vm507, %v7187, %v7216
        %7218 = vst [vmem:[%s7211 + $0x8] sm:$0x1] %v7217
        %v7219 = vld [vmem:[%s7211 + $0xc] sm:$0xf]
        %v7220 = vsel %vm6420, %v7194, %v7219
        %7221 = vst [vmem:[%s7211 + $0xc] sm:$0xf] %v7220
        %7222 = vst.msk [vmem:[%s7211 + $0x10] sm:$0xf] %vm6424, %v7203
        %v7223 = vld [vmem:[%s7211 + $0x14] sm:$0x1]
        %v7224 = vsel %vm507, %v7204, %v7223
        %7225 = vst [vmem:[%s7211 + $0x14] sm:$0x1] %v7224
        // Predicated region
        $region57: #{feature_extractor_nhwc.1} parent=47 // pred_check
          %p7226 = pneg %p4262
        $region58: #{feature_extractor_nhwc.1} parent=47 // pred_check_branch
          %7228 = sbr.rel (%p7226) target = $region60
        $region59: #{feature_extractor_nhwc.1} parent=47 // pred_region
          %7229 = vst.msk [vmem:[#allocation4] sm:$0xf] %vm6424, 0
          %7230 = vst.msk [vmem:[#allocation4 + $0x4] sm:$0xf] %vm6424, 0
          %vm7231 = vcmask 516096
          %7232 = vst.msk [vmem:[#allocation4 + $0x8] sm:$0x1] %vm7231, 0
        $region60: #{feature_extractor_nhwc.1} parent=47 // pred_fallthru
          _
        // Predicated region
        $region61: #{feature_extractor_nhwc.1} parent=47 // pred_check
          %p7233 = pneg %p4273
        $region62: #{feature_extractor_nhwc.1} parent=47 // pred_check_branch
          %7235 = sbr.rel (%p7233) target = $region64
        $region63: #{feature_extractor_nhwc.1} parent=47 // pred_region
          %s7236 = scalar_lea.vmem [#allocation4], 108
          %7237 = vst.msk [vmem:[%s7236] sm:$0xf] %vm6424, 0
          %7238 = vst.msk [vmem:[%s7236 + $0x4] sm:$0xf] %vm6424, 0
          %vm7239 = vcmask 516096
          %7240 = vst.msk [vmem:[%s7236 + $0x8] sm:$0x1] %vm7239, 0
        $region64: #{feature_extractor_nhwc.1} parent=47 // pred_fallthru
          _
        %v7241 = vld [vmem:[#allocation4] sm:$0xf]
        %v7242 = vld [vmem:[#allocation4 + $0x4] sm:$0xf]
        %v7243 = vld [vmem:[#allocation4 + $0x8] sm:$0x1]
        %v7244 = vld [vmem:[#allocation4 + $0xc] sm:$0xf]
        %v7245 = vld [vmem:[#allocation4 + $0x10] sm:$0xf]
        %v7246 = vld [vmem:[#allocation4 + $0x14] sm:$0x1]
        %v7247 = vld [vmem:[#allocation4 + $0x18] sm:$0xf]
        %v7248 = vld [vmem:[#allocation4 + $0x1c] sm:$0xf]
        %v7249 = vld [vmem:[#allocation4 + $0x20] sm:$0x1]
        %v7250 = vld [vmem:[#allocation4 + $0x24] sm:$0xf]
        %v7251 = vld [vmem:[#allocation4 + $0x28] sm:$0xf]
        %v7252 = vld [vmem:[#allocation4 + $0x2c] sm:$0x1]
        %v7253 = vld [vmem:[#allocation4 + $0x30] sm:$0xf]
        %v7254 = vld [vmem:[#allocation4 + $0x34] sm:$0xf]
        %v7255 = vld [vmem:[#allocation4 + $0x38] sm:$0x1]
        %v7256 = vld [vmem:[#allocation4 + $0x3c] sm:$0xf]
        %v7257 = vld [vmem:[#allocation4 + $0x40] sm:$0xf]
        %v7258 = vld [vmem:[#allocation4 + $0x44] sm:$0x1]
        %v7259 = vld [vmem:[#allocation4 + $0x48] sm:$0xf]
        %v7260 = vld [vmem:[#allocation4 + $0x4c] sm:$0xf]
        %v7261 = vld [vmem:[#allocation4 + $0x50] sm:$0x1]
        %v7262 = vld [vmem:[#allocation4 + $0x54] sm:$0xf]
        %v7263 = vld [vmem:[#allocation4 + $0x58] sm:$0xf]
        %v7264 = vld [vmem:[#allocation4 + $0x5c] sm:$0x1]
        %7265 = vst.msk [vmem:[#allocation5] sm:$0xf] %vm6424, %v7241
        %7266 = vst.msk [vmem:[#allocation5 + $0x14] sm:$0xf] %vm6424, %v7242
        %7267 = vst.msk [vmem:[#allocation5 + $0x28] sm:$0xf] %vm6424, %v7244
        %7268 = vst.msk [vmem:[#allocation5 + $0x3c] sm:$0xf] %vm6424, %v7245
        %7269 = vst.msk [vmem:[#allocation5 + $0x50] sm:$0xf] %vm6424, %v7247
        %7270 = vst.msk [vmem:[#allocation5 + $0x64] sm:$0xf] %vm6424, %v7248
        %7271 = vst.msk [vmem:[#allocation5 + $0x78] sm:$0xf] %vm6424, %v7250
        %7272 = vst.msk [vmem:[#allocation5 + $0x8c] sm:$0xf] %vm6424, %v7251
        %7273 = vst.msk [vmem:[#allocation5 + $0xa0] sm:$0xf] %vm6424, %v7253
        %7274 = vst.msk [vmem:[#allocation5 + $0xb4] sm:$0xf] %vm6424, %v7254
        %7275 = vst.msk [vmem:[#allocation5 + $0xc8] sm:$0xf] %vm6424, %v7256
        %7276 = vst.msk [vmem:[#allocation5 + $0xdc] sm:$0xf] %vm6424, %v7257
        %7277 = vst.msk [vmem:[#allocation5 + $0xf0] sm:$0xf] %vm6424, %v7259
        %7278 = vst.msk [vmem:[#allocation5 + $0x104] sm:$0xf] %vm6424, %v7260
        %7279 = vst.msk [vmem:[#allocation5 + $0x118] sm:$0xf] %vm6424, %v7262
        %7280 = vst.msk [vmem:[#allocation5 + $0x12c] sm:$0xf] %vm6424, %v7263
        %v7282 = vshrl.u32 %v7241, 16
        %v7284 = vrot.slane %v7282, 4
        %v7285 = vshll.u32 %v7241, 16
        %v7287 = vrot.slane %v7285, 5
        %v7288 = vor.u32 %v7284, %v7287
        %v7289 = vrot.slane %v7288, 4
        %v7291 = vshll.u32 %v7242, 16
        %v7293 = vrot.slane %v7291, 5
        %v7294 = vsel %vm1342, %v7289, %v7293
        %v7295 = vshrl.u32 %v7242, 16
        %v7297 = vrot.slane %v7295, 4
        %v7298 = vor.u32 %v7297, %v7293
        %v7299 = vrot.slane %v7298, 4
        %v7301 = vshll.u32 %v7243, 16
        %v7303 = vrot.slane %v7301, 5
        %v7304 = vsel %vm1342, %v7299, %v7303
        %v7306 = vshrl.u32 %v7244, 16
        %v7308 = vrot.slane %v7306, 4
        %v7309 = vshll.u32 %v7244, 16
        %v7311 = vrot.slane %v7309, 5
        %v7312 = vor.u32 %v7308, %v7311
        %v7313 = vrot.slane %v7312, 4
        %v7315 = vshll.u32 %v7245, 16
        %v7317 = vrot.slane %v7315, 5
        %v7318 = vsel %vm1342, %v7313, %v7317
        %v7319 = vshrl.u32 %v7245, 16
        %v7321 = vrot.slane %v7319, 4
        %v7322 = vor.u32 %v7321, %v7317
        %v7323 = vrot.slane %v7322, 4
        %v7325 = vshll.u32 %v7246, 16
        %v7327 = vrot.slane %v7325, 5
        %v7328 = vsel %vm1342, %v7323, %v7327
        %v7330 = vshrl.u32 %v7247, 16
        %v7332 = vrot.slane %v7330, 4
        %v7333 = vshll.u32 %v7247, 16
        %v7335 = vrot.slane %v7333, 5
        %v7336 = vor.u32 %v7332, %v7335
        %v7337 = vrot.slane %v7336, 4
        %v7339 = vshll.u32 %v7248, 16
        %v7341 = vrot.slane %v7339, 5
        %v7342 = vsel %vm1342, %v7337, %v7341
        %v7343 = vshrl.u32 %v7248, 16
        %v7345 = vrot.slane %v7343, 4
        %v7346 = vor.u32 %v7345, %v7341
        %v7347 = vrot.slane %v7346, 4
        %v7349 = vshll.u32 %v7249, 16
        %v7351 = vrot.slane %v7349, 5
        %v7352 = vsel %vm1342, %v7347, %v7351
        %v7354 = vshrl.u32 %v7250, 16
        %v7356 = vrot.slane %v7354, 4
        %v7357 = vshll.u32 %v7250, 16
        %v7359 = vrot.slane %v7357, 5
        %v7360 = vor.u32 %v7356, %v7359
        %v7361 = vrot.slane %v7360, 4
        %v7363 = vshll.u32 %v7251, 16
        %v7365 = vrot.slane %v7363, 5
        %v7366 = vsel %vm1342, %v7361, %v7365
        %v7367 = vshrl.u32 %v7251, 16
        %v7369 = vrot.slane %v7367, 4
        %v7370 = vor.u32 %v7369, %v7365
        %v7371 = vrot.slane %v7370, 4
        %v7373 = vshll.u32 %v7252, 16
        %v7375 = vrot.slane %v7373, 5
        %v7376 = vsel %vm1342, %v7371, %v7375
        %v7378 = vshrl.u32 %v7253, 16
        %v7380 = vrot.slane %v7378, 4
        %v7381 = vshll.u32 %v7253, 16
        %v7383 = vrot.slane %v7381, 5
        %v7384 = vor.u32 %v7380, %v7383
        %v7385 = vrot.slane %v7384, 4
        %v7387 = vshll.u32 %v7254, 16
        %v7389 = vrot.slane %v7387, 5
        %v7390 = vsel %vm1342, %v7385, %v7389
        %v7391 = vshrl.u32 %v7254, 16
        %v7393 = vrot.slane %v7391, 4
        %v7394 = vor.u32 %v7393, %v7389
        %v7395 = vrot.slane %v7394, 4
        %v7397 = vshll.u32 %v7255, 16
        %v7399 = vrot.slane %v7397, 5
        %v7400 = vsel %vm1342, %v7395, %v7399
        %v7402 = vshrl.u32 %v7256, 16
        %v7404 = vrot.slane %v7402, 4
        %v7405 = vshll.u32 %v7256, 16
        %v7407 = vrot.slane %v7405, 5
        %v7408 = vor.u32 %v7404, %v7407
        %v7409 = vrot.slane %v7408, 4
        %v7411 = vshll.u32 %v7257, 16
        %v7413 = vrot.slane %v7411, 5
        %v7414 = vsel %vm1342, %v7409, %v7413
        %v7415 = vshrl.u32 %v7257, 16
        %v7417 = vrot.slane %v7415, 4
        %v7418 = vor.u32 %v7417, %v7413
        %v7419 = vrot.slane %v7418, 4
        %v7421 = vshll.u32 %v7258, 16
        %v7423 = vrot.slane %v7421, 5
        %v7424 = vsel %vm1342, %v7419, %v7423
        %v7426 = vshrl.u32 %v7259, 16
        %v7428 = vrot.slane %v7426, 4
        %v7429 = vshll.u32 %v7259, 16
        %v7431 = vrot.slane %v7429, 5
        %v7432 = vor.u32 %v7428, %v7431
        %v7433 = vrot.slane %v7432, 4
        %v7435 = vshll.u32 %v7260, 16
        %v7437 = vrot.slane %v7435, 5
        %v7438 = vsel %vm1342, %v7433, %v7437
        %v7439 = vshrl.u32 %v7260, 16
        %v7441 = vrot.slane %v7439, 4
        %v7442 = vor.u32 %v7441, %v7437
        %v7443 = vrot.slane %v7442, 4
        %v7445 = vshll.u32 %v7261, 16
        %v7447 = vrot.slane %v7445, 5
        %v7448 = vsel %vm1342, %v7443, %v7447
        %v7450 = vshrl.u32 %v7262, 16
        %v7452 = vrot.slane %v7450, 4
        %v7453 = vshll.u32 %v7262, 16
        %v7455 = vrot.slane %v7453, 5
        %v7456 = vor.u32 %v7452, %v7455
        %v7457 = vrot.slane %v7456, 4
        %v7459 = vshll.u32 %v7263, 16
        %v7461 = vrot.slane %v7459, 5
        %v7462 = vsel %vm1342, %v7457, %v7461
        %v7463 = vshrl.u32 %v7263, 16
        %v7465 = vrot.slane %v7463, 4
        %v7466 = vor.u32 %v7465, %v7461
        %v7467 = vrot.slane %v7466, 4
        %v7469 = vshll.u32 %v7264, 16
        %v7471 = vrot.slane %v7469, 5
        %v7472 = vsel %vm1342, %v7467, %v7471
        %7473 = vrot.lane.b32.xlu0 %v7294, 64
        %v7474 = vpop.permute.xlu0 %7473
        %7475 = vrot.lane.b32.xlu0 %v7304, 64
        %v7476 = vpop.permute.xlu0 %7475
        %7477 = vrot.lane.b32.xlu0 %v7318, 64
        %v7478 = vpop.permute.xlu0 %7477
        %7479 = vrot.lane.b32.xlu0 %v7328, 64
        %v7480 = vpop.permute.xlu0 %7479
        %7481 = vrot.lane.b32.xlu0 %v7342, 64
        %v7482 = vpop.permute.xlu0 %7481
        %7483 = vrot.lane.b32.xlu0 %v7352, 64
        %v7484 = vpop.permute.xlu0 %7483
        %7485 = vrot.lane.b32.xlu0 %v7366, 64
        %v7486 = vpop.permute.xlu0 %7485
        %7487 = vrot.lane.b32.xlu0 %v7376, 64
        %v7488 = vpop.permute.xlu0 %7487
        %7489 = vrot.lane.b32.xlu0 %v7390, 64
        %v7490 = vpop.permute.xlu0 %7489
        %7491 = vrot.lane.b32.xlu0 %v7400, 64
        %v7492 = vpop.permute.xlu0 %7491
        %7493 = vrot.lane.b32.xlu0 %v7414, 64
        %v7494 = vpop.permute.xlu0 %7493
        %7495 = vrot.lane.b32.xlu0 %v7424, 64
        %v7496 = vpop.permute.xlu0 %7495
        %7497 = vrot.lane.b32.xlu0 %v7438, 64
        %v7498 = vpop.permute.xlu0 %7497
        %7499 = vrot.lane.b32.xlu0 %v7448, 64
        %v7500 = vpop.permute.xlu0 %7499
        %7501 = vrot.lane.b32.xlu0 %v7462, 64
        %v7502 = vpop.permute.xlu0 %7501
        %7503 = vrot.lane.b32.xlu0 %v7472, 64
        %v7504 = vpop.permute.xlu0 %7503
        %vm7521 = vcmask 1043968
        %7522 = vst.msk [vmem:[#allocation5] sm:$0xf] %vm7521, %v7474
        %7523 = vst.msk [vmem:[#allocation5 + $0x14] sm:$0xf] %vm7521, %v7476
        %7524 = vst.msk [vmem:[#allocation5 + $0x28] sm:$0xf] %vm7521, %v7478
        %7525 = vst.msk [vmem:[#allocation5 + $0x3c] sm:$0xf] %vm7521, %v7480
        %7526 = vst.msk [vmem:[#allocation5 + $0x50] sm:$0xf] %vm7521, %v7482
        %7527 = vst.msk [vmem:[#allocation5 + $0x64] sm:$0xf] %vm7521, %v7484
        %7528 = vst.msk [vmem:[#allocation5 + $0x78] sm:$0xf] %vm7521, %v7486
        %7529 = vst.msk [vmem:[#allocation5 + $0x8c] sm:$0xf] %vm7521, %v7488
        %7530 = vst.msk [vmem:[#allocation5 + $0xa0] sm:$0xf] %vm7521, %v7490
        %7531 = vst.msk [vmem:[#allocation5 + $0xb4] sm:$0xf] %vm7521, %v7492
        %7532 = vst.msk [vmem:[#allocation5 + $0xc8] sm:$0xf] %vm7521, %v7494
        %7533 = vst.msk [vmem:[#allocation5 + $0xdc] sm:$0xf] %vm7521, %v7496
        %7534 = vst.msk [vmem:[#allocation5 + $0xf0] sm:$0xf] %vm7521, %v7498
        %7535 = vst.msk [vmem:[#allocation5 + $0x104] sm:$0xf] %vm7521, %v7500
        %7536 = vst.msk [vmem:[#allocation5 + $0x118] sm:$0xf] %vm7521, %v7502
        %7537 = vst.msk [vmem:[#allocation5 + $0x12c] sm:$0xf] %vm7521, %v7504
        %v7562 = vrot.slane %v7241, 5
        %v7563 = vrot.slane %v7562, 4
        %v7564 = vrot.slane %v7242, 5
        %v7565 = vsel %vm1626, %v7563, %v7564
        %v7566 = vrot.slane %v7564, 4
        %v7567 = vrot.slane %v7243, 5
        %v7568 = vsel %vm1626, %v7566, %v7567
        %v7569 = vrot.slane %v7244, 5
        %v7570 = vrot.slane %v7569, 4
        %v7571 = vrot.slane %v7245, 5
        %v7572 = vsel %vm1626, %v7570, %v7571
        %v7573 = vrot.slane %v7571, 4
        %v7574 = vrot.slane %v7246, 5
        %v7575 = vsel %vm1626, %v7573, %v7574
        %v7576 = vrot.slane %v7247, 5
        %v7577 = vrot.slane %v7576, 4
        %v7578 = vrot.slane %v7248, 5
        %v7579 = vsel %vm1626, %v7577, %v7578
        %v7580 = vrot.slane %v7578, 4
        %v7581 = vrot.slane %v7249, 5
        %v7582 = vsel %vm1626, %v7580, %v7581
        %v7583 = vrot.slane %v7250, 5
        %v7584 = vrot.slane %v7583, 4
        %v7585 = vrot.slane %v7251, 5
        %v7586 = vsel %vm1626, %v7584, %v7585
        %v7587 = vrot.slane %v7585, 4
        %v7588 = vrot.slane %v7252, 5
        %v7589 = vsel %vm1626, %v7587, %v7588
        %v7590 = vrot.slane %v7253, 5
        %v7591 = vrot.slane %v7590, 4
        %v7592 = vrot.slane %v7254, 5
        %v7593 = vsel %vm1626, %v7591, %v7592
        %v7594 = vrot.slane %v7592, 4
        %v7595 = vrot.slane %v7255, 5
        %v7596 = vsel %vm1626, %v7594, %v7595
        %v7597 = vrot.slane %v7256, 5
        %v7598 = vrot.slane %v7597, 4
        %v7599 = vrot.slane %v7257, 5
        %v7600 = vsel %vm1626, %v7598, %v7599
        %v7601 = vrot.slane %v7599, 4
        %v7602 = vrot.slane %v7258, 5
        %v7603 = vsel %vm1626, %v7601, %v7602
        %v7604 = vrot.slane %v7259, 5
        %v7605 = vrot.slane %v7604, 4
        %v7606 = vrot.slane %v7260, 5
        %v7607 = vsel %vm1626, %v7605, %v7606
        %v7608 = vrot.slane %v7606, 4
        %v7609 = vrot.slane %v7261, 5
        %v7610 = vsel %vm1626, %v7608, %v7609
        %v7611 = vrot.slane %v7262, 5
        %v7612 = vrot.slane %v7611, 4
        %v7613 = vrot.slane %v7263, 5
        %v7614 = vsel %vm1626, %v7612, %v7613
        %v7615 = vrot.slane %v7613, 4
        %v7616 = vrot.slane %v7264, 5
        %v7617 = vsel %vm1626, %v7615, %v7616
        %7634 = vst.msk [vmem:[#allocation5 + $0x4] sm:$0xf] %vm6424, %v7565
        %7635 = vst.msk [vmem:[#allocation5 + $0x18] sm:$0xf] %vm6424, %v7568
        %7636 = vst.msk [vmem:[#allocation5 + $0x2c] sm:$0xf] %vm6424, %v7572
        %7637 = vst.msk [vmem:[#allocation5 + $0x40] sm:$0xf] %vm6424, %v7575
        %7638 = vst.msk [vmem:[#allocation5 + $0x54] sm:$0xf] %vm6424, %v7579
        %7639 = vst.msk [vmem:[#allocation5 + $0x68] sm:$0xf] %vm6424, %v7582
        %7640 = vst.msk [vmem:[#allocation5 + $0x7c] sm:$0xf] %vm6424, %v7586
        %7641 = vst.msk [vmem:[#allocation5 + $0x90] sm:$0xf] %vm6424, %v7589
        %7642 = vst.msk [vmem:[#allocation5 + $0xa4] sm:$0xf] %vm6424, %v7593
        %7643 = vst.msk [vmem:[#allocation5 + $0xb8] sm:$0xf] %vm6424, %v7596
        %7644 = vst.msk [vmem:[#allocation5 + $0xcc] sm:$0xf] %vm6424, %v7600
        %7645 = vst.msk [vmem:[#allocation5 + $0xe0] sm:$0xf] %vm6424, %v7603
        %7646 = vst.msk [vmem:[#allocation5 + $0xf4] sm:$0xf] %vm6424, %v7607
        %7647 = vst.msk [vmem:[#allocation5 + $0x108] sm:$0xf] %vm6424, %v7610
        %7648 = vst.msk [vmem:[#allocation5 + $0x11c] sm:$0xf] %vm6424, %v7614
        %7649 = vst.msk [vmem:[#allocation5 + $0x130] sm:$0xf] %vm6424, %v7617
        %s7650 = scalar_lea.vmem [#allocation4], 12
        %v7651 = vld [vmem:[%s7650] sm:$0xf]
        %v7652 = vld [vmem:[%s7650 + $0x4] sm:$0xf]
        %v7653 = vld [vmem:[%s7650 + $0x8] sm:$0x1]
        %v7654 = vld [vmem:[%s7650 + $0xc] sm:$0xf]
        %v7655 = vld [vmem:[%s7650 + $0x10] sm:$0xf]
        %v7656 = vld [vmem:[%s7650 + $0x14] sm:$0x1]
        %v7657 = vld [vmem:[%s7650 + $0x18] sm:$0xf]
        %v7658 = vld [vmem:[%s7650 + $0x1c] sm:$0xf]
        %v7659 = vld [vmem:[%s7650 + $0x20] sm:$0x1]
        %v7660 = vld [vmem:[%s7650 + $0x24] sm:$0xf]
        %v7661 = vld [vmem:[%s7650 + $0x28] sm:$0xf]
        %v7662 = vld [vmem:[%s7650 + $0x2c] sm:$0x1]
        %v7663 = vld [vmem:[%s7650 + $0x30] sm:$0xf]
        %v7664 = vld [vmem:[%s7650 + $0x34] sm:$0xf]
        %v7665 = vld [vmem:[%s7650 + $0x38] sm:$0x1]
        %v7666 = vld [vmem:[%s7650 + $0x3c] sm:$0xf]
        %v7667 = vld [vmem:[%s7650 + $0x40] sm:$0xf]
        %v7668 = vld [vmem:[%s7650 + $0x44] sm:$0x1]
        %v7669 = vld [vmem:[%s7650 + $0x48] sm:$0xf]
        %v7670 = vld [vmem:[%s7650 + $0x4c] sm:$0xf]
        %v7671 = vld [vmem:[%s7650 + $0x50] sm:$0x1]
        %v7672 = vld [vmem:[%s7650 + $0x54] sm:$0xf]
        %v7673 = vld [vmem:[%s7650 + $0x58] sm:$0xf]
        %v7674 = vld [vmem:[%s7650 + $0x5c] sm:$0x1]
        %7691 = vrot.lane.b32.xlu0 %v7651, 64
        %v7692 = vpop.permute.xlu0 %7691
        %7693 = vrot.lane.b32.xlu0 %v7652, 64
        %v7694 = vpop.permute.xlu0 %7693
        %7695 = vrot.lane.b32.xlu0 %v7654, 64
        %v7696 = vpop.permute.xlu0 %7695
        %7697 = vrot.lane.b32.xlu0 %v7655, 64
        %v7698 = vpop.permute.xlu0 %7697
        %7699 = vrot.lane.b32.xlu0 %v7657, 64
        %v7700 = vpop.permute.xlu0 %7699
        %7701 = vrot.lane.b32.xlu0 %v7658, 64
        %v7702 = vpop.permute.xlu0 %7701
        %7703 = vrot.lane.b32.xlu0 %v7660, 64
        %v7704 = vpop.permute.xlu0 %7703
        %7705 = vrot.lane.b32.xlu0 %v7661, 64
        %v7706 = vpop.permute.xlu0 %7705
        %7707 = vrot.lane.b32.xlu0 %v7663, 64
        %v7708 = vpop.permute.xlu0 %7707
        %7709 = vrot.lane.b32.xlu0 %v7664, 64
        %v7710 = vpop.permute.xlu0 %7709
        %7711 = vrot.lane.b32.xlu0 %v7666, 64
        %v7712 = vpop.permute.xlu0 %7711
        %7713 = vrot.lane.b32.xlu0 %v7667, 64
        %v7714 = vpop.permute.xlu0 %7713
        %7715 = vrot.lane.b32.xlu0 %v7669, 64
        %v7716 = vpop.permute.xlu0 %7715
        %7717 = vrot.lane.b32.xlu0 %v7670, 64
        %v7718 = vpop.permute.xlu0 %7717
        %7719 = vrot.lane.b32.xlu0 %v7672, 64
        %v7720 = vpop.permute.xlu0 %7719
        %7721 = vrot.lane.b32.xlu0 %v7673, 64
        %v7722 = vpop.permute.xlu0 %7721
        %7739 = vst.msk [vmem:[#allocation5 + $0x4] sm:$0xf] %vm7521, %v7692
        %7740 = vst.msk [vmem:[#allocation5 + $0x18] sm:$0xf] %vm7521, %v7694
        %7741 = vst.msk [vmem:[#allocation5 + $0x2c] sm:$0xf] %vm7521, %v7696
        %7742 = vst.msk [vmem:[#allocation5 + $0x40] sm:$0xf] %vm7521, %v7698
        %7743 = vst.msk [vmem:[#allocation5 + $0x54] sm:$0xf] %vm7521, %v7700
        %7744 = vst.msk [vmem:[#allocation5 + $0x68] sm:$0xf] %vm7521, %v7702
        %7745 = vst.msk [vmem:[#allocation5 + $0x7c] sm:$0xf] %vm7521, %v7704
        %7746 = vst.msk [vmem:[#allocation5 + $0x90] sm:$0xf] %vm7521, %v7706
        %7747 = vst.msk [vmem:[#allocation5 + $0xa4] sm:$0xf] %vm7521, %v7708
        %7748 = vst.msk [vmem:[#allocation5 + $0xb8] sm:$0xf] %vm7521, %v7710
        %7749 = vst.msk [vmem:[#allocation5 + $0xcc] sm:$0xf] %vm7521, %v7712
        %7750 = vst.msk [vmem:[#allocation5 + $0xe0] sm:$0xf] %vm7521, %v7714
        %7751 = vst.msk [vmem:[#allocation5 + $0xf4] sm:$0xf] %vm7521, %v7716
        %7752 = vst.msk [vmem:[#allocation5 + $0x108] sm:$0xf] %vm7521, %v7718
        %7753 = vst.msk [vmem:[#allocation5 + $0x11c] sm:$0xf] %vm7521, %v7720
        %7754 = vst.msk [vmem:[#allocation5 + $0x130] sm:$0xf] %vm7521, %v7722
        %v7756 = vshrl.u32 %v7651, 16
        %v7758 = vrot.slane %v7756, 4
        %v7759 = vshll.u32 %v7651, 16
        %v7761 = vrot.slane %v7759, 5
        %v7762 = vor.u32 %v7758, %v7761
        %v7763 = vrot.slane %v7762, 4
        %v7765 = vshll.u32 %v7652, 16
        %v7767 = vrot.slane %v7765, 5
        %v7768 = vsel %vm1342, %v7763, %v7767
        %v7769 = vshrl.u32 %v7652, 16
        %v7771 = vrot.slane %v7769, 4
        %v7772 = vor.u32 %v7771, %v7767
        %v7773 = vrot.slane %v7772, 4
        %v7775 = vshll.u32 %v7653, 16
        %v7777 = vrot.slane %v7775, 5
        %v7778 = vsel %vm1342, %v7773, %v7777
        %v7780 = vshrl.u32 %v7654, 16
        %v7782 = vrot.slane %v7780, 4
        %v7783 = vshll.u32 %v7654, 16
        %v7785 = vrot.slane %v7783, 5
        %v7786 = vor.u32 %v7782, %v7785
        %v7787 = vrot.slane %v7786, 4
        %v7789 = vshll.u32 %v7655, 16
        %v7791 = vrot.slane %v7789, 5
        %v7792 = vsel %vm1342, %v7787, %v7791
        %v7793 = vshrl.u32 %v7655, 16
        %v7795 = vrot.slane %v7793, 4
        %v7796 = vor.u32 %v7795, %v7791
        %v7797 = vrot.slane %v7796, 4
        %v7799 = vshll.u32 %v7656, 16
        %v7801 = vrot.slane %v7799, 5
        %v7802 = vsel %vm1342, %v7797, %v7801
        %v7804 = vshrl.u32 %v7657, 16
        %v7806 = vrot.slane %v7804, 4
        %v7807 = vshll.u32 %v7657, 16
        %v7809 = vrot.slane %v7807, 5
        %v7810 = vor.u32 %v7806, %v7809
        %v7811 = vrot.slane %v7810, 4
        %v7813 = vshll.u32 %v7658, 16
        %v7815 = vrot.slane %v7813, 5
        %v7816 = vsel %vm1342, %v7811, %v7815
        %v7817 = vshrl.u32 %v7658, 16
        %v7819 = vrot.slane %v7817, 4
        %v7820 = vor.u32 %v7819, %v7815
        %v7821 = vrot.slane %v7820, 4
        %v7823 = vshll.u32 %v7659, 16
        %v7825 = vrot.slane %v7823, 5
        %v7826 = vsel %vm1342, %v7821, %v7825
        %v7828 = vshrl.u32 %v7660, 16
        %v7830 = vrot.slane %v7828, 4
        %v7831 = vshll.u32 %v7660, 16
        %v7833 = vrot.slane %v7831, 5
        %v7834 = vor.u32 %v7830, %v7833
        %v7835 = vrot.slane %v7834, 4
        %v7837 = vshll.u32 %v7661, 16
        %v7839 = vrot.slane %v7837, 5
        %v7840 = vsel %vm1342, %v7835, %v7839
        %v7841 = vshrl.u32 %v7661, 16
        %v7843 = vrot.slane %v7841, 4
        %v7844 = vor.u32 %v7843, %v7839
        %v7845 = vrot.slane %v7844, 4
        %v7847 = vshll.u32 %v7662, 16
        %v7849 = vrot.slane %v7847, 5
        %v7850 = vsel %vm1342, %v7845, %v7849
        %v7852 = vshrl.u32 %v7663, 16
        %v7854 = vrot.slane %v7852, 4
        %v7855 = vshll.u32 %v7663, 16
        %v7857 = vrot.slane %v7855, 5
        %v7858 = vor.u32 %v7854, %v7857
        %v7859 = vrot.slane %v7858, 4
        %v7861 = vshll.u32 %v7664, 16
        %v7863 = vrot.slane %v7861, 5
        %v7864 = vsel %vm1342, %v7859, %v7863
        %v7865 = vshrl.u32 %v7664, 16
        %v7867 = vrot.slane %v7865, 4
        %v7868 = vor.u32 %v7867, %v7863
        %v7869 = vrot.slane %v7868, 4
        %v7871 = vshll.u32 %v7665, 16
        %v7873 = vrot.slane %v7871, 5
        %v7874 = vsel %vm1342, %v7869, %v7873
        %v7876 = vshrl.u32 %v7666, 16
        %v7878 = vrot.slane %v7876, 4
        %v7879 = vshll.u32 %v7666, 16
        %v7881 = vrot.slane %v7879, 5
        %v7882 = vor.u32 %v7878, %v7881
        %v7883 = vrot.slane %v7882, 4
        %v7885 = vshll.u32 %v7667, 16
        %v7887 = vrot.slane %v7885, 5
        %v7888 = vsel %vm1342, %v7883, %v7887
        %v7889 = vshrl.u32 %v7667, 16
        %v7891 = vrot.slane %v7889, 4
        %v7892 = vor.u32 %v7891, %v7887
        %v7893 = vrot.slane %v7892, 4
        %v7895 = vshll.u32 %v7668, 16
        %v7897 = vrot.slane %v7895, 5
        %v7898 = vsel %vm1342, %v7893, %v7897
        %v7900 = vshrl.u32 %v7669, 16
        %v7902 = vrot.slane %v7900, 4
        %v7903 = vshll.u32 %v7669, 16
        %v7905 = vrot.slane %v7903, 5
        %v7906 = vor.u32 %v7902, %v7905
        %v7907 = vrot.slane %v7906, 4
        %v7909 = vshll.u32 %v7670, 16
        %v7911 = vrot.slane %v7909, 5
        %v7912 = vsel %vm1342, %v7907, %v7911
        %v7913 = vshrl.u32 %v7670, 16
        %v7915 = vrot.slane %v7913, 4
        %v7916 = vor.u32 %v7915, %v7911
        %v7917 = vrot.slane %v7916, 4
        %v7919 = vshll.u32 %v7671, 16
        %v7921 = vrot.slane %v7919, 5
        %v7922 = vsel %vm1342, %v7917, %v7921
        %v7924 = vshrl.u32 %v7672, 16
        %v7926 = vrot.slane %v7924, 4
        %v7927 = vshll.u32 %v7672, 16
        %v7929 = vrot.slane %v7927, 5
        %v7930 = vor.u32 %v7926, %v7929
        %v7931 = vrot.slane %v7930, 4
        %v7933 = vshll.u32 %v7673, 16
        %v7935 = vrot.slane %v7933, 5
        %v7936 = vsel %vm1342, %v7931, %v7935
        %v7937 = vshrl.u32 %v7673, 16
        %v7939 = vrot.slane %v7937, 4
        %v7940 = vor.u32 %v7939, %v7935
        %v7941 = vrot.slane %v7940, 4
        %v7943 = vshll.u32 %v7674, 16
        %v7945 = vrot.slane %v7943, 5
        %v7946 = vsel %vm1342, %v7941, %v7945
        %7963 = vst.msk [vmem:[#allocation5 + $0x8] sm:$0xf] %vm6424, %v7768
        %7964 = vst.msk [vmem:[#allocation5 + $0x1c] sm:$0xf] %vm6424, %v7778
        %7965 = vst.msk [vmem:[#allocation5 + $0x30] sm:$0xf] %vm6424, %v7792
        %7966 = vst.msk [vmem:[#allocation5 + $0x44] sm:$0xf] %vm6424, %v7802
        %7967 = vst.msk [vmem:[#allocation5 + $0x58] sm:$0xf] %vm6424, %v7816
        %7968 = vst.msk [vmem:[#allocation5 + $0x6c] sm:$0xf] %vm6424, %v7826
        %7969 = vst.msk [vmem:[#allocation5 + $0x80] sm:$0xf] %vm6424, %v7840
        %7970 = vst.msk [vmem:[#allocation5 + $0x94] sm:$0xf] %vm6424, %v7850
        %7971 = vst.msk [vmem:[#allocation5 + $0xa8] sm:$0xf] %vm6424, %v7864
        %7972 = vst.msk [vmem:[#allocation5 + $0xbc] sm:$0xf] %vm6424, %v7874
        %7973 = vst.msk [vmem:[#allocation5 + $0xd0] sm:$0xf] %vm6424, %v7888
        %7974 = vst.msk [vmem:[#allocation5 + $0xe4] sm:$0xf] %vm6424, %v7898
        %7975 = vst.msk [vmem:[#allocation5 + $0xf8] sm:$0xf] %vm6424, %v7912
        %7976 = vst.msk [vmem:[#allocation5 + $0x10c] sm:$0xf] %vm6424, %v7922
        %7977 = vst.msk [vmem:[#allocation5 + $0x120] sm:$0xf] %vm6424, %v7936
        %7978 = vst.msk [vmem:[#allocation5 + $0x134] sm:$0xf] %vm6424, %v7946
        %v7987 = vrot.slane %v7651, 5
        %v7988 = vrot.slane %v7987, 4
        %v7989 = vrot.slane %v7652, 5
        %v7990 = vsel %vm1626, %v7988, %v7989
        %v7991 = vrot.slane %v7989, 4
        %v7992 = vrot.slane %v7653, 5
        %v7993 = vsel %vm1626, %v7991, %v7992
        %v7994 = vrot.slane %v7654, 5
        %v7995 = vrot.slane %v7994, 4
        %v7996 = vrot.slane %v7655, 5
        %v7997 = vsel %vm1626, %v7995, %v7996
        %v7998 = vrot.slane %v7996, 4
        %v7999 = vrot.slane %v7656, 5
        %v8000 = vsel %vm1626, %v7998, %v7999
        %v8001 = vrot.slane %v7657, 5
        %v8002 = vrot.slane %v8001, 4
        %v8003 = vrot.slane %v7658, 5
        %v8004 = vsel %vm1626, %v8002, %v8003
        %v8005 = vrot.slane %v8003, 4
        %v8006 = vrot.slane %v7659, 5
        %v8007 = vsel %vm1626, %v8005, %v8006
        %v8008 = vrot.slane %v7660, 5
        %v8009 = vrot.slane %v8008, 4
        %v8010 = vrot.slane %v7661, 5
        %v8011 = vsel %vm1626, %v8009, %v8010
        %v8012 = vrot.slane %v8010, 4
        %v8013 = vrot.slane %v7662, 5
        %v8014 = vsel %vm1626, %v8012, %v8013
        %v8015 = vrot.slane %v7663, 5
        %v8016 = vrot.slane %v8015, 4
        %v8017 = vrot.slane %v7664, 5
        %v8018 = vsel %vm1626, %v8016, %v8017
        %v8019 = vrot.slane %v8017, 4
        %v8020 = vrot.slane %v7665, 5
        %v8021 = vsel %vm1626, %v8019, %v8020
        %v8022 = vrot.slane %v7666, 5
        %v8023 = vrot.slane %v8022, 4
        %v8024 = vrot.slane %v7667, 5
        %v8025 = vsel %vm1626, %v8023, %v8024
        %v8026 = vrot.slane %v8024, 4
        %v8027 = vrot.slane %v7668, 5
        %v8028 = vsel %vm1626, %v8026, %v8027
        %v8029 = vrot.slane %v7669, 5
        %v8030 = vrot.slane %v8029, 4
        %v8031 = vrot.slane %v7670, 5
        %v8032 = vsel %vm1626, %v8030, %v8031
        %v8033 = vrot.slane %v8031, 4
        %v8034 = vrot.slane %v7671, 5
        %v8035 = vsel %vm1626, %v8033, %v8034
        %v8036 = vrot.slane %v7672, 5
        %v8037 = vrot.slane %v8036, 4
        %v8038 = vrot.slane %v7673, 5
        %v8039 = vsel %vm1626, %v8037, %v8038
        %v8040 = vrot.slane %v8038, 4
        %v8041 = vrot.slane %v7674, 5
        %v8042 = vsel %vm1626, %v8040, %v8041
        %8043 = vrot.lane.b32.xlu0 %v7990, 64
        %v8044 = vpop.permute.xlu0 %8043
        %8045 = vrot.lane.b32.xlu0 %v7993, 64
        %v8046 = vpop.permute.xlu0 %8045
        %8047 = vrot.lane.b32.xlu0 %v7997, 64
        %v8048 = vpop.permute.xlu0 %8047
        %8049 = vrot.lane.b32.xlu0 %v8000, 64
        %v8050 = vpop.permute.xlu0 %8049
        %8051 = vrot.lane.b32.xlu0 %v8004, 64
        %v8052 = vpop.permute.xlu0 %8051
        %8053 = vrot.lane.b32.xlu0 %v8007, 64
        %v8054 = vpop.permute.xlu0 %8053
        %8055 = vrot.lane.b32.xlu0 %v8011, 64
        %v8056 = vpop.permute.xlu0 %8055
        %8057 = vrot.lane.b32.xlu0 %v8014, 64
        %v8058 = vpop.permute.xlu0 %8057
        %8059 = vrot.lane.b32.xlu0 %v8018, 64
        %v8060 = vpop.permute.xlu0 %8059
        %8061 = vrot.lane.b32.xlu0 %v8021, 64
        %v8062 = vpop.permute.xlu0 %8061
        %8063 = vrot.lane.b32.xlu0 %v8025, 64
        %v8064 = vpop.permute.xlu0 %8063
        %8065 = vrot.lane.b32.xlu0 %v8028, 64
        %v8066 = vpop.permute.xlu0 %8065
        %8067 = vrot.lane.b32.xlu0 %v8032, 64
        %v8068 = vpop.permute.xlu0 %8067
        %8069 = vrot.lane.b32.xlu0 %v8035, 64
        %v8070 = vpop.permute.xlu0 %8069
        %8071 = vrot.lane.b32.xlu0 %v8039, 64
        %v8072 = vpop.permute.xlu0 %8071
        %8073 = vrot.lane.b32.xlu0 %v8042, 64
        %v8074 = vpop.permute.xlu0 %8073
        %8091 = vst.msk [vmem:[#allocation5 + $0x8] sm:$0xf] %vm7521, %v8044
        %8092 = vst.msk [vmem:[#allocation5 + $0x1c] sm:$0xf] %vm7521, %v8046
        %8093 = vst.msk [vmem:[#allocation5 + $0x30] sm:$0xf] %vm7521, %v8048
        %8094 = vst.msk [vmem:[#allocation5 + $0x44] sm:$0xf] %vm7521, %v8050
        %8095 = vst.msk [vmem:[#allocation5 + $0x58] sm:$0xf] %vm7521, %v8052
        %8096 = vst.msk [vmem:[#allocation5 + $0x6c] sm:$0xf] %vm7521, %v8054
        %8097 = vst.msk [vmem:[#allocation5 + $0x80] sm:$0xf] %vm7521, %v8056
        %8098 = vst.msk [vmem:[#allocation5 + $0x94] sm:$0xf] %vm7521, %v8058
        %8099 = vst.msk [vmem:[#allocation5 + $0xa8] sm:$0xf] %vm7521, %v8060
        %8100 = vst.msk [vmem:[#allocation5 + $0xbc] sm:$0xf] %vm7521, %v8062
        %8101 = vst.msk [vmem:[#allocation5 + $0xd0] sm:$0xf] %vm7521, %v8064
        %8102 = vst.msk [vmem:[#allocation5 + $0xe4] sm:$0xf] %vm7521, %v8066
        %8103 = vst.msk [vmem:[#allocation5 + $0xf8] sm:$0xf] %vm7521, %v8068
        %8104 = vst.msk [vmem:[#allocation5 + $0x10c] sm:$0xf] %vm7521, %v8070
        %8105 = vst.msk [vmem:[#allocation5 + $0x120] sm:$0xf] %vm7521, %v8072
        %8106 = vst.msk [vmem:[#allocation5 + $0x134] sm:$0xf] %vm7521, %v8074
        %s8107 = scalar_lea.vmem [#allocation4], 24
        %v8108 = vld [vmem:[%s8107] sm:$0xf]
        %v8109 = vld [vmem:[%s8107 + $0x4] sm:$0xf]
        %v8110 = vld [vmem:[%s8107 + $0x8] sm:$0x1]
        %v8111 = vld [vmem:[%s8107 + $0xc] sm:$0xf]
        %v8112 = vld [vmem:[%s8107 + $0x10] sm:$0xf]
        %v8113 = vld [vmem:[%s8107 + $0x14] sm:$0x1]
        %v8114 = vld [vmem:[%s8107 + $0x18] sm:$0xf]
        %v8115 = vld [vmem:[%s8107 + $0x1c] sm:$0xf]
        %v8116 = vld [vmem:[%s8107 + $0x20] sm:$0x1]
        %v8117 = vld [vmem:[%s8107 + $0x24] sm:$0xf]
        %v8118 = vld [vmem:[%s8107 + $0x28] sm:$0xf]
        %v8119 = vld [vmem:[%s8107 + $0x2c] sm:$0x1]
        %v8120 = vld [vmem:[%s8107 + $0x30] sm:$0xf]
        %v8121 = vld [vmem:[%s8107 + $0x34] sm:$0xf]
        %v8122 = vld [vmem:[%s8107 + $0x38] sm:$0x1]
        %v8123 = vld [vmem:[%s8107 + $0x3c] sm:$0xf]
        %v8124 = vld [vmem:[%s8107 + $0x40] sm:$0xf]
        %v8125 = vld [vmem:[%s8107 + $0x44] sm:$0x1]
        %v8126 = vld [vmem:[%s8107 + $0x48] sm:$0xf]
        %v8127 = vld [vmem:[%s8107 + $0x4c] sm:$0xf]
        %v8128 = vld [vmem:[%s8107 + $0x50] sm:$0x1]
        %v8129 = vld [vmem:[%s8107 + $0x54] sm:$0xf]
        %v8130 = vld [vmem:[%s8107 + $0x58] sm:$0xf]
        %v8131 = vld [vmem:[%s8107 + $0x5c] sm:$0x1]
        %8132 = vst.msk [vmem:[#allocation5 + $0xc] sm:$0xf] %vm6424, %v8108
        %8133 = vst.msk [vmem:[#allocation5 + $0x20] sm:$0xf] %vm6424, %v8109
        %8134 = vst.msk [vmem:[#allocation5 + $0x34] sm:$0xf] %vm6424, %v8111
        %8135 = vst.msk [vmem:[#allocation5 + $0x48] sm:$0xf] %vm6424, %v8112
        %8136 = vst.msk [vmem:[#allocation5 + $0x5c] sm:$0xf] %vm6424, %v8114
        %8137 = vst.msk [vmem:[#allocation5 + $0x70] sm:$0xf] %vm6424, %v8115
        %8138 = vst.msk [vmem:[#allocation5 + $0x84] sm:$0xf] %vm6424, %v8117
        %8139 = vst.msk [vmem:[#allocation5 + $0x98] sm:$0xf] %vm6424, %v8118
        %8140 = vst.msk [vmem:[#allocation5 + $0xac] sm:$0xf] %vm6424, %v8120
        %8141 = vst.msk [vmem:[#allocation5 + $0xc0] sm:$0xf] %vm6424, %v8121
        %8142 = vst.msk [vmem:[#allocation5 + $0xd4] sm:$0xf] %vm6424, %v8123
        %8143 = vst.msk [vmem:[#allocation5 + $0xe8] sm:$0xf] %vm6424, %v8124
        %8144 = vst.msk [vmem:[#allocation5 + $0xfc] sm:$0xf] %vm6424, %v8126
        %8145 = vst.msk [vmem:[#allocation5 + $0x110] sm:$0xf] %vm6424, %v8127
        %8146 = vst.msk [vmem:[#allocation5 + $0x124] sm:$0xf] %vm6424, %v8129
        %8147 = vst.msk [vmem:[#allocation5 + $0x138] sm:$0xf] %vm6424, %v8130
        %v8149 = vshrl.u32 %v8108, 16
        %v8151 = vrot.slane %v8149, 4
        %v8152 = vshll.u32 %v8108, 16
        %v8154 = vrot.slane %v8152, 5
        %v8155 = vor.u32 %v8151, %v8154
        %v8156 = vrot.slane %v8155, 4
        %v8158 = vshll.u32 %v8109, 16
        %v8160 = vrot.slane %v8158, 5
        %v8161 = vsel %vm1342, %v8156, %v8160
        %v8162 = vshrl.u32 %v8109, 16
        %v8164 = vrot.slane %v8162, 4
        %v8165 = vor.u32 %v8164, %v8160
        %v8166 = vrot.slane %v8165, 4
        %v8168 = vshll.u32 %v8110, 16
        %v8170 = vrot.slane %v8168, 5
        %v8171 = vsel %vm1342, %v8166, %v8170
        %v8173 = vshrl.u32 %v8111, 16
        %v8175 = vrot.slane %v8173, 4
        %v8176 = vshll.u32 %v8111, 16
        %v8178 = vrot.slane %v8176, 5
        %v8179 = vor.u32 %v8175, %v8178
        %v8180 = vrot.slane %v8179, 4
        %v8182 = vshll.u32 %v8112, 16
        %v8184 = vrot.slane %v8182, 5
        %v8185 = vsel %vm1342, %v8180, %v8184
        %v8186 = vshrl.u32 %v8112, 16
        %v8188 = vrot.slane %v8186, 4
        %v8189 = vor.u32 %v8188, %v8184
        %v8190 = vrot.slane %v8189, 4
        %v8192 = vshll.u32 %v8113, 16
        %v8194 = vrot.slane %v8192, 5
        %v8195 = vsel %vm1342, %v8190, %v8194
        %v8197 = vshrl.u32 %v8114, 16
        %v8199 = vrot.slane %v8197, 4
        %v8200 = vshll.u32 %v8114, 16
        %v8202 = vrot.slane %v8200, 5
        %v8203 = vor.u32 %v8199, %v8202
        %v8204 = vrot.slane %v8203, 4
        %v8206 = vshll.u32 %v8115, 16
        %v8208 = vrot.slane %v8206, 5
        %v8209 = vsel %vm1342, %v8204, %v8208
        %v8210 = vshrl.u32 %v8115, 16
        %v8212 = vrot.slane %v8210, 4
        %v8213 = vor.u32 %v8212, %v8208
        %v8214 = vrot.slane %v8213, 4
        %v8216 = vshll.u32 %v8116, 16
        %v8218 = vrot.slane %v8216, 5
        %v8219 = vsel %vm1342, %v8214, %v8218
        %v8221 = vshrl.u32 %v8117, 16
        %v8223 = vrot.slane %v8221, 4
        %v8224 = vshll.u32 %v8117, 16
        %v8226 = vrot.slane %v8224, 5
        %v8227 = vor.u32 %v8223, %v8226
        %v8228 = vrot.slane %v8227, 4
        %v8230 = vshll.u32 %v8118, 16
        %v8232 = vrot.slane %v8230, 5
        %v8233 = vsel %vm1342, %v8228, %v8232
        %v8234 = vshrl.u32 %v8118, 16
        %v8236 = vrot.slane %v8234, 4
        %v8237 = vor.u32 %v8236, %v8232
        %v8238 = vrot.slane %v8237, 4
        %v8240 = vshll.u32 %v8119, 16
        %v8242 = vrot.slane %v8240, 5
        %v8243 = vsel %vm1342, %v8238, %v8242
        %v8245 = vshrl.u32 %v8120, 16
        %v8247 = vrot.slane %v8245, 4
        %v8248 = vshll.u32 %v8120, 16
        %v8250 = vrot.slane %v8248, 5
        %v8251 = vor.u32 %v8247, %v8250
        %v8252 = vrot.slane %v8251, 4
        %v8254 = vshll.u32 %v8121, 16
        %v8256 = vrot.slane %v8254, 5
        %v8257 = vsel %vm1342, %v8252, %v8256
        %v8258 = vshrl.u32 %v8121, 16
        %v8260 = vrot.slane %v8258, 4
        %v8261 = vor.u32 %v8260, %v8256
        %v8262 = vrot.slane %v8261, 4
        %v8264 = vshll.u32 %v8122, 16
        %v8266 = vrot.slane %v8264, 5
        %v8267 = vsel %vm1342, %v8262, %v8266
        %v8269 = vshrl.u32 %v8123, 16
        %v8271 = vrot.slane %v8269, 4
        %v8272 = vshll.u32 %v8123, 16
        %v8274 = vrot.slane %v8272, 5
        %v8275 = vor.u32 %v8271, %v8274
        %v8276 = vrot.slane %v8275, 4
        %v8278 = vshll.u32 %v8124, 16
        %v8280 = vrot.slane %v8278, 5
        %v8281 = vsel %vm1342, %v8276, %v8280
        %v8282 = vshrl.u32 %v8124, 16
        %v8284 = vrot.slane %v8282, 4
        %v8285 = vor.u32 %v8284, %v8280
        %v8286 = vrot.slane %v8285, 4
        %v8288 = vshll.u32 %v8125, 16
        %v8290 = vrot.slane %v8288, 5
        %v8291 = vsel %vm1342, %v8286, %v8290
        %v8293 = vshrl.u32 %v8126, 16
        %v8295 = vrot.slane %v8293, 4
        %v8296 = vshll.u32 %v8126, 16
        %v8298 = vrot.slane %v8296, 5
        %v8299 = vor.u32 %v8295, %v8298
        %v8300 = vrot.slane %v8299, 4
        %v8302 = vshll.u32 %v8127, 16
        %v8304 = vrot.slane %v8302, 5
        %v8305 = vsel %vm1342, %v8300, %v8304
        %v8306 = vshrl.u32 %v8127, 16
        %v8308 = vrot.slane %v8306, 4
        %v8309 = vor.u32 %v8308, %v8304
        %v8310 = vrot.slane %v8309, 4
        %v8312 = vshll.u32 %v8128, 16
        %v8314 = vrot.slane %v8312, 5
        %v8315 = vsel %vm1342, %v8310, %v8314
        %v8317 = vshrl.u32 %v8129, 16
        %v8319 = vrot.slane %v8317, 4
        %v8320 = vshll.u32 %v8129, 16
        %v8322 = vrot.slane %v8320, 5
        %v8323 = vor.u32 %v8319, %v8322
        %v8324 = vrot.slane %v8323, 4
        %v8326 = vshll.u32 %v8130, 16
        %v8328 = vrot.slane %v8326, 5
        %v8329 = vsel %vm1342, %v8324, %v8328
        %v8330 = vshrl.u32 %v8130, 16
        %v8332 = vrot.slane %v8330, 4
        %v8333 = vor.u32 %v8332, %v8328
        %v8334 = vrot.slane %v8333, 4
        %v8336 = vshll.u32 %v8131, 16
        %v8338 = vrot.slane %v8336, 5
        %v8339 = vsel %vm1342, %v8334, %v8338
        %8340 = vrot.lane.b32.xlu0 %v8161, 64
        %v8341 = vpop.permute.xlu0 %8340
        %8342 = vrot.lane.b32.xlu0 %v8171, 64
        %v8343 = vpop.permute.xlu0 %8342
        %8344 = vrot.lane.b32.xlu0 %v8185, 64
        %v8345 = vpop.permute.xlu0 %8344
        %8346 = vrot.lane.b32.xlu0 %v8195, 64
        %v8347 = vpop.permute.xlu0 %8346
        %8348 = vrot.lane.b32.xlu0 %v8209, 64
        %v8349 = vpop.permute.xlu0 %8348
        %8350 = vrot.lane.b32.xlu0 %v8219, 64
        %v8351 = vpop.permute.xlu0 %8350
        %8352 = vrot.lane.b32.xlu0 %v8233, 64
        %v8353 = vpop.permute.xlu0 %8352
        %8354 = vrot.lane.b32.xlu0 %v8243, 64
        %v8355 = vpop.permute.xlu0 %8354
        %8356 = vrot.lane.b32.xlu0 %v8257, 64
        %v8357 = vpop.permute.xlu0 %8356
        %8358 = vrot.lane.b32.xlu0 %v8267, 64
        %v8359 = vpop.permute.xlu0 %8358
        %8360 = vrot.lane.b32.xlu0 %v8281, 64
        %v8361 = vpop.permute.xlu0 %8360
        %8362 = vrot.lane.b32.xlu0 %v8291, 64
        %v8363 = vpop.permute.xlu0 %8362
        %8364 = vrot.lane.b32.xlu0 %v8305, 64
        %v8365 = vpop.permute.xlu0 %8364
        %8366 = vrot.lane.b32.xlu0 %v8315, 64
        %v8367 = vpop.permute.xlu0 %8366
        %8368 = vrot.lane.b32.xlu0 %v8329, 64
        %v8369 = vpop.permute.xlu0 %8368
        %8370 = vrot.lane.b32.xlu0 %v8339, 64
        %v8371 = vpop.permute.xlu0 %8370
        %8388 = vst.msk [vmem:[#allocation5 + $0xc] sm:$0xf] %vm7521, %v8341
        %8389 = vst.msk [vmem:[#allocation5 + $0x20] sm:$0xf] %vm7521, %v8343
        %8390 = vst.msk [vmem:[#allocation5 + $0x34] sm:$0xf] %vm7521, %v8345
        %8391 = vst.msk [vmem:[#allocation5 + $0x48] sm:$0xf] %vm7521, %v8347
        %8392 = vst.msk [vmem:[#allocation5 + $0x5c] sm:$0xf] %vm7521, %v8349
        %8393 = vst.msk [vmem:[#allocation5 + $0x70] sm:$0xf] %vm7521, %v8351
        %8394 = vst.msk [vmem:[#allocation5 + $0x84] sm:$0xf] %vm7521, %v8353
        %8395 = vst.msk [vmem:[#allocation5 + $0x98] sm:$0xf] %vm7521, %v8355
        %8396 = vst.msk [vmem:[#allocation5 + $0xac] sm:$0xf] %vm7521, %v8357
        %8397 = vst.msk [vmem:[#allocation5 + $0xc0] sm:$0xf] %vm7521, %v8359
        %8398 = vst.msk [vmem:[#allocation5 + $0xd4] sm:$0xf] %vm7521, %v8361
        %8399 = vst.msk [vmem:[#allocation5 + $0xe8] sm:$0xf] %vm7521, %v8363
        %8400 = vst.msk [vmem:[#allocation5 + $0xfc] sm:$0xf] %vm7521, %v8365
        %8401 = vst.msk [vmem:[#allocation5 + $0x110] sm:$0xf] %vm7521, %v8367
        %8402 = vst.msk [vmem:[#allocation5 + $0x124] sm:$0xf] %vm7521, %v8369
        %8403 = vst.msk [vmem:[#allocation5 + $0x138] sm:$0xf] %vm7521, %v8371
        %v8428 = vrot.slane %v8108, 5
        %v8429 = vrot.slane %v8428, 4
        %v8430 = vrot.slane %v8109, 5
        %v8431 = vsel %vm1626, %v8429, %v8430
        %v8432 = vrot.slane %v8430, 4
        %v8433 = vrot.slane %v8110, 5
        %v8434 = vsel %vm1626, %v8432, %v8433
        %v8435 = vrot.slane %v8111, 5
        %v8436 = vrot.slane %v8435, 4
        %v8437 = vrot.slane %v8112, 5
        %v8438 = vsel %vm1626, %v8436, %v8437
        %v8439 = vrot.slane %v8437, 4
        %v8440 = vrot.slane %v8113, 5
        %v8441 = vsel %vm1626, %v8439, %v8440
        %v8442 = vrot.slane %v8114, 5
        %v8443 = vrot.slane %v8442, 4
        %v8444 = vrot.slane %v8115, 5
        %v8445 = vsel %vm1626, %v8443, %v8444
        %v8446 = vrot.slane %v8444, 4
        %v8447 = vrot.slane %v8116, 5
        %v8448 = vsel %vm1626, %v8446, %v8447
        %v8449 = vrot.slane %v8117, 5
        %v8450 = vrot.slane %v8449, 4
        %v8451 = vrot.slane %v8118, 5
        %v8452 = vsel %vm1626, %v8450, %v8451
        %v8453 = vrot.slane %v8451, 4
        %v8454 = vrot.slane %v8119, 5
        %v8455 = vsel %vm1626, %v8453, %v8454
        %v8456 = vrot.slane %v8120, 5
        %v8457 = vrot.slane %v8456, 4
        %v8458 = vrot.slane %v8121, 5
        %v8459 = vsel %vm1626, %v8457, %v8458
        %v8460 = vrot.slane %v8458, 4
        %v8461 = vrot.slane %v8122, 5
        %v8462 = vsel %vm1626, %v8460, %v8461
        %v8463 = vrot.slane %v8123, 5
        %v8464 = vrot.slane %v8463, 4
        %v8465 = vrot.slane %v8124, 5
        %v8466 = vsel %vm1626, %v8464, %v8465
        %v8467 = vrot.slane %v8465, 4
        %v8468 = vrot.slane %v8125, 5
        %v8469 = vsel %vm1626, %v8467, %v8468
        %v8470 = vrot.slane %v8126, 5
        %v8471 = vrot.slane %v8470, 4
        %v8472 = vrot.slane %v8127, 5
        %v8473 = vsel %vm1626, %v8471, %v8472
        %v8474 = vrot.slane %v8472, 4
        %v8475 = vrot.slane %v8128, 5
        %v8476 = vsel %vm1626, %v8474, %v8475
        %v8477 = vrot.slane %v8129, 5
        %v8478 = vrot.slane %v8477, 4
        %v8479 = vrot.slane %v8130, 5
        %v8480 = vsel %vm1626, %v8478, %v8479
        %v8481 = vrot.slane %v8479, 4
        %v8482 = vrot.slane %v8131, 5
        %v8483 = vsel %vm1626, %v8481, %v8482
        %8500 = vst.msk [vmem:[#allocation5 + $0x10] sm:$0xf] %vm6424, %v8431
        %8501 = vst.msk [vmem:[#allocation5 + $0x24] sm:$0xf] %vm6424, %v8434
        %8502 = vst.msk [vmem:[#allocation5 + $0x38] sm:$0xf] %vm6424, %v8438
        %8503 = vst.msk [vmem:[#allocation5 + $0x4c] sm:$0xf] %vm6424, %v8441
        %8504 = vst.msk [vmem:[#allocation5 + $0x60] sm:$0xf] %vm6424, %v8445
        %8505 = vst.msk [vmem:[#allocation5 + $0x74] sm:$0xf] %vm6424, %v8448
        %8506 = vst.msk [vmem:[#allocation5 + $0x88] sm:$0xf] %vm6424, %v8452
        %8507 = vst.msk [vmem:[#allocation5 + $0x9c] sm:$0xf] %vm6424, %v8455
        %8508 = vst.msk [vmem:[#allocation5 + $0xb0] sm:$0xf] %vm6424, %v8459
        %8509 = vst.msk [vmem:[#allocation5 + $0xc4] sm:$0xf] %vm6424, %v8462
        %8510 = vst.msk [vmem:[#allocation5 + $0xd8] sm:$0xf] %vm6424, %v8466
        %8511 = vst.msk [vmem:[#allocation5 + $0xec] sm:$0xf] %vm6424, %v8469
        %8512 = vst.msk [vmem:[#allocation5 + $0x100] sm:$0xf] %vm6424, %v8473
        %8513 = vst.msk [vmem:[#allocation5 + $0x114] sm:$0xf] %vm6424, %v8476
        %8514 = vst.msk [vmem:[#allocation5 + $0x128] sm:$0xf] %vm6424, %v8480
        %8515 = vst.msk [vmem:[#allocation5 + $0x13c] sm:$0xf] %vm6424, %v8483
        %v8516 = vld [vmem:[#allocation5] sm:$0xff]
        %v8517 = vld [vmem:[#allocation5 + $0x8] sm:$0xff]
        %v8518 = vld [vmem:[#allocation5 + $0x10] sm:$0xf]
        %v8519 = vld [vmem:[#allocation5 + $0x14] sm:$0xff]
        %v8520 = vld [vmem:[#allocation5 + $0x1c] sm:$0xff]
        %v8521 = vld [vmem:[#allocation5 + $0x24] sm:$0xf]
        %v8522 = vld [vmem:[#allocation5 + $0x28] sm:$0xff]
        %v8523 = vld [vmem:[#allocation5 + $0x30] sm:$0xff]
        %v8524 = vld [vmem:[#allocation5 + $0x38] sm:$0xf]
        %v8525 = vld [vmem:[#allocation5 + $0x3c] sm:$0xff]
        %v8526 = vld [vmem:[#allocation5 + $0x44] sm:$0xff]
        %v8527 = vld [vmem:[#allocation5 + $0x4c] sm:$0xf]
        %v8528 = vld [vmem:[#allocation5 + $0x50] sm:$0xff]
        %v8529 = vld [vmem:[#allocation5 + $0x58] sm:$0xff]
        %v8530 = vld [vmem:[#allocation5 + $0x60] sm:$0xf]
        %v8531 = vld [vmem:[#allocation5 + $0x64] sm:$0xff]
        %v8532 = vld [vmem:[#allocation5 + $0x6c] sm:$0xff]
        %v8533 = vld [vmem:[#allocation5 + $0x74] sm:$0xf]
        %v8534 = vld [vmem:[#allocation5 + $0x78] sm:$0xff]
        %v8535 = vld [vmem:[#allocation5 + $0x80] sm:$0xff]
        %v8536 = vld [vmem:[#allocation5 + $0x88] sm:$0xf]
        %v8537 = vld [vmem:[#allocation5 + $0x8c] sm:$0xff]
        %v8538 = vld [vmem:[#allocation5 + $0x94] sm:$0xff]
        %v8539 = vld [vmem:[#allocation5 + $0x9c] sm:$0xf]
        %v8540 = vld [vmem:[#allocation5 + $0xa0] sm:$0xff]
        %v8541 = vld [vmem:[#allocation5 + $0xa8] sm:$0xff]
        %v8542 = vld [vmem:[#allocation5 + $0xb0] sm:$0xf]
        %v8543 = vld [vmem:[#allocation5 + $0xb4] sm:$0xff]
        %v8544 = vld [vmem:[#allocation5 + $0xbc] sm:$0xff]
        %v8545 = vld [vmem:[#allocation5 + $0xc4] sm:$0xf]
        %v8546 = vld [vmem:[#allocation5 + $0xc8] sm:$0xff]
        %v8547 = vld [vmem:[#allocation5 + $0xd0] sm:$0xff]
        %v8548 = vld [vmem:[#allocation5 + $0xd8] sm:$0xf]
        %v8549 = vld [vmem:[#allocation5 + $0xdc] sm:$0xff]
        %v8550 = vld [vmem:[#allocation5 + $0xe4] sm:$0xff]
        %v8551 = vld [vmem:[#allocation5 + $0xec] sm:$0xf]
        %v8552 = vld [vmem:[#allocation5 + $0xf0] sm:$0xff]
        %v8553 = vld [vmem:[#allocation5 + $0xf8] sm:$0xff]
        %v8554 = vld [vmem:[#allocation5 + $0x100] sm:$0xf]
        %v8555 = vld [vmem:[#allocation5 + $0x104] sm:$0xff]
        %v8556 = vld [vmem:[#allocation5 + $0x10c] sm:$0xff]
        %v8557 = vld [vmem:[#allocation5 + $0x114] sm:$0xf]
        %v8558 = vld [vmem:[#allocation5 + $0x118] sm:$0xff]
        %v8559 = vld [vmem:[#allocation5 + $0x120] sm:$0xff]
        %v8560 = vld [vmem:[#allocation5 + $0x128] sm:$0xf]
        %v8561 = vld [vmem:[#allocation5 + $0x12c] sm:$0xff]
        %v8562 = vld [vmem:[#allocation5 + $0x134] sm:$0xff]
        %v8563 = vld [vmem:[#allocation5 + $0x13c] sm:$0xf]
        %v8564 = vld [vmem:[%s5] sm:$0xf]
        %v8565 = vld [vmem:[%s5 + $0x4] sm:$0xf]
        %v8566 = vld [vmem:[%s5 + $0x8] sm:$0xf]
        %v8567 = vld [vmem:[%s5 + $0xc] sm:$0xf]
        %v8568 = vld [vmem:[%s5 + $0x10] sm:$0xf]
        %v8569 = vld [vmem:[%s5 + $0x14] sm:$0xf]
        %v8570 = vld [vmem:[%s5 + $0x18] sm:$0xf]
        %v8571 = vld [vmem:[%s5 + $0x1c] sm:$0xf]
        %v8572 = vld [vmem:[%s5 + $0x20] sm:$0xf]
        %v8573 = vld [vmem:[%s5 + $0x24] sm:$0xf]
        %v8574 = vld [vmem:[%s5 + $0x28] sm:$0xf]
        %v8575 = vld [vmem:[%s5 + $0x2c] sm:$0xf]
        %v8576 = vld [vmem:[%s5 + $0x30] sm:$0xf]
        %v8577 = vld [vmem:[%s5 + $0x34] sm:$0xf]
        %v8578 = vld [vmem:[%s5 + $0x38] sm:$0xf]
        %v8579 = vld [vmem:[%s5 + $0x3c] sm:$0xf]
        %v8580 = vld [vmem:[%s5 + $0x40] sm:$0xf]
        %v8581 = vld [vmem:[%s5 + $0x44] sm:$0xf]
        %v8582 = vld [vmem:[%s5 + $0x48] sm:$0xf]
        %v8583 = vld [vmem:[%s5 + $0x4c] sm:$0xf]
        %v8584 = vld [vmem:[%s5 + $0x50] sm:$0xf]
        %v8585 = vld [vmem:[%s5 + $0x54] sm:$0xf]
        %v8586 = vld [vmem:[%s5 + $0x58] sm:$0xf]
        %v8587 = vld [vmem:[%s5 + $0x5c] sm:$0xf]
        %v8588 = vld [vmem:[%s5 + $0x60] sm:$0xf]
        %v8589 = vld [vmem:[%s5 + $0x64] sm:$0xf]
        %v8590 = vld [vmem:[%s5 + $0x68] sm:$0xf]
        %v8591 = vld [vmem:[%s5 + $0x6c] sm:$0xf]
        %v8592 = vld [vmem:[%s5 + $0x70] sm:$0xf]
        %v8593 = vld [vmem:[%s5 + $0x74] sm:$0xf]
        %v8594 = vld [vmem:[%s5 + $0x78] sm:$0xf]
        %v8595 = vld [vmem:[%s5 + $0x7c] sm:$0xf]
        %v8596 = vld [vmem:[%s5 + $0x80] sm:$0xf]
        %v8597 = vld [vmem:[%s5 + $0x84] sm:$0xf]
        %v8598 = vld [vmem:[%s5 + $0x88] sm:$0xf]
        %v8599 = vld [vmem:[%s5 + $0x8c] sm:$0xf]
        %v8600 = vld [vmem:[%s5 + $0x90] sm:$0xf]
        %v8601 = vld [vmem:[%s5 + $0x94] sm:$0xf]
        %v8602 = vld [vmem:[%s5 + $0x98] sm:$0xf]
        %v8603 = vld [vmem:[%s5 + $0x9c] sm:$0xf]
        %v8604 = vld [vmem:[%s5 + $0xa0] sm:$0xf]
        %v8605 = vld [vmem:[%s5 + $0xa4] sm:$0xf]
        %v8606 = vld [vmem:[%s5 + $0xa8] sm:$0xf]
        %v8607 = vld [vmem:[%s5 + $0xac] sm:$0xf]
        %v8608 = vld [vmem:[%s5 + $0xb0] sm:$0xf]
        %v8609 = vld [vmem:[%s5 + $0xb4] sm:$0xf]
        %v8610 = vld [vmem:[%s5 + $0xb8] sm:$0xf]
        %v8611 = vld [vmem:[%s5 + $0xbc] sm:$0xf]
        %v8612 = vld [vmem:[%s5 + $0xc0] sm:$0xf]
        %v8613 = vld [vmem:[%s5 + $0xc4] sm:$0xf]
        %v8614 = vld [vmem:[%s5 + $0xc8] sm:$0xf]
        %v8615 = vld [vmem:[%s5 + $0xcc] sm:$0xf]
        %v8616 = vld [vmem:[%s5 + $0xd0] sm:$0xf]
        %v8617 = vld [vmem:[%s5 + $0xd4] sm:$0xf]
        %v8618 = vld [vmem:[%s5 + $0xd8] sm:$0xf]
        %v8619 = vld [vmem:[%s5 + $0xdc] sm:$0xf]
        %v8620 = vld [vmem:[%s5 + $0xe0] sm:$0xf]
        %v8621 = vld [vmem:[%s5 + $0xe4] sm:$0xf]
        %v8622 = vld [vmem:[%s5 + $0xe8] sm:$0xf]
        %v8623 = vld [vmem:[%s5 + $0xec] sm:$0xf]
        %v8624 = vld [vmem:[%s5 + $0xf0] sm:$0xf]
        %v8625 = vld [vmem:[%s5 + $0xf4] sm:$0xf]
        %v8626 = vld [vmem:[%s5 + $0xf8] sm:$0xf]
        %v8627 = vld [vmem:[%s5 + $0xfc] sm:$0xf]
        %v8628 = vld [vmem:[%s5 + $0x100] sm:$0xf]
        %v8629 = vld [vmem:[%s5 + $0x104] sm:$0xf]
        %v8630 = vld [vmem:[%s5 + $0x108] sm:$0xf]
        %v8631 = vld [vmem:[%s5 + $0x10c] sm:$0xf]
        %v8632 = vld [vmem:[%s5 + $0x110] sm:$0xf]
        %v8633 = vld [vmem:[%s5 + $0x114] sm:$0xf]
        %v8634 = vld [vmem:[%s5 + $0x118] sm:$0xf]
        %v8635 = vld [vmem:[%s5 + $0x11c] sm:$0xf]
        %v8636 = vld [vmem:[%s5 + $0x120] sm:$0xf]
        %v8637 = vld [vmem:[%s5 + $0x124] sm:$0xf]
        %v8638 = vld [vmem:[%s5 + $0x128] sm:$0xf]
        %v8639 = vld [vmem:[%s5 + $0x12c] sm:$0xf]
        %v8640 = vld [vmem:[%s5 + $0x130] sm:$0xf]
        %v8641 = vld [vmem:[%s5 + $0x134] sm:$0xf]
        %v8642 = vld [vmem:[%s5 + $0x138] sm:$0xf]
        %v8643 = vld [vmem:[%s5 + $0x13c] sm:$0xf]
        %v8644 = vld [vmem:[%s6] sm:$0x1]
        %v8646 = vlaneseq
        %v8647 = vshrl.u32 %v8646, 7
        %v8648 = vsub.s32 0, %v8647
        %v8649 = vrot.slane %v8644, %v8648
        %v8699 = vunpack.c.l.b16 %v8516
        %v8700 = vunpack.c.h.b16 %v8516
        %v8701 = vunpack.c.l.b16 %v8517
        %v8702 = vunpack.c.h.b16 %v8517
        %v8703 = vunpack.c.l.b16 %v8518
        %v8704 = vunpack.c.l.b16 %v8519
        %v8705 = vunpack.c.h.b16 %v8519
        %v8706 = vunpack.c.l.b16 %v8520
        %v8707 = vunpack.c.h.b16 %v8520
        %v8708 = vunpack.c.l.b16 %v8521
        %v8709 = vunpack.c.l.b16 %v8522
        %v8710 = vunpack.c.h.b16 %v8522
        %v8711 = vunpack.c.l.b16 %v8523
        %v8712 = vunpack.c.h.b16 %v8523
        %v8713 = vunpack.c.l.b16 %v8524
        %v8714 = vunpack.c.l.b16 %v8525
        %v8715 = vunpack.c.h.b16 %v8525
        %v8716 = vunpack.c.l.b16 %v8526
        %v8717 = vunpack.c.h.b16 %v8526
        %v8718 = vunpack.c.l.b16 %v8527
        %v8719 = vunpack.c.l.b16 %v8528
        %v8720 = vunpack.c.h.b16 %v8528
        %v8721 = vunpack.c.l.b16 %v8529
        %v8722 = vunpack.c.h.b16 %v8529
        %v8723 = vunpack.c.l.b16 %v8530
        %v8724 = vunpack.c.l.b16 %v8531
        %v8725 = vunpack.c.h.b16 %v8531
        %v8726 = vunpack.c.l.b16 %v8532
        %v8727 = vunpack.c.h.b16 %v8532
        %v8728 = vunpack.c.l.b16 %v8533
        %v8729 = vunpack.c.l.b16 %v8534
        %v8730 = vunpack.c.h.b16 %v8534
        %v8731 = vunpack.c.l.b16 %v8535
        %v8732 = vunpack.c.h.b16 %v8535
        %v8733 = vunpack.c.l.b16 %v8536
        %v8734 = vunpack.c.l.b16 %v8537
        %v8735 = vunpack.c.h.b16 %v8537
        %v8736 = vunpack.c.l.b16 %v8538
        %v8737 = vunpack.c.h.b16 %v8538
        %v8738 = vunpack.c.l.b16 %v8539
        %v8739 = vunpack.c.l.b16 %v8540
        %v8740 = vunpack.c.h.b16 %v8540
        %v8741 = vunpack.c.l.b16 %v8541
        %v8742 = vunpack.c.h.b16 %v8541
        %v8743 = vunpack.c.l.b16 %v8542
        %v8744 = vunpack.c.l.b16 %v8543
        %v8745 = vunpack.c.h.b16 %v8543
        %v8746 = vunpack.c.l.b16 %v8544
        %v8747 = vunpack.c.h.b16 %v8544
        %v8748 = vunpack.c.l.b16 %v8545
        %v8749 = vunpack.c.l.b16 %v8546
        %v8750 = vunpack.c.h.b16 %v8546
        %v8751 = vunpack.c.l.b16 %v8547
        %v8752 = vunpack.c.h.b16 %v8547
        %v8753 = vunpack.c.l.b16 %v8548
        %v8754 = vunpack.c.l.b16 %v8549
        %v8755 = vunpack.c.h.b16 %v8549
        %v8756 = vunpack.c.l.b16 %v8550
        %v8757 = vunpack.c.h.b16 %v8550
        %v8758 = vunpack.c.l.b16 %v8551
        %v8759 = vunpack.c.l.b16 %v8552
        %v8760 = vunpack.c.h.b16 %v8552
        %v8761 = vunpack.c.l.b16 %v8553
        %v8762 = vunpack.c.h.b16 %v8553
        %v8763 = vunpack.c.l.b16 %v8554
        %v8764 = vunpack.c.l.b16 %v8555
        %v8765 = vunpack.c.h.b16 %v8555
        %v8766 = vunpack.c.l.b16 %v8556
        %v8767 = vunpack.c.h.b16 %v8556
        %v8768 = vunpack.c.l.b16 %v8557
        %v8769 = vunpack.c.l.b16 %v8558
        %v8770 = vunpack.c.h.b16 %v8558
        %v8771 = vunpack.c.l.b16 %v8559
        %v8772 = vunpack.c.h.b16 %v8559
        %v8773 = vunpack.c.l.b16 %v8560
        %v8774 = vunpack.c.l.b16 %v8561
        %v8775 = vunpack.c.h.b16 %v8561
        %v8776 = vunpack.c.l.b16 %v8562
        %v8777 = vunpack.c.h.b16 %v8562
        %v8778 = vunpack.c.l.b16 %v8563
        %v8779 = vpack.c.b16 %v8704, %v8699
        %v8780 = vpack.c.b16 %v8705, %v8700
        %v8781 = vpack.c.b16 %v8706, %v8701
        %v8782 = vpack.c.b16 %v8707, %v8702
        %v8783 = vpack.c.b16 %v8708, %v8703
        %v8784 = vpack.c.b16 %v8714, %v8709
        %v8785 = vpack.c.b16 %v8715, %v8710
        %v8786 = vpack.c.b16 %v8716, %v8711
        %v8787 = vpack.c.b16 %v8717, %v8712
        %v8788 = vpack.c.b16 %v8718, %v8713
        %v8789 = vpack.c.b16 %v8724, %v8719
        %v8790 = vpack.c.b16 %v8725, %v8720
        %v8791 = vpack.c.b16 %v8726, %v8721
        %v8792 = vpack.c.b16 %v8727, %v8722
        %v8793 = vpack.c.b16 %v8728, %v8723
        %v8794 = vpack.c.b16 %v8734, %v8729
        %v8795 = vpack.c.b16 %v8735, %v8730
        %v8796 = vpack.c.b16 %v8736, %v8731
        %v8797 = vpack.c.b16 %v8737, %v8732
        %v8798 = vpack.c.b16 %v8738, %v8733
        %v8799 = vpack.c.b16 %v8744, %v8739
        %v8800 = vpack.c.b16 %v8745, %v8740
        %v8801 = vpack.c.b16 %v8746, %v8741
        %v8802 = vpack.c.b16 %v8747, %v8742
        %v8803 = vpack.c.b16 %v8748, %v8743
        %v8804 = vpack.c.b16 %v8754, %v8749
        %v8805 = vpack.c.b16 %v8755, %v8750
        %v8806 = vpack.c.b16 %v8756, %v8751
        %v8807 = vpack.c.b16 %v8757, %v8752
        %v8808 = vpack.c.b16 %v8758, %v8753
        %v8809 = vpack.c.b16 %v8764, %v8759
        %v8810 = vpack.c.b16 %v8765, %v8760
        %v8811 = vpack.c.b16 %v8766, %v8761
        %v8812 = vpack.c.b16 %v8767, %v8762
        %v8813 = vpack.c.b16 %v8768, %v8763
        %v8814 = vpack.c.b16 %v8774, %v8769
        %v8815 = vpack.c.b16 %v8775, %v8770
        %v8816 = vpack.c.b16 %v8776, %v8771
        %v8817 = vpack.c.b16 %v8777, %v8772
        %v8818 = vpack.c.b16 %v8778, %v8773
        %v8939 = vunpack.c.l.b16 %v8564
        %v8940 = vunpack.c.l.b16 %v8565
        %v8941 = vunpack.c.l.b16 %v8566
        %v8942 = vunpack.c.l.b16 %v8567
        %v8943 = vunpack.c.l.b16 %v8568
        %v8944 = vunpack.c.l.b16 %v8569
        %v8945 = vunpack.c.l.b16 %v8570
        %v8946 = vunpack.c.l.b16 %v8571
        %v8947 = vunpack.c.l.b16 %v8572
        %v8948 = vunpack.c.l.b16 %v8573
        %v8949 = vunpack.c.l.b16 %v8574
        %v8950 = vunpack.c.l.b16 %v8575
        %v8951 = vunpack.c.l.b16 %v8576
        %v8952 = vunpack.c.l.b16 %v8577
        %v8953 = vunpack.c.l.b16 %v8578
        %v8954 = vunpack.c.l.b16 %v8579
        %v8955 = vunpack.c.l.b16 %v8580
        %v8956 = vunpack.c.l.b16 %v8581
        %v8957 = vunpack.c.l.b16 %v8582
        %v8958 = vunpack.c.l.b16 %v8583
        %v8959 = vunpack.c.l.b16 %v8584
        %v8960 = vunpack.c.l.b16 %v8585
        %v8961 = vunpack.c.l.b16 %v8586
        %v8962 = vunpack.c.l.b16 %v8587
        %v8963 = vunpack.c.l.b16 %v8588
        %v8964 = vunpack.c.l.b16 %v8589
        %v8965 = vunpack.c.l.b16 %v8590
        %v8966 = vunpack.c.l.b16 %v8591
        %v8967 = vunpack.c.l.b16 %v8592
        %v8968 = vunpack.c.l.b16 %v8593
        %v8969 = vunpack.c.l.b16 %v8594
        %v8970 = vunpack.c.l.b16 %v8595
        %v8971 = vunpack.c.l.b16 %v8596
        %v8972 = vunpack.c.l.b16 %v8597
        %v8973 = vunpack.c.l.b16 %v8598
        %v8974 = vunpack.c.l.b16 %v8599
        %v8975 = vunpack.c.l.b16 %v8600
        %v8976 = vunpack.c.l.b16 %v8601
        %v8977 = vunpack.c.l.b16 %v8602
        %v8978 = vunpack.c.l.b16 %v8603
        %v8979 = vunpack.c.l.b16 %v8604
        %v8980 = vunpack.c.l.b16 %v8605
        %v8981 = vunpack.c.l.b16 %v8606
        %v8982 = vunpack.c.l.b16 %v8607
        %v8983 = vunpack.c.l.b16 %v8608
        %v8984 = vunpack.c.l.b16 %v8609
        %v8985 = vunpack.c.l.b16 %v8610
        %v8986 = vunpack.c.l.b16 %v8611
        %v8987 = vunpack.c.l.b16 %v8612
        %v8988 = vunpack.c.l.b16 %v8613
        %v8989 = vunpack.c.l.b16 %v8614
        %v8990 = vunpack.c.l.b16 %v8615
        %v8991 = vunpack.c.l.b16 %v8616
        %v8992 = vunpack.c.l.b16 %v8617
        %v8993 = vunpack.c.l.b16 %v8618
        %v8994 = vunpack.c.l.b16 %v8619
        %v8995 = vunpack.c.l.b16 %v8620
        %v8996 = vunpack.c.l.b16 %v8621
        %v8997 = vunpack.c.l.b16 %v8622
        %v8998 = vunpack.c.l.b16 %v8623
        %v8999 = vunpack.c.l.b16 %v8624
        %v9000 = vunpack.c.l.b16 %v8625
        %v9001 = vunpack.c.l.b16 %v8626
        %v9002 = vunpack.c.l.b16 %v8627
        %v9003 = vunpack.c.l.b16 %v8628
        %v9004 = vunpack.c.l.b16 %v8629
        %v9005 = vunpack.c.l.b16 %v8630
        %v9006 = vunpack.c.l.b16 %v8631
        %v9007 = vunpack.c.l.b16 %v8632
        %v9008 = vunpack.c.l.b16 %v8633
        %v9009 = vunpack.c.l.b16 %v8634
        %v9010 = vunpack.c.l.b16 %v8635
        %v9011 = vunpack.c.l.b16 %v8636
        %v9012 = vunpack.c.l.b16 %v8637
        %v9013 = vunpack.c.l.b16 %v8638
        %v9014 = vunpack.c.l.b16 %v8639
        %v9015 = vunpack.c.l.b16 %v8640
        %v9016 = vunpack.c.l.b16 %v8641
        %v9017 = vunpack.c.l.b16 %v8642
        %v9018 = vunpack.c.l.b16 %v8643
        %v9019 = vpack.c.b16 %v8940, %v8939
        %v9020 = vpack.c.b16 %v8942, %v8941
        %v9021 = vpack.c.b16 %v8944, %v8943
        %v9022 = vpack.c.b16 %v8946, %v8945
        %v9023 = vpack.c.b16 %v8948, %v8947
        %v9024 = vpack.c.b16 %v8950, %v8949
        %v9025 = vpack.c.b16 %v8952, %v8951
        %v9026 = vpack.c.b16 %v8954, %v8953
        %v9027 = vpack.c.b16 %v8956, %v8955
        %v9028 = vpack.c.b16 %v8958, %v8957
        %v9029 = vpack.c.b16 %v8960, %v8959
        %v9030 = vpack.c.b16 %v8962, %v8961
        %v9031 = vpack.c.b16 %v8964, %v8963
        %v9032 = vpack.c.b16 %v8966, %v8965
        %v9033 = vpack.c.b16 %v8968, %v8967
        %v9034 = vpack.c.b16 %v8970, %v8969
        %v9035 = vpack.c.b16 %v8972, %v8971
        %v9036 = vpack.c.b16 %v8974, %v8973
        %v9037 = vpack.c.b16 %v8976, %v8975
        %v9038 = vpack.c.b16 %v8978, %v8977
        %v9039 = vpack.c.b16 %v8980, %v8979
        %v9040 = vpack.c.b16 %v8982, %v8981
        %v9041 = vpack.c.b16 %v8984, %v8983
        %v9042 = vpack.c.b16 %v8986, %v8985
        %v9043 = vpack.c.b16 %v8988, %v8987
        %v9044 = vpack.c.b16 %v8990, %v8989
        %v9045 = vpack.c.b16 %v8992, %v8991
        %v9046 = vpack.c.b16 %v8994, %v8993
        %v9047 = vpack.c.b16 %v8996, %v8995
        %v9048 = vpack.c.b16 %v8998, %v8997
        %v9049 = vpack.c.b16 %v9000, %v8999
        %v9050 = vpack.c.b16 %v9002, %v9001
        %v9051 = vpack.c.b16 %v9004, %v9003
        %v9052 = vpack.c.b16 %v9006, %v9005
        %v9053 = vpack.c.b16 %v9008, %v9007
        %v9054 = vpack.c.b16 %v9010, %v9009
        %v9055 = vpack.c.b16 %v9012, %v9011
        %v9056 = vpack.c.b16 %v9014, %v9013
        %v9057 = vpack.c.b16 %v9016, %v9015
        %v9058 = vpack.c.b16 %v9018, %v9017
        %9099 = vmatprep.subr.bf16.mxu0 0
        %9100 = vmatpush1.bf16.msra.mxu0 %v9026
        %9101 = vmatprep.subr.bf16.mxu0 0
        %9102 = vmatpush1.bf16.msra.mxu0 %v9025
        %9103 = vmatprep.subr.bf16.mxu0 0
        %9104 = vmatpush1.bf16.msra.mxu0 %v9024
        %9105 = vmatprep.subr.bf16.mxu0 0
        %9106 = vmatpush1.bf16.msra.mxu0 %v9023
        %9107 = vmatprep.subr.bf16.mxu0 0
        %9108 = vmatpush1.bf16.msra.mxu0 %v9022
        %9109 = vmatprep.subr.bf16.mxu0 0
        %9110 = vmatpush1.bf16.msra.mxu0 %v9021
        %9111 = vmatprep.subr.bf16.mxu0 0
        %9112 = vmatpush1.bf16.msra.mxu0 %v9020
        %9113 = vmatprep.subr.bf16.mxu0 0
        %9114 = vmatpush1.bf16.msra.mxu0 %v9019
        %9115 = vmatprep.subr.bf16.mxu0 0
        %9116 = vmatpush2.bf16.msra.mxu0 %v9034
        %9117 = vmatprep.subr.bf16.mxu0 0
        %9118 = vmatpush2.bf16.msra.mxu0 %v9033
        %9119 = vmatprep.subr.bf16.mxu0 0
        %9120 = vmatpush2.bf16.msra.mxu0 %v9032
        %9121 = vmatprep.subr.bf16.mxu0 0
        %9122 = vmatpush2.bf16.msra.mxu0 %v9031
        %9123 = vmatprep.subr.bf16.mxu0 0
        %9124 = vmatpush2.bf16.msra.mxu0 %v9030
        %9125 = vmatprep.subr.bf16.mxu0 0
        %9126 = vmatpush2.bf16.msra.mxu0 %v9029
        %9127 = vmatprep.subr.bf16.mxu0 0
        %9128 = vmatpush2.bf16.msra.mxu0 %v9028
        %9129 = vmatprep.subr.bf16.mxu0 0
        %9130 = vmatpush2.bf16.msra.mxu0 %v9027
        %9131 = vmatprep.mubr.bf16.mxu0 %v8780
        %9132 = vmatmul.mubr.bf16.gmra.mxu0 %v8779
        %v9133 = vpop.f32.mrf.mxu0
        %v9134 = vadd.f32 %v8649, %v9133
        %v9135 = vpop.f32.mrf.mxu0
        %v9136 = vpop.f32.mrf.mxu0
        %v9137 = vadd.f32 %v8649, %v9136
        %v9138 = vpop.f32.mrf.mxu0
        %9139 = vmatprep.mubr.bf16.mxu0 %v8785
        %9140 = vmatmul.mubr.bf16.gmra.mxu0 %v8784
        %v9141 = vpop.f32.mrf.mxu0
        %v9142 = vadd.f32 %v8649, %v9141
        %v9143 = vpop.f32.mrf.mxu0
        %v9144 = vpop.f32.mrf.mxu0
        %v9145 = vadd.f32 %v8649, %v9144
        %v9146 = vpop.f32.mrf.mxu0
        %9147 = vmatprep.mubr.bf16.mxu0 %v8790
        %9148 = vmatmul.mubr.bf16.gmra.mxu0 %v8789
        %v9149 = vpop.f32.mrf.mxu0
        %v9150 = vadd.f32 %v8649, %v9149
        %v9151 = vpop.f32.mrf.mxu0
        %v9152 = vpop.f32.mrf.mxu0
        %v9153 = vadd.f32 %v8649, %v9152
        %v9154 = vpop.f32.mrf.mxu0
        %9155 = vmatprep.mubr.bf16.mxu0 %v8795
        %9156 = vmatmul.mubr.bf16.gmra.mxu0 %v8794
        %v9157 = vpop.f32.mrf.mxu0
        %v9158 = vadd.f32 %v8649, %v9157
        %v9159 = vpop.f32.mrf.mxu0
        %v9160 = vpop.f32.mrf.mxu0
        %v9161 = vadd.f32 %v8649, %v9160
        %v9162 = vpop.f32.mrf.mxu0
        %9163 = vmatprep.mubr.bf16.mxu0 %v8800
        %9164 = vmatmul.mubr.bf16.gmra.mxu0 %v8799
        %v9165 = vpop.f32.mrf.mxu0
        %v9166 = vadd.f32 %v8649, %v9165
        %v9167 = vpop.f32.mrf.mxu0
        %v9168 = vpop.f32.mrf.mxu0
        %v9169 = vadd.f32 %v8649, %v9168
        %v9170 = vpop.f32.mrf.mxu0
        %9171 = vmatprep.mubr.bf16.mxu0 %v8805
        %9172 = vmatmul.mubr.bf16.gmra.mxu0 %v8804
        %v9173 = vpop.f32.mrf.mxu0
        %v9174 = vadd.f32 %v8649, %v9173
        %v9175 = vpop.f32.mrf.mxu0
        %v9176 = vpop.f32.mrf.mxu0
        %v9177 = vadd.f32 %v8649, %v9176
        %v9178 = vpop.f32.mrf.mxu0
        %9179 = vmatprep.mubr.bf16.mxu0 %v8810
        %9180 = vmatmul.mubr.bf16.gmra.mxu0 %v8809
        %v9181 = vpop.f32.mrf.mxu0
        %v9182 = vadd.f32 %v8649, %v9181
        %v9183 = vpop.f32.mrf.mxu0
        %v9184 = vpop.f32.mrf.mxu0
        %v9185 = vadd.f32 %v8649, %v9184
        %v9186 = vpop.f32.mrf.mxu0
        %9187 = vmatprep.mubr.bf16.mxu0 %v8815
        %9188 = vmatmul.mubr.bf16.gmra.mxu0 %v8814
        %v9189 = vpop.f32.mrf.mxu0
        %v9190 = vadd.f32 %v8649, %v9189
        %v9191 = vpop.f32.mrf.mxu0
        %v9192 = vpop.f32.mrf.mxu0
        %v9193 = vadd.f32 %v8649, %v9192
        %v9194 = vpop.f32.mrf.mxu0
        %9195 = vdwg.mxu0
        %9196 = vmatprep.subr.bf16.mxu0 0
        %9197 = vmatpush1.bf16.msra.mxu0 %v9042
        %9198 = vmatprep.subr.bf16.mxu0 0
        %9199 = vmatpush1.bf16.msra.mxu0 %v9041
        %9200 = vmatprep.subr.bf16.mxu0 0
        %9201 = vmatpush1.bf16.msra.mxu0 %v9040
        %9202 = vmatprep.subr.bf16.mxu0 0
        %9203 = vmatpush1.bf16.msra.mxu0 %v9039
        %9204 = vmatprep.subr.bf16.mxu0 0
        %9205 = vmatpush1.bf16.msra.mxu0 %v9038
        %9206 = vmatprep.subr.bf16.mxu0 0
        %9207 = vmatpush1.bf16.msra.mxu0 %v9037
        %9208 = vmatprep.subr.bf16.mxu0 0
        %9209 = vmatpush1.bf16.msra.mxu0 %v9036
        %9210 = vmatprep.subr.bf16.mxu0 0
        %9211 = vmatpush1.bf16.msra.mxu0 %v9035
        %9212 = vmatprep.subr.bf16.mxu0 0
        %9213 = vmatpush2.bf16.msra.mxu0 %v9050
        %9214 = vmatprep.subr.bf16.mxu0 0
        %9215 = vmatpush2.bf16.msra.mxu0 %v9049
        %9216 = vmatprep.subr.bf16.mxu0 0
        %9217 = vmatpush2.bf16.msra.mxu0 %v9048
        %9218 = vmatprep.subr.bf16.mxu0 0
        %9219 = vmatpush2.bf16.msra.mxu0 %v9047
        %9220 = vmatprep.subr.bf16.mxu0 0
        %9221 = vmatpush2.bf16.msra.mxu0 %v9046
        %9222 = vmatprep.subr.bf16.mxu0 0
        %9223 = vmatpush2.bf16.msra.mxu0 %v9045
        %9224 = vmatprep.subr.bf16.mxu0 0
        %9225 = vmatpush2.bf16.msra.mxu0 %v9044
        %9226 = vmatprep.subr.bf16.mxu0 0
        %9227 = vmatpush2.bf16.msra.mxu0 %v9043
        %9228 = vmatprep.mubr.bf16.mxu0 %v8782
        %9229 = vmatmul.mubr.bf16.gmra.mxu0 %v8781
        %v9230 = vpop.f32.mrf.mxu0
        %v9231 = vadd.f32 %v9134, %v9230
        %v9232 = vpop.f32.mrf.mxu0
        %v9233 = vpop.f32.mrf.mxu0
        %v9234 = vadd.f32 %v9137, %v9233
        %v9235 = vpop.f32.mrf.mxu0
        %9236 = vmatprep.mubr.bf16.mxu0 %v8787
        %9237 = vmatmul.mubr.bf16.gmra.mxu0 %v8786
        %v9238 = vpop.f32.mrf.mxu0
        %v9239 = vadd.f32 %v9142, %v9238
        %v9240 = vpop.f32.mrf.mxu0
        %v9241 = vpop.f32.mrf.mxu0
        %v9242 = vadd.f32 %v9145, %v9241
        %v9243 = vpop.f32.mrf.mxu0
        %9244 = vmatprep.mubr.bf16.mxu0 %v8792
        %9245 = vmatmul.mubr.bf16.gmra.mxu0 %v8791
        %v9246 = vpop.f32.mrf.mxu0
        %v9247 = vadd.f32 %v9150, %v9246
        %v9248 = vpop.f32.mrf.mxu0
        %v9249 = vpop.f32.mrf.mxu0
        %v9250 = vadd.f32 %v9153, %v9249
        %v9251 = vpop.f32.mrf.mxu0
        %9252 = vmatprep.mubr.bf16.mxu0 %v8797
        %9253 = vmatmul.mubr.bf16.gmra.mxu0 %v8796
        %v9254 = vpop.f32.mrf.mxu0
        %v9255 = vadd.f32 %v9158, %v9254
        %v9256 = vpop.f32.mrf.mxu0
        %v9257 = vpop.f32.mrf.mxu0
        %v9258 = vadd.f32 %v9161, %v9257
        %v9259 = vpop.f32.mrf.mxu0
        %9260 = vmatprep.mubr.bf16.mxu0 %v8802
        %9261 = vmatmul.mubr.bf16.gmra.mxu0 %v8801
        %v9262 = vpop.f32.mrf.mxu0
        %v9263 = vadd.f32 %v9166, %v9262
        %v9264 = vpop.f32.mrf.mxu0
        %v9265 = vpop.f32.mrf.mxu0
        %v9266 = vadd.f32 %v9169, %v9265
        %v9267 = vpop.f32.mrf.mxu0
        %9268 = vmatprep.mubr.bf16.mxu0 %v8807
        %9269 = vmatmul.mubr.bf16.gmra.mxu0 %v8806
        %v9270 = vpop.f32.mrf.mxu0
        %v9271 = vadd.f32 %v9174, %v9270
        %v9272 = vpop.f32.mrf.mxu0
        %v9273 = vpop.f32.mrf.mxu0
        %v9274 = vadd.f32 %v9177, %v9273
        %v9275 = vpop.f32.mrf.mxu0
        %9276 = vmatprep.mubr.bf16.mxu0 %v8812
        %9277 = vmatmul.mubr.bf16.gmra.mxu0 %v8811
        %v9278 = vpop.f32.mrf.mxu0
        %v9279 = vadd.f32 %v9182, %v9278
        %v9280 = vpop.f32.mrf.mxu0
        %v9281 = vpop.f32.mrf.mxu0
        %v9282 = vadd.f32 %v9185, %v9281
        %v9283 = vpop.f32.mrf.mxu0
        %9284 = vmatprep.mubr.bf16.mxu0 %v8817
        %9285 = vmatmul.mubr.bf16.gmra.mxu0 %v8816
        %v9286 = vpop.f32.mrf.mxu0
        %v9287 = vadd.f32 %v9190, %v9286
        %v9288 = vpop.f32.mrf.mxu0
        %v9289 = vpop.f32.mrf.mxu0
        %v9290 = vadd.f32 %v9193, %v9289
        %v9291 = vpop.f32.mrf.mxu0
        %9292 = vdwg.mxu0
        %9293 = vmatprep.subr.bf16.mxu0 0
        %9294 = vmatpush1.bf16.msra.mxu0 %v9058
        %9295 = vmatprep.subr.bf16.mxu0 0
        %9296 = vmatpush1.bf16.msra.mxu0 %v9057
        %9297 = vmatprep.subr.bf16.mxu0 0
        %9298 = vmatpush1.bf16.msra.mxu0 %v9056
        %9299 = vmatprep.subr.bf16.mxu0 0
        %9300 = vmatpush1.bf16.msra.mxu0 %v9055
        %9301 = vmatprep.subr.bf16.mxu0 0
        %9302 = vmatpush1.bf16.msra.mxu0 %v9054
        %9303 = vmatprep.subr.bf16.mxu0 0
        %9304 = vmatpush1.bf16.msra.mxu0 %v9053
        %9305 = vmatprep.subr.bf16.mxu0 0
        %9306 = vmatpush1.bf16.msra.mxu0 %v9052
        %9307 = vmatprep.subr.bf16.mxu0 0
        %9308 = vmatpush1.bf16.msra.mxu0 %v9051
        %9309 = vmatprep.subr.bf16.mxu0 0
        %9310 = vmatpush2.bf16.msra.mxu0 0
        %9311 = vmatprep.subr.bf16.mxu0 0
        %9312 = vmatpush2.bf16.msra.mxu0 0
        %9313 = vmatprep.subr.bf16.mxu0 0
        %9314 = vmatpush2.bf16.msra.mxu0 0
        %9315 = vmatprep.subr.bf16.mxu0 0
        %9316 = vmatpush2.bf16.msra.mxu0 0
        %9317 = vmatprep.subr.bf16.mxu0 0
        %9318 = vmatpush2.bf16.msra.mxu0 0
        %9319 = vmatprep.subr.bf16.mxu0 0
        %9320 = vmatpush2.bf16.msra.mxu0 0
        %9321 = vmatprep.subr.bf16.mxu0 0
        %9322 = vmatpush2.bf16.msra.mxu0 0
        %9323 = vmatprep.subr.bf16.mxu0 0
        %9324 = vmatpush2.bf16.msra.mxu0 0
        %9325 = vmatprep.mubr.bf16.mxu0 0
        %9326 = vmatmul.mubr.bf16.gmra.mxu0 %v8783
        %v9327 = vpop.f32.mrf.mxu0
        %v9328 = vadd.f32 %v9231, %v9327
        %v9329 = vpop.f32.mrf.mxu0
        %v9330 = vpop.f32.mrf.mxu0
        %v9331 = vadd.f32 %v9234, %v9330
        %v9332 = vpop.f32.mrf.mxu0
        %9333 = vmatprep.mubr.bf16.mxu0 0
        %9334 = vmatmul.mubr.bf16.gmra.mxu0 %v8788
        %v9335 = vpop.f32.mrf.mxu0
        %v9336 = vadd.f32 %v9239, %v9335
        %v9337 = vpop.f32.mrf.mxu0
        %v9338 = vpop.f32.mrf.mxu0
        %v9339 = vadd.f32 %v9242, %v9338
        %v9340 = vpop.f32.mrf.mxu0
        %9341 = vmatprep.mubr.bf16.mxu0 0
        %9342 = vmatmul.mubr.bf16.gmra.mxu0 %v8793
        %v9343 = vpop.f32.mrf.mxu0
        %v9344 = vadd.f32 %v9247, %v9343
        %v9345 = vpop.f32.mrf.mxu0
        %v9346 = vpop.f32.mrf.mxu0
        %v9347 = vadd.f32 %v9250, %v9346
        %v9348 = vpop.f32.mrf.mxu0
        %9349 = vmatprep.mubr.bf16.mxu0 0
        %9350 = vmatmul.mubr.bf16.gmra.mxu0 %v8798
        %v9351 = vpop.f32.mrf.mxu0
        %v9352 = vadd.f32 %v9255, %v9351
        %v9353 = vpop.f32.mrf.mxu0
        %v9354 = vpop.f32.mrf.mxu0
        %v9355 = vadd.f32 %v9258, %v9354
        %v9356 = vpop.f32.mrf.mxu0
        %9357 = vmatprep.mubr.bf16.mxu0 0
        %9358 = vmatmul.mubr.bf16.gmra.mxu0 %v8803
        %v9359 = vpop.f32.mrf.mxu0
        %v9360 = vadd.f32 %v9263, %v9359
        %v9361 = vpop.f32.mrf.mxu0
        %v9362 = vpop.f32.mrf.mxu0
        %v9363 = vadd.f32 %v9266, %v9362
        %v9364 = vpop.f32.mrf.mxu0
        %9365 = vmatprep.mubr.bf16.mxu0 0
        %9366 = vmatmul.mubr.bf16.gmra.mxu0 %v8808
        %v9367 = vpop.f32.mrf.mxu0
        %v9368 = vadd.f32 %v9271, %v9367
        %v9369 = vpop.f32.mrf.mxu0
        %v9370 = vpop.f32.mrf.mxu0
        %v9371 = vadd.f32 %v9274, %v9370
        %v9372 = vpop.f32.mrf.mxu0
        %9373 = vmatprep.mubr.bf16.mxu0 0
        %9374 = vmatmul.mubr.bf16.gmra.mxu0 %v8813
        %v9375 = vpop.f32.mrf.mxu0
        %v9376 = vadd.f32 %v9279, %v9375
        %v9377 = vpop.f32.mrf.mxu0
        %v9378 = vpop.f32.mrf.mxu0
        %v9379 = vadd.f32 %v9282, %v9378
        %v9380 = vpop.f32.mrf.mxu0
        %9381 = vmatprep.mubr.bf16.mxu0 0
        %9382 = vmatmul.mubr.bf16.gmra.mxu0 %v8818
        %v9383 = vpop.f32.mrf.mxu0
        %v9384 = vadd.f32 %v9287, %v9383
        %v9385 = vpop.f32.mrf.mxu0
        %v9386 = vpop.f32.mrf.mxu0
        %v9387 = vadd.f32 %v9290, %v9386
        %v9388 = vpop.f32.mrf.mxu0
        %9389 = vdwg.mxu0
        %vm9390 = vcmask 523264
        %9391 = vst.msk [vmem:[%s285] sm:$0xff] %vm9390, %v9328
        %9392 = vst.msk [vmem:[%s285 + $0x8] sm:$0xff] %vm9390, %v9331
        %9393 = vst.msk [vmem:[%s285 + $0x10] sm:$0xff] %vm9390, %v9336
        %9394 = vst.msk [vmem:[%s285 + $0x18] sm:$0xff] %vm9390, %v9339
        %9395 = vst.msk [vmem:[%s285 + $0x20] sm:$0xff] %vm9390, %v9344
        %9396 = vst.msk [vmem:[%s285 + $0x28] sm:$0xff] %vm9390, %v9347
        %9397 = vst.msk [vmem:[%s285 + $0x30] sm:$0xff] %vm9390, %v9352
        %9398 = vst.msk [vmem:[%s285 + $0x38] sm:$0xff] %vm9390, %v9355
        %9399 = vst.msk [vmem:[%s285 + $0x40] sm:$0xff] %vm9390, %v9360
        %9400 = vst.msk [vmem:[%s285 + $0x48] sm:$0xff] %vm9390, %v9363
        %9401 = vst.msk [vmem:[%s285 + $0x50] sm:$0xff] %vm9390, %v9368
        %9402 = vst.msk [vmem:[%s285 + $0x58] sm:$0xff] %vm9390, %v9371
        %9403 = vst.msk [vmem:[%s285 + $0x60] sm:$0xff] %vm9390, %v9376
        %9404 = vst.msk [vmem:[%s285 + $0x68] sm:$0xff] %vm9390, %v9379
        %9405 = vst.msk [vmem:[%s285 + $0x70] sm:$0xff] %vm9390, %v9384
        %9406 = vst.msk [vmem:[%s285 + $0x78] sm:$0xff] %vm9390, %v9387
        %s9407 = sand.u32 %s195, 1
        %s9408 = scalar_lea.sflag [#allocation7], %s9407
        %s9409 = sand.u32 %s195, 1
        %s9410 = smul.addr %s9409, 128
        %s9411 = scalar_lea.vmem [#allocation6], %s9410
        // Predicated region
        $region65: #{feature_extractor_nhwc.1} parent=47 // pred_check
          %p9412 = pneg %p205
        $region66: #{feature_extractor_nhwc.1} parent=47 // pred_check_branch
          %9414 = sbr.rel (%p9412) target = $region68
        $region67: #{feature_extractor_nhwc.1} parent=47 // pred_region
          %s9415 = smul.u32 8, %s26
          %s9417 = ssub.s32 2048, 2048
          %9418 = vsyncadd %s9408, %s9417
          %s9419 = smul.addr %s9415, 2
          %s9420 = smul.addr %s25, 32
          %s9421 = sadd.s32 %s9419, %s9420
          %s9422 = smul.addr %s9421, 128
          %s9423 = scalar_lea.hbm %s7, %s9422
          %s9424 = sshll.u32 %s9411, 4
          %s9425 = int_to_ptr.vmem [resolvable:$true] %s9424
          %9430 = dma.vmem_to_hbm [thread:$0]  %s9425, 2048, %s9423, %s9408, 128, 128, 8
        $region68: #{feature_extractor_nhwc.1} parent=47 // pred_fallthru
          _
      $region48: #{feature_extractor_nhwc.1} parent=5 // pred_fallthru
        _
      %p9431 = scmp.le.s32.totalorder 2, %s16
      // Predicated region
      $region69: #{feature_extractor_nhwc.1} parent=5 // pred_check
        %p9432 = pneg %p9431
      $region70: #{feature_extractor_nhwc.1} parent=5 // pred_check_branch
        %9434 = sbr.rel (%p9432) target = $region72
      $region71: #{feature_extractor_nhwc.1} parent=5 // pred_region
        %s9435 = ssub.s32 %s16, 2
        // Predicated region
        $region73: #{feature_extractor_nhwc.1} parent=71 // pred_check
          %p9436 = pneg %p211
        $region74: #{feature_extractor_nhwc.1} parent=71 // pred_check_branch
          %9438 = sbr.rel (%p9436) target = $region76
        $region75: #{feature_extractor_nhwc.1} parent=71 // pred_region
          %s9439 = sand.u32 %s196, 1
          %s9440 = scalar_lea.sflag [#allocation7], %s9439
          %s9441 = sand.u32 %s196, 1
          %s9442 = smul.addr %s9441, 128
          %s9443 = scalar_lea.vmem [#allocation6], %s9442
          %9444 = dma.done %s9440, 2048
        $region76: #{feature_extractor_nhwc.1} parent=71 // pred_fallthru
          _
      $region72: #{feature_extractor_nhwc.1} parent=5 // pred_fallthru
        _
    $region6: #{feature_extractor_nhwc.1} parent=1 // loop_footer
      %s20 = sadd.s32 1, %s16
    $region7: #{feature_extractor_nhwc.1} parent=1 // loop_footer_branch
      %15 = sbr.rel target = $region3
    $region8: #{feature_extractor_nhwc.1} parent=1 // loop_exit
      _
    %9445 = vsyncpa [#allocation7], 1
    %s9446 = scalar_lea.sflag [#allocation7], 1
    %9447 = vsyncpa %s9446, 1

</llo_original>
